<compile_context>
chip_gen: v7x
topology: tpu7x:2x2x1
jax: 0.10.0
libtpu: 0.0.40
codegen_flags: <defaults>
</compile_context>

<pallas_src>
import jax
import jax.numpy as jnp
from jax.experimental import pallas as pl
from jax.experimental.pallas import tpu as pltpu

LEAK = 0.1


# ----------------------------------------------------------------------------
# SpectralNorm (one power iteration, as in the torch module) -- parameter prep
# ----------------------------------------------------------------------------
def l2normalize(v, eps=1e-12):
    return v / (jnp.linalg.norm(v) + eps)


def spectral_norm_weight(w, u):
    # TODO(synk): the torch module persists the updated `u` buffer in-place
    # across forwards; this stateless version matches a single forward exactly.
    h = w.shape[0]
    wm = w.reshape(h, -1)
    v = l2normalize(wm.T @ u)
    u_new = l2normalize(wm @ v)
    sigma = jnp.dot(u_new, wm @ v)
    return w / sigma


# ----------------------------------------------------------------------------
# Weight repacking: fold the kw/channel part of the 4x4 stride-2 conv into a
# block-banded matrix so the in-kernel conv is a lane-dense matmul per kh.
#   bigw[kh, s*C + c, wo*D + d] = w[d, c, kh, s - 2*wo]   (0 <= s-2*wo < 4)
# ----------------------------------------------------------------------------
def _conv_bigw(w, wp, wo):
    D, C, KH, KW = w.shape
    s_idx = jnp.arange(wp)[:, None, None]
    wo_idx = jnp.arange(wo)[None, :, None]
    kw_idx = jnp.arange(KW)[None, None, :]
    mask = (s_idx == 2 * wo_idx + kw_idx).astype(jnp.float32)     # (Wp, Wo, KW)
    wt = jnp.transpose(w, (2, 3, 1, 0))                           # (KH, KW, C, D)
    big = jnp.einsum("swk,hkcd->hscwd", mask, wt)                 # (KH, Wp, C, Wo, D)
    return big.reshape(KH, wp * C, wo * D)


# ----------------------------------------------------------------------------
# Fused Discriminator forward (single Pallas kernel, grid over batch)
# ----------------------------------------------------------------------------
def make_discriminator_forward(ndf=8, image_size=64, batch=2):
    assert image_size == 64, "module spec: l4 branch requires image_size == 64"
    # (input spatial H, in channels C, out channels D) for the 4 strided convs
    layers = [
        (image_size, 3, ndf),
        (image_size // 2, ndf, ndf * 2),
        (image_size // 4, ndf * 2, ndf * 4),
        (image_size // 8, ndf * 4, ndf * 8),
    ]
    H1, C1, _ = layers[0]
    HP1 = H1 + 2
    ho = [h // 2 for (h, _, _) in layers]        # conv output spatial sizes
    c_attn1 = ndf * 4                            # channels at attn1 (after l3)
    c_attn2 = ndf * 8                            # channels at attn2 (after l4)
    n_attn2 = ho[3] * ho[3]                      # tokens at attn2 (= 16)

    def kernel(x_ref,
               w1_ref, b1_ref, w2_ref, b2_ref, w3_ref, b3_ref, w4_ref, b4_ref,
               wq1_ref, bq1_ref, wk1_ref, bk1_ref, wv1_ref, bv1_ref, g1_ref,
               wq2_ref, bq2_ref, wk2_ref, bk2_ref, wv2_ref, bv2_ref, g2_ref,
               wl_ref, bl_ref,
               o_ref,
               pad2_ref, pad3_ref, pad4_ref, tok1_ref, tok2_ref):

        def row_sel(n_out, n_pad, kh):
            # one-hot (n_out, n_pad) matrix selecting padded rows kh + 2*i
            r = jax.lax.broadcasted_iota(jnp.int32, (n_out, n_pad), 1)
            h = jax.lax.broadcasted_iota(jnp.int32, (n_out, n_pad), 0)
            return jnp.where(r == 2 * h + kh, 1.0, 0.0).astype(jnp.bfloat16)

        def conv(x2, w_ref, b_ref, n_out, n_pad):
            # x2: (Hp, Wp*C) padded activation; out: (Ho, Wo*D) + bias + LeakyReLU
            xb = x2.astype(jnp.bfloat16)
            wod = w_ref.shape[2]
            acc = jnp.zeros((n_out, wod), jnp.float32)
            for kh in range(4):
                rows = jnp.dot(row_sel(n_out, n_pad, kh), xb,
                               preferred_element_type=jnp.float32)
                acc = acc + jnp.dot(rows.astype(jnp.bfloat16), w_ref[kh],
                                    preferred_element_type=jnp.float32)
            out = acc + b_ref[...]
            return jnp.where(out >= 0, out, LEAK * out)

        def pad_store(pad_ref, value, h, c):
            # zero border + write interior of the (Hp, Wp*C) padded buffer
            pad_ref[...] = jnp.zeros(pad_ref.shape, jnp.float32)
            pad_ref[1:h + 1, c:(h + 1) * c] = value

        def to_tokens(x_sp, tok_ref, wo_n, c):
            # (Ho, Wo*C) spatial-row form -> (Ho*Wo, C) token-major form
            for wo in range(wo_n):
                tok_ref[:, wo, :] = x_sp[:, wo * c:(wo + 1) * c]
            return tok_ref[...].reshape(x_sp.shape[0] * wo_n, c)

        def attention(x_tok, wq_ref, bq_ref, wk_ref, bk_ref, wv_ref, bv_ref, g_ref):
            xb = x_tok.astype(jnp.bfloat16)
            q = jnp.dot(xb, wq_ref[...], preferred_element_type=jnp.float32) + bq_ref[...]
            k = jnp.dot(xb, wk_ref[...], preferred_element_type=jnp.float32) + bk_ref[...]
            v = jnp.dot(xb, wv_ref[...], preferred_element_type=jnp.float32) + bv_ref[...]
            e = jax.lax.dot_general(q.astype(jnp.bfloat16), k.astype(jnp.bfloat16),
                                    (((1,), (1,)), ((), ())),
                                    preferred_element_type=jnp.float32)   # (N, N)
            m = jnp.max(e, axis=-1, keepdims=True)
            p = jnp.exp(e - m)
            s = jnp.sum(p, axis=-1, keepdims=True)
            a = p * pl.reciprocal(s, approx=True)
            o = jnp.dot(a.astype(jnp.bfloat16), v.astype(jnp.bfloat16),
                        preferred_element_type=jnp.float32)
            return g_ref[0, 0] * o + x_tok

        # ---- l1 .. l3 : SpectralNorm(Conv 4x4 / s2 / p1) + LeakyReLU(0.1) ----
        out1 = conv(x_ref[0], w1_ref, b1_ref, ho[0], H1 + 2)                 # (32, 256)
        pad_store(pad2_ref, out1, layers[1][0], layers[1][1])
        out2 = conv(pad2_ref[...], w2_ref, b2_ref, ho[1], layers[1][0] + 2)  # (16, 256)
        pad_store(pad3_ref, out2, layers[2][0], layers[2][1])
        out3 = conv(pad3_ref[...], w3_ref, b3_ref, ho[2], layers[2][0] + 2)  # (8, 256)

        # ---- attn1 ----
        xt1 = to_tokens(out3, tok1_ref, ho[2], c_attn1)                      # (64, 32)
        y1 = attention(xt1, wq1_ref, bq1_ref, wk1_ref, bk1_ref,
                       wv1_ref, bv1_ref, g1_ref)                             # (64, 32)

        # ---- l4 ----
        H4, C4, _ = layers[3]
        pad4_ref[...] = jnp.zeros(pad4_ref.shape, jnp.float32)
        y1_3d = y1.reshape(ho[2], ho[2], c_attn1)                            # (8, 8, 32)
        for wo in range(ho[2]):
            pad4_ref[1:H4 + 1, C4 * (wo + 1):C4 * (wo + 2)] = y1_3d[:, wo, :]
        out4 = conv(pad4_ref[...], w4_ref, b4_ref, ho[3], H4 + 2)            # (4, 256)

        # ---- attn2 ----
        xt2 = to_tokens(out4, tok2_ref, ho[3], c_attn2)                      # (16, 64)
        y2 = attention(xt2, wq2_ref, bq2_ref, wk2_ref, bk2_ref,
                       wv2_ref, bv2_ref, g2_ref)                             # (16, 64)

        # ---- last: Conv2d(curr_dim, 1, 4) on the 4x4 map == full reduction ----
        prod = y2 * wl_ref[...]
        t = jnp.sum(prod, axis=1, keepdims=True)
        t = jnp.sum(t, axis=0, keepdims=True)                                # (1, 1)
        o_ref[0] = jnp.zeros((8, 128), jnp.float32) + (t + bl_ref[...])

    # ------------------------- specs & pallas_call ---------------------------
    def full_spec(shape):
        return pl.BlockSpec(shape, lambda b, _s=shape: (0,) * len(_s))

    conv_w_shapes = [(4, (h + 2) * c, (h // 2) * d) for (h, c, d) in layers]
    conv_b_shapes = [(1, (h // 2) * d) for (h, c, d) in layers]

    in_specs = [pl.BlockSpec((1, HP1, HP1 * C1), lambda b: (b, 0, 0))]
    for ws, bs in zip(conv_w_shapes, conv_b_shapes):
        in_specs += [full_spec(ws), full_spec(bs)]
    for c in (c_attn1, c_attn2):
        in_specs += [full_spec((c, c // 8)), full_spec((1, c // 8)),
                     full_spec((c, c // 8)), full_spec((1, c // 8)),
                     full_spec((c, c)), full_spec((1, c)),
                     full_spec((1, 1))]
    in_specs += [full_spec((n_attn2, c_attn2)), full_spec((1, 1))]

    scratch = [
        pltpu.VMEM((layers[1][0] + 2, (layers[1][0] + 2) * layers[1][1]), jnp.float32),
        pltpu.VMEM((layers[2][0] + 2, (layers[2][0] + 2) * layers[2][1]), jnp.float32),
        pltpu.VMEM((layers[3][0] + 2, (layers[3][0] + 2) * layers[3][1]), jnp.float32),
        pltpu.VMEM((ho[2], ho[2], c_attn1), jnp.float32),
        pltpu.VMEM((ho[3], ho[3], c_attn2), jnp.float32),
    ]

    call = pl.pallas_call(
        kernel,
        out_shape=jax.ShapeDtypeStruct((batch, 8, 128), jnp.float32),
        grid=(batch,),
        in_specs=in_specs,
        out_specs=pl.BlockSpec((1, 8, 128), lambda b: (b, 0, 0)),
        scratch_shapes=scratch,
        compiler_params=pltpu.CompilerParams(
            dimension_semantics=("parallel",),
            vmem_limit_bytes=32 * 1024 * 1024),
    )

    def forward(params, x_nchw):
        B = x_nchw.shape[0]
        # Network input: NCHW -> NHWC, pad spatially by 1, flatten rows to Wp*3.
        x_nhwc = jnp.transpose(x_nchw, (0, 2, 3, 1))
        xpad = jnp.pad(x_nhwc, ((0, 0), (1, 1), (1, 1), (0, 0)))
        x2 = xpad.reshape(B, HP1, HP1 * C1)

        ins = [x2]
        for (h, c, d), name in zip(layers, ("l1", "l2", "l3", "l4")):
            p = params[name]
            w = spectral_norm_weight(p["w"], p["u"])
            ins.append(_conv_bigw(w, h + 2, h // 2).astype(jnp.bfloat16))
            ins.append(jnp.tile(p["b"], h // 2).reshape(1, -1).astype(jnp.float32))
        for name in ("attn1", "attn2"):
            p = params[name]
            ins += [p["wq"].T.astype(jnp.bfloat16), p["bq"].reshape(1, -1),
                    p["wk"].T.astype(jnp.bfloat16), p["bk"].reshape(1, -1),
                    p["wv"].T.astype(jnp.bfloat16), p["bv"].reshape(1, -1),
                    p["gamma"].reshape(1, 1)]
        wl = jnp.transpose(params["last"]["w"][0], (1, 2, 0)).reshape(n_attn2, c_attn2)
        ins += [wl, params["last"]["b"].reshape(1, 1)]

        out = call(*ins)
        return out[:, 0, 0]          # matches torch .squeeze() for batch >= 2

    return forward


# ----------------------------------------------------------------------------
# Parameter construction (deterministic, matches the module's __init__ shapes)
# ----------------------------------------------------------------------------
def init_params(key, ndf=8):
    ks = iter(jax.random.split(key, 64))

    def nrm(shape, scale=0.1):
        return scale * jax.random.normal(next(ks), shape, jnp.float32)

    def sn_conv(cin, cout, k=4):
        return {
            "w": nrm((cout, cin, k, k)),
            "b": nrm((cout,), 0.01),
            "u": l2normalize(jax.random.normal(next(ks), (cout,), jnp.float32)),
        }

    def attn(in_dim):
        c8 = in_dim // 8
        return {
            "wq": nrm((c8, in_dim)), "bq": nrm((c8,), 0.01),
            "wk": nrm((c8, in_dim)), "bk": nrm((c8,), 0.01),
            "wv": nrm((in_dim, in_dim)), "bv": nrm((in_dim,), 0.01),
            "gamma": jnp.zeros((1,), jnp.float32),     # torch.zeros(1)
        }

    return {
        "l1": sn_conv(3, ndf),
        "l2": sn_conv(ndf, ndf * 2),
        "l3": sn_conv(ndf * 2, ndf * 4),
        "l4": sn_conv(ndf * 4, ndf * 8),
        "last": {"w": nrm((1, ndf * 8, 4, 4)), "b": nrm((1,), 0.01)},
        "attn1": attn(ndf * 4),
        "attn2": attn(ndf * 8),
    }


# ----------------------------------------------------------------------------
# Pure-JAX reference (mirrors the PyTorch module) for a numeric sanity check
# ----------------------------------------------------------------------------
def reference_forward(params, x):
    leak = lambda t: jnp.where(t >= 0, t, LEAK * t)

    def conv(x, w, b, stride, pad):
        y = jax.lax.conv_general_dilated(
            x, w, (stride, stride), [(pad, pad), (pad, pad)],
            dimension_numbers=("NCHW", "OIHW", "NCHW"))
        return y + b.reshape(1, -1, 1, 1)

    def sn_conv(x, p):
        return leak(conv(x, spectral_norm_weight(p["w"], p["u"]), p["b"], 2, 1))

    def attn(x, p):
        B, C, H, W = x.shape
        xf = x.reshape(B, C, H * W)
        q = jnp.einsum("oc,bcn->bon", p["wq"], xf) + p["bq"][None, :, None]
        k = jnp.einsum("oc,bcn->bon", p["wk"], xf) + p["bk"][None, :, None]
        v = jnp.einsum("oc,bcn->bon", p["wv"], xf) + p["bv"][None, :, None]
        energy = jnp.einsum("bcn,bcm->bnm", q, k)
        a = jax.nn.softmax(energy, axis=-1)
        out = jnp.einsum("bcm,bnm->bcn", v, a)
        out = p["gamma"][0] * out + xf
        return out.reshape(B, C, H, W)

    out = sn_conv(x, params["l1"])
    out = sn_conv(out, params["l2"])
    out = sn_conv(out, params["l3"])
    out = attn(out, params["attn1"])
    out = sn_conv(out, params["l4"])
    out = attn(out, params["attn2"])
    out = conv(out, params["last"]["w"], params["last"]["b"], 1, 0)
    return jnp.squeeze(out)


if __name__ == "__main__":
    key = jax.random.PRNGKey(0)
    k_param, k_x = jax.random.split(key)
    ndf = 8
    params = init_params(k_param, ndf=ndf)
    x = jax.random.normal(k_x, (2, 3, 64, 64), jnp.float32)   # NCHW, like PyTorch

    fwd = jax.jit(make_discriminator_forward(ndf=ndf, image_size=64, batch=2))
    y = fwd(params, x)
    jax.block_until_ready(y)
    assert y.shape == (2,), y.shape
    assert bool(jnp.all(jnp.isfinite(y)))

    # Numeric sanity check against the pure-JAX reference (bf16 MXU operands
    # in the kernel -> allow a small relative tolerance).
    y_ref = jax.jit(reference_forward)(params, x)
    jax.block_until_ready(y_ref)
    rel = float(jnp.max(jnp.abs(y - y_ref)) / (jnp.max(jnp.abs(y_ref)) + 1e-6))
    assert rel < 5e-2, f"kernel/reference mismatch: rel={rel}, y={y}, y_ref={y_ref}"

    print("KERNEL_OK")
</pallas_src>

<mosaic_0001>
module attributes {stable_mosaic.version = 11 : i64} {
  func.func @kernel(%arg0: i32, %arg1: memref<1x66x198xf32, #tpu.memory_space<vmem>>, %arg2: memref<4x198x256xbf16, #tpu.memory_space<vmem>>, %arg3: memref<1x256xf32, #tpu.memory_space<vmem>>, %arg4: memref<4x272x256xbf16, #tpu.memory_space<vmem>>, %arg5: memref<1x256xf32, #tpu.memory_space<vmem>>, %arg6: memref<4x288x256xbf16, #tpu.memory_space<vmem>>, %arg7: memref<1x256xf32, #tpu.memory_space<vmem>>, %arg8: memref<4x320x256xbf16, #tpu.memory_space<vmem>>, %arg9: memref<1x256xf32, #tpu.memory_space<vmem>>, %arg10: memref<32x4xbf16, #tpu.memory_space<vmem>>, %arg11: memref<1x4xf32, #tpu.memory_space<vmem>>, %arg12: memref<32x4xbf16, #tpu.memory_space<vmem>>, %arg13: memref<1x4xf32, #tpu.memory_space<vmem>>, %arg14: memref<32x32xbf16, #tpu.memory_space<vmem>>, %arg15: memref<1x32xf32, #tpu.memory_space<vmem>>, %arg16: memref<1x1xf32, #tpu.memory_space<vmem>>, %arg17: memref<64x8xbf16, #tpu.memory_space<vmem>>, %arg18: memref<1x8xf32, #tpu.memory_space<vmem>>, %arg19: memref<64x8xbf16, #tpu.memory_space<vmem>>, %arg20: memref<1x8xf32, #tpu.memory_space<vmem>>, %arg21: memref<64x64xbf16, #tpu.memory_space<vmem>>, %arg22: memref<1x64xf32, #tpu.memory_space<vmem>>, %arg23: memref<1x1xf32, #tpu.memory_space<vmem>>, %arg24: memref<16x64xf32, #tpu.memory_space<vmem>>, %arg25: memref<1x1xf32, #tpu.memory_space<vmem>>, %arg26: memref<1x8x128xf32, #tpu.memory_space<vmem>>, %arg27: memref<34x272xf32, #tpu.memory_space<vmem>>, %arg28: memref<18x288xf32, #tpu.memory_space<vmem>>, %arg29: memref<10x320xf32, #tpu.memory_space<vmem>>, %arg30: memref<8x8x32xf32, #tpu.memory_space<vmem>>, %arg31: memref<4x4x64xf32, #tpu.memory_space<vmem>>) attributes {dimension_semantics = [#tpu.dimension_semantics<parallel>], iteration_bounds = array<i64: 2>, scalar_prefetch = 0 : i64, scratch_operands = 5 : i64, tpu.core_type = #tpu.core_type<tc>, window_params = [{transform_indices = @transform_0, window_bounds = array<i64: 1, 66, 198>}, {pipeline_mode = #tpu.pipeline_mode<synchronous>, transform_indices = @transform_1, window_bounds = array<i64: 4, 198, 256>}, {pipeline_mode = #tpu.pipeline_mode<synchronous>, transform_indices = @transform_2, window_bounds = array<i64: 1, 256>}, {pipeline_mode = #tpu.pipeline_mode<synchronous>, transform_indices = @transform_3, window_bounds = array<i64: 4, 272, 256>}, {pipeline_mode = #tpu.pipeline_mode<synchronous>, transform_indices = @transform_4, window_bounds = array<i64: 1, 256>}, {pipeline_mode = #tpu.pipeline_mode<synchronous>, transform_indices = @transform_5, window_bounds = array<i64: 4, 288, 256>}, {pipeline_mode = #tpu.pipeline_mode<synchronous>, transform_indices = @transform_6, window_bounds = array<i64: 1, 256>}, {pipeline_mode = #tpu.pipeline_mode<synchronous>, transform_indices = @transform_7, window_bounds = array<i64: 4, 320, 256>}, {pipeline_mode = #tpu.pipeline_mode<synchronous>, transform_indices = @transform_8, window_bounds = array<i64: 1, 256>}, {pipeline_mode = #tpu.pipeline_mode<synchronous>, transform_indices = @transform_9, window_bounds = array<i64: 32, 4>}, {pipeline_mode = #tpu.pipeline_mode<synchronous>, transform_indices = @transform_10, window_bounds = array<i64: 1, 4>}, {pipeline_mode = #tpu.pipeline_mode<synchronous>, transform_indices = @transform_11, window_bounds = array<i64: 32, 4>}, {pipeline_mode = #tpu.pipeline_mode<synchronous>, transform_indices = @transform_12, window_bounds = array<i64: 1, 4>}, {pipeline_mode = #tpu.pipeline_mode<synchronous>, transform_indices = @transform_13, window_bounds = array<i64: 32, 32>}, {pipeline_mode = #tpu.pipeline_mode<synchronous>, transform_indices = @transform_14, window_bounds = array<i64: 1, 32>}, {pipeline_mode = #tpu.pipeline_mode<synchronous>, transform_indices = @transform_15, window_bounds = array<i64: 1, 1>}, {pipeline_mode = #tpu.pipeline_mode<synchronous>, transform_indices = @transform_16, window_bounds = array<i64: 64, 8>}, {pipeline_mode = #tpu.pipeline_mode<synchronous>, transform_indices = @transform_17, window_bounds = array<i64: 1, 8>}, {pipeline_mode = #tpu.pipeline_mode<synchronous>, transform_indices = @transform_18, window_bounds = array<i64: 64, 8>}, {pipeline_mode = #tpu.pipeline_mode<synchronous>, transform_indices = @transform_19, window_bounds = array<i64: 1, 8>}, {pipeline_mode = #tpu.pipeline_mode<synchronous>, transform_indices = @transform_20, window_bounds = array<i64: 64, 64>}, {pipeline_mode = #tpu.pipeline_mode<synchronous>, transform_indices = @transform_21, window_bounds = array<i64: 1, 64>}, {pipeline_mode = #tpu.pipeline_mode<synchronous>, transform_indices = @transform_22, window_bounds = array<i64: 1, 1>}, {pipeline_mode = #tpu.pipeline_mode<synchronous>, transform_indices = @transform_23, window_bounds = array<i64: 16, 64>}, {pipeline_mode = #tpu.pipeline_mode<synchronous>, transform_indices = @transform_24, window_bounds = array<i64: 1, 1>}, {transform_indices = @transform_25, window_bounds = array<i64: 1, 8, 128>}]} {
    %c0 = arith.constant 0 : index
    %c0_0 = arith.constant 0 : index
    %c0_1 = arith.constant 0 : index
    %0 = vector.load %arg1[%c0, %c0_0, %c0_1] : memref<1x66x198xf32, #tpu.memory_space<vmem>>, vector<1x66x198xf32>
    %1 = vector.shape_cast %0 : vector<1x66x198xf32> to vector<66x198xf32>
    %2 = arith.truncf %1 : vector<66x198xf32> to vector<66x198xbf16>
    %cst = arith.constant 0.000000e+00 : f32
    %3 = vector.broadcast %cst : f32 to vector<32x256xf32>
    %4 = tpu.iota {dimensions = array<i32: 1>} : vector<32x66xi32>
    %5 = tpu.iota {dimensions = array<i32: 0>} : vector<32x66xi32>
    %c2_i32 = arith.constant 2 : i32
    %6 = vector.broadcast %c2_i32 : i32 to vector<32x66xi32>
    %7 = arith.muli %6, %5 : vector<32x66xi32>
    %c0_i32 = arith.constant 0 : i32
    %8 = vector.broadcast %c0_i32 : i32 to vector<32x66xi32>
    %9 = arith.addi %7, %8 : vector<32x66xi32>
    %10 = arith.cmpi eq, %4, %9 : vector<32x66xi32>
    %cst_2 = arith.constant 1.000000e+00 : f32
    %cst_3 = arith.constant 0.000000e+00 : f32
    %11 = vector.broadcast %cst_2 : f32 to vector<32x66xf32>
    %12 = vector.broadcast %cst_3 : f32 to vector<32x66xf32>
    %13 = arith.select %10, %11, %12 : vector<32x66xi1>, vector<32x66xf32>
    %14 = arith.truncf %13 : vector<32x66xf32> to vector<32x66xbf16>
    %cst_4 = arith.constant dense<0.000000e+00> : vector<32x198xf32>
    %15 = tpu.matmul %14, %2, %cst_4 {dimension_numbers = #tpu.dot_dimension_numbers<[1], [0], [0], [1], [0, 0, 1, 1], [], []>} : vector<32x66xbf16>, vector<66x198xbf16>, vector<32x198xf32> -> vector<32x198xf32>
    %16 = arith.truncf %15 : vector<32x198xf32> to vector<32x198xbf16>
    %c0_5 = arith.constant 0 : index
    %c0_6 = arith.constant 0 : index
    %c0_7 = arith.constant 0 : index
    %17 = vector.load %arg2[%c0_5, %c0_6, %c0_7] : memref<4x198x256xbf16, #tpu.memory_space<vmem>>, vector<1x198x256xbf16>
    %18 = vector.shape_cast %17 : vector<1x198x256xbf16> to vector<198x256xbf16>
    %cst_8 = arith.constant dense<0.000000e+00> : vector<32x256xf32>
    %19 = tpu.matmul %16, %18, %cst_8 {dimension_numbers = #tpu.dot_dimension_numbers<[1], [0], [0], [1], [0, 0, 1, 1], [], []>} : vector<32x198xbf16>, vector<198x256xbf16>, vector<32x256xf32> -> vector<32x256xf32>
    %20 = arith.addf %3, %19 : vector<32x256xf32>
    %21 = tpu.iota {dimensions = array<i32: 1>} : vector<32x66xi32>
    %22 = tpu.iota {dimensions = array<i32: 0>} : vector<32x66xi32>
    %c2_i32_9 = arith.constant 2 : i32
    %23 = vector.broadcast %c2_i32_9 : i32 to vector<32x66xi32>
    %24 = arith.muli %23, %22 : vector<32x66xi32>
    %c1_i32 = arith.constant 1 : i32
    %25 = vector.broadcast %c1_i32 : i32 to vector<32x66xi32>
    %26 = arith.addi %24, %25 : vector<32x66xi32>
    %27 = arith.cmpi eq, %21, %26 : vector<32x66xi32>
    %cst_10 = arith.constant 1.000000e+00 : f32
    %cst_11 = arith.constant 0.000000e+00 : f32
    %28 = vector.broadcast %cst_10 : f32 to vector<32x66xf32>
    %29 = vector.broadcast %cst_11 : f32 to vector<32x66xf32>
    %30 = arith.select %27, %28, %29 : vector<32x66xi1>, vector<32x66xf32>
    %31 = arith.truncf %30 : vector<32x66xf32> to vector<32x66xbf16>
    %cst_12 = arith.constant dense<0.000000e+00> : vector<32x198xf32>
    %32 = tpu.matmul %31, %2, %cst_12 {dimension_numbers = #tpu.dot_dimension_numbers<[1], [0], [0], [1], [0, 0, 1, 1], [], []>} : vector<32x66xbf16>, vector<66x198xbf16>, vector<32x198xf32> -> vector<32x198xf32>
    %33 = arith.truncf %32 : vector<32x198xf32> to vector<32x198xbf16>
    %c1 = arith.constant 1 : index
    %c0_13 = arith.constant 0 : index
    %c0_14 = arith.constant 0 : index
    %34 = vector.load %arg2[%c1, %c0_13, %c0_14] : memref<4x198x256xbf16, #tpu.memory_space<vmem>>, vector<1x198x256xbf16>
    %35 = vector.shape_cast %34 : vector<1x198x256xbf16> to vector<198x256xbf16>
    %cst_15 = arith.constant dense<0.000000e+00> : vector<32x256xf32>
    %36 = tpu.matmul %33, %35, %cst_15 {dimension_numbers = #tpu.dot_dimension_numbers<[1], [0], [0], [1], [0, 0, 1, 1], [], []>} : vector<32x198xbf16>, vector<198x256xbf16>, vector<32x256xf32> -> vector<32x256xf32>
    %37 = arith.addf %20, %36 : vector<32x256xf32>
    %38 = tpu.iota {dimensions = array<i32: 1>} : vector<32x66xi32>
    %39 = tpu.iota {dimensions = array<i32: 0>} : vector<32x66xi32>
    %c2_i32_16 = arith.constant 2 : i32
    %40 = vector.broadcast %c2_i32_16 : i32 to vector<32x66xi32>
    %41 = arith.muli %40, %39 : vector<32x66xi32>
    %c2_i32_17 = arith.constant 2 : i32
    %42 = vector.broadcast %c2_i32_17 : i32 to vector<32x66xi32>
    %43 = arith.addi %41, %42 : vector<32x66xi32>
    %44 = arith.cmpi eq, %38, %43 : vector<32x66xi32>
    %cst_18 = arith.constant 1.000000e+00 : f32
    %cst_19 = arith.constant 0.000000e+00 : f32
    %45 = vector.broadcast %cst_18 : f32 to vector<32x66xf32>
    %46 = vector.broadcast %cst_19 : f32 to vector<32x66xf32>
    %47 = arith.select %44, %45, %46 : vector<32x66xi1>, vector<32x66xf32>
    %48 = arith.truncf %47 : vector<32x66xf32> to vector<32x66xbf16>
    %cst_20 = arith.constant dense<0.000000e+00> : vector<32x198xf32>
    %49 = tpu.matmul %48, %2, %cst_20 {dimension_numbers = #tpu.dot_dimension_numbers<[1], [0], [0], [1], [0, 0, 1, 1], [], []>} : vector<32x66xbf16>, vector<66x198xbf16>, vector<32x198xf32> -> vector<32x198xf32>
    %50 = arith.truncf %49 : vector<32x198xf32> to vector<32x198xbf16>
    %c2 = arith.constant 2 : index
    %c0_21 = arith.constant 0 : index
    %c0_22 = arith.constant 0 : index
    %51 = vector.load %arg2[%c2, %c0_21, %c0_22] : memref<4x198x256xbf16, #tpu.memory_space<vmem>>, vector<1x198x256xbf16>
    %52 = vector.shape_cast %51 : vector<1x198x256xbf16> to vector<198x256xbf16>
    %cst_23 = arith.constant dense<0.000000e+00> : vector<32x256xf32>
    %53 = tpu.matmul %50, %52, %cst_23 {dimension_numbers = #tpu.dot_dimension_numbers<[1], [0], [0], [1], [0, 0, 1, 1], [], []>} : vector<32x198xbf16>, vector<198x256xbf16>, vector<32x256xf32> -> vector<32x256xf32>
    %54 = arith.addf %37, %53 : vector<32x256xf32>
    %55 = tpu.iota {dimensions = array<i32: 1>} : vector<32x66xi32>
    %56 = tpu.iota {dimensions = array<i32: 0>} : vector<32x66xi32>
    %c2_i32_24 = arith.constant 2 : i32
    %57 = vector.broadcast %c2_i32_24 : i32 to vector<32x66xi32>
    %58 = arith.muli %57, %56 : vector<32x66xi32>
    %c3_i32 = arith.constant 3 : i32
    %59 = vector.broadcast %c3_i32 : i32 to vector<32x66xi32>
    %60 = arith.addi %58, %59 : vector<32x66xi32>
    %61 = arith.cmpi eq, %55, %60 : vector<32x66xi32>
    %cst_25 = arith.constant 1.000000e+00 : f32
    %cst_26 = arith.constant 0.000000e+00 : f32
    %62 = vector.broadcast %cst_25 : f32 to vector<32x66xf32>
    %63 = vector.broadcast %cst_26 : f32 to vector<32x66xf32>
    %64 = arith.select %61, %62, %63 : vector<32x66xi1>, vector<32x66xf32>
    %65 = arith.truncf %64 : vector<32x66xf32> to vector<32x66xbf16>
    %cst_27 = arith.constant dense<0.000000e+00> : vector<32x198xf32>
    %66 = tpu.matmul %65, %2, %cst_27 {dimension_numbers = #tpu.dot_dimension_numbers<[1], [0], [0], [1], [0, 0, 1, 1], [], []>} : vector<32x66xbf16>, vector<66x198xbf16>, vector<32x198xf32> -> vector<32x198xf32>
    %67 = arith.truncf %66 : vector<32x198xf32> to vector<32x198xbf16>
    %c3 = arith.constant 3 : index
    %c0_28 = arith.constant 0 : index
    %c0_29 = arith.constant 0 : index
    %68 = vector.load %arg2[%c3, %c0_28, %c0_29] : memref<4x198x256xbf16, #tpu.memory_space<vmem>>, vector<1x198x256xbf16>
    %69 = vector.shape_cast %68 : vector<1x198x256xbf16> to vector<198x256xbf16>
    %cst_30 = arith.constant dense<0.000000e+00> : vector<32x256xf32>
    %70 = tpu.matmul %67, %69, %cst_30 {dimension_numbers = #tpu.dot_dimension_numbers<[1], [0], [0], [1], [0, 0, 1, 1], [], []>} : vector<32x198xbf16>, vector<198x256xbf16>, vector<32x256xf32> -> vector<32x256xf32>
    %71 = arith.addf %54, %70 : vector<32x256xf32>
    %c0_31 = arith.constant 0 : index
    %c0_32 = arith.constant 0 : index
    %72 = vector.load %arg3[%c0_31, %c0_32] : memref<1x256xf32, #tpu.memory_space<vmem>>, vector<1x256xf32>
    %73 = vector.broadcast %72 : vector<1x256xf32> to vector<32x256xf32>
    %74 = arith.addf %71, %73 : vector<32x256xf32>
    %cst_33 = arith.constant 0.000000e+00 : f32
    %75 = vector.broadcast %cst_33 : f32 to vector<32x256xf32>
    %76 = arith.cmpf oge, %74, %75 : vector<32x256xf32>
    %cst_34 = arith.constant 1.000000e-01 : f32
    %77 = vector.broadcast %cst_34 : f32 to vector<32x256xf32>
    %78 = arith.mulf %77, %74 : vector<32x256xf32>
    %79 = arith.select %76, %74, %78 : vector<32x256xi1>, vector<32x256xf32>
    %cst_35 = arith.constant 0.000000e+00 : f32
    %80 = vector.broadcast %cst_35 : f32 to vector<34x272xf32>
    %c0_36 = arith.constant 0 : index
    %c0_37 = arith.constant 0 : index
    %81 = vector.load %arg27[%c0_36, %c0_37] : memref<34x272xf32, #tpu.memory_space<vmem>>, vector<34x272xf32>
    tpu.vector_store %arg27[%c0_36, %c0_37], %80 {strides = array<i32>} : memref<34x272xf32, #tpu.memory_space<vmem>>, vector<34x272xf32>,
    %c1_38 = arith.constant 1 : index
    %c8 = arith.constant 8 : index
    %82 = vector.load %arg27[%c1_38, %c8] : memref<34x272xf32, #tpu.memory_space<vmem>>, vector<32x256xf32>
    tpu.vector_store %arg27[%c1_38, %c8], %79 {strides = array<i32>} : memref<34x272xf32, #tpu.memory_space<vmem>>, vector<32x256xf32>,
    %c0_39 = arith.constant 0 : index
    %c0_40 = arith.constant 0 : index
    %83 = vector.load %arg27[%c0_39, %c0_40] : memref<34x272xf32, #tpu.memory_space<vmem>>, vector<34x272xf32>
    %84 = arith.truncf %83 : vector<34x272xf32> to vector<34x272xbf16>
    %cst_41 = arith.constant 0.000000e+00 : f32
    %85 = vector.broadcast %cst_41 : f32 to vector<16x256xf32>
    %86 = tpu.iota {dimensions = array<i32: 1>} : vector<16x34xi32>
    %87 = tpu.iota {dimensions = array<i32: 0>} : vector<16x34xi32>
    %c2_i32_42 = arith.constant 2 : i32
    %88 = vector.broadcast %c2_i32_42 : i32 to vector<16x34xi32>
    %89 = arith.muli %88, %87 : vector<16x34xi32>
    %c0_i32_43 = arith.constant 0 : i32
    %90 = vector.broadcast %c0_i32_43 : i32 to vector<16x34xi32>
    %91 = arith.addi %89, %90 : vector<16x34xi32>
    %92 = arith.cmpi eq, %86, %91 : vector<16x34xi32>
    %cst_44 = arith.constant 1.000000e+00 : f32
    %cst_45 = arith.constant 0.000000e+00 : f32
    %93 = vector.broadcast %cst_44 : f32 to vector<16x34xf32>
    %94 = vector.broadcast %cst_45 : f32 to vector<16x34xf32>
    %95 = arith.select %92, %93, %94 : vector<16x34xi1>, vector<16x34xf32>
    %96 = arith.truncf %95 : vector<16x34xf32> to vector<16x34xbf16>
    %cst_46 = arith.constant dense<0.000000e+00> : vector<16x272xf32>
    %97 = tpu.matmul %96, %84, %cst_46 {dimension_numbers = #tpu.dot_dimension_numbers<[1], [0], [0], [1], [0, 0, 1, 1], [], []>} : vector<16x34xbf16>, vector<34x272xbf16>, vector<16x272xf32> -> vector<16x272xf32>
    %98 = arith.truncf %97 : vector<16x272xf32> to vector<16x272xbf16>
    %c0_47 = arith.constant 0 : index
    %c0_48 = arith.constant 0 : index
    %c0_49 = arith.constant 0 : index
    %99 = vector.load %arg4[%c0_47, %c0_48, %c0_49] : memref<4x272x256xbf16, #tpu.memory_space<vmem>>, vector<1x272x256xbf16>
    %100 = vector.shape_cast %99 : vector<1x272x256xbf16> to vector<272x256xbf16>
    %cst_50 = arith.constant dense<0.000000e+00> : vector<16x256xf32>
    %101 = tpu.matmul %98, %100, %cst_50 {dimension_numbers = #tpu.dot_dimension_numbers<[1], [0], [0], [1], [0, 0, 1, 1], [], []>} : vector<16x272xbf16>, vector<272x256xbf16>, vector<16x256xf32> -> vector<16x256xf32>
    %102 = arith.addf %85, %101 : vector<16x256xf32>
    %103 = tpu.iota {dimensions = array<i32: 1>} : vector<16x34xi32>
    %104 = tpu.iota {dimensions = array<i32: 0>} : vector<16x34xi32>
    %c2_i32_51 = arith.constant 2 : i32
    %105 = vector.broadcast %c2_i32_51 : i32 to vector<16x34xi32>
    %106 = arith.muli %105, %104 : vector<16x34xi32>
    %c1_i32_52 = arith.constant 1 : i32
    %107 = vector.broadcast %c1_i32_52 : i32 to vector<16x34xi32>
    %108 = arith.addi %106, %107 : vector<16x34xi32>
    %109 = arith.cmpi eq, %103, %108 : vector<16x34xi32>
    %cst_53 = arith.constant 1.000000e+00 : f32
    %cst_54 = arith.constant 0.000000e+00 : f32
    %110 = vector.broadcast %cst_53 : f32 to vector<16x34xf32>
    %111 = vector.broadcast %cst_54 : f32 to vector<16x34xf32>
    %112 = arith.select %109, %110, %111 : vector<16x34xi1>, vector<16x34xf32>
    %113 = arith.truncf %112 : vector<16x34xf32> to vector<16x34xbf16>
    %cst_55 = arith.constant dense<0.000000e+00> : vector<16x272xf32>
    %114 = tpu.matmul %113, %84, %cst_55 {dimension_numbers = #tpu.dot_dimension_numbers<[1], [0], [0], [1], [0, 0, 1, 1], [], []>} : vector<16x34xbf16>, vector<34x272xbf16>, vector<16x272xf32> -> vector<16x272xf32>
    %115 = arith.truncf %114 : vector<16x272xf32> to vector<16x272xbf16>
    %c1_56 = arith.constant 1 : index
    %c0_57 = arith.constant 0 : index
    %c0_58 = arith.constant 0 : index
    %116 = vector.load %arg4[%c1_56, %c0_57, %c0_58] : memref<4x272x256xbf16, #tpu.memory_space<vmem>>, vector<1x272x256xbf16>
    %117 = vector.shape_cast %116 : vector<1x272x256xbf16> to vector<272x256xbf16>
    %cst_59 = arith.constant dense<0.000000e+00> : vector<16x256xf32>
    %118 = tpu.matmul %115, %117, %cst_59 {dimension_numbers = #tpu.dot_dimension_numbers<[1], [0], [0], [1], [0, 0, 1, 1], [], []>} : vector<16x272xbf16>, vector<272x256xbf16>, vector<16x256xf32> -> vector<16x256xf32>
    %119 = arith.addf %102, %118 : vector<16x256xf32>
    %120 = tpu.iota {dimensions = array<i32: 1>} : vector<16x34xi32>
    %121 = tpu.iota {dimensions = array<i32: 0>} : vector<16x34xi32>
    %c2_i32_60 = arith.constant 2 : i32
    %122 = vector.broadcast %c2_i32_60 : i32 to vector<16x34xi32>
    %123 = arith.muli %122, %121 : vector<16x34xi32>
    %c2_i32_61 = arith.constant 2 : i32
    %124 = vector.broadcast %c2_i32_61 : i32 to vector<16x34xi32>
    %125 = arith.addi %123, %124 : vector<16x34xi32>
    %126 = arith.cmpi eq, %120, %125 : vector<16x34xi32>
    %cst_62 = arith.constant 1.000000e+00 : f32
    %cst_63 = arith.constant 0.000000e+00 : f32
    %127 = vector.broadcast %cst_62 : f32 to vector<16x34xf32>
    %128 = vector.broadcast %cst_63 : f32 to vector<16x34xf32>
    %129 = arith.select %126, %127, %128 : vector<16x34xi1>, vector<16x34xf32>
    %130 = arith.truncf %129 : vector<16x34xf32> to vector<16x34xbf16>
    %cst_64 = arith.constant dense<0.000000e+00> : vector<16x272xf32>
    %131 = tpu.matmul %130, %84, %cst_64 {dimension_numbers = #tpu.dot_dimension_numbers<[1], [0], [0], [1], [0, 0, 1, 1], [], []>} : vector<16x34xbf16>, vector<34x272xbf16>, vector<16x272xf32> -> vector<16x272xf32>
    %132 = arith.truncf %131 : vector<16x272xf32> to vector<16x272xbf16>
    %c2_65 = arith.constant 2 : index
    %c0_66 = arith.constant 0 : index
    %c0_67 = arith.constant 0 : index
    %133 = vector.load %arg4[%c2_65, %c0_66, %c0_67] : memref<4x272x256xbf16, #tpu.memory_space<vmem>>, vector<1x272x256xbf16>
    %134 = vector.shape_cast %133 : vector<1x272x256xbf16> to vector<272x256xbf16>
    %cst_68 = arith.constant dense<0.000000e+00> : vector<16x256xf32>
    %135 = tpu.matmul %132, %134, %cst_68 {dimension_numbers = #tpu.dot_dimension_numbers<[1], [0], [0], [1], [0, 0, 1, 1], [], []>} : vector<16x272xbf16>, vector<272x256xbf16>, vector<16x256xf32> -> vector<16x256xf32>
    %136 = arith.addf %119, %135 : vector<16x256xf32>
    %137 = tpu.iota {dimensions = array<i32: 1>} : vector<16x34xi32>
    %138 = tpu.iota {dimensions = array<i32: 0>} : vector<16x34xi32>
    %c2_i32_69 = arith.constant 2 : i32
    %139 = vector.broadcast %c2_i32_69 : i32 to vector<16x34xi32>
    %140 = arith.muli %139, %138 : vector<16x34xi32>
    %c3_i32_70 = arith.constant 3 : i32
    %141 = vector.broadcast %c3_i32_70 : i32 to vector<16x34xi32>
    %142 = arith.addi %140, %141 : vector<16x34xi32>
    %143 = arith.cmpi eq, %137, %142 : vector<16x34xi32>
    %cst_71 = arith.constant 1.000000e+00 : f32
    %cst_72 = arith.constant 0.000000e+00 : f32
    %144 = vector.broadcast %cst_71 : f32 to vector<16x34xf32>
    %145 = vector.broadcast %cst_72 : f32 to vector<16x34xf32>
    %146 = arith.select %143, %144, %145 : vector<16x34xi1>, vector<16x34xf32>
    %147 = arith.truncf %146 : vector<16x34xf32> to vector<16x34xbf16>
    %cst_73 = arith.constant dense<0.000000e+00> : vector<16x272xf32>
    %148 = tpu.matmul %147, %84, %cst_73 {dimension_numbers = #tpu.dot_dimension_numbers<[1], [0], [0], [1], [0, 0, 1, 1], [], []>} : vector<16x34xbf16>, vector<34x272xbf16>, vector<16x272xf32> -> vector<16x272xf32>
    %149 = arith.truncf %148 : vector<16x272xf32> to vector<16x272xbf16>
    %c3_74 = arith.constant 3 : index
    %c0_75 = arith.constant 0 : index
    %c0_76 = arith.constant 0 : index
    %150 = vector.load %arg4[%c3_74, %c0_75, %c0_76] : memref<4x272x256xbf16, #tpu.memory_space<vmem>>, vector<1x272x256xbf16>
    %151 = vector.shape_cast %150 : vector<1x272x256xbf16> to vector<272x256xbf16>
    %cst_77 = arith.constant dense<0.000000e+00> : vector<16x256xf32>
    %152 = tpu.matmul %149, %151, %cst_77 {dimension_numbers = #tpu.dot_dimension_numbers<[1], [0], [0], [1], [0, 0, 1, 1], [], []>} : vector<16x272xbf16>, vector<272x256xbf16>, vector<16x256xf32> -> vector<16x256xf32>
    %153 = arith.addf %136, %152 : vector<16x256xf32>
    %c0_78 = arith.constant 0 : index
    %c0_79 = arith.constant 0 : index
    %154 = vector.load %arg5[%c0_78, %c0_79] : memref<1x256xf32, #tpu.memory_space<vmem>>, vector<1x256xf32>
    %155 = vector.broadcast %154 : vector<1x256xf32> to vector<16x256xf32>
    %156 = arith.addf %153, %155 : vector<16x256xf32>
    %cst_80 = arith.constant 0.000000e+00 : f32
    %157 = vector.broadcast %cst_80 : f32 to vector<16x256xf32>
    %158 = arith.cmpf oge, %156, %157 : vector<16x256xf32>
    %cst_81 = arith.constant 1.000000e-01 : f32
    %159 = vector.broadcast %cst_81 : f32 to vector<16x256xf32>
    %160 = arith.mulf %159, %156 : vector<16x256xf32>
    %161 = arith.select %158, %156, %160 : vector<16x256xi1>, vector<16x256xf32>
    %cst_82 = arith.constant 0.000000e+00 : f32
    %162 = vector.broadcast %cst_82 : f32 to vector<18x288xf32>
    %c0_83 = arith.constant 0 : index
    %c0_84 = arith.constant 0 : index
    %163 = vector.load %arg28[%c0_83, %c0_84] : memref<18x288xf32, #tpu.memory_space<vmem>>, vector<18x288xf32>
    tpu.vector_store %arg28[%c0_83, %c0_84], %162 {strides = array<i32>} : memref<18x288xf32, #tpu.memory_space<vmem>>, vector<18x288xf32>,
    %c1_85 = arith.constant 1 : index
    %c16 = arith.constant 16 : index
    %164 = vector.load %arg28[%c1_85, %c16] : memref<18x288xf32, #tpu.memory_space<vmem>>, vector<16x256xf32>
    tpu.vector_store %arg28[%c1_85, %c16], %161 {strides = array<i32>} : memref<18x288xf32, #tpu.memory_space<vmem>>, vector<16x256xf32>,
    %c0_86 = arith.constant 0 : index
    %c0_87 = arith.constant 0 : index
    %165 = vector.load %arg28[%c0_86, %c0_87] : memref<18x288xf32, #tpu.memory_space<vmem>>, vector<18x288xf32>
    %166 = arith.truncf %165 : vector<18x288xf32> to vector<18x288xbf16>
    %cst_88 = arith.constant 0.000000e+00 : f32
    %167 = vector.broadcast %cst_88 : f32 to vector<8x256xf32>
    %168 = tpu.iota {dimensions = array<i32: 1>} : vector<8x18xi32>
    %169 = tpu.iota {dimensions = array<i32: 0>} : vector<8x18xi32>
    %c2_i32_89 = arith.constant 2 : i32
    %170 = vector.broadcast %c2_i32_89 : i32 to vector<8x18xi32>
    %171 = arith.muli %170, %169 : vector<8x18xi32>
    %c0_i32_90 = arith.constant 0 : i32
    %172 = vector.broadcast %c0_i32_90 : i32 to vector<8x18xi32>
    %173 = arith.addi %171, %172 : vector<8x18xi32>
    %174 = arith.cmpi eq, %168, %173 : vector<8x18xi32>
    %cst_91 = arith.constant 1.000000e+00 : f32
    %cst_92 = arith.constant 0.000000e+00 : f32
    %175 = vector.broadcast %cst_91 : f32 to vector<8x18xf32>
    %176 = vector.broadcast %cst_92 : f32 to vector<8x18xf32>
    %177 = arith.select %174, %175, %176 : vector<8x18xi1>, vector<8x18xf32>
    %178 = arith.truncf %177 : vector<8x18xf32> to vector<8x18xbf16>
    %cst_93 = arith.constant dense<0.000000e+00> : vector<8x288xf32>
    %179 = tpu.matmul %178, %166, %cst_93 {dimension_numbers = #tpu.dot_dimension_numbers<[1], [0], [0], [1], [0, 0, 1, 1], [], []>} : vector<8x18xbf16>, vector<18x288xbf16>, vector<8x288xf32> -> vector<8x288xf32>
    %180 = arith.truncf %179 : vector<8x288xf32> to vector<8x288xbf16>
    %c0_94 = arith.constant 0 : index
    %c0_95 = arith.constant 0 : index
    %c0_96 = arith.constant 0 : index
    %181 = vector.load %arg6[%c0_94, %c0_95, %c0_96] : memref<4x288x256xbf16, #tpu.memory_space<vmem>>, vector<1x288x256xbf16>
    %182 = vector.shape_cast %181 : vector<1x288x256xbf16> to vector<288x256xbf16>
    %cst_97 = arith.constant dense<0.000000e+00> : vector<8x256xf32>
    %183 = tpu.matmul %180, %182, %cst_97 {dimension_numbers = #tpu.dot_dimension_numbers<[1], [0], [0], [1], [0, 0, 1, 1], [], []>} : vector<8x288xbf16>, vector<288x256xbf16>, vector<8x256xf32> -> vector<8x256xf32>
    %184 = arith.addf %167, %183 : vector<8x256xf32>
    %185 = tpu.iota {dimensions = array<i32: 1>} : vector<8x18xi32>
    %186 = tpu.iota {dimensions = array<i32: 0>} : vector<8x18xi32>
    %c2_i32_98 = arith.constant 2 : i32
    %187 = vector.broadcast %c2_i32_98 : i32 to vector<8x18xi32>
    %188 = arith.muli %187, %186 : vector<8x18xi32>
    %c1_i32_99 = arith.constant 1 : i32
    %189 = vector.broadcast %c1_i32_99 : i32 to vector<8x18xi32>
    %190 = arith.addi %188, %189 : vector<8x18xi32>
    %191 = arith.cmpi eq, %185, %190 : vector<8x18xi32>
    %cst_100 = arith.constant 1.000000e+00 : f32
    %cst_101 = arith.constant 0.000000e+00 : f32
    %192 = vector.broadcast %cst_100 : f32 to vector<8x18xf32>
    %193 = vector.broadcast %cst_101 : f32 to vector<8x18xf32>
    %194 = arith.select %191, %192, %193 : vector<8x18xi1>, vector<8x18xf32>
    %195 = arith.truncf %194 : vector<8x18xf32> to vector<8x18xbf16>
    %cst_102 = arith.constant dense<0.000000e+00> : vector<8x288xf32>
    %196 = tpu.matmul %195, %166, %cst_102 {dimension_numbers = #tpu.dot_dimension_numbers<[1], [0], [0], [1], [0, 0, 1, 1], [], []>} : vector<8x18xbf16>, vector<18x288xbf16>, vector<8x288xf32> -> vector<8x288xf32>
    %197 = arith.truncf %196 : vector<8x288xf32> to vector<8x288xbf16>
    %c1_103 = arith.constant 1 : index
    %c0_104 = arith.constant 0 : index
    %c0_105 = arith.constant 0 : index
    %198 = vector.load %arg6[%c1_103, %c0_104, %c0_105] : memref<4x288x256xbf16, #tpu.memory_space<vmem>>, vector<1x288x256xbf16>
    %199 = vector.shape_cast %198 : vector<1x288x256xbf16> to vector<288x256xbf16>
    %cst_106 = arith.constant dense<0.000000e+00> : vector<8x256xf32>
    %200 = tpu.matmul %197, %199, %cst_106 {dimension_numbers = #tpu.dot_dimension_numbers<[1], [0], [0], [1], [0, 0, 1, 1], [], []>} : vector<8x288xbf16>, vector<288x256xbf16>, vector<8x256xf32> -> vector<8x256xf32>
    %201 = arith.addf %184, %200 : vector<8x256xf32>
    %202 = tpu.iota {dimensions = array<i32: 1>} : vector<8x18xi32>
    %203 = tpu.iota {dimensions = array<i32: 0>} : vector<8x18xi32>
    %c2_i32_107 = arith.constant 2 : i32
    %204 = vector.broadcast %c2_i32_107 : i32 to vector<8x18xi32>
    %205 = arith.muli %204, %203 : vector<8x18xi32>
    %c2_i32_108 = arith.constant 2 : i32
    %206 = vector.broadcast %c2_i32_108 : i32 to vector<8x18xi32>
    %207 = arith.addi %205, %206 : vector<8x18xi32>
    %208 = arith.cmpi eq, %202, %207 : vector<8x18xi32>
    %cst_109 = arith.constant 1.000000e+00 : f32
    %cst_110 = arith.constant 0.000000e+00 : f32
    %209 = vector.broadcast %cst_109 : f32 to vector<8x18xf32>
    %210 = vector.broadcast %cst_110 : f32 to vector<8x18xf32>
    %211 = arith.select %208, %209, %210 : vector<8x18xi1>, vector<8x18xf32>
    %212 = arith.truncf %211 : vector<8x18xf32> to vector<8x18xbf16>
    %cst_111 = arith.constant dense<0.000000e+00> : vector<8x288xf32>
    %213 = tpu.matmul %212, %166, %cst_111 {dimension_numbers = #tpu.dot_dimension_numbers<[1], [0], [0], [1], [0, 0, 1, 1], [], []>} : vector<8x18xbf16>, vector<18x288xbf16>, vector<8x288xf32> -> vector<8x288xf32>
    %214 = arith.truncf %213 : vector<8x288xf32> to vector<8x288xbf16>
    %c2_112 = arith.constant 2 : index
    %c0_113 = arith.constant 0 : index
    %c0_114 = arith.constant 0 : index
    %215 = vector.load %arg6[%c2_112, %c0_113, %c0_114] : memref<4x288x256xbf16, #tpu.memory_space<vmem>>, vector<1x288x256xbf16>
    %216 = vector.shape_cast %215 : vector<1x288x256xbf16> to vector<288x256xbf16>
    %cst_115 = arith.constant dense<0.000000e+00> : vector<8x256xf32>
    %217 = tpu.matmul %214, %216, %cst_115 {dimension_numbers = #tpu.dot_dimension_numbers<[1], [0], [0], [1], [0, 0, 1, 1], [], []>} : vector<8x288xbf16>, vector<288x256xbf16>, vector<8x256xf32> -> vector<8x256xf32>
    %218 = arith.addf %201, %217 : vector<8x256xf32>
    %219 = tpu.iota {dimensions = array<i32: 1>} : vector<8x18xi32>
    %220 = tpu.iota {dimensions = array<i32: 0>} : vector<8x18xi32>
    %c2_i32_116 = arith.constant 2 : i32
    %221 = vector.broadcast %c2_i32_116 : i32 to vector<8x18xi32>
    %222 = arith.muli %221, %220 : vector<8x18xi32>
    %c3_i32_117 = arith.constant 3 : i32
    %223 = vector.broadcast %c3_i32_117 : i32 to vector<8x18xi32>
    %224 = arith.addi %222, %223 : vector<8x18xi32>
    %225 = arith.cmpi eq, %219, %224 : vector<8x18xi32>
    %cst_118 = arith.constant 1.000000e+00 : f32
    %cst_119 = arith.constant 0.000000e+00 : f32
    %226 = vector.broadcast %cst_118 : f32 to vector<8x18xf32>
    %227 = vector.broadcast %cst_119 : f32 to vector<8x18xf32>
    %228 = arith.select %225, %226, %227 : vector<8x18xi1>, vector<8x18xf32>
    %229 = arith.truncf %228 : vector<8x18xf32> to vector<8x18xbf16>
    %cst_120 = arith.constant dense<0.000000e+00> : vector<8x288xf32>
    %230 = tpu.matmul %229, %166, %cst_120 {dimension_numbers = #tpu.dot_dimension_numbers<[1], [0], [0], [1], [0, 0, 1, 1], [], []>} : vector<8x18xbf16>, vector<18x288xbf16>, vector<8x288xf32> -> vector<8x288xf32>
    %231 = arith.truncf %230 : vector<8x288xf32> to vector<8x288xbf16>
    %c3_121 = arith.constant 3 : index
    %c0_122 = arith.constant 0 : index
    %c0_123 = arith.constant 0 : index
    %232 = vector.load %arg6[%c3_121, %c0_122, %c0_123] : memref<4x288x256xbf16, #tpu.memory_space<vmem>>, vector<1x288x256xbf16>
    %233 = vector.shape_cast %232 : vector<1x288x256xbf16> to vector<288x256xbf16>
    %cst_124 = arith.constant dense<0.000000e+00> : vector<8x256xf32>
    %234 = tpu.matmul %231, %233, %cst_124 {dimension_numbers = #tpu.dot_dimension_numbers<[1], [0], [0], [1], [0, 0, 1, 1], [], []>} : vector<8x288xbf16>, vector<288x256xbf16>, vector<8x256xf32> -> vector<8x256xf32>
    %235 = arith.addf %218, %234 : vector<8x256xf32>
    %c0_125 = arith.constant 0 : index
    %c0_126 = arith.constant 0 : index
    %236 = vector.load %arg7[%c0_125, %c0_126] : memref<1x256xf32, #tpu.memory_space<vmem>>, vector<1x256xf32>
    %237 = vector.broadcast %236 : vector<1x256xf32> to vector<8x256xf32>
    %238 = arith.addf %235, %237 : vector<8x256xf32>
    %cst_127 = arith.constant 0.000000e+00 : f32
    %239 = vector.broadcast %cst_127 : f32 to vector<8x256xf32>
    %240 = arith.cmpf oge, %238, %239 : vector<8x256xf32>
    %cst_128 = arith.constant 1.000000e-01 : f32
    %241 = vector.broadcast %cst_128 : f32 to vector<8x256xf32>
    %242 = arith.mulf %241, %238 : vector<8x256xf32>
    %243 = arith.select %240, %238, %242 : vector<8x256xi1>, vector<8x256xf32>
    %244 = vector.extract_strided_slice %243 {offsets = [0, 0], sizes = [8, 32], strides = [1, 1]} : vector<8x256xf32> to vector<8x32xf32>
    %c0_129 = arith.constant 0 : index
    %c0_130 = arith.constant 0 : index
    %c0_131 = arith.constant 0 : index
    %245 = vector.load %arg30[%c0_129, %c0_130, %c0_131] : memref<8x8x32xf32, #tpu.memory_space<vmem>>, vector<8x1x32xf32>
    %246 = vector.shape_cast %245 : vector<8x1x32xf32> to vector<8x32xf32>
    %247 = vector.shape_cast %244 : vector<8x32xf32> to vector<8x1x32xf32>
    tpu.vector_store %arg30[%c0_129, %c0_130, %c0_131], %247 {strides = array<i32>} : memref<8x8x32xf32, #tpu.memory_space<vmem>>, vector<8x1x32xf32>,
    %248 = vector.extract_strided_slice %243 {offsets = [0, 32], sizes = [8, 32], strides = [1, 1]} : vector<8x256xf32> to vector<8x32xf32>
    %c0_132 = arith.constant 0 : index
    %c1_133 = arith.constant 1 : index
    %c0_134 = arith.constant 0 : index
    %249 = vector.load %arg30[%c0_132, %c1_133, %c0_134] : memref<8x8x32xf32, #tpu.memory_space<vmem>>, vector<8x1x32xf32>
    %250 = vector.shape_cast %249 : vector<8x1x32xf32> to vector<8x32xf32>
    %251 = vector.shape_cast %248 : vector<8x32xf32> to vector<8x1x32xf32>
    tpu.vector_store %arg30[%c0_132, %c1_133, %c0_134], %251 {strides = array<i32>} : memref<8x8x32xf32, #tpu.memory_space<vmem>>, vector<8x1x32xf32>,
    %252 = vector.extract_strided_slice %243 {offsets = [0, 64], sizes = [8, 32], strides = [1, 1]} : vector<8x256xf32> to vector<8x32xf32>
    %c0_135 = arith.constant 0 : index
    %c2_136 = arith.constant 2 : index
    %c0_137 = arith.constant 0 : index
    %253 = vector.load %arg30[%c0_135, %c2_136, %c0_137] : memref<8x8x32xf32, #tpu.memory_space<vmem>>, vector<8x1x32xf32>
    %254 = vector.shape_cast %253 : vector<8x1x32xf32> to vector<8x32xf32>
    %255 = vector.shape_cast %252 : vector<8x32xf32> to vector<8x1x32xf32>
    tpu.vector_store %arg30[%c0_135, %c2_136, %c0_137], %255 {strides = array<i32>} : memref<8x8x32xf32, #tpu.memory_space<vmem>>, vector<8x1x32xf32>,
    %256 = vector.extract_strided_slice %243 {offsets = [0, 96], sizes = [8, 32], strides = [1, 1]} : vector<8x256xf32> to vector<8x32xf32>
    %c0_138 = arith.constant 0 : index
    %c3_139 = arith.constant 3 : index
    %c0_140 = arith.constant 0 : index
    %257 = vector.load %arg30[%c0_138, %c3_139, %c0_140] : memref<8x8x32xf32, #tpu.memory_space<vmem>>, vector<8x1x32xf32>
    %258 = vector.shape_cast %257 : vector<8x1x32xf32> to vector<8x32xf32>
    %259 = vector.shape_cast %256 : vector<8x32xf32> to vector<8x1x32xf32>
    tpu.vector_store %arg30[%c0_138, %c3_139, %c0_140], %259 {strides = array<i32>} : memref<8x8x32xf32, #tpu.memory_space<vmem>>, vector<8x1x32xf32>,
    %260 = vector.extract_strided_slice %243 {offsets = [0, 128], sizes = [8, 32], strides = [1, 1]} : vector<8x256xf32> to vector<8x32xf32>
    %c0_141 = arith.constant 0 : index
    %c4 = arith.constant 4 : index
    %c0_142 = arith.constant 0 : index
    %261 = vector.load %arg30[%c0_141, %c4, %c0_142] : memref<8x8x32xf32, #tpu.memory_space<vmem>>, vector<8x1x32xf32>
    %262 = vector.shape_cast %261 : vector<8x1x32xf32> to vector<8x32xf32>
    %263 = vector.shape_cast %260 : vector<8x32xf32> to vector<8x1x32xf32>
    tpu.vector_store %arg30[%c0_141, %c4, %c0_142], %263 {strides = array<i32>} : memref<8x8x32xf32, #tpu.memory_space<vmem>>, vector<8x1x32xf32>,
    %264 = vector.extract_strided_slice %243 {offsets = [0, 160], sizes = [8, 32], strides = [1, 1]} : vector<8x256xf32> to vector<8x32xf32>
    %c0_143 = arith.constant 0 : index
    %c5 = arith.constant 5 : index
    %c0_144 = arith.constant 0 : index
    %265 = vector.load %arg30[%c0_143, %c5, %c0_144] : memref<8x8x32xf32, #tpu.memory_space<vmem>>, vector<8x1x32xf32>
    %266 = vector.shape_cast %265 : vector<8x1x32xf32> to vector<8x32xf32>
    %267 = vector.shape_cast %264 : vector<8x32xf32> to vector<8x1x32xf32>
    tpu.vector_store %arg30[%c0_143, %c5, %c0_144], %267 {strides = array<i32>} : memref<8x8x32xf32, #tpu.memory_space<vmem>>, vector<8x1x32xf32>,
    %268 = vector.extract_strided_slice %243 {offsets = [0, 192], sizes = [8, 32], strides = [1, 1]} : vector<8x256xf32> to vector<8x32xf32>
    %c0_145 = arith.constant 0 : index
    %c6 = arith.constant 6 : index
    %c0_146 = arith.constant 0 : index
    %269 = vector.load %arg30[%c0_145, %c6, %c0_146] : memref<8x8x32xf32, #tpu.memory_space<vmem>>, vector<8x1x32xf32>
    %270 = vector.shape_cast %269 : vector<8x1x32xf32> to vector<8x32xf32>
    %271 = vector.shape_cast %268 : vector<8x32xf32> to vector<8x1x32xf32>
    tpu.vector_store %arg30[%c0_145, %c6, %c0_146], %271 {strides = array<i32>} : memref<8x8x32xf32, #tpu.memory_space<vmem>>, vector<8x1x32xf32>,
    %272 = vector.extract_strided_slice %243 {offsets = [0, 224], sizes = [8, 32], strides = [1, 1]} : vector<8x256xf32> to vector<8x32xf32>
    %c0_147 = arith.constant 0 : index
    %c7 = arith.constant 7 : index
    %c0_148 = arith.constant 0 : index
    %273 = vector.load %arg30[%c0_147, %c7, %c0_148] : memref<8x8x32xf32, #tpu.memory_space<vmem>>, vector<8x1x32xf32>
    %274 = vector.shape_cast %273 : vector<8x1x32xf32> to vector<8x32xf32>
    %275 = vector.shape_cast %272 : vector<8x32xf32> to vector<8x1x32xf32>
    tpu.vector_store %arg30[%c0_147, %c7, %c0_148], %275 {strides = array<i32>} : memref<8x8x32xf32, #tpu.memory_space<vmem>>, vector<8x1x32xf32>,
    %c0_149 = arith.constant 0 : index
    %c0_150 = arith.constant 0 : index
    %c0_151 = arith.constant 0 : index
    %276 = vector.load %arg30[%c0_149, %c0_150, %c0_151] : memref<8x8x32xf32, #tpu.memory_space<vmem>>, vector<8x8x32xf32>
    %277 = vector.shape_cast %276 : vector<8x8x32xf32> to vector<64x32xf32>
    %278 = arith.truncf %277 : vector<64x32xf32> to vector<64x32xbf16>
    %c0_152 = arith.constant 0 : index
    %c0_153 = arith.constant 0 : index
    %279 = vector.load %arg10[%c0_152, %c0_153] : memref<32x4xbf16, #tpu.memory_space<vmem>>, vector<32x4xbf16>
    %cst_154 = arith.constant dense<0.000000e+00> : vector<64x4xf32>
    %280 = tpu.matmul %278, %279, %cst_154 {dimension_numbers = #tpu.dot_dimension_numbers<[1], [0], [0], [1], [0, 0, 1, 1], [], []>} : vector<64x32xbf16>, vector<32x4xbf16>, vector<64x4xf32> -> vector<64x4xf32>
    %c0_155 = arith.constant 0 : index
    %c0_156 = arith.constant 0 : index
    %281 = vector.load %arg11[%c0_155, %c0_156] : memref<1x4xf32, #tpu.memory_space<vmem>>, vector<1x4xf32>
    %282 = vector.broadcast %281 : vector<1x4xf32> to vector<64x4xf32>
    %283 = arith.addf %280, %282 : vector<64x4xf32>
    %c0_157 = arith.constant 0 : index
    %c0_158 = arith.constant 0 : index
    %284 = vector.load %arg12[%c0_157, %c0_158] : memref<32x4xbf16, #tpu.memory_space<vmem>>, vector<32x4xbf16>
    %cst_159 = arith.constant dense<0.000000e+00> : vector<64x4xf32>
    %285 = tpu.matmul %278, %284, %cst_159 {dimension_numbers = #tpu.dot_dimension_numbers<[1], [0], [0], [1], [0, 0, 1, 1], [], []>} : vector<64x32xbf16>, vector<32x4xbf16>, vector<64x4xf32> -> vector<64x4xf32>
    %c0_160 = arith.constant 0 : index
    %c0_161 = arith.constant 0 : index
    %286 = vector.load %arg13[%c0_160, %c0_161] : memref<1x4xf32, #tpu.memory_space<vmem>>, vector<1x4xf32>
    %287 = vector.broadcast %286 : vector<1x4xf32> to vector<64x4xf32>
    %288 = arith.addf %285, %287 : vector<64x4xf32>
    %c0_162 = arith.constant 0 : index
    %c0_163 = arith.constant 0 : index
    %289 = vector.load %arg14[%c0_162, %c0_163] : memref<32x32xbf16, #tpu.memory_space<vmem>>, vector<32x32xbf16>
    %cst_164 = arith.constant dense<0.000000e+00> : vector<64x32xf32>
    %290 = tpu.matmul %278, %289, %cst_164 {dimension_numbers = #tpu.dot_dimension_numbers<[1], [0], [0], [1], [0, 0, 1, 1], [], []>} : vector<64x32xbf16>, vector<32x32xbf16>, vector<64x32xf32> -> vector<64x32xf32>
    %c0_165 = arith.constant 0 : index
    %c0_166 = arith.constant 0 : index
    %291 = vector.load %arg15[%c0_165, %c0_166] : memref<1x32xf32, #tpu.memory_space<vmem>>, vector<1x32xf32>
    %292 = vector.broadcast %291 : vector<1x32xf32> to vector<64x32xf32>
    %293 = arith.addf %290, %292 : vector<64x32xf32>
    %294 = arith.truncf %283 : vector<64x4xf32> to vector<64x4xbf16>
    %295 = arith.truncf %288 : vector<64x4xf32> to vector<64x4xbf16>
    %cst_167 = arith.constant dense<0.000000e+00> : vector<64x64xf32>
    %296 = tpu.matmul %294, %295, %cst_167 {dimension_numbers = #tpu.dot_dimension_numbers<[1], [1], [0], [0], [0, 0, 1, 0], [], []>} : vector<64x4xbf16>, vector<64x4xbf16>, vector<64x64xf32> -> vector<64x64xf32>
    %cst_168 = arith.constant dense<0xFF800000> : vector<64xf32>
    %297 = vector.multi_reduction <maximumf>, %296, %cst_168 [1] : vector<64x64xf32> to vector<64xf32>
    %298 = vector.shape_cast %297 : vector<64xf32> to vector<64x1xf32>
    %299 = vector.broadcast %298 : vector<64x1xf32> to vector<64x64xf32>
    %300 = arith.subf %296, %299 : vector<64x64xf32>
    %301 = math.exp %300 : vector<64x64xf32>
    %cst_169 = arith.constant dense<0.000000e+00> : vector<64xf32>
    %302 = vector.multi_reduction <add>, %301, %cst_169 [1] : vector<64x64xf32> to vector<64xf32>
    %303 = vector.shape_cast %302 : vector<64xf32> to vector<64x1xf32>
    %304 = tpu.reciprocal %303 {approx = true} : vector<64x1xf32> -> vector<64x1xf32>
    %305 = vector.broadcast %304 : vector<64x1xf32> to vector<64x64xf32>
    %306 = arith.mulf %301, %305 : vector<64x64xf32>
    %307 = arith.truncf %306 : vector<64x64xf32> to vector<64x64xbf16>
    %308 = arith.truncf %293 : vector<64x32xf32> to vector<64x32xbf16>
    %cst_170 = arith.constant dense<0.000000e+00> : vector<64x32xf32>
    %309 = tpu.matmul %307, %308, %cst_170 {dimension_numbers = #tpu.dot_dimension_numbers<[1], [0], [0], [1], [0, 0, 1, 1], [], []>} : vector<64x64xbf16>, vector<64x32xbf16>, vector<64x32xf32> -> vector<64x32xf32>
    %c0_171 = arith.constant 0 : index
    %c0_172 = arith.constant 0 : index
    %310 = vector.load %arg16[%c0_171, %c0_172] : memref<1x1xf32, #tpu.memory_space<vmem>>, vector<1x1xf32>
    %311 = vector.extract %310[0, 0] : f32 from vector<1x1xf32>
    %312 = vector.broadcast %311 : f32 to vector<64x32xf32>
    %313 = arith.mulf %312, %309 : vector<64x32xf32>
    %314 = arith.addf %313, %277 : vector<64x32xf32>
    %cst_173 = arith.constant 0.000000e+00 : f32
    %315 = vector.broadcast %cst_173 : f32 to vector<10x320xf32>
    %c0_174 = arith.constant 0 : index
    %c0_175 = arith.constant 0 : index
    %316 = vector.load %arg29[%c0_174, %c0_175] : memref<10x320xf32, #tpu.memory_space<vmem>>, vector<10x320xf32>
    tpu.vector_store %arg29[%c0_174, %c0_175], %315 {strides = array<i32>} : memref<10x320xf32, #tpu.memory_space<vmem>>, vector<10x320xf32>,
    %317 = vector.shape_cast %314 : vector<64x32xf32> to vector<8x8x32xf32>
    %318 = vector.extract_strided_slice %317 {offsets = [0, 0, 0], sizes = [8, 1, 32], strides = [1, 1, 1]} : vector<8x8x32xf32> to vector<8x1x32xf32>
    %319 = vector.shape_cast %318 : vector<8x1x32xf32> to vector<8x32xf32>
    %c1_176 = arith.constant 1 : index
    %c32 = arith.constant 32 : index
    %320 = vector.load %arg29[%c1_176, %c32] : memref<10x320xf32, #tpu.memory_space<vmem>>, vector<8x32xf32>
    tpu.vector_store %arg29[%c1_176, %c32], %319 {strides = array<i32>} : memref<10x320xf32, #tpu.memory_space<vmem>>, vector<8x32xf32>,
    %321 = vector.extract_strided_slice %317 {offsets = [0, 1, 0], sizes = [8, 1, 32], strides = [1, 1, 1]} : vector<8x8x32xf32> to vector<8x1x32xf32>
    %322 = vector.shape_cast %321 : vector<8x1x32xf32> to vector<8x32xf32>
    %c1_177 = arith.constant 1 : index
    %c64 = arith.constant 64 : index
    %323 = vector.load %arg29[%c1_177, %c64] : memref<10x320xf32, #tpu.memory_space<vmem>>, vector<8x32xf32>
    tpu.vector_store %arg29[%c1_177, %c64], %322 {strides = array<i32>} : memref<10x320xf32, #tpu.memory_space<vmem>>, vector<8x32xf32>,
    %324 = vector.extract_strided_slice %317 {offsets = [0, 2, 0], sizes = [8, 1, 32], strides = [1, 1, 1]} : vector<8x8x32xf32> to vector<8x1x32xf32>
    %325 = vector.shape_cast %324 : vector<8x1x32xf32> to vector<8x32xf32>
    %c1_178 = arith.constant 1 : index
    %c96 = arith.constant 96 : index
    %326 = vector.load %arg29[%c1_178, %c96] : memref<10x320xf32, #tpu.memory_space<vmem>>, vector<8x32xf32>
    tpu.vector_store %arg29[%c1_178, %c96], %325 {strides = array<i32>} : memref<10x320xf32, #tpu.memory_space<vmem>>, vector<8x32xf32>,
    %327 = vector.extract_strided_slice %317 {offsets = [0, 3, 0], sizes = [8, 1, 32], strides = [1, 1, 1]} : vector<8x8x32xf32> to vector<8x1x32xf32>
    %328 = vector.shape_cast %327 : vector<8x1x32xf32> to vector<8x32xf32>
    %c1_179 = arith.constant 1 : index
    %c128 = arith.constant 128 : index
    %329 = vector.load %arg29[%c1_179, %c128] : memref<10x320xf32, #tpu.memory_space<vmem>>, vector<8x32xf32>
    tpu.vector_store %arg29[%c1_179, %c128], %328 {strides = array<i32>} : memref<10x320xf32, #tpu.memory_space<vmem>>, vector<8x32xf32>,
    %330 = vector.extract_strided_slice %317 {offsets = [0, 4, 0], sizes = [8, 1, 32], strides = [1, 1, 1]} : vector<8x8x32xf32> to vector<8x1x32xf32>
    %331 = vector.shape_cast %330 : vector<8x1x32xf32> to vector<8x32xf32>
    %c1_180 = arith.constant 1 : index
    %c160 = arith.constant 160 : index
    %332 = vector.load %arg29[%c1_180, %c160] : memref<10x320xf32, #tpu.memory_space<vmem>>, vector<8x32xf32>
    tpu.vector_store %arg29[%c1_180, %c160], %331 {strides = array<i32>} : memref<10x320xf32, #tpu.memory_space<vmem>>, vector<8x32xf32>,
    %333 = vector.extract_strided_slice %317 {offsets = [0, 5, 0], sizes = [8, 1, 32], strides = [1, 1, 1]} : vector<8x8x32xf32> to vector<8x1x32xf32>
    %334 = vector.shape_cast %333 : vector<8x1x32xf32> to vector<8x32xf32>
    %c1_181 = arith.constant 1 : index
    %c192 = arith.constant 192 : index
    %335 = vector.load %arg29[%c1_181, %c192] : memref<10x320xf32, #tpu.memory_space<vmem>>, vector<8x32xf32>
    tpu.vector_store %arg29[%c1_181, %c192], %334 {strides = array<i32>} : memref<10x320xf32, #tpu.memory_space<vmem>>, vector<8x32xf32>,
    %336 = vector.extract_strided_slice %317 {offsets = [0, 6, 0], sizes = [8, 1, 32], strides = [1, 1, 1]} : vector<8x8x32xf32> to vector<8x1x32xf32>
    %337 = vector.shape_cast %336 : vector<8x1x32xf32> to vector<8x32xf32>
    %c1_182 = arith.constant 1 : index
    %c224 = arith.constant 224 : index
    %338 = vector.load %arg29[%c1_182, %c224] : memref<10x320xf32, #tpu.memory_space<vmem>>, vector<8x32xf32>
    tpu.vector_store %arg29[%c1_182, %c224], %337 {strides = array<i32>} : memref<10x320xf32, #tpu.memory_space<vmem>>, vector<8x32xf32>,
    %339 = vector.extract_strided_slice %317 {offsets = [0, 7, 0], sizes = [8, 1, 32], strides = [1, 1, 1]} : vector<8x8x32xf32> to vector<8x1x32xf32>
    %340 = vector.shape_cast %339 : vector<8x1x32xf32> to vector<8x32xf32>
    %c1_183 = arith.constant 1 : index
    %c256 = arith.constant 256 : index
    %341 = vector.load %arg29[%c1_183, %c256] : memref<10x320xf32, #tpu.memory_space<vmem>>, vector<8x32xf32>
    tpu.vector_store %arg29[%c1_183, %c256], %340 {strides = array<i32>} : memref<10x320xf32, #tpu.memory_space<vmem>>, vector<8x32xf32>,
    %c0_184 = arith.constant 0 : index
    %c0_185 = arith.constant 0 : index
    %342 = vector.load %arg29[%c0_184, %c0_185] : memref<10x320xf32, #tpu.memory_space<vmem>>, vector<10x320xf32>
    %343 = arith.truncf %342 : vector<10x320xf32> to vector<10x320xbf16>
    %cst_186 = arith.constant 0.000000e+00 : f32
    %344 = vector.broadcast %cst_186 : f32 to vector<4x256xf32>
    %345 = tpu.iota {dimensions = array<i32: 1>} : vector<4x10xi32>
    %346 = tpu.iota {dimensions = array<i32: 0>} : vector<4x10xi32>
    %c2_i32_187 = arith.constant 2 : i32
    %347 = vector.broadcast %c2_i32_187 : i32 to vector<4x10xi32>
    %348 = arith.muli %347, %346 : vector<4x10xi32>
    %c0_i32_188 = arith.constant 0 : i32
    %349 = vector.broadcast %c0_i32_188 : i32 to vector<4x10xi32>
    %350 = arith.addi %348, %349 : vector<4x10xi32>
    %351 = arith.cmpi eq, %345, %350 : vector<4x10xi32>
    %cst_189 = arith.constant 1.000000e+00 : f32
    %cst_190 = arith.constant 0.000000e+00 : f32
    %352 = vector.broadcast %cst_189 : f32 to vector<4x10xf32>
    %353 = vector.broadcast %cst_190 : f32 to vector<4x10xf32>
    %354 = arith.select %351, %352, %353 : vector<4x10xi1>, vector<4x10xf32>
    %355 = arith.truncf %354 : vector<4x10xf32> to vector<4x10xbf16>
    %cst_191 = arith.constant dense<0.000000e+00> : vector<4x320xf32>
    %356 = tpu.matmul %355, %343, %cst_191 {dimension_numbers = #tpu.dot_dimension_numbers<[1], [0], [0], [1], [0, 0, 1, 1], [], []>} : vector<4x10xbf16>, vector<10x320xbf16>, vector<4x320xf32> -> vector<4x320xf32>
    %357 = arith.truncf %356 : vector<4x320xf32> to vector<4x320xbf16>
    %c0_192 = arith.constant 0 : index
    %c0_193 = arith.constant 0 : index
    %c0_194 = arith.constant 0 : index
    %358 = vector.load %arg8[%c0_192, %c0_193, %c0_194] : memref<4x320x256xbf16, #tpu.memory_space<vmem>>, vector<1x320x256xbf16>
    %359 = vector.shape_cast %358 : vector<1x320x256xbf16> to vector<320x256xbf16>
    %cst_195 = arith.constant dense<0.000000e+00> : vector<4x256xf32>
    %360 = tpu.matmul %357, %359, %cst_195 {dimension_numbers = #tpu.dot_dimension_numbers<[1], [0], [0], [1], [0, 0, 1, 1], [], []>} : vector<4x320xbf16>, vector<320x256xbf16>, vector<4x256xf32> -> vector<4x256xf32>
    %361 = arith.addf %344, %360 : vector<4x256xf32>
    %362 = tpu.iota {dimensions = array<i32: 1>} : vector<4x10xi32>
    %363 = tpu.iota {dimensions = array<i32: 0>} : vector<4x10xi32>
    %c2_i32_196 = arith.constant 2 : i32
    %364 = vector.broadcast %c2_i32_196 : i32 to vector<4x10xi32>
    %365 = arith.muli %364, %363 : vector<4x10xi32>
    %c1_i32_197 = arith.constant 1 : i32
    %366 = vector.broadcast %c1_i32_197 : i32 to vector<4x10xi32>
    %367 = arith.addi %365, %366 : vector<4x10xi32>
    %368 = arith.cmpi eq, %362, %367 : vector<4x10xi32>
    %cst_198 = arith.constant 1.000000e+00 : f32
    %cst_199 = arith.constant 0.000000e+00 : f32
    %369 = vector.broadcast %cst_198 : f32 to vector<4x10xf32>
    %370 = vector.broadcast %cst_199 : f32 to vector<4x10xf32>
    %371 = arith.select %368, %369, %370 : vector<4x10xi1>, vector<4x10xf32>
    %372 = arith.truncf %371 : vector<4x10xf32> to vector<4x10xbf16>
    %cst_200 = arith.constant dense<0.000000e+00> : vector<4x320xf32>
    %373 = tpu.matmul %372, %343, %cst_200 {dimension_numbers = #tpu.dot_dimension_numbers<[1], [0], [0], [1], [0, 0, 1, 1], [], []>} : vector<4x10xbf16>, vector<10x320xbf16>, vector<4x320xf32> -> vector<4x320xf32>
    %374 = arith.truncf %373 : vector<4x320xf32> to vector<4x320xbf16>
    %c1_201 = arith.constant 1 : index
    %c0_202 = arith.constant 0 : index
    %c0_203 = arith.constant 0 : index
    %375 = vector.load %arg8[%c1_201, %c0_202, %c0_203] : memref<4x320x256xbf16, #tpu.memory_space<vmem>>, vector<1x320x256xbf16>
    %376 = vector.shape_cast %375 : vector<1x320x256xbf16> to vector<320x256xbf16>
    %cst_204 = arith.constant dense<0.000000e+00> : vector<4x256xf32>
    %377 = tpu.matmul %374, %376, %cst_204 {dimension_numbers = #tpu.dot_dimension_numbers<[1], [0], [0], [1], [0, 0, 1, 1], [], []>} : vector<4x320xbf16>, vector<320x256xbf16>, vector<4x256xf32> -> vector<4x256xf32>
    %378 = arith.addf %361, %377 : vector<4x256xf32>
    %379 = tpu.iota {dimensions = array<i32: 1>} : vector<4x10xi32>
    %380 = tpu.iota {dimensions = array<i32: 0>} : vector<4x10xi32>
    %c2_i32_205 = arith.constant 2 : i32
    %381 = vector.broadcast %c2_i32_205 : i32 to vector<4x10xi32>
    %382 = arith.muli %381, %380 : vector<4x10xi32>
    %c2_i32_206 = arith.constant 2 : i32
    %383 = vector.broadcast %c2_i32_206 : i32 to vector<4x10xi32>
    %384 = arith.addi %382, %383 : vector<4x10xi32>
    %385 = arith.cmpi eq, %379, %384 : vector<4x10xi32>
    %cst_207 = arith.constant 1.000000e+00 : f32
    %cst_208 = arith.constant 0.000000e+00 : f32
    %386 = vector.broadcast %cst_207 : f32 to vector<4x10xf32>
    %387 = vector.broadcast %cst_208 : f32 to vector<4x10xf32>
    %388 = arith.select %385, %386, %387 : vector<4x10xi1>, vector<4x10xf32>
    %389 = arith.truncf %388 : vector<4x10xf32> to vector<4x10xbf16>
    %cst_209 = arith.constant dense<0.000000e+00> : vector<4x320xf32>
    %390 = tpu.matmul %389, %343, %cst_209 {dimension_numbers = #tpu.dot_dimension_numbers<[1], [0], [0], [1], [0, 0, 1, 1], [], []>} : vector<4x10xbf16>, vector<10x320xbf16>, vector<4x320xf32> -> vector<4x320xf32>
    %391 = arith.truncf %390 : vector<4x320xf32> to vector<4x320xbf16>
    %c2_210 = arith.constant 2 : index
    %c0_211 = arith.constant 0 : index
    %c0_212 = arith.constant 0 : index
    %392 = vector.load %arg8[%c2_210, %c0_211, %c0_212] : memref<4x320x256xbf16, #tpu.memory_space<vmem>>, vector<1x320x256xbf16>
    %393 = vector.shape_cast %392 : vector<1x320x256xbf16> to vector<320x256xbf16>
    %cst_213 = arith.constant dense<0.000000e+00> : vector<4x256xf32>
    %394 = tpu.matmul %391, %393, %cst_213 {dimension_numbers = #tpu.dot_dimension_numbers<[1], [0], [0], [1], [0, 0, 1, 1], [], []>} : vector<4x320xbf16>, vector<320x256xbf16>, vector<4x256xf32> -> vector<4x256xf32>
    %395 = arith.addf %378, %394 : vector<4x256xf32>
    %396 = tpu.iota {dimensions = array<i32: 1>} : vector<4x10xi32>
    %397 = tpu.iota {dimensions = array<i32: 0>} : vector<4x10xi32>
    %c2_i32_214 = arith.constant 2 : i32
    %398 = vector.broadcast %c2_i32_214 : i32 to vector<4x10xi32>
    %399 = arith.muli %398, %397 : vector<4x10xi32>
    %c3_i32_215 = arith.constant 3 : i32
    %400 = vector.broadcast %c3_i32_215 : i32 to vector<4x10xi32>
    %401 = arith.addi %399, %400 : vector<4x10xi32>
    %402 = arith.cmpi eq, %396, %401 : vector<4x10xi32>
    %cst_216 = arith.constant 1.000000e+00 : f32
    %cst_217 = arith.constant 0.000000e+00 : f32
    %403 = vector.broadcast %cst_216 : f32 to vector<4x10xf32>
    %404 = vector.broadcast %cst_217 : f32 to vector<4x10xf32>
    %405 = arith.select %402, %403, %404 : vector<4x10xi1>, vector<4x10xf32>
    %406 = arith.truncf %405 : vector<4x10xf32> to vector<4x10xbf16>
    %cst_218 = arith.constant dense<0.000000e+00> : vector<4x320xf32>
    %407 = tpu.matmul %406, %343, %cst_218 {dimension_numbers = #tpu.dot_dimension_numbers<[1], [0], [0], [1], [0, 0, 1, 1], [], []>} : vector<4x10xbf16>, vector<10x320xbf16>, vector<4x320xf32> -> vector<4x320xf32>
    %408 = arith.truncf %407 : vector<4x320xf32> to vector<4x320xbf16>
    %c3_219 = arith.constant 3 : index
    %c0_220 = arith.constant 0 : index
    %c0_221 = arith.constant 0 : index
    %409 = vector.load %arg8[%c3_219, %c0_220, %c0_221] : memref<4x320x256xbf16, #tpu.memory_space<vmem>>, vector<1x320x256xbf16>
    %410 = vector.shape_cast %409 : vector<1x320x256xbf16> to vector<320x256xbf16>
    %cst_222 = arith.constant dense<0.000000e+00> : vector<4x256xf32>
    %411 = tpu.matmul %408, %410, %cst_222 {dimension_numbers = #tpu.dot_dimension_numbers<[1], [0], [0], [1], [0, 0, 1, 1], [], []>} : vector<4x320xbf16>, vector<320x256xbf16>, vector<4x256xf32> -> vector<4x256xf32>
    %412 = arith.addf %395, %411 : vector<4x256xf32>
    %c0_223 = arith.constant 0 : index
    %c0_224 = arith.constant 0 : index
    %413 = vector.load %arg9[%c0_223, %c0_224] : memref<1x256xf32, #tpu.memory_space<vmem>>, vector<1x256xf32>
    %414 = vector.broadcast %413 : vector<1x256xf32> to vector<4x256xf32>
    %415 = arith.addf %412, %414 : vector<4x256xf32>
    %cst_225 = arith.constant 0.000000e+00 : f32
    %416 = vector.broadcast %cst_225 : f32 to vector<4x256xf32>
    %417 = arith.cmpf oge, %415, %416 : vector<4x256xf32>
    %cst_226 = arith.constant 1.000000e-01 : f32
    %418 = vector.broadcast %cst_226 : f32 to vector<4x256xf32>
    %419 = arith.mulf %418, %415 : vector<4x256xf32>
    %420 = arith.select %417, %415, %419 : vector<4x256xi1>, vector<4x256xf32>
    %421 = vector.extract_strided_slice %420 {offsets = [0, 0], sizes = [4, 64], strides = [1, 1]} : vector<4x256xf32> to vector<4x64xf32>
    %c0_227 = arith.constant 0 : index
    %c0_228 = arith.constant 0 : index
    %c0_229 = arith.constant 0 : index
    %422 = vector.load %arg31[%c0_227, %c0_228, %c0_229] : memref<4x4x64xf32, #tpu.memory_space<vmem>>, vector<4x1x64xf32>
    %423 = vector.shape_cast %422 : vector<4x1x64xf32> to vector<4x64xf32>
    %424 = vector.shape_cast %421 : vector<4x64xf32> to vector<4x1x64xf32>
    tpu.vector_store %arg31[%c0_227, %c0_228, %c0_229], %424 {strides = array<i32>} : memref<4x4x64xf32, #tpu.memory_space<vmem>>, vector<4x1x64xf32>,
    %425 = vector.extract_strided_slice %420 {offsets = [0, 64], sizes = [4, 64], strides = [1, 1]} : vector<4x256xf32> to vector<4x64xf32>
    %c0_230 = arith.constant 0 : index
    %c1_231 = arith.constant 1 : index
    %c0_232 = arith.constant 0 : index
    %426 = vector.load %arg31[%c0_230, %c1_231, %c0_232] : memref<4x4x64xf32, #tpu.memory_space<vmem>>, vector<4x1x64xf32>
    %427 = vector.shape_cast %426 : vector<4x1x64xf32> to vector<4x64xf32>
    %428 = vector.shape_cast %425 : vector<4x64xf32> to vector<4x1x64xf32>
    tpu.vector_store %arg31[%c0_230, %c1_231, %c0_232], %428 {strides = array<i32>} : memref<4x4x64xf32, #tpu.memory_space<vmem>>, vector<4x1x64xf32>,
    %429 = vector.extract_strided_slice %420 {offsets = [0, 128], sizes = [4, 64], strides = [1, 1]} : vector<4x256xf32> to vector<4x64xf32>
    %c0_233 = arith.constant 0 : index
    %c2_234 = arith.constant 2 : index
    %c0_235 = arith.constant 0 : index
    %430 = vector.load %arg31[%c0_233, %c2_234, %c0_235] : memref<4x4x64xf32, #tpu.memory_space<vmem>>, vector<4x1x64xf32>
    %431 = vector.shape_cast %430 : vector<4x1x64xf32> to vector<4x64xf32>
    %432 = vector.shape_cast %429 : vector<4x64xf32> to vector<4x1x64xf32>
    tpu.vector_store %arg31[%c0_233, %c2_234, %c0_235], %432 {strides = array<i32>} : memref<4x4x64xf32, #tpu.memory_space<vmem>>, vector<4x1x64xf32>,
    %433 = vector.extract_strided_slice %420 {offsets = [0, 192], sizes = [4, 64], strides = [1, 1]} : vector<4x256xf32> to vector<4x64xf32>
    %c0_236 = arith.constant 0 : index
    %c3_237 = arith.constant 3 : index
    %c0_238 = arith.constant 0 : index
    %434 = vector.load %arg31[%c0_236, %c3_237, %c0_238] : memref<4x4x64xf32, #tpu.memory_space<vmem>>, vector<4x1x64xf32>
    %435 = vector.shape_cast %434 : vector<4x1x64xf32> to vector<4x64xf32>
    %436 = vector.shape_cast %433 : vector<4x64xf32> to vector<4x1x64xf32>
    tpu.vector_store %arg31[%c0_236, %c3_237, %c0_238], %436 {strides = array<i32>} : memref<4x4x64xf32, #tpu.memory_space<vmem>>, vector<4x1x64xf32>,
    %c0_239 = arith.constant 0 : index
    %c0_240 = arith.constant 0 : index
    %c0_241 = arith.constant 0 : index
    %437 = vector.load %arg31[%c0_239, %c0_240, %c0_241] : memref<4x4x64xf32, #tpu.memory_space<vmem>>, vector<4x4x64xf32>
    %438 = vector.shape_cast %437 : vector<4x4x64xf32> to vector<16x64xf32>
    %439 = arith.truncf %438 : vector<16x64xf32> to vector<16x64xbf16>
    %c0_242 = arith.constant 0 : index
    %c0_243 = arith.constant 0 : index
    %440 = vector.load %arg17[%c0_242, %c0_243] : memref<64x8xbf16, #tpu.memory_space<vmem>>, vector<64x8xbf16>
    %cst_244 = arith.constant dense<0.000000e+00> : vector<16x8xf32>
    %441 = tpu.matmul %439, %440, %cst_244 {dimension_numbers = #tpu.dot_dimension_numbers<[1], [0], [0], [1], [0, 0, 1, 1], [], []>} : vector<16x64xbf16>, vector<64x8xbf16>, vector<16x8xf32> -> vector<16x8xf32>
    %c0_245 = arith.constant 0 : index
    %c0_246 = arith.constant 0 : index
    %442 = vector.load %arg18[%c0_245, %c0_246] : memref<1x8xf32, #tpu.memory_space<vmem>>, vector<1x8xf32>
    %443 = vector.broadcast %442 : vector<1x8xf32> to vector<16x8xf32>
    %444 = arith.addf %441, %443 : vector<16x8xf32>
    %c0_247 = arith.constant 0 : index
    %c0_248 = arith.constant 0 : index
    %445 = vector.load %arg19[%c0_247, %c0_248] : memref<64x8xbf16, #tpu.memory_space<vmem>>, vector<64x8xbf16>
    %cst_249 = arith.constant dense<0.000000e+00> : vector<16x8xf32>
    %446 = tpu.matmul %439, %445, %cst_249 {dimension_numbers = #tpu.dot_dimension_numbers<[1], [0], [0], [1], [0, 0, 1, 1], [], []>} : vector<16x64xbf16>, vector<64x8xbf16>, vector<16x8xf32> -> vector<16x8xf32>
    %c0_250 = arith.constant 0 : index
    %c0_251 = arith.constant 0 : index
    %447 = vector.load %arg20[%c0_250, %c0_251] : memref<1x8xf32, #tpu.memory_space<vmem>>, vector<1x8xf32>
    %448 = vector.broadcast %447 : vector<1x8xf32> to vector<16x8xf32>
    %449 = arith.addf %446, %448 : vector<16x8xf32>
    %c0_252 = arith.constant 0 : index
    %c0_253 = arith.constant 0 : index
    %450 = vector.load %arg21[%c0_252, %c0_253] : memref<64x64xbf16, #tpu.memory_space<vmem>>, vector<64x64xbf16>
    %cst_254 = arith.constant dense<0.000000e+00> : vector<16x64xf32>
    %451 = tpu.matmul %439, %450, %cst_254 {dimension_numbers = #tpu.dot_dimension_numbers<[1], [0], [0], [1], [0, 0, 1, 1], [], []>} : vector<16x64xbf16>, vector<64x64xbf16>, vector<16x64xf32> -> vector<16x64xf32>
    %c0_255 = arith.constant 0 : index
    %c0_256 = arith.constant 0 : index
    %452 = vector.load %arg22[%c0_255, %c0_256] : memref<1x64xf32, #tpu.memory_space<vmem>>, vector<1x64xf32>
    %453 = vector.broadcast %452 : vector<1x64xf32> to vector<16x64xf32>
    %454 = arith.addf %451, %453 : vector<16x64xf32>
    %455 = arith.truncf %444 : vector<16x8xf32> to vector<16x8xbf16>
    %456 = arith.truncf %449 : vector<16x8xf32> to vector<16x8xbf16>
    %cst_257 = arith.constant dense<0.000000e+00> : vector<16x16xf32>
    %457 = tpu.matmul %455, %456, %cst_257 {dimension_numbers = #tpu.dot_dimension_numbers<[1], [1], [0], [0], [0, 0, 1, 0], [], []>} : vector<16x8xbf16>, vector<16x8xbf16>, vector<16x16xf32> -> vector<16x16xf32>
    %cst_258 = arith.constant dense<0xFF800000> : vector<16xf32>
    %458 = vector.multi_reduction <maximumf>, %457, %cst_258 [1] : vector<16x16xf32> to vector<16xf32>
    %459 = vector.shape_cast %458 : vector<16xf32> to vector<16x1xf32>
    %460 = vector.broadcast %459 : vector<16x1xf32> to vector<16x16xf32>
    %461 = arith.subf %457, %460 : vector<16x16xf32>
    %462 = math.exp %461 : vector<16x16xf32>
    %cst_259 = arith.constant dense<0.000000e+00> : vector<16xf32>
    %463 = vector.multi_reduction <add>, %462, %cst_259 [1] : vector<16x16xf32> to vector<16xf32>
    %464 = vector.shape_cast %463 : vector<16xf32> to vector<16x1xf32>
    %465 = tpu.reciprocal %464 {approx = true} : vector<16x1xf32> -> vector<16x1xf32>
    %466 = vector.broadcast %465 : vector<16x1xf32> to vector<16x16xf32>
    %467 = arith.mulf %462, %466 : vector<16x16xf32>
    %468 = arith.truncf %467 : vector<16x16xf32> to vector<16x16xbf16>
    %469 = arith.truncf %454 : vector<16x64xf32> to vector<16x64xbf16>
    %cst_260 = arith.constant dense<0.000000e+00> : vector<16x64xf32>
    %470 = tpu.matmul %468, %469, %cst_260 {dimension_numbers = #tpu.dot_dimension_numbers<[1], [0], [0], [1], [0, 0, 1, 1], [], []>} : vector<16x16xbf16>, vector<16x64xbf16>, vector<16x64xf32> -> vector<16x64xf32>
    %c0_261 = arith.constant 0 : index
    %c0_262 = arith.constant 0 : index
    %471 = vector.load %arg23[%c0_261, %c0_262] : memref<1x1xf32, #tpu.memory_space<vmem>>, vector<1x1xf32>
    %472 = vector.extract %471[0, 0] : f32 from vector<1x1xf32>
    %473 = vector.broadcast %472 : f32 to vector<16x64xf32>
    %474 = arith.mulf %473, %470 : vector<16x64xf32>
    %475 = arith.addf %474, %438 : vector<16x64xf32>
    %c0_263 = arith.constant 0 : index
    %c0_264 = arith.constant 0 : index
    %476 = vector.load %arg24[%c0_263, %c0_264] : memref<16x64xf32, #tpu.memory_space<vmem>>, vector<16x64xf32>
    %477 = arith.mulf %475, %476 : vector<16x64xf32>
    %cst_265 = arith.constant dense<0.000000e+00> : vector<16xf32>
    %478 = vector.multi_reduction <add>, %477, %cst_265 [1] : vector<16x64xf32> to vector<16xf32>
    %479 = vector.shape_cast %478 : vector<16xf32> to vector<16x1xf32>
    %cst_266 = arith.constant dense<0.000000e+00> : vector<1xf32>
    %480 = vector.multi_reduction <add>, %479, %cst_266 [0] : vector<16x1xf32> to vector<1xf32>
    %481 = vector.shape_cast %480 : vector<1xf32> to vector<1x1xf32>
    %cst_267 = arith.constant 0.000000e+00 : f32
    %482 = vector.broadcast %cst_267 : f32 to vector<8x128xf32>
    %c0_268 = arith.constant 0 : index
    %c0_269 = arith.constant 0 : index
    %483 = vector.load %arg25[%c0_268, %c0_269] : memref<1x1xf32, #tpu.memory_space<vmem>>, vector<1x1xf32>
    %484 = arith.addf %481, %483 : vector<1x1xf32>
    %485 = vector.broadcast %484 : vector<1x1xf32> to vector<8x128xf32>
    %486 = arith.addf %482, %485 : vector<8x128xf32>
    %c0_270 = arith.constant 0 : index
    %c0_271 = arith.constant 0 : index
    %c0_272 = arith.constant 0 : index
    %487 = vector.load %arg26[%c0_270, %c0_271, %c0_272] : memref<1x8x128xf32, #tpu.memory_space<vmem>>, vector<1x8x128xf32>
    %488 = vector.shape_cast %487 : vector<1x8x128xf32> to vector<8x128xf32>
    %489 = vector.shape_cast %486 : vector<8x128xf32> to vector<1x8x128xf32>
    tpu.vector_store %arg26[%c0_270, %c0_271, %c0_272], %489 {strides = array<i32>} : memref<1x8x128xf32, #tpu.memory_space<vmem>>, vector<1x8x128xf32>,
    return
  }
  func.func @transform_0(%arg0: i32) -> (i32, i32, i32) {
    %c0_i32 = arith.constant 0 : i32
    %c0_i32_0 = arith.constant 0 : i32
    %c0_i32_1 = arith.constant 0 : i32
    return %arg0, %c0_i32, %c0_i32_0 : i32, i32, i32
  }
  func.func @transform_1(%arg0: i32) -> (i32, i32, i32) {
    %c0_i32 = arith.constant 0 : i32
    %c0_i32_0 = arith.constant 0 : i32
    %c0_i32_1 = arith.constant 0 : i32
    %c0_i32_2 = arith.constant 0 : i32
    return %c0_i32, %c0_i32_0, %c0_i32_1 : i32, i32, i32
  }
  func.func @transform_2(%arg0: i32) -> (i32, i32) {
    %c0_i32 = arith.constant 0 : i32
    %c0_i32_0 = arith.constant 0 : i32
    %c0_i32_1 = arith.constant 0 : i32
    return %c0_i32, %c0_i32_0 : i32, i32
  }
  func.func @transform_3(%arg0: i32) -> (i32, i32, i32) {
    %c0_i32 = arith.constant 0 : i32
    %c0_i32_0 = arith.constant 0 : i32
    %c0_i32_1 = arith.constant 0 : i32
    %c0_i32_2 = arith.constant 0 : i32
    return %c0_i32, %c0_i32_0, %c0_i32_1 : i32, i32, i32
  }
  func.func @transform_4(%arg0: i32) -> (i32, i32) {
    %c0_i32 = arith.constant 0 : i32
    %c0_i32_0 = arith.constant 0 : i32
    %c0_i32_1 = arith.constant 0 : i32
    return %c0_i32, %c0_i32_0 : i32, i32
  }
  func.func @transform_5(%arg0: i32) -> (i32, i32, i32) {
    %c0_i32 = arith.constant 0 : i32
    %c0_i32_0 = arith.constant 0 : i32
    %c0_i32_1 = arith.constant 0 : i32
    %c0_i32_2 = arith.constant 0 : i32
    return %c0_i32, %c0_i32_0, %c0_i32_1 : i32, i32, i32
  }
  func.func @transform_6(%arg0: i32) -> (i32, i32) {
    %c0_i32 = arith.constant 0 : i32
    %c0_i32_0 = arith.constant 0 : i32
    %c0_i32_1 = arith.constant 0 : i32
    return %c0_i32, %c0_i32_0 : i32, i32
  }
  func.func @transform_7(%arg0: i32) -> (i32, i32, i32) {
    %c0_i32 = arith.constant 0 : i32
    %c0_i32_0 = arith.constant 0 : i32
    %c0_i32_1 = arith.constant 0 : i32
    %c0_i32_2 = arith.constant 0 : i32
    return %c0_i32, %c0_i32_0, %c0_i32_1 : i32, i32, i32
  }
  func.func @transform_8(%arg0: i32) -> (i32, i32) {
    %c0_i32 = arith.constant 0 : i32
    %c0_i32_0 = arith.constant 0 : i32
    %c0_i32_1 = arith.constant 0 : i32
    return %c0_i32, %c0_i32_0 : i32, i32
  }
  func.func @transform_9(%arg0: i32) -> (i32, i32) {
    %c0_i32 = arith.constant 0 : i32
    %c0_i32_0 = arith.constant 0 : i32
    %c0_i32_1 = arith.constant 0 : i32
    return %c0_i32, %c0_i32_0 : i32, i32
  }
  func.func @transform_10(%arg0: i32) -> (i32, i32) {
    %c0_i32 = arith.constant 0 : i32
    %c0_i32_0 = arith.constant 0 : i32
    %c0_i32_1 = arith.constant 0 : i32
    return %c0_i32, %c0_i32_0 : i32, i32
  }
  func.func @transform_11(%arg0: i32) -> (i32, i32) {
    %c0_i32 = arith.constant 0 : i32
    %c0_i32_0 = arith.constant 0 : i32
    %c0_i32_1 = arith.constant 0 : i32
    return %c0_i32, %c0_i32_0 : i32, i32
  }
  func.func @transform_12(%arg0: i32) -> (i32, i32) {
    %c0_i32 = arith.constant 0 : i32
    %c0_i32_0 = arith.constant 0 : i32
    %c0_i32_1 = arith.constant 0 : i32
    return %c0_i32, %c0_i32_0 : i32, i32
  }
  func.func @transform_13(%arg0: i32) -> (i32, i32) {
    %c0_i32 = arith.constant 0 : i32
    %c0_i32_0 = arith.constant 0 : i32
    %c0_i32_1 = arith.constant 0 : i32
    return %c0_i32, %c0_i32_0 : i32, i32
  }
  func.func @transform_14(%arg0: i32) -> (i32, i32) {
    %c0_i32 = arith.constant 0 : i32
    %c0_i32_0 = arith.constant 0 : i32
    %c0_i32_1 = arith.constant 0 : i32
    return %c0_i32, %c0_i32_0 : i32, i32
  }
  func.func @transform_15(%arg0: i32) -> (i32, i32) {
    %c0_i32 = arith.constant 0 : i32
    %c0_i32_0 = arith.constant 0 : i32
    %c0_i32_1 = arith.constant 0 : i32
    return %c0_i32, %c0_i32_0 : i32, i32
  }
  func.func @transform_16(%arg0: i32) -> (i32, i32) {
    %c0_i32 = arith.constant 0 : i32
    %c0_i32_0 = arith.constant 0 : i32
    %c0_i32_1 = arith.constant 0 : i32
    return %c0_i32, %c0_i32_0 : i32, i32
  }
  func.func @transform_17(%arg0: i32) -> (i32, i32) {
    %c0_i32 = arith.constant 0 : i32
    %c0_i32_0 = arith.constant 0 : i32
    %c0_i32_1 = arith.constant 0 : i32
    return %c0_i32, %c0_i32_0 : i32, i32
  }
  func.func @transform_18(%arg0: i32) -> (i32, i32) {
    %c0_i32 = arith.constant 0 : i32
    %c0_i32_0 = arith.constant 0 : i32
    %c0_i32_1 = arith.constant 0 : i32
    return %c0_i32, %c0_i32_0 : i32, i32
  }
  func.func @transform_19(%arg0: i32) -> (i32, i32) {
    %c0_i32 = arith.constant 0 : i32
    %c0_i32_0 = arith.constant 0 : i32
    %c0_i32_1 = arith.constant 0 : i32
    return %c0_i32, %c0_i32_0 : i32, i32
  }
  func.func @transform_20(%arg0: i32) -> (i32, i32) {
    %c0_i32 = arith.constant 0 : i32
    %c0_i32_0 = arith.constant 0 : i32
    %c0_i32_1 = arith.constant 0 : i32
    return %c0_i32, %c0_i32_0 : i32, i32
  }
  func.func @transform_21(%arg0: i32) -> (i32, i32) {
    %c0_i32 = arith.constant 0 : i32
    %c0_i32_0 = arith.constant 0 : i32
    %c0_i32_1 = arith.constant 0 : i32
    return %c0_i32, %c0_i32_0 : i32, i32
  }
  func.func @transform_22(%arg0: i32) -> (i32, i32) {
    %c0_i32 = arith.constant 0 : i32
    %c0_i32_0 = arith.constant 0 : i32
    %c0_i32_1 = arith.constant 0 : i32
    return %c0_i32, %c0_i32_0 : i32, i32
  }
  func.func @transform_23(%arg0: i32) -> (i32, i32) {
    %c0_i32 = arith.constant 0 : i32
    %c0_i32_0 = arith.constant 0 : i32
    %c0_i32_1 = arith.constant 0 : i32
    return %c0_i32, %c0_i32_0 : i32, i32
  }
  func.func @transform_24(%arg0: i32) -> (i32, i32) {
    %c0_i32 = arith.constant 0 : i32
    %c0_i32_0 = arith.constant 0 : i32
    %c0_i32_1 = arith.constant 0 : i32
    return %c0_i32, %c0_i32_0 : i32, i32
  }
  func.func @transform_25(%arg0: i32) -> (i32, i32, i32) {
    %c0_i32 = arith.constant 0 : i32
    %c0_i32_0 = arith.constant 0 : i32
    %c0_i32_1 = arith.constant 0 : i32
    return %arg0, %c0_i32, %c0_i32_0 : i32, i32, i32
  }
}

</mosaic_0001>

<llo_original>
// kernel: tile.23
$region0: #{tile.23}
  #allocation0 [shape = 's32[1]{0}', space=sflag, size = 0x4, scoped, tag = 'scoped memory for tile.23']
  %s0 = inlined_call_operand.vmem [shape: f32[8], index: 0, kind: input, shape index: {}]
  %s1 = inlined_call_operand.vmem [shape: f32[32,8], index: 1, kind: output, shape index: {}]
  // Predicated region
  $region2: #{tile.23} parent=0 // pred_check
    _
  $region3: #{tile.23} parent=0 // pred_check_branch
    %3 = sbr.rel (0) target = $region5
  $region4: #{tile.23} parent=0 // pred_region
    _
  $region5: #{tile.23} parent=0 // pred_fallthru
    _
  %v4 = vld [vmem:[%s0] ss:$0 sm:$0xff]
  %5 = vst [vmem:[%s1] sm:$0xff] %v4
  %s6 = scalar_lea.vmem %s1, 8
  %7 = vst [vmem:[%s6] sm:$0xff] %v4
  %s8 = scalar_lea.vmem %s1, 16
  %9 = vst [vmem:[%s8] sm:$0xff] %v4
  %s10 = scalar_lea.vmem %s1, 24
  %11 = vst [vmem:[%s10] sm:$0xff] %v4

// kernel: tile.24
$region0: #{tile.24}
  %s0 = inlined_call_operand.vmem [shape: f32[32,8], index: 0, kind: input, shape index: {}]
  %s1 = inlined_call_operand.vmem [shape: f32[1,256], index: 1, kind: output, shape index: {}]
  $region1: #{tile.24} parent=0
    #allocation0 [shape = 'u8[8192]{0}', space=vmem, size = 0x2000, scoped, tag = 'scoped mem for output reshape']
    %s2 = smov 3
    %v3 = vld [vmem:[%s0] ss:$16 sm:%s2]
    %vm4 = vcmask 64512
    %5 = vst.msk [vmem:[#allocation0] ss:$8 sm:$0x3] %vm4, %v3
    %s6 = scalar_lea.vmem %s0, 15
    %s7 = smov 3
    %v8 = vld [vmem:[%s6] ss:$16 sm:%s7]
    %9 = vrot.lane.b32.xlu0 %v8, 120
    %v10 = vpop.permute.xlu0 %9
    %vm11 = vcmask 1048512
    %12 = vst.msk [vmem:[#allocation0] ss:$8 sm:$0x3] %vm11, %v10
    %s13 = scalar_lea.vmem %s0, 14
    %s14 = smov 3
    %v15 = vld [vmem:[%s13] ss:$16 sm:%s14]
    %16 = vrot.lane.b32.xlu0 %v15, 112
    %v17 = vpop.permute.xlu0 %16
    %vm18 = vcmask 982912
    %19 = vst.msk [vmem:[#allocation0] ss:$8 sm:$0x3] %vm18, %v17
    %s20 = scalar_lea.vmem %s0, 13
    %s21 = smov 3
    %v22 = vld [vmem:[%s20] ss:$16 sm:%s21]
    %23 = vrot.lane.b32.xlu0 %v22, 104
    %v24 = vpop.permute.xlu0 %23
    %vm25 = vcmask 917312
    %26 = vst.msk [vmem:[#allocation0] ss:$8 sm:$0x3] %vm25, %v24
    %s27 = scalar_lea.vmem %s0, 12
    %s28 = smov 3
    %v29 = vld [vmem:[%s27] ss:$16 sm:%s28]
    %30 = vrot.lane.b32.xlu0 %v29, 96
    %v31 = vpop.permute.xlu0 %30
    %vm32 = vcmask 851712
    %33 = vst.msk [vmem:[#allocation0] ss:$8 sm:$0x3] %vm32, %v31
    %s34 = scalar_lea.vmem %s0, 11
    %s35 = smov 3
    %v36 = vld [vmem:[%s34] ss:$16 sm:%s35]
    %37 = vrot.lane.b32.xlu0 %v36, 88
    %v38 = vpop.permute.xlu0 %37
    %vm39 = vcmask 786112
    %40 = vst.msk [vmem:[#allocation0] ss:$8 sm:$0x3] %vm39, %v38
    %s41 = scalar_lea.vmem %s0, 10
    %s42 = smov 3
    %v43 = vld [vmem:[%s41] ss:$16 sm:%s42]
    %44 = vrot.lane.b32.xlu0 %v43, 80
    %v45 = vpop.permute.xlu0 %44
    %vm46 = vcmask 720512
    %47 = vst.msk [vmem:[#allocation0] ss:$8 sm:$0x3] %vm46, %v45
    %s48 = scalar_lea.vmem %s0, 9
    %s49 = smov 3
    %v50 = vld [vmem:[%s48] ss:$16 sm:%s49]
    %51 = vrot.lane.b32.xlu0 %v50, 72
    %v52 = vpop.permute.xlu0 %51
    %vm53 = vcmask 654912
    %54 = vst.msk [vmem:[#allocation0] ss:$8 sm:$0x3] %vm53, %v52
    %s55 = scalar_lea.vmem %s0, 8
    %s56 = smov 3
    %v57 = vld [vmem:[%s55] ss:$16 sm:%s56]
    %58 = vrot.lane.b32.xlu0 %v57, 64
    %v59 = vpop.permute.xlu0 %58
    %vm60 = vcmask 589312
    %61 = vst.msk [vmem:[#allocation0] ss:$8 sm:$0x3] %vm60, %v59
    %s62 = scalar_lea.vmem %s0, 7
    %s63 = smov 3
    %v64 = vld [vmem:[%s62] ss:$16 sm:%s63]
    %65 = vrot.lane.b32.xlu0 %v64, 56
    %v66 = vpop.permute.xlu0 %65
    %vm67 = vcmask 523712
    %68 = vst.msk [vmem:[#allocation0] ss:$8 sm:$0x3] %vm67, %v66
    %s69 = scalar_lea.vmem %s0, 6
    %s70 = smov 3
    %v71 = vld [vmem:[%s69] ss:$16 sm:%s70]
    %72 = vrot.lane.b32.xlu0 %v71, 48
    %v73 = vpop.permute.xlu0 %72
    %vm74 = vcmask 458112
    %75 = vst.msk [vmem:[#allocation0] ss:$8 sm:$0x3] %vm74, %v73
    %s76 = scalar_lea.vmem %s0, 5
    %s77 = smov 3
    %v78 = vld [vmem:[%s76] ss:$16 sm:%s77]
    %79 = vrot.lane.b32.xlu0 %v78, 40
    %v80 = vpop.permute.xlu0 %79
    %vm81 = vcmask 392512
    %82 = vst.msk [vmem:[#allocation0] ss:$8 sm:$0x3] %vm81, %v80
    %s83 = scalar_lea.vmem %s0, 4
    %s84 = smov 3
    %v85 = vld [vmem:[%s83] ss:$16 sm:%s84]
    %86 = vrot.lane.b32.xlu0 %v85, 32
    %v87 = vpop.permute.xlu0 %86
    %vm88 = vcmask 326912
    %89 = vst.msk [vmem:[#allocation0] ss:$8 sm:$0x3] %vm88, %v87
    %s90 = scalar_lea.vmem %s0, 3
    %s91 = smov 3
    %v92 = vld [vmem:[%s90] ss:$16 sm:%s91]
    %93 = vrot.lane.b32.xlu0 %v92, 24
    %v94 = vpop.permute.xlu0 %93
    %vm95 = vcmask 261312
    %96 = vst.msk [vmem:[#allocation0] ss:$8 sm:$0x3] %vm95, %v94
    %s97 = scalar_lea.vmem %s0, 2
    %s98 = smov 3
    %v99 = vld [vmem:[%s97] ss:$16 sm:%s98]
    %100 = vrot.lane.b32.xlu0 %v99, 16
    %v101 = vpop.permute.xlu0 %100
    %vm102 = vcmask 195712
    %103 = vst.msk [vmem:[#allocation0] ss:$8 sm:$0x3] %vm102, %v101
    %s104 = scalar_lea.vmem %s0, 1
    %s105 = smov 3
    %v106 = vld [vmem:[%s104] ss:$16 sm:%s105]
    %107 = vrot.lane.b32.xlu0 %v106, 8
    %v108 = vpop.permute.xlu0 %107
    %vm109 = vcmask 130112
    %110 = vst.msk [vmem:[#allocation0] ss:$8 sm:$0x3] %vm109, %v108
    %s112 = sshllo.u32 0, 1
    %v114 = vld [vmem:[#allocation0] sm:%s112]
    %s115 = sshllo.u32 0, 1
    %116 = vst [vmem:[%s1] sm:%s115] %v114
    %s117 = scalar_lea.vmem [#allocation0], 8
    %v118 = vld [vmem:[%s117] sm:%s112]
    %s119 = sshllo.u32 0, 1
    %s120 = scalar_lea.vmem %s1, 1
    %121 = vst [vmem:[%s120] sm:%s119] %v118

// kernel: tile.28
$region0: #{tile.28}
  #allocation0 [shape = 's32[1]{0}', space=sflag, size = 0x4, scoped, tag = 'scoped memory for tile.28']
  %s0 = inlined_call_operand.vmem [shape: f32[16], index: 0, kind: input, shape index: {}]
  %s1 = inlined_call_operand.vmem [shape: f32[16,16], index: 1, kind: output, shape index: {}]
  // Predicated region
  $region2: #{tile.28} parent=0 // pred_check
    _
  $region3: #{tile.28} parent=0 // pred_check_branch
    %3 = sbr.rel (0) target = $region5
  $region4: #{tile.28} parent=0 // pred_region
    _
  $region5: #{tile.28} parent=0 // pred_fallthru
    _
  %v4 = vld [vmem:[%s0] ss:$0 sm:$0xff]
  %5 = vst [vmem:[%s1] sm:$0xff] %v4
  %s6 = scalar_lea.vmem %s1, 8
  %7 = vst [vmem:[%s6] sm:$0xff] %v4

// kernel: tile.29
$region0: #{tile.29}
  %s0 = inlined_call_operand.vmem [shape: f32[16,16], index: 0, kind: input, shape index: {}]
  %s1 = inlined_call_operand.vmem [shape: f32[1,256], index: 1, kind: output, shape index: {}]
  $region1: #{tile.29} parent=0
    #allocation0 [shape = 'u8[8192]{0}', space=vmem, size = 0x2000, scoped, tag = 'scoped mem for output reshape']
    %s2 = smov 3
    %v3 = vld [vmem:[%s0] ss:$8 sm:%s2]
    %vm4 = vcmask 130048
    %5 = vst.msk [vmem:[#allocation0] ss:$8 sm:$0x3] %vm4, %v3
    %s6 = scalar_lea.vmem %s0, 7
    %s7 = smov 3
    %v8 = vld [vmem:[%s6] ss:$8 sm:%s7]
    %9 = vrot.lane.b32.xlu0 %v8, 112
    %v10 = vpop.permute.xlu0 %9
    %vm11 = vcmask 1048448
    %12 = vst.msk [vmem:[#allocation0] ss:$8 sm:$0x3] %vm11, %v10
    %s13 = scalar_lea.vmem %s0, 6
    %s14 = smov 3
    %v15 = vld [vmem:[%s13] ss:$8 sm:%s14]
    %16 = vrot.lane.b32.xlu0 %v15, 96
    %v17 = vpop.permute.xlu0 %16
    %vm18 = vcmask 917248
    %19 = vst.msk [vmem:[#allocation0] ss:$8 sm:$0x3] %vm18, %v17
    %s20 = scalar_lea.vmem %s0, 5
    %s21 = smov 3
    %v22 = vld [vmem:[%s20] ss:$8 sm:%s21]
    %23 = vrot.lane.b32.xlu0 %v22, 80
    %v24 = vpop.permute.xlu0 %23
    %vm25 = vcmask 786048
    %26 = vst.msk [vmem:[#allocation0] ss:$8 sm:$0x3] %vm25, %v24
    %s27 = scalar_lea.vmem %s0, 4
    %s28 = smov 3
    %v29 = vld [vmem:[%s27] ss:$8 sm:%s28]
    %30 = vrot.lane.b32.xlu0 %v29, 64
    %v31 = vpop.permute.xlu0 %30
    %vm32 = vcmask 654848
    %33 = vst.msk [vmem:[#allocation0] ss:$8 sm:$0x3] %vm32, %v31
    %s34 = scalar_lea.vmem %s0, 3
    %s35 = smov 3
    %v36 = vld [vmem:[%s34] ss:$8 sm:%s35]
    %37 = vrot.lane.b32.xlu0 %v36, 48
    %v38 = vpop.permute.xlu0 %37
    %vm39 = vcmask 523648
    %40 = vst.msk [vmem:[#allocation0] ss:$8 sm:$0x3] %vm39, %v38
    %s41 = scalar_lea.vmem %s0, 2
    %s42 = smov 3
    %v43 = vld [vmem:[%s41] ss:$8 sm:%s42]
    %44 = vrot.lane.b32.xlu0 %v43, 32
    %v45 = vpop.permute.xlu0 %44
    %vm46 = vcmask 392448
    %47 = vst.msk [vmem:[#allocation0] ss:$8 sm:$0x3] %vm46, %v45
    %s48 = scalar_lea.vmem %s0, 1
    %s49 = smov 3
    %v50 = vld [vmem:[%s48] ss:$8 sm:%s49]
    %51 = vrot.lane.b32.xlu0 %v50, 16
    %v52 = vpop.permute.xlu0 %51
    %vm53 = vcmask 261248
    %54 = vst.msk [vmem:[#allocation0] ss:$8 sm:$0x3] %vm53, %v52
    %s56 = sshllo.u32 0, 1
    %v58 = vld [vmem:[#allocation0] sm:%s56]
    %s59 = sshllo.u32 0, 1
    %60 = vst [vmem:[%s1] sm:%s59] %v58
    %s61 = scalar_lea.vmem [#allocation0], 8
    %v62 = vld [vmem:[%s61] sm:%s56]
    %s63 = sshllo.u32 0, 1
    %s64 = scalar_lea.vmem %s1, 1
    %65 = vst [vmem:[%s64] sm:%s63] %v62

// kernel: tile.34
$region0: #{tile.34}
  %s0 = inlined_call_operand.vmem [shape: f32[8,32], index: 0, kind: input, shape index: {}]
  %s1 = inlined_call_operand.vmem [shape: f32[1,256], index: 1, kind: output, shape index: {}]
  $region1: #{tile.34} parent=0
    #allocation0 [shape = 'u8[8192]{0}', space=vmem, size = 0x2000, scoped, tag = 'scoped mem for output reshape']
    %s2 = smov 3
    %v3 = vld [vmem:[%s0] ss:$4 sm:%s2]
    %vm4 = vcmask 261120
    %5 = vst.msk [vmem:[#allocation0] ss:$8 sm:$0x3] %vm4, %v3
    %s6 = scalar_lea.vmem %s0, 3
    %s7 = smov 3
    %v8 = vld [vmem:[%s6] ss:$4 sm:%s7]
    %9 = vrot.lane.b32.xlu0 %v8, 96
    %v10 = vpop.permute.xlu0 %9
    %vm11 = vcmask 1048320
    %12 = vst.msk [vmem:[#allocation0] ss:$8 sm:$0x3] %vm11, %v10
    %s13 = scalar_lea.vmem %s0, 2
    %s14 = smov 3
    %v15 = vld [vmem:[%s13] ss:$4 sm:%s14]
    %16 = vrot.lane.b32.xlu0 %v15, 64
    %v17 = vpop.permute.xlu0 %16
    %vm18 = vcmask 785920
    %19 = vst.msk [vmem:[#allocation0] ss:$8 sm:$0x3] %vm18, %v17
    %s20 = scalar_lea.vmem %s0, 1
    %s21 = smov 3
    %v22 = vld [vmem:[%s20] ss:$4 sm:%s21]
    %23 = vrot.lane.b32.xlu0 %v22, 32
    %v24 = vpop.permute.xlu0 %23
    %vm25 = vcmask 523520
    %26 = vst.msk [vmem:[#allocation0] ss:$8 sm:$0x3] %vm25, %v24
    %s28 = sshllo.u32 0, 1
    %v30 = vld [vmem:[#allocation0] sm:%s28]
    %s31 = sshllo.u32 0, 1
    %32 = vst [vmem:[%s1] sm:%s31] %v30
    %s33 = scalar_lea.vmem [#allocation0], 8
    %v34 = vld [vmem:[%s33] sm:%s28]
    %s35 = sshllo.u32 0, 1
    %s36 = scalar_lea.vmem %s1, 1
    %37 = vst [vmem:[%s36] sm:%s35] %v34

// kernel: tile.33
$region0: #{tile.33}
  #allocation0 [shape = 's32[1]{0}', space=sflag, size = 0x4, scoped, tag = 'scoped memory for tile.33']
  %s0 = inlined_call_operand.vmem [shape: f32[32], index: 0, kind: input, shape index: {}]
  %s1 = inlined_call_operand.vmem [shape: f32[8,32], index: 1, kind: output, shape index: {}]
  // Predicated region
  $region2: #{tile.33} parent=0 // pred_check
    _
  $region3: #{tile.33} parent=0 // pred_check_branch
    %3 = sbr.rel (0) target = $region5
  $region4: #{tile.33} parent=0 // pred_region
    _
  $region5: #{tile.33} parent=0 // pred_fallthru
    _
  %v4 = vld [vmem:[%s0] ss:$0 sm:$0xff]
  %5 = vst [vmem:[%s1] sm:$0xff] %v4

// kernel: tile.38
$region0: #{tile.38}
  #allocation0 [shape = 's32[1]{0}', space=sflag, size = 0x4, scoped, tag = 'scoped memory for tile.38']
  %s0 = inlined_call_operand.vmem [shape: f32[64], index: 0, kind: input, shape index: {}]
  %s1 = inlined_call_operand.vmem [shape: f32[4,64], index: 1, kind: output, shape index: {}]
  // Predicated region
  $region2: #{tile.38} parent=0 // pred_check
    _
  $region3: #{tile.38} parent=0 // pred_check_branch
    %3 = sbr.rel (0) target = $region5
  $region4: #{tile.38} parent=0 // pred_region
    _
  $region5: #{tile.38} parent=0 // pred_fallthru
    _
  %v4 = vld [vmem:[%s0] ss:$0 sm:$0xff]
  %5 = vst [vmem:[%s1] sm:$0xf] %v4

// kernel: tile.39
$region0: #{tile.39}
  %s0 = inlined_call_operand.vmem [shape: f32[4,64], index: 0, kind: input, shape index: {}]
  %s1 = inlined_call_operand.vmem [shape: f32[1,256], index: 1, kind: output, shape index: {}]
  $region1: #{tile.39} parent=0
    #allocation0 [shape = 'u8[8192]{0}', space=vmem, size = 0x2000, scoped, tag = 'scoped mem for output reshape']
    #allocation1 [shape = 'u8[4096]{0}', space=vmem, size = 0x1000, scoped, tag = 'scoped mem for input reshape']
    %s3 = sshllo.u32 0, 4
    %v4 = vld [vmem:[%s0] sm:%s3]
    %5 = vst [vmem:[#allocation1] sm:%s3] %v4
    %s6 = smov 3
    %v7 = vld [vmem:[#allocation1] ss:$2 sm:%s6]
    %vm8 = vcmask 523264
    %9 = vst.msk [vmem:[#allocation0] ss:$8 sm:$0x3] %vm8, %v7
    %s10 = scalar_lea.vmem [#allocation1], 1
    %s11 = smov 3
    %v12 = vld [vmem:[%s10] ss:$2 sm:%s11]
    %13 = vrot.lane.b32.xlu0 %v12, 64
    %v14 = vpop.permute.xlu0 %13
    %vm15 = vcmask 1048064
    %16 = vst.msk [vmem:[#allocation0] ss:$8 sm:$0x3] %vm15, %v14
    %s18 = sshllo.u32 0, 1
    %v20 = vld [vmem:[#allocation0] sm:%s18]
    %s21 = sshllo.u32 0, 1
    %22 = vst [vmem:[%s1] sm:%s21] %v20
    %s23 = scalar_lea.vmem [#allocation0], 8
    %v24 = vld [vmem:[%s23] sm:%s18]
    %s25 = sshllo.u32 0, 1
    %s26 = scalar_lea.vmem %s1, 1
    %27 = vst [vmem:[%s26] sm:%s25] %v24

// kernel: forward.1
$region0: #{forward.1}
  #allocation0 [shape = 'u32[]', space=smem, size = 0x4, offset = 0x4, fixed_abs, tag = 'smem constant byte address 0x4 - core index']
  #allocation1 [shape = 'u32[144,128]{1,0:T(1,128)}', space=vmem, size = 0x12000, scoped, tag = 'internal scratch']
  #allocation2 [shape = 'f32[34,272]{1,0:T(8,128)}', space=vmem, size = 0xf000, scoped, tag = 'scratch operand']
  #allocation3 [shape = 'f32[18,288]{1,0:T(8,128)}', space=vmem, size = 0x9000, scoped, tag = 'scratch operand']
  #allocation4 [shape = 'f32[10,320]{1,0:T(8,128)}', space=vmem, size = 0x6000, scoped, tag = 'scratch operand']
  #allocation5 [shape = 'f32[8,8,32]{2,1,0:T(8,128)}', space=vmem, size = 0x8000, scoped, tag = 'scratch operand']
  #allocation6 [shape = 'f32[4,4,64]{2,1,0:T(4,128)}', space=vmem, size = 0x2000, scoped, tag = 'scratch operand']
  #allocation7 [shape = 'f32[1,1]{1,0:T(1,128)S(1)}', space=vmem, size = 0x200, scoped, tag = 'scoped memory for forward.1']
  #allocation8 [shape = 'f32[1,1]{1,0:T(1,128)S(1)}', space=vmem, size = 0x200, scoped, tag = 'scoped memory for forward.1']
  #allocation9 [shape = 'f32[1,1]{1,0:T(1,128)S(1)}', space=vmem, size = 0x200, scoped, tag = 'scoped memory for forward.1']
  %s0 = inlined_call_operand.vmem [shape: f32[2,66,198], index: 0, kind: input, shape index: {}]
  %s1 = inlined_call_operand.vmem [shape: bf16[4,198,256], index: 1, kind: input, shape index: {}]
  %s2 = inlined_call_operand.vmem [shape: f32[1,256], index: 2, kind: input, shape index: {}]
  %s3 = inlined_call_operand.vmem [shape: bf16[4,272,256], index: 3, kind: input, shape index: {}]
  %s4 = inlined_call_operand.vmem [shape: f32[1,256], index: 4, kind: input, shape index: {}]
  %s5 = inlined_call_operand.vmem [shape: bf16[4,288,256], index: 5, kind: input, shape index: {}]
  %s6 = inlined_call_operand.vmem [shape: f32[1,256], index: 6, kind: input, shape index: {}]
  %s7 = inlined_call_operand.vmem [shape: bf16[4,320,256], index: 7, kind: input, shape index: {}]
  %s8 = inlined_call_operand.vmem [shape: f32[1,256], index: 8, kind: input, shape index: {}]
  %s9 = inlined_call_operand.vmem [shape: bf16[32,4], index: 9, kind: input, shape index: {}]
  %s10 = inlined_call_operand.vmem [shape: f32[1,4], index: 10, kind: input, shape index: {}]
  %s11 = inlined_call_operand.vmem [shape: bf16[32,4], index: 11, kind: input, shape index: {}]
  %s12 = inlined_call_operand.vmem [shape: f32[1,4], index: 12, kind: input, shape index: {}]
  %s13 = inlined_call_operand.vmem [shape: bf16[32,32], index: 13, kind: input, shape index: {}]
  %s14 = inlined_call_operand.vmem [shape: f32[1,32], index: 14, kind: input, shape index: {}]
  %s15 = inlined_call_operand.<no memory space> [shape: f32[1,1], index: 15, kind: input, shape index: {}]
  %s16 = inlined_call_operand.vmem [shape: bf16[64,8], index: 16, kind: input, shape index: {}]
  %s17 = inlined_call_operand.vmem [shape: f32[1,8], index: 17, kind: input, shape index: {}]
  %s18 = inlined_call_operand.vmem [shape: bf16[64,8], index: 18, kind: input, shape index: {}]
  %s19 = inlined_call_operand.vmem [shape: f32[1,8], index: 19, kind: input, shape index: {}]
  %s20 = inlined_call_operand.vmem [shape: bf16[64,64], index: 20, kind: input, shape index: {}]
  %s21 = inlined_call_operand.vmem [shape: f32[1,64], index: 21, kind: input, shape index: {}]
  %s22 = inlined_call_operand.<no memory space> [shape: f32[1,1], index: 22, kind: input, shape index: {}]
  %s23 = inlined_call_operand.vmem [shape: f32[16,64], index: 23, kind: input, shape index: {}]
  %s24 = inlined_call_operand.<no memory space> [shape: f32[1,1], index: 24, kind: input, shape index: {}]
  %s25 = inlined_call_operand.vmem [shape: f32[2,8,128], index: 25, kind: output, shape index: {}]
  %s26 = sld [smem:[#allocation0]]
  $region133: #{forward.1} parent=0
    _
  %s28 = ssub.s32 1, %s26
  %s29 = scalar_select 0, %s28, %s26
  %v30 = vstv %s15
  %31 = vst [vmem:[#allocation7] sm:$0x1] %v30
  %v32 = vstv %s22
  %33 = vst [vmem:[#allocation8] sm:$0x1] %v32
  %v34 = vstv %s24
  %35 = vst [vmem:[#allocation9] sm:$0x1] %v34
  loop: start=0, step=1, limit=4
  $region2: #{forward.1} parent=0 // loop_pre_header
    _
  $region3: #{forward.1} parent=0 // loop_header
    %s37 = sphi 0, %s41
    %p38 = scmp.ge.s32.totalorder %s37, 4
    %s47 = sphi 0, %s49
    %s50 = sphi 0, %s47
    %s51 = sphi 0, %s50
    %s67 = sphi 0, %s51
    %s71 = sphi 0, %s71
    %s73 = sphi 0, %s71
    %s74 = sphi 0, %s73
    %s88 = sphi 0, %s74
    %s92 = sphi 0, %s92
    %s94 = sphi 0, %s92
    %s95 = sphi 0, %s94
    %s109 = sphi 0, %s95
    %s113 = sphi 0, %s113
    %s115 = sphi 0, %s113
    %s116 = sphi 0, %s115
    %s130 = sphi 0, %s116
    %s134 = sphi 0, %s134
    %s136 = sphi 0, %s134
    %s137 = sphi 0, %s136
    %s151 = sphi 0, %s137
    %s155 = sphi 0, %s155
    %s157 = sphi 0, %s155
    %s158 = sphi 0, %s157
    %s172 = sphi 0, %s158
    %s176 = sphi 0, %s176
    %s178 = sphi 0, %s176
    %s179 = sphi 0, %s178
    %s193 = sphi 0, %s179
    %s197 = sphi 0, %s197
    %s199 = sphi 0, %s197
    %s200 = sphi 0, %s199
    %s214 = sphi 0, %s200
    %s218 = sphi 0, %s218
    %s220 = sphi 0, %s218
    %s221 = sphi 0, %s220
    %s235 = sphi 0, %s221
    %s239 = sphi 0, %s239
    %s241 = sphi 0, %s239
    %s242 = sphi 0, %s241
    %s256 = sphi 0, %s242
    %s260 = sphi 0, %s260
    %s262 = sphi 0, %s260
    %s263 = sphi 0, %s262
    %s277 = sphi 0, %s263
    %s281 = sphi 0, %s281
    %s283 = sphi 0, %s281
    %s284 = sphi 0, %s283
    %s298 = sphi 0, %s284
    %s302 = sphi 0, %s302
    %s304 = sphi 0, %s302
    %s305 = sphi 0, %s304
    %s319 = sphi 0, %s305
    %s323 = sphi 0, %s323
    %s325 = sphi 0, %s323
    %s326 = sphi 0, %s325
    %s340 = sphi 0, %s326
    %s344 = sphi 0, %s344
    %s346 = sphi 0, %s344
    %s347 = sphi 0, %s346
    %s361 = sphi 0, %s347
    %s365 = sphi 0, %s365
    %s367 = sphi 0, %s365
    %s368 = sphi 0, %s367
    %s382 = sphi 0, %s368
    %s386 = sphi 0, %s386
    %s388 = sphi 0, %s386
    %s389 = sphi 0, %s388
    %s403 = sphi 0, %s389
    %s407 = sphi 0, %s407
    %s409 = sphi 0, %s407
    %s410 = sphi 0, %s409
    %s424 = sphi 0, %s410
    %s428 = sphi 0, %s428
    %s430 = sphi 0, %s428
    %s431 = sphi 0, %s430
    %s445 = sphi 0, %s431
    %s449 = sphi 0, %s449
    %s451 = sphi 0, %s449
    %s452 = sphi 0, %s451
    %s466 = sphi 0, %s452
    %s470 = sphi 0, %s470
    %s472 = sphi 0, %s470
    %s473 = sphi 0, %s472
    %s487 = sphi 0, %s473
    %s491 = sphi 0, %s491
    %s493 = sphi 0, %s491
    %s494 = sphi 0, %s493
    %s508 = sphi 0, %s494
    %s512 = sphi 0, %s512
    %s514 = sphi 0, %s512
    %s515 = sphi 0, %s514
    %s529 = sphi 0, %s515
    %s533 = sphi 0, %s533
    %s535 = sphi 0, %s533
    %s536 = sphi 0, %s535
    %s550 = sphi 0, %s536
    %s554 = sphi 0, %s554
    %s556 = sphi 0, %s554
    %s557 = sphi 0, %s556
    %s571 = sphi 0, %s557
    %s577 = sphi 0, %s579
    %s580 = sphi 0, %s577
    %s581 = sphi 0, %s580
    %s597 = sphi 0, %s581
  $region4: #{forward.1} parent=0 // loop_header_branch
    %40 = sbr.rel (%p38) target = $region8
  $region5: #{forward.1} parent=0 // loop_body
    %s42 = ssub.s32 %s37, 1
    %s43 = ssub.s32 %s37, 2
    %s44 = sadd.s32 %s37, 1
    %s45 = ssub.s32 %s37, %s44
    %p46 = scmp.eq.s32.totalorder %s45, 0
    %s48 = sadd.s32 %s47, 1
    %s49 = scalar_select %p46, %s47, %s48
    %p52 = pneg %p46
    %p53 = scmp.eq.s32.totalorder %s37, 1
    %p54 = por %p52, %p53
    %p55 = scmp.ne.s32.totalorder %s47, %s50
    %p56 = scmp.eq.s32.totalorder %s37, 0
    %p57 = por %p55, %p56
    %p58 = scmp.ne.s32.totalorder %s47, %s50
    %p59 = scmp.eq.s32.totalorder %s42, 1
    %p60 = por %p58, %p59
    %p61 = scmp.ne.s32.totalorder %s50, %s51
    %p62 = scmp.eq.s32.totalorder %s42, 0
    %p63 = por %p61, %p62
    %p64 = scmp.ne.s32.totalorder %s50, %s51
    %p65 = scmp.eq.s32.totalorder %s43, 1
    %p66 = por %p64, %p65
    %p68 = scmp.ne.s32.totalorder %s51, %s67
    %p69 = scmp.eq.s32.totalorder %s43, 0
    %p70 = por %p68, %p69
    %s72 = sadd.s32 %s71, 1
    %p75 = scmp.eq.s32.totalorder %s37, 1
    %p76 = scmp.ne.s32.totalorder %s71, %s73
    %p77 = scmp.eq.s32.totalorder %s37, 0
    %p78 = por %p76, %p77
    %p79 = scmp.ne.s32.totalorder %s71, %s73
    %p80 = scmp.eq.s32.totalorder %s42, 1
    %p81 = por %p79, %p80
    %p82 = scmp.ne.s32.totalorder %s73, %s74
    %p83 = scmp.eq.s32.totalorder %s42, 0
    %p84 = por %p82, %p83
    %p85 = scmp.ne.s32.totalorder %s73, %s74
    %p86 = scmp.eq.s32.totalorder %s43, 1
    %p87 = por %p85, %p86
    %p89 = scmp.ne.s32.totalorder %s74, %s88
    %p90 = scmp.eq.s32.totalorder %s43, 0
    %p91 = por %p89, %p90
    %s93 = sadd.s32 %s92, 1
    %p96 = scmp.eq.s32.totalorder %s37, 1
    %p97 = scmp.ne.s32.totalorder %s92, %s94
    %p98 = scmp.eq.s32.totalorder %s37, 0
    %p99 = por %p97, %p98
    %p100 = scmp.ne.s32.totalorder %s92, %s94
    %p101 = scmp.eq.s32.totalorder %s42, 1
    %p102 = por %p100, %p101
    %p103 = scmp.ne.s32.totalorder %s94, %s95
    %p104 = scmp.eq.s32.totalorder %s42, 0
    %p105 = por %p103, %p104
    %p106 = scmp.ne.s32.totalorder %s94, %s95
    %p107 = scmp.eq.s32.totalorder %s43, 1
    %p108 = por %p106, %p107
    %p110 = scmp.ne.s32.totalorder %s95, %s109
    %p111 = scmp.eq.s32.totalorder %s43, 0
    %p112 = por %p110, %p111
    %s114 = sadd.s32 %s113, 1
    %p117 = scmp.eq.s32.totalorder %s37, 1
    %p118 = scmp.ne.s32.totalorder %s113, %s115
    %p119 = scmp.eq.s32.totalorder %s37, 0
    %p120 = por %p118, %p119
    %p121 = scmp.ne.s32.totalorder %s113, %s115
    %p122 = scmp.eq.s32.totalorder %s42, 1
    %p123 = por %p121, %p122
    %p124 = scmp.ne.s32.totalorder %s115, %s116
    %p125 = scmp.eq.s32.totalorder %s42, 0
    %p126 = por %p124, %p125
    %p127 = scmp.ne.s32.totalorder %s115, %s116
    %p128 = scmp.eq.s32.totalorder %s43, 1
    %p129 = por %p127, %p128
    %p131 = scmp.ne.s32.totalorder %s116, %s130
    %p132 = scmp.eq.s32.totalorder %s43, 0
    %p133 = por %p131, %p132
    %s135 = sadd.s32 %s134, 1
    %p138 = scmp.eq.s32.totalorder %s37, 1
    %p139 = scmp.ne.s32.totalorder %s134, %s136
    %p140 = scmp.eq.s32.totalorder %s37, 0
    %p141 = por %p139, %p140
    %p142 = scmp.ne.s32.totalorder %s134, %s136
    %p143 = scmp.eq.s32.totalorder %s42, 1
    %p144 = por %p142, %p143
    %p145 = scmp.ne.s32.totalorder %s136, %s137
    %p146 = scmp.eq.s32.totalorder %s42, 0
    %p147 = por %p145, %p146
    %p148 = scmp.ne.s32.totalorder %s136, %s137
    %p149 = scmp.eq.s32.totalorder %s43, 1
    %p150 = por %p148, %p149
    %p152 = scmp.ne.s32.totalorder %s137, %s151
    %p153 = scmp.eq.s32.totalorder %s43, 0
    %p154 = por %p152, %p153
    %s156 = sadd.s32 %s155, 1
    %p159 = scmp.eq.s32.totalorder %s37, 1
    %p160 = scmp.ne.s32.totalorder %s155, %s157
    %p161 = scmp.eq.s32.totalorder %s37, 0
    %p162 = por %p160, %p161
    %p163 = scmp.ne.s32.totalorder %s155, %s157
    %p164 = scmp.eq.s32.totalorder %s42, 1
    %p165 = por %p163, %p164
    %p166 = scmp.ne.s32.totalorder %s157, %s158
    %p167 = scmp.eq.s32.totalorder %s42, 0
    %p168 = por %p166, %p167
    %p169 = scmp.ne.s32.totalorder %s157, %s158
    %p170 = scmp.eq.s32.totalorder %s43, 1
    %p171 = por %p169, %p170
    %p173 = scmp.ne.s32.totalorder %s158, %s172
    %p174 = scmp.eq.s32.totalorder %s43, 0
    %p175 = por %p173, %p174
    %s177 = sadd.s32 %s176, 1
    %p180 = scmp.eq.s32.totalorder %s37, 1
    %p181 = scmp.ne.s32.totalorder %s176, %s178
    %p182 = scmp.eq.s32.totalorder %s37, 0
    %p183 = por %p181, %p182
    %p184 = scmp.ne.s32.totalorder %s176, %s178
    %p185 = scmp.eq.s32.totalorder %s42, 1
    %p186 = por %p184, %p185
    %p187 = scmp.ne.s32.totalorder %s178, %s179
    %p188 = scmp.eq.s32.totalorder %s42, 0
    %p189 = por %p187, %p188
    %p190 = scmp.ne.s32.totalorder %s178, %s179
    %p191 = scmp.eq.s32.totalorder %s43, 1
    %p192 = por %p190, %p191
    %p194 = scmp.ne.s32.totalorder %s179, %s193
    %p195 = scmp.eq.s32.totalorder %s43, 0
    %p196 = por %p194, %p195
    %s198 = sadd.s32 %s197, 1
    %p201 = scmp.eq.s32.totalorder %s37, 1
    %p202 = scmp.ne.s32.totalorder %s197, %s199
    %p203 = scmp.eq.s32.totalorder %s37, 0
    %p204 = por %p202, %p203
    %p205 = scmp.ne.s32.totalorder %s197, %s199
    %p206 = scmp.eq.s32.totalorder %s42, 1
    %p207 = por %p205, %p206
    %p208 = scmp.ne.s32.totalorder %s199, %s200
    %p209 = scmp.eq.s32.totalorder %s42, 0
    %p210 = por %p208, %p209
    %p211 = scmp.ne.s32.totalorder %s199, %s200
    %p212 = scmp.eq.s32.totalorder %s43, 1
    %p213 = por %p211, %p212
    %p215 = scmp.ne.s32.totalorder %s200, %s214
    %p216 = scmp.eq.s32.totalorder %s43, 0
    %p217 = por %p215, %p216
    %s219 = sadd.s32 %s218, 1
    %p222 = scmp.eq.s32.totalorder %s37, 1
    %p223 = scmp.ne.s32.totalorder %s218, %s220
    %p224 = scmp.eq.s32.totalorder %s37, 0
    %p225 = por %p223, %p224
    %p226 = scmp.ne.s32.totalorder %s218, %s220
    %p227 = scmp.eq.s32.totalorder %s42, 1
    %p228 = por %p226, %p227
    %p229 = scmp.ne.s32.totalorder %s220, %s221
    %p230 = scmp.eq.s32.totalorder %s42, 0
    %p231 = por %p229, %p230
    %p232 = scmp.ne.s32.totalorder %s220, %s221
    %p233 = scmp.eq.s32.totalorder %s43, 1
    %p234 = por %p232, %p233
    %p236 = scmp.ne.s32.totalorder %s221, %s235
    %p237 = scmp.eq.s32.totalorder %s43, 0
    %p238 = por %p236, %p237
    %s240 = sadd.s32 %s239, 1
    %p243 = scmp.eq.s32.totalorder %s37, 1
    %p244 = scmp.ne.s32.totalorder %s239, %s241
    %p245 = scmp.eq.s32.totalorder %s37, 0
    %p246 = por %p244, %p245
    %p247 = scmp.ne.s32.totalorder %s239, %s241
    %p248 = scmp.eq.s32.totalorder %s42, 1
    %p249 = por %p247, %p248
    %p250 = scmp.ne.s32.totalorder %s241, %s242
    %p251 = scmp.eq.s32.totalorder %s42, 0
    %p252 = por %p250, %p251
    %p253 = scmp.ne.s32.totalorder %s241, %s242
    %p254 = scmp.eq.s32.totalorder %s43, 1
    %p255 = por %p253, %p254
    %p257 = scmp.ne.s32.totalorder %s242, %s256
    %p258 = scmp.eq.s32.totalorder %s43, 0
    %p259 = por %p257, %p258
    %s261 = sadd.s32 %s260, 1
    %p264 = scmp.eq.s32.totalorder %s37, 1
    %p265 = scmp.ne.s32.totalorder %s260, %s262
    %p266 = scmp.eq.s32.totalorder %s37, 0
    %p267 = por %p265, %p266
    %p268 = scmp.ne.s32.totalorder %s260, %s262
    %p269 = scmp.eq.s32.totalorder %s42, 1
    %p270 = por %p268, %p269
    %p271 = scmp.ne.s32.totalorder %s262, %s263
    %p272 = scmp.eq.s32.totalorder %s42, 0
    %p273 = por %p271, %p272
    %p274 = scmp.ne.s32.totalorder %s262, %s263
    %p275 = scmp.eq.s32.totalorder %s43, 1
    %p276 = por %p274, %p275
    %p278 = scmp.ne.s32.totalorder %s263, %s277
    %p279 = scmp.eq.s32.totalorder %s43, 0
    %p280 = por %p278, %p279
    %s282 = sadd.s32 %s281, 1
    %p285 = scmp.eq.s32.totalorder %s37, 1
    %p286 = scmp.ne.s32.totalorder %s281, %s283
    %p287 = scmp.eq.s32.totalorder %s37, 0
    %p288 = por %p286, %p287
    %p289 = scmp.ne.s32.totalorder %s281, %s283
    %p290 = scmp.eq.s32.totalorder %s42, 1
    %p291 = por %p289, %p290
    %p292 = scmp.ne.s32.totalorder %s283, %s284
    %p293 = scmp.eq.s32.totalorder %s42, 0
    %p294 = por %p292, %p293
    %p295 = scmp.ne.s32.totalorder %s283, %s284
    %p296 = scmp.eq.s32.totalorder %s43, 1
    %p297 = por %p295, %p296
    %p299 = scmp.ne.s32.totalorder %s284, %s298
    %p300 = scmp.eq.s32.totalorder %s43, 0
    %p301 = por %p299, %p300
    %s303 = sadd.s32 %s302, 1
    %p306 = scmp.eq.s32.totalorder %s37, 1
    %p307 = scmp.ne.s32.totalorder %s302, %s304
    %p308 = scmp.eq.s32.totalorder %s37, 0
    %p309 = por %p307, %p308
    %p310 = scmp.ne.s32.totalorder %s302, %s304
    %p311 = scmp.eq.s32.totalorder %s42, 1
    %p312 = por %p310, %p311
    %p313 = scmp.ne.s32.totalorder %s304, %s305
    %p314 = scmp.eq.s32.totalorder %s42, 0
    %p315 = por %p313, %p314
    %p316 = scmp.ne.s32.totalorder %s304, %s305
    %p317 = scmp.eq.s32.totalorder %s43, 1
    %p318 = por %p316, %p317
    %p320 = scmp.ne.s32.totalorder %s305, %s319
    %p321 = scmp.eq.s32.totalorder %s43, 0
    %p322 = por %p320, %p321
    %s324 = sadd.s32 %s323, 1
    %p327 = scmp.eq.s32.totalorder %s37, 1
    %p328 = scmp.ne.s32.totalorder %s323, %s325
    %p329 = scmp.eq.s32.totalorder %s37, 0
    %p330 = por %p328, %p329
    %p331 = scmp.ne.s32.totalorder %s323, %s325
    %p332 = scmp.eq.s32.totalorder %s42, 1
    %p333 = por %p331, %p332
    %p334 = scmp.ne.s32.totalorder %s325, %s326
    %p335 = scmp.eq.s32.totalorder %s42, 0
    %p336 = por %p334, %p335
    %p337 = scmp.ne.s32.totalorder %s325, %s326
    %p338 = scmp.eq.s32.totalorder %s43, 1
    %p339 = por %p337, %p338
    %p341 = scmp.ne.s32.totalorder %s326, %s340
    %p342 = scmp.eq.s32.totalorder %s43, 0
    %p343 = por %p341, %p342
    %s345 = sadd.s32 %s344, 1
    %p348 = scmp.eq.s32.totalorder %s37, 1
    %p349 = scmp.ne.s32.totalorder %s344, %s346
    %p350 = scmp.eq.s32.totalorder %s37, 0
    %p351 = por %p349, %p350
    %p352 = scmp.ne.s32.totalorder %s344, %s346
    %p353 = scmp.eq.s32.totalorder %s42, 1
    %p354 = por %p352, %p353
    %p355 = scmp.ne.s32.totalorder %s346, %s347
    %p356 = scmp.eq.s32.totalorder %s42, 0
    %p357 = por %p355, %p356
    %p358 = scmp.ne.s32.totalorder %s346, %s347
    %p359 = scmp.eq.s32.totalorder %s43, 1
    %p360 = por %p358, %p359
    %p362 = scmp.ne.s32.totalorder %s347, %s361
    %p363 = scmp.eq.s32.totalorder %s43, 0
    %p364 = por %p362, %p363
    %s366 = sadd.s32 %s365, 1
    %p369 = scmp.eq.s32.totalorder %s37, 1
    %p370 = scmp.ne.s32.totalorder %s365, %s367
    %p371 = scmp.eq.s32.totalorder %s37, 0
    %p372 = por %p370, %p371
    %p373 = scmp.ne.s32.totalorder %s365, %s367
    %p374 = scmp.eq.s32.totalorder %s42, 1
    %p375 = por %p373, %p374
    %p376 = scmp.ne.s32.totalorder %s367, %s368
    %p377 = scmp.eq.s32.totalorder %s42, 0
    %p378 = por %p376, %p377
    %p379 = scmp.ne.s32.totalorder %s367, %s368
    %p380 = scmp.eq.s32.totalorder %s43, 1
    %p381 = por %p379, %p380
    %p383 = scmp.ne.s32.totalorder %s368, %s382
    %p384 = scmp.eq.s32.totalorder %s43, 0
    %p385 = por %p383, %p384
    %s387 = sadd.s32 %s386, 1
    %p390 = scmp.eq.s32.totalorder %s37, 1
    %p391 = scmp.ne.s32.totalorder %s386, %s388
    %p392 = scmp.eq.s32.totalorder %s37, 0
    %p393 = por %p391, %p392
    %p394 = scmp.ne.s32.totalorder %s386, %s388
    %p395 = scmp.eq.s32.totalorder %s42, 1
    %p396 = por %p394, %p395
    %p397 = scmp.ne.s32.totalorder %s388, %s389
    %p398 = scmp.eq.s32.totalorder %s42, 0
    %p399 = por %p397, %p398
    %p400 = scmp.ne.s32.totalorder %s388, %s389
    %p401 = scmp.eq.s32.totalorder %s43, 1
    %p402 = por %p400, %p401
    %p404 = scmp.ne.s32.totalorder %s389, %s403
    %p405 = scmp.eq.s32.totalorder %s43, 0
    %p406 = por %p404, %p405
    %s408 = sadd.s32 %s407, 1
    %p411 = scmp.eq.s32.totalorder %s37, 1
    %p412 = scmp.ne.s32.totalorder %s407, %s409
    %p413 = scmp.eq.s32.totalorder %s37, 0
    %p414 = por %p412, %p413
    %p415 = scmp.ne.s32.totalorder %s407, %s409
    %p416 = scmp.eq.s32.totalorder %s42, 1
    %p417 = por %p415, %p416
    %p418 = scmp.ne.s32.totalorder %s409, %s410
    %p419 = scmp.eq.s32.totalorder %s42, 0
    %p420 = por %p418, %p419
    %p421 = scmp.ne.s32.totalorder %s409, %s410
    %p422 = scmp.eq.s32.totalorder %s43, 1
    %p423 = por %p421, %p422
    %p425 = scmp.ne.s32.totalorder %s410, %s424
    %p426 = scmp.eq.s32.totalorder %s43, 0
    %p427 = por %p425, %p426
    %s429 = sadd.s32 %s428, 1
    %p432 = scmp.eq.s32.totalorder %s37, 1
    %p433 = scmp.ne.s32.totalorder %s428, %s430
    %p434 = scmp.eq.s32.totalorder %s37, 0
    %p435 = por %p433, %p434
    %p436 = scmp.ne.s32.totalorder %s428, %s430
    %p437 = scmp.eq.s32.totalorder %s42, 1
    %p438 = por %p436, %p437
    %p439 = scmp.ne.s32.totalorder %s430, %s431
    %p440 = scmp.eq.s32.totalorder %s42, 0
    %p441 = por %p439, %p440
    %p442 = scmp.ne.s32.totalorder %s430, %s431
    %p443 = scmp.eq.s32.totalorder %s43, 1
    %p444 = por %p442, %p443
    %p446 = scmp.ne.s32.totalorder %s431, %s445
    %p447 = scmp.eq.s32.totalorder %s43, 0
    %p448 = por %p446, %p447
    %s450 = sadd.s32 %s449, 1
    %p453 = scmp.eq.s32.totalorder %s37, 1
    %p454 = scmp.ne.s32.totalorder %s449, %s451
    %p455 = scmp.eq.s32.totalorder %s37, 0
    %p456 = por %p454, %p455
    %p457 = scmp.ne.s32.totalorder %s449, %s451
    %p458 = scmp.eq.s32.totalorder %s42, 1
    %p459 = por %p457, %p458
    %p460 = scmp.ne.s32.totalorder %s451, %s452
    %p461 = scmp.eq.s32.totalorder %s42, 0
    %p462 = por %p460, %p461
    %p463 = scmp.ne.s32.totalorder %s451, %s452
    %p464 = scmp.eq.s32.totalorder %s43, 1
    %p465 = por %p463, %p464
    %p467 = scmp.ne.s32.totalorder %s452, %s466
    %p468 = scmp.eq.s32.totalorder %s43, 0
    %p469 = por %p467, %p468
    %s471 = sadd.s32 %s470, 1
    %p474 = scmp.eq.s32.totalorder %s37, 1
    %p475 = scmp.ne.s32.totalorder %s470, %s472
    %p476 = scmp.eq.s32.totalorder %s37, 0
    %p477 = por %p475, %p476
    %p478 = scmp.ne.s32.totalorder %s470, %s472
    %p479 = scmp.eq.s32.totalorder %s42, 1
    %p480 = por %p478, %p479
    %p481 = scmp.ne.s32.totalorder %s472, %s473
    %p482 = scmp.eq.s32.totalorder %s42, 0
    %p483 = por %p481, %p482
    %p484 = scmp.ne.s32.totalorder %s472, %s473
    %p485 = scmp.eq.s32.totalorder %s43, 1
    %p486 = por %p484, %p485
    %p488 = scmp.ne.s32.totalorder %s473, %s487
    %p489 = scmp.eq.s32.totalorder %s43, 0
    %p490 = por %p488, %p489
    %s492 = sadd.s32 %s491, 1
    %p495 = scmp.eq.s32.totalorder %s37, 1
    %p496 = scmp.ne.s32.totalorder %s491, %s493
    %p497 = scmp.eq.s32.totalorder %s37, 0
    %p498 = por %p496, %p497
    %p499 = scmp.ne.s32.totalorder %s491, %s493
    %p500 = scmp.eq.s32.totalorder %s42, 1
    %p501 = por %p499, %p500
    %p502 = scmp.ne.s32.totalorder %s493, %s494
    %p503 = scmp.eq.s32.totalorder %s42, 0
    %p504 = por %p502, %p503
    %p505 = scmp.ne.s32.totalorder %s493, %s494
    %p506 = scmp.eq.s32.totalorder %s43, 1
    %p507 = por %p505, %p506
    %p509 = scmp.ne.s32.totalorder %s494, %s508
    %p510 = scmp.eq.s32.totalorder %s43, 0
    %p511 = por %p509, %p510
    %s513 = sadd.s32 %s512, 1
    %p516 = scmp.eq.s32.totalorder %s37, 1
    %p517 = scmp.ne.s32.totalorder %s512, %s514
    %p518 = scmp.eq.s32.totalorder %s37, 0
    %p519 = por %p517, %p518
    %p520 = scmp.ne.s32.totalorder %s512, %s514
    %p521 = scmp.eq.s32.totalorder %s42, 1
    %p522 = por %p520, %p521
    %p523 = scmp.ne.s32.totalorder %s514, %s515
    %p524 = scmp.eq.s32.totalorder %s42, 0
    %p525 = por %p523, %p524
    %p526 = scmp.ne.s32.totalorder %s514, %s515
    %p527 = scmp.eq.s32.totalorder %s43, 1
    %p528 = por %p526, %p527
    %p530 = scmp.ne.s32.totalorder %s515, %s529
    %p531 = scmp.eq.s32.totalorder %s43, 0
    %p532 = por %p530, %p531
    %s534 = sadd.s32 %s533, 1
    %p537 = scmp.eq.s32.totalorder %s37, 1
    %p538 = scmp.ne.s32.totalorder %s533, %s535
    %p539 = scmp.eq.s32.totalorder %s37, 0
    %p540 = por %p538, %p539
    %p541 = scmp.ne.s32.totalorder %s533, %s535
    %p542 = scmp.eq.s32.totalorder %s42, 1
    %p543 = por %p541, %p542
    %p544 = scmp.ne.s32.totalorder %s535, %s536
    %p545 = scmp.eq.s32.totalorder %s42, 0
    %p546 = por %p544, %p545
    %p547 = scmp.ne.s32.totalorder %s535, %s536
    %p548 = scmp.eq.s32.totalorder %s43, 1
    %p549 = por %p547, %p548
    %p551 = scmp.ne.s32.totalorder %s536, %s550
    %p552 = scmp.eq.s32.totalorder %s43, 0
    %p553 = por %p551, %p552
    %s555 = sadd.s32 %s554, 1
    %p558 = scmp.eq.s32.totalorder %s37, 1
    %p559 = scmp.ne.s32.totalorder %s554, %s556
    %p560 = scmp.eq.s32.totalorder %s37, 0
    %p561 = por %p559, %p560
    %p562 = scmp.ne.s32.totalorder %s554, %s556
    %p563 = scmp.eq.s32.totalorder %s42, 1
    %p564 = por %p562, %p563
    %p565 = scmp.ne.s32.totalorder %s556, %s557
    %p566 = scmp.eq.s32.totalorder %s42, 0
    %p567 = por %p565, %p566
    %p568 = scmp.ne.s32.totalorder %s556, %s557
    %p569 = scmp.eq.s32.totalorder %s43, 1
    %p570 = por %p568, %p569
    %p572 = scmp.ne.s32.totalorder %s557, %s571
    %p573 = scmp.eq.s32.totalorder %s43, 0
    %p574 = por %p572, %p573
    %s575 = ssub.s32 %s37, %s44
    %p576 = scmp.eq.s32.totalorder %s575, 0
    %s578 = sadd.s32 %s577, 1
    %s579 = scalar_select %p576, %s577, %s578
    %p582 = pneg %p576
    %p583 = scmp.eq.s32.totalorder %s37, 1
    %p584 = por %p582, %p583
    %p585 = scmp.ne.s32.totalorder %s577, %s580
    %p586 = scmp.eq.s32.totalorder %s37, 0
    %p587 = por %p585, %p586
    %p588 = scmp.ne.s32.totalorder %s577, %s580
    %p589 = scmp.eq.s32.totalorder %s42, 1
    %p590 = por %p588, %p589
    %p591 = scmp.ne.s32.totalorder %s580, %s581
    %p592 = scmp.eq.s32.totalorder %s42, 0
    %p593 = por %p591, %p592
    %p594 = scmp.ne.s32.totalorder %s580, %s581
    %p595 = scmp.eq.s32.totalorder %s43, 1
    %p596 = por %p594, %p595
    %p598 = scmp.ne.s32.totalorder %s581, %s597
    %p599 = scmp.eq.s32.totalorder %s43, 0
    %p600 = por %p598, %p599
    %p601 = scmp.le.s32.totalorder 1, %s37
    %p602 = scmp.lt.s32.totalorder %s37, 3
    %p603 = pnand %p601, %p602
    %p604 = pneg %p603
    // Predicated region
    $region9: #{forward.1} parent=5 // pred_check
      _
    $region10: #{forward.1} parent=5 // pred_check_branch
      %606 = sbr.rel (%p603) target = $region12
    $region11: #{forward.1} parent=5 // pred_region
      %s607 = ssub.s32 %s37, 1
      // Predicated region
      $region13: #{forward.1} parent=11 // pred_check
        %p608 = pneg %p84
      $region14: #{forward.1} parent=11 // pred_check_branch
        %610 = sbr.rel (%p608) target = $region16
      $region15: #{forward.1} parent=11 // pred_region
        _
      $region16: #{forward.1} parent=11 // pred_fallthru
        _
      // Predicated region
      $region17: #{forward.1} parent=11 // pred_check
        %p611 = pneg %p105
      $region18: #{forward.1} parent=11 // pred_check_branch
        %613 = sbr.rel (%p611) target = $region20
      $region19: #{forward.1} parent=11 // pred_region
        _
      $region20: #{forward.1} parent=11 // pred_fallthru
        _
      // Predicated region
      $region21: #{forward.1} parent=11 // pred_check
        %p614 = pneg %p126
      $region22: #{forward.1} parent=11 // pred_check_branch
        %616 = sbr.rel (%p614) target = $region24
      $region23: #{forward.1} parent=11 // pred_region
        _
      $region24: #{forward.1} parent=11 // pred_fallthru
        _
      // Predicated region
      $region25: #{forward.1} parent=11 // pred_check
        %p617 = pneg %p147
      $region26: #{forward.1} parent=11 // pred_check_branch
        %619 = sbr.rel (%p617) target = $region28
      $region27: #{forward.1} parent=11 // pred_region
        _
      $region28: #{forward.1} parent=11 // pred_fallthru
        _
      // Predicated region
      $region29: #{forward.1} parent=11 // pred_check
        %p620 = pneg %p168
      $region30: #{forward.1} parent=11 // pred_check_branch
        %622 = sbr.rel (%p620) target = $region32
      $region31: #{forward.1} parent=11 // pred_region
        _
      $region32: #{forward.1} parent=11 // pred_fallthru
        _
      // Predicated region
      $region33: #{forward.1} parent=11 // pred_check
        %p623 = pneg %p189
      $region34: #{forward.1} parent=11 // pred_check_branch
        %625 = sbr.rel (%p623) target = $region36
      $region35: #{forward.1} parent=11 // pred_region
        _
      $region36: #{forward.1} parent=11 // pred_fallthru
        _
      // Predicated region
      $region37: #{forward.1} parent=11 // pred_check
        %p626 = pneg %p210
      $region38: #{forward.1} parent=11 // pred_check_branch
        %628 = sbr.rel (%p626) target = $region40
      $region39: #{forward.1} parent=11 // pred_region
        _
      $region40: #{forward.1} parent=11 // pred_fallthru
        _
      // Predicated region
      $region41: #{forward.1} parent=11 // pred_check
        %p629 = pneg %p231
      $region42: #{forward.1} parent=11 // pred_check_branch
        %631 = sbr.rel (%p629) target = $region44
      $region43: #{forward.1} parent=11 // pred_region
        _
      $region44: #{forward.1} parent=11 // pred_fallthru
        _
      // Predicated region
      $region45: #{forward.1} parent=11 // pred_check
        %p632 = pneg %p252
      $region46: #{forward.1} parent=11 // pred_check_branch
        %634 = sbr.rel (%p632) target = $region48
      $region47: #{forward.1} parent=11 // pred_region
        _
      $region48: #{forward.1} parent=11 // pred_fallthru
        _
      // Predicated region
      $region49: #{forward.1} parent=11 // pred_check
        %p635 = pneg %p273
      $region50: #{forward.1} parent=11 // pred_check_branch
        %637 = sbr.rel (%p635) target = $region52
      $region51: #{forward.1} parent=11 // pred_region
        _
      $region52: #{forward.1} parent=11 // pred_fallthru
        _
      // Predicated region
      $region53: #{forward.1} parent=11 // pred_check
        %p638 = pneg %p294
      $region54: #{forward.1} parent=11 // pred_check_branch
        %640 = sbr.rel (%p638) target = $region56
      $region55: #{forward.1} parent=11 // pred_region
        _
      $region56: #{forward.1} parent=11 // pred_fallthru
        _
      // Predicated region
      $region57: #{forward.1} parent=11 // pred_check
        %p641 = pneg %p315
      $region58: #{forward.1} parent=11 // pred_check_branch
        %643 = sbr.rel (%p641) target = $region60
      $region59: #{forward.1} parent=11 // pred_region
        _
      $region60: #{forward.1} parent=11 // pred_fallthru
        _
      // Predicated region
      $region61: #{forward.1} parent=11 // pred_check
        %p644 = pneg %p336
      $region62: #{forward.1} parent=11 // pred_check_branch
        %646 = sbr.rel (%p644) target = $region64
      $region63: #{forward.1} parent=11 // pred_region
        _
      $region64: #{forward.1} parent=11 // pred_fallthru
        _
      // Predicated region
      $region65: #{forward.1} parent=11 // pred_check
        %p647 = pneg %p357
      $region66: #{forward.1} parent=11 // pred_check_branch
        %649 = sbr.rel (%p647) target = $region68
      $region67: #{forward.1} parent=11 // pred_region
        _
      $region68: #{forward.1} parent=11 // pred_fallthru
        _
      // Predicated region
      $region69: #{forward.1} parent=11 // pred_check
        %p650 = pneg %p378
      $region70: #{forward.1} parent=11 // pred_check_branch
        %652 = sbr.rel (%p650) target = $region72
      $region71: #{forward.1} parent=11 // pred_region
        _
      $region72: #{forward.1} parent=11 // pred_fallthru
        _
      // Predicated region
      $region73: #{forward.1} parent=11 // pred_check
        %p653 = pneg %p399
      $region74: #{forward.1} parent=11 // pred_check_branch
        %655 = sbr.rel (%p653) target = $region76
      $region75: #{forward.1} parent=11 // pred_region
        _
      $region76: #{forward.1} parent=11 // pred_fallthru
        _
      // Predicated region
      $region77: #{forward.1} parent=11 // pred_check
        %p656 = pneg %p420
      $region78: #{forward.1} parent=11 // pred_check_branch
        %658 = sbr.rel (%p656) target = $region80
      $region79: #{forward.1} parent=11 // pred_region
        _
      $region80: #{forward.1} parent=11 // pred_fallthru
        _
      // Predicated region
      $region81: #{forward.1} parent=11 // pred_check
        %p659 = pneg %p441
      $region82: #{forward.1} parent=11 // pred_check_branch
        %661 = sbr.rel (%p659) target = $region84
      $region83: #{forward.1} parent=11 // pred_region
        _
      $region84: #{forward.1} parent=11 // pred_fallthru
        _
      // Predicated region
      $region85: #{forward.1} parent=11 // pred_check
        %p662 = pneg %p462
      $region86: #{forward.1} parent=11 // pred_check_branch
        %664 = sbr.rel (%p662) target = $region88
      $region87: #{forward.1} parent=11 // pred_region
        _
      $region88: #{forward.1} parent=11 // pred_fallthru
        _
      // Predicated region
      $region89: #{forward.1} parent=11 // pred_check
        %p665 = pneg %p483
      $region90: #{forward.1} parent=11 // pred_check_branch
        %667 = sbr.rel (%p665) target = $region92
      $region91: #{forward.1} parent=11 // pred_region
        _
      $region92: #{forward.1} parent=11 // pred_fallthru
        _
      // Predicated region
      $region93: #{forward.1} parent=11 // pred_check
        %p668 = pneg %p504
      $region94: #{forward.1} parent=11 // pred_check_branch
        %670 = sbr.rel (%p668) target = $region96
      $region95: #{forward.1} parent=11 // pred_region
        _
      $region96: #{forward.1} parent=11 // pred_fallthru
        _
      // Predicated region
      $region97: #{forward.1} parent=11 // pred_check
        %p671 = pneg %p525
      $region98: #{forward.1} parent=11 // pred_check_branch
        %673 = sbr.rel (%p671) target = $region100
      $region99: #{forward.1} parent=11 // pred_region
        _
      $region100: #{forward.1} parent=11 // pred_fallthru
        _
      // Predicated region
      $region101: #{forward.1} parent=11 // pred_check
        %p674 = pneg %p546
      $region102: #{forward.1} parent=11 // pred_check_branch
        %676 = sbr.rel (%p674) target = $region104
      $region103: #{forward.1} parent=11 // pred_region
        _
      $region104: #{forward.1} parent=11 // pred_fallthru
        _
      // Predicated region
      $region105: #{forward.1} parent=11 // pred_check
        %p677 = pneg %p567
      $region106: #{forward.1} parent=11 // pred_check_branch
        %679 = sbr.rel (%p677) target = $region108
      $region107: #{forward.1} parent=11 // pred_region
        _
      $region108: #{forward.1} parent=11 // pred_fallthru
        _
    $region12: #{forward.1} parent=5 // pred_fallthru
      _
    %p680 = scmp.lt.s32.totalorder %s37, 2
    // Predicated region
    $region109: #{forward.1} parent=5 // pred_check
      %p681 = pneg %p680
    $region110: #{forward.1} parent=5 // pred_check_branch
      %683 = sbr.rel (%p681) target = $region112
    $region111: #{forward.1} parent=5 // pred_region
      // Predicated region
      $region113: #{forward.1} parent=111 // pred_check
        %p684 = pneg %p57
      $region114: #{forward.1} parent=111 // pred_check_branch
        %686 = sbr.rel (%p684) target = $region116
      $region115: #{forward.1} parent=111 // pred_region
        %p687 = scmp.lt.s32.totalorder %s37, 1
        %s688 = scalar_select %p687, %s37, 1
        %s689 = smul.addr %s688, 18
        %s690 = smul.addr %s689, 8
        %s691 = scalar_lea.vmem %s0, %s690
      $region116: #{forward.1} parent=111 // pred_fallthru
        _
    $region112: #{forward.1} parent=5 // pred_fallthru
      _
    %p692 = scmp.le.s32.totalorder 1, %s37
    %p693 = scmp.lt.s32.totalorder %s37, 3
    %p694 = pnand %p692, %p693
    %p695 = pneg %p694
    // Predicated region
    $region117: #{forward.1} parent=5 // pred_check
      _
    $region118: #{forward.1} parent=5 // pred_check_branch
      %697 = sbr.rel (%p694) target = $region120
    $region119: #{forward.1} parent=5 // pred_region
      %s698 = ssub.s32 %s37, 1
      %p699 = scmp.lt.s32.totalorder %s42, 1
      %s700 = scalar_select %p699, %s42, 1
      %s701 = smul.addr %s700, 18
      %s702 = smul.addr %s701, 8
      %s703 = scalar_lea.vmem %s0, %s702
      %p704 = pneg %p63
      %p705 = pneg %p60
      %p706 = pneg %p84
      %p707 = pneg %p81
      %p708 = pneg %p105
      %p709 = pneg %p102
      %p710 = pneg %p126
      %p711 = pneg %p123
      %p712 = pneg %p147
      %p713 = pneg %p144
      %p714 = pneg %p168
      %p715 = pneg %p165
      %p716 = pneg %p189
      %p717 = pneg %p186
      %p718 = pneg %p210
      %p719 = pneg %p207
      %p720 = pneg %p231
      %p721 = pneg %p228
      %p722 = pneg %p252
      %p723 = pneg %p249
      %p724 = pneg %p273
      %p725 = pneg %p270
      %p726 = pneg %p294
      %p727 = pneg %p291
      %p728 = pneg %p315
      %p729 = pneg %p312
      %p730 = pneg %p336
      %p731 = pneg %p333
      %p732 = pneg %p357
      %p733 = pneg %p354
      %p734 = pneg %p378
      %p735 = pneg %p375
      %p736 = pneg %p399
      %p737 = pneg %p396
      %p738 = pneg %p420
      %p739 = pneg %p417
      %p740 = pneg %p441
      %p741 = pneg %p438
      %p742 = pneg %p462
      %p743 = pneg %p459
      %p744 = pneg %p483
      %p745 = pneg %p480
      %p746 = pneg %p504
      %p747 = pneg %p501
      %p748 = pneg %p525
      %p749 = pneg %p522
      %p750 = pneg %p546
      %p751 = pneg %p543
      %p752 = pneg %p567
      %p753 = pneg %p564
      %p754 = pneg %p593
      %p755 = pneg %p590
      %p756 = scmp.lt.s32.totalorder %s42, 1
      %s757 = scalar_select %p756, %s42, 1
      %s758 = smul.addr %s757, 8
      %s759 = scalar_lea.vmem %s25, %s758
      %p760 = scmp.lt.s32.totalorder %s42, 1
      %s761 = scalar_select %p760, %s42, 1
      %s762 = smul.addr %s761, 18
      %s763 = smul.addr %s762, 8
      %s764 = scalar_lea.vmem %s0, %s763
      %p765 = scmp.lt.s32.totalorder %s42, 1
      %s766 = scalar_select %p765, %s42, 1
      %s767 = smul.addr %s766, 8
      %s768 = scalar_lea.vmem %s25, %s767
      %v770 = vld [vmem:[%s764] sm:$0xff]
      %v771 = vld [vmem:[%s764 + $0x8] sm:$0xff]
      %v772 = vld [vmem:[%s764 + $0x10] sm:$0xff]
      %v773 = vld [vmem:[%s764 + $0x18] sm:$0xff]
      %v774 = vld [vmem:[%s764 + $0x20] sm:$0xff]
      %v775 = vld [vmem:[%s764 + $0x28] sm:$0xff]
      %v776 = vld [vmem:[%s764 + $0x30] sm:$0xff]
      %v777 = vld [vmem:[%s764 + $0x38] sm:$0xff]
      %v778 = vld [vmem:[%s764 + $0x40] sm:$0xff]
      %v779 = vld [vmem:[%s764 + $0x48] sm:$0xff]
      %v780 = vld [vmem:[%s764 + $0x50] sm:$0xff]
      %v781 = vld [vmem:[%s764 + $0x58] sm:$0xff]
      %v782 = vld [vmem:[%s764 + $0x60] sm:$0xff]
      %v783 = vld [vmem:[%s764 + $0x68] sm:$0xff]
      %v784 = vld [vmem:[%s764 + $0x70] sm:$0xff]
      %v785 = vld [vmem:[%s764 + $0x78] sm:$0xff]
      %v786 = vld [vmem:[%s764 + $0x80] sm:$0x3]
      %v787 = vld [vmem:[%s764 + $0x88] sm:$0x3]
      %v788 = vpack.c.bf16 %v772, %v770
      %v789 = vpack.c.bf16 %v773, %v771
      %v790 = vpack.c.bf16 %v776, %v774
      %v791 = vpack.c.bf16 %v777, %v775
      %v792 = vpack.c.bf16 %v780, %v778
      %v793 = vpack.c.bf16 %v781, %v779
      %v794 = vpack.c.bf16 %v784, %v782
      %v795 = vpack.c.bf16 %v785, %v783
      %v796 = vpack.c.bf16 %v786, %v786
      %v797 = vpack.c.bf16 %v787, %v787
      %v798 = vlaneseq
      %v799 = vand.u32 %v798, 127
      %v800 = vlaneseq
      %v801 = vshrl.u32 %v800, 7
      %v802 = vadd.s32 %v801, 8
      %v803 = vadd.s32 %v801, 16
      %v804 = vadd.s32 %v801, 24
      %v805 = vmul.u32 %v801, 2
      %v806 = vmul.u32 %v802, 2
      %v807 = vmul.u32 %v803, 2
      %v808 = vmul.u32 %v804, 2
      %vm809 = vcmp.eq.s32.totalorder %v799, %v805
      %vm810 = vcmp.eq.s32.totalorder %v799, %v806
      %vm811 = vcmp.eq.s32.totalorder %v799, %v807
      %vm812 = vcmp.eq.s32.totalorder %v799, %v808
      %v813 = vsel %vm809, 1.0, 0.0
      %v814 = vsel %vm810, 1.0, 0.0
      %v815 = vsel %vm811, 1.0, 0.0
      %v816 = vsel %vm812, 1.0, 0.0
      %v817 = vpack.c.bf16 %v814, %v813
      %v818 = vpack.c.bf16 %v816, %v815
      %vm819 = vcmask 539648
      %v821 = vsel %vm819, %v817, 0
      %v824 = vsel %vm819, %v818, 0
      %vm826 = vcmask 1040384
      %v828 = vsel %vm826, %v796, 0
      %v831 = vsel %vm826, %v797, 0
      %833 = vmatprep.subr.bf16.mxu0 %v789
      %834 = vmatpush1.bf16.msra.mxu0 %v788
      %835 = vmatprep.subr.bf16.mxu0 %v791
      %836 = vmatpush1.bf16.msra.mxu0 %v790
      %837 = vmatprep.subr.bf16.mxu0 %v793
      %838 = vmatpush1.bf16.msra.mxu0 %v792
      %839 = vmatprep.subr.bf16.mxu0 %v795
      %840 = vmatpush1.bf16.msra.mxu0 %v794
      %841 = vmatprep.subr.bf16.mxu0 %v831
      %842 = vmatpush1.bf16.msra.mxu0 %v828
      %843 = vmatprep.subr.bf16.mxu0 0
      %844 = vmatpush1.bf16.msra.mxu0 0
      %845 = vmatprep.subr.bf16.mxu0 0
      %846 = vmatpush1.bf16.msra.mxu0 0
      %847 = vmatprep.subr.bf16.mxu0 0
      %848 = vmatpush1.bf16.msra.mxu0 0
      %849 = vmatprep.subr.bf16.mxu0 0
      %850 = vmatpush1.bf16.msra.mxu0 0
      %851 = vmatprep.subr.bf16.mxu0 0
      %852 = vmatpush1.bf16.msra.mxu0 0
      %853 = vmatprep.subr.bf16.mxu0 0
      %854 = vmatpush1.bf16.msra.mxu0 0
      %855 = vmatprep.subr.bf16.mxu0 0
      %856 = vmatpush1.bf16.msra.mxu0 0
      %857 = vmatprep.subr.bf16.mxu0 0
      %858 = vmatpush1.bf16.msra.mxu0 0
      %859 = vmatprep.subr.bf16.mxu0 0
      %860 = vmatpush1.bf16.msra.mxu0 0
      %861 = vmatprep.subr.bf16.mxu0 0
      %862 = vmatpush1.bf16.msra.mxu0 0
      %863 = vmatprep.subr.bf16.mxu0 0
      %864 = vmatpush1.bf16.msra.mxu0 0
      %865 = vmatprep.mubr.bf16.mxu0 0
      %866 = vmatmul.mubr.bf16.gmra.mrb[0].mxu0 %v821
      %v867 = vpop.f32.mrb[0].mxu0
      %v868 = vadd.f32 0.0, %v867
      %v869 = vpop.f32.mrb[0].mxu0
      %v870 = vadd.f32 0.0, %v869
      %v871 = vpop.f32.mrb[0].mxu0
      %v872 = vadd.f32 0.0, %v871
      %v873 = vpop.f32.mrb[0].mxu0
      %v874 = vadd.f32 0.0, %v873
      %875 = vmatprep.mubr.bf16.mxu0 0
      %876 = vmatmul.mubr.bf16.gmra.mrb[0].mxu0 %v824
      %v877 = vpop.f32.mrb[0].mxu0
      %v878 = vadd.f32 0.0, %v877
      %v879 = vpop.f32.mrb[0].mxu0
      %v880 = vadd.f32 0.0, %v879
      %v881 = vpop.f32.mrb[0].mxu0
      %v882 = vadd.f32 0.0, %v881
      %v883 = vpop.f32.mrb[0].mxu0
      %v884 = vadd.f32 0.0, %v883
      %885 = vdwg.mxu0
      %v886 = vpack.c.bf16 %v872, %v868
      %v887 = vpack.c.bf16 %v874, %v870
      %v888 = vpack.c.bf16 %v882, %v878
      %v889 = vpack.c.bf16 %v884, %v880
      %v890 = vld [vmem:[%s1] sm:$0xff]
      %v891 = vld [vmem:[%s1 + $0x8] sm:$0xff]
      %v892 = vld [vmem:[%s1 + $0x10] sm:$0xff]
      %v893 = vld [vmem:[%s1 + $0x18] sm:$0xff]
      %v894 = vld [vmem:[%s1 + $0x20] sm:$0xff]
      %v895 = vld [vmem:[%s1 + $0x28] sm:$0xff]
      %v896 = vld [vmem:[%s1 + $0x30] sm:$0xff]
      %v897 = vld [vmem:[%s1 + $0x38] sm:$0xff]
      %v898 = vld [vmem:[%s1 + $0x40] sm:$0xff]
      %v899 = vld [vmem:[%s1 + $0x48] sm:$0xff]
      %v900 = vld [vmem:[%s1 + $0x50] sm:$0xff]
      %v901 = vld [vmem:[%s1 + $0x58] sm:$0xff]
      %v902 = vld [vmem:[%s1 + $0x60] sm:$0xff]
      %v903 = vld [vmem:[%s1 + $0x68] sm:$0xff]
      %v904 = vld [vmem:[%s1 + $0x70] sm:$0xff]
      %v905 = vld [vmem:[%s1 + $0x78] sm:$0xff]
      %v906 = vld [vmem:[%s1 + $0x80] sm:$0xff]
      %v907 = vld [vmem:[%s1 + $0x88] sm:$0xff]
      %v908 = vld [vmem:[%s1 + $0x90] sm:$0xff]
      %v909 = vld [vmem:[%s1 + $0x98] sm:$0xff]
      %v910 = vld [vmem:[%s1 + $0xa0] sm:$0xff]
      %v911 = vld [vmem:[%s1 + $0xa8] sm:$0xff]
      %v912 = vld [vmem:[%s1 + $0xb0] sm:$0xff]
      %v913 = vld [vmem:[%s1 + $0xb8] sm:$0xff]
      %v914 = vld [vmem:[%s1 + $0xc0] sm:$0x77]
      %v915 = vadd.s32 %v805, 1
      %v916 = vadd.s32 %v806, 1
      %v917 = vadd.s32 %v807, 1
      %v918 = vadd.s32 %v808, 1
      %vm919 = vcmp.eq.s32.totalorder %v799, %v915
      %vm920 = vcmp.eq.s32.totalorder %v799, %v916
      %vm921 = vcmp.eq.s32.totalorder %v799, %v917
      %vm922 = vcmp.eq.s32.totalorder %v799, %v918
      %v923 = vsel %vm919, 1.0, 0.0
      %v924 = vsel %vm920, 1.0, 0.0
      %v925 = vsel %vm921, 1.0, 0.0
      %v926 = vsel %vm922, 1.0, 0.0
      %v927 = vpack.c.bf16 %v924, %v923
      %v928 = vpack.c.bf16 %v926, %v925
      %v930 = vsel %vm819, %v927, 0
      %v933 = vsel %vm819, %v928, 0
      %935 = vmatprep.subr.bf16.mxu0 %v789
      %936 = vmatpush1.bf16.msra.mxu0 %v788
      %937 = vmatprep.subr.bf16.mxu0 %v791
      %938 = vmatpush1.bf16.msra.mxu0 %v790
      %939 = vmatprep.subr.bf16.mxu0 %v793
      %940 = vmatpush1.bf16.msra.mxu0 %v792
      %941 = vmatprep.subr.bf16.mxu0 %v795
      %942 = vmatpush1.bf16.msra.mxu0 %v794
      %943 = vmatprep.subr.bf16.mxu0 %v831
      %944 = vmatpush1.bf16.msra.mxu0 %v828
      %945 = vmatprep.subr.bf16.mxu0 0
      %946 = vmatpush1.bf16.msra.mxu0 0
      %947 = vmatprep.subr.bf16.mxu0 0
      %948 = vmatpush1.bf16.msra.mxu0 0
      %949 = vmatprep.subr.bf16.mxu0 0
      %950 = vmatpush1.bf16.msra.mxu0 0
      %951 = vmatprep.subr.bf16.mxu0 0
      %952 = vmatpush1.bf16.msra.mxu0 0
      %953 = vmatprep.subr.bf16.mxu0 0
      %954 = vmatpush1.bf16.msra.mxu0 0
      %955 = vmatprep.subr.bf16.mxu0 0
      %956 = vmatpush1.bf16.msra.mxu0 0
      %957 = vmatprep.subr.bf16.mxu0 0
      %958 = vmatpush1.bf16.msra.mxu0 0
      %959 = vmatprep.subr.bf16.mxu0 0
      %960 = vmatpush1.bf16.msra.mxu0 0
      %961 = vmatprep.subr.bf16.mxu0 0
      %962 = vmatpush1.bf16.msra.mxu0 0
      %963 = vmatprep.subr.bf16.mxu0 0
      %964 = vmatpush1.bf16.msra.mxu0 0
      %965 = vmatprep.subr.bf16.mxu0 0
      %966 = vmatpush1.bf16.msra.mxu0 0
      %967 = vmatprep.mubr.bf16.mxu0 0
      %968 = vmatmul.mubr.bf16.gmra.mrb[0].mxu0 %v930
      %v969 = vpop.f32.mrb[0].mxu0
      %v970 = vadd.f32 0.0, %v969
      %v971 = vpop.f32.mrb[0].mxu0
      %v972 = vadd.f32 0.0, %v971
      %v973 = vpop.f32.mrb[0].mxu0
      %v974 = vadd.f32 0.0, %v973
      %v975 = vpop.f32.mrb[0].mxu0
      %v976 = vadd.f32 0.0, %v975
      %977 = vmatprep.mubr.bf16.mxu0 0
      %978 = vmatmul.mubr.bf16.gmra.mrb[0].mxu0 %v933
      %v979 = vpop.f32.mrb[0].mxu0
      %v980 = vadd.f32 0.0, %v979
      %v981 = vpop.f32.mrb[0].mxu0
      %v982 = vadd.f32 0.0, %v981
      %v983 = vpop.f32.mrb[0].mxu0
      %v984 = vadd.f32 0.0, %v983
      %v985 = vpop.f32.mrb[0].mxu0
      %v986 = vadd.f32 0.0, %v985
      %987 = vdwg.mxu0
      %v988 = vpack.c.bf16 %v974, %v970
      %v989 = vpack.c.bf16 %v976, %v972
      %v990 = vpack.c.bf16 %v984, %v980
      %v991 = vpack.c.bf16 %v986, %v982
      %s992 = scalar_lea.vmem %s1, 200
      %v993 = vld [vmem:[%s992] sm:$0xff]
      %v994 = vld [vmem:[%s992 + $0x8] sm:$0xff]
      %v995 = vld [vmem:[%s992 + $0x10] sm:$0xff]
      %v996 = vld [vmem:[%s992 + $0x18] sm:$0xff]
      %v997 = vld [vmem:[%s992 + $0x20] sm:$0xff]
      %v998 = vld [vmem:[%s992 + $0x28] sm:$0xff]
      %v999 = vld [vmem:[%s992 + $0x30] sm:$0xff]
      %v1000 = vld [vmem:[%s992 + $0x38] sm:$0xff]
      %v1001 = vld [vmem:[%s992 + $0x40] sm:$0xff]
      %v1002 = vld [vmem:[%s992 + $0x48] sm:$0xff]
      %v1003 = vld [vmem:[%s992 + $0x50] sm:$0xff]
      %v1004 = vld [vmem:[%s992 + $0x58] sm:$0xff]
      %v1005 = vld [vmem:[%s992 + $0x60] sm:$0xff]
      %v1006 = vld [vmem:[%s992 + $0x68] sm:$0xff]
      %v1007 = vld [vmem:[%s992 + $0x70] sm:$0xff]
      %v1008 = vld [vmem:[%s992 + $0x78] sm:$0xff]
      %v1009 = vld [vmem:[%s992 + $0x80] sm:$0xff]
      %v1010 = vld [vmem:[%s992 + $0x88] sm:$0xff]
      %v1011 = vld [vmem:[%s992 + $0x90] sm:$0xff]
      %v1012 = vld [vmem:[%s992 + $0x98] sm:$0xff]
      %v1013 = vld [vmem:[%s992 + $0xa0] sm:$0xff]
      %v1014 = vld [vmem:[%s992 + $0xa8] sm:$0xff]
      %v1015 = vld [vmem:[%s992 + $0xb0] sm:$0xff]
      %v1016 = vld [vmem:[%s992 + $0xb8] sm:$0xff]
      %v1017 = vld [vmem:[%s992 + $0xc0] sm:$0x77]
      %v1043 = vunpack.c.l.b16 %v993
      %v1044 = vunpack.c.h.b16 %v993
      %v1045 = vunpack.c.l.b16 %v994
      %v1046 = vunpack.c.h.b16 %v994
      %v1047 = vunpack.c.l.b16 %v995
      %v1048 = vunpack.c.h.b16 %v995
      %v1049 = vunpack.c.l.b16 %v996
      %v1050 = vunpack.c.h.b16 %v996
      %v1051 = vunpack.c.l.b16 %v997
      %v1052 = vunpack.c.h.b16 %v997
      %v1053 = vunpack.c.l.b16 %v998
      %v1054 = vunpack.c.h.b16 %v998
      %v1055 = vunpack.c.l.b16 %v999
      %v1056 = vunpack.c.h.b16 %v999
      %v1057 = vunpack.c.l.b16 %v1000
      %v1058 = vunpack.c.h.b16 %v1000
      %v1059 = vunpack.c.l.b16 %v1001
      %v1060 = vunpack.c.h.b16 %v1001
      %v1061 = vunpack.c.l.b16 %v1002
      %v1062 = vunpack.c.h.b16 %v1002
      %v1063 = vunpack.c.l.b16 %v1003
      %v1064 = vunpack.c.h.b16 %v1003
      %v1065 = vunpack.c.l.b16 %v1004
      %v1066 = vunpack.c.h.b16 %v1004
      %v1067 = vunpack.c.l.b16 %v1005
      %v1068 = vunpack.c.h.b16 %v1005
      %v1069 = vunpack.c.l.b16 %v1006
      %v1070 = vunpack.c.h.b16 %v1006
      %v1071 = vunpack.c.l.b16 %v1007
      %v1072 = vunpack.c.h.b16 %v1007
      %v1073 = vunpack.c.l.b16 %v1008
      %v1074 = vunpack.c.h.b16 %v1008
      %v1075 = vunpack.c.l.b16 %v1009
      %v1076 = vunpack.c.h.b16 %v1009
      %v1077 = vunpack.c.l.b16 %v1010
      %v1078 = vunpack.c.h.b16 %v1010
      %v1079 = vunpack.c.l.b16 %v1011
      %v1080 = vunpack.c.h.b16 %v1011
      %v1081 = vunpack.c.l.b16 %v1012
      %v1082 = vunpack.c.h.b16 %v1012
      %v1083 = vunpack.c.l.b16 %v1013
      %v1084 = vunpack.c.h.b16 %v1013
      %v1085 = vunpack.c.l.b16 %v1014
      %v1086 = vunpack.c.h.b16 %v1014
      %v1087 = vunpack.c.l.b16 %v1015
      %v1088 = vunpack.c.h.b16 %v1015
      %v1089 = vunpack.c.l.b16 %v1016
      %v1090 = vunpack.c.h.b16 %v1016
      %v1091 = vunpack.c.l.b16 %v1017
      %v1092 = vunpack.c.h.b16 %v1017
      %v1093 = vpack.c.b16 %v1045, %v1043
      %v1094 = vpack.c.b16 %v1046, %v1044
      %v1095 = vpack.c.b16 %v1049, %v1047
      %v1096 = vpack.c.b16 %v1050, %v1048
      %v1097 = vpack.c.b16 %v1053, %v1051
      %v1098 = vpack.c.b16 %v1054, %v1052
      %v1099 = vpack.c.b16 %v1057, %v1055
      %v1100 = vpack.c.b16 %v1058, %v1056
      %v1101 = vpack.c.b16 %v1061, %v1059
      %v1102 = vpack.c.b16 %v1062, %v1060
      %v1103 = vpack.c.b16 %v1065, %v1063
      %v1104 = vpack.c.b16 %v1066, %v1064
      %v1105 = vpack.c.b16 %v1069, %v1067
      %v1106 = vpack.c.b16 %v1070, %v1068
      %v1107 = vpack.c.b16 %v1073, %v1071
      %v1108 = vpack.c.b16 %v1074, %v1072
      %v1109 = vpack.c.b16 %v1077, %v1075
      %v1110 = vpack.c.b16 %v1078, %v1076
      %v1111 = vpack.c.b16 %v1081, %v1079
      %v1112 = vpack.c.b16 %v1082, %v1080
      %v1113 = vpack.c.b16 %v1085, %v1083
      %v1114 = vpack.c.b16 %v1086, %v1084
      %v1115 = vpack.c.b16 %v1089, %v1087
      %v1116 = vpack.c.b16 %v1090, %v1088
      %v1117 = vpack.c.b16 %v1091, %v1091
      %v1118 = vpack.c.b16 %v1092, %v1092
      %vm1143 = vcmask 572416
      %v1145 = vsel %vm1143, %v989, 0
      %v1148 = vsel %vm1143, %v991, 0
      %vm1150 = vcmask 1042432
      %v1152 = vsel %vm1150, %v1117, 0
      %v1155 = vsel %vm1150, %v1118, 0
      %1157 = vmatprep.subr.bf16.mxu0 %v1094
      %1158 = vmatpush1.bf16.msra.mxu0 %v1093
      %1159 = vmatprep.subr.bf16.mxu0 %v1096
      %1160 = vmatpush1.bf16.msra.mxu0 %v1095
      %1161 = vmatprep.subr.bf16.mxu0 %v1098
      %1162 = vmatpush1.bf16.msra.mxu0 %v1097
      %1163 = vmatprep.subr.bf16.mxu0 %v1100
      %1164 = vmatpush1.bf16.msra.mxu0 %v1099
      %1165 = vmatprep.subr.bf16.mxu0 %v1102
      %1166 = vmatpush1.bf16.msra.mxu0 %v1101
      %1167 = vmatprep.subr.bf16.mxu0 %v1104
      %1168 = vmatpush1.bf16.msra.mxu0 %v1103
      %1169 = vmatprep.subr.bf16.mxu0 %v1106
      %1170 = vmatpush1.bf16.msra.mxu0 %v1105
      %1171 = vmatprep.subr.bf16.mxu0 %v1108
      %1172 = vmatpush1.bf16.msra.mxu0 %v1107
      %1173 = vmatprep.subr.bf16.mxu0 %v1110
      %1174 = vmatpush1.bf16.msra.mxu0 %v1109
      %1175 = vmatprep.subr.bf16.mxu0 %v1112
      %1176 = vmatpush1.bf16.msra.mxu0 %v1111
      %1177 = vmatprep.subr.bf16.mxu0 %v1114
      %1178 = vmatpush1.bf16.msra.mxu0 %v1113
      %1179 = vmatprep.subr.bf16.mxu0 %v1116
      %1180 = vmatpush1.bf16.msra.mxu0 %v1115
      %1181 = vmatprep.subr.bf16.mxu0 %v1155
      %1182 = vmatpush1.bf16.msra.mxu0 %v1152
      %1183 = vmatprep.subr.bf16.mxu0 0
      %1184 = vmatpush1.bf16.msra.mxu0 0
      %1185 = vmatprep.subr.bf16.mxu0 0
      %1186 = vmatpush1.bf16.msra.mxu0 0
      %1187 = vmatprep.subr.bf16.mxu0 0
      %1188 = vmatpush1.bf16.msra.mxu0 0
      %1189 = vmatprep.mubr.bf16.mxu0 %v1145
      %1190 = vmatmul.mubr.bf16.gmra.mrb[0].mxu0 %v988
      %v1191 = vpop.f32.mrb[0].mxu0
      %v1192 = vadd.f32 0.0, %v1191
      %v1193 = vpop.f32.mrb[0].mxu0
      %v1194 = vadd.f32 0.0, %v1193
      %v1195 = vpop.f32.mrb[0].mxu0
      %v1196 = vadd.f32 0.0, %v1195
      %v1197 = vpop.f32.mrb[0].mxu0
      %v1198 = vadd.f32 0.0, %v1197
      %1199 = vmatprep.mubr.bf16.mxu0 %v1148
      %1200 = vmatmul.mubr.bf16.gmra.mrb[0].mxu0 %v990
      %v1201 = vpop.f32.mrb[0].mxu0
      %v1202 = vadd.f32 0.0, %v1201
      %v1203 = vpop.f32.mrb[0].mxu0
      %v1204 = vadd.f32 0.0, %v1203
      %v1205 = vpop.f32.mrb[0].mxu0
      %v1206 = vadd.f32 0.0, %v1205
      %v1207 = vpop.f32.mrb[0].mxu0
      %v1208 = vadd.f32 0.0, %v1207
      %1209 = vdwg.mxu0
      %v1235 = vunpack.c.l.b16 %v890
      %v1236 = vunpack.c.h.b16 %v890
      %v1237 = vunpack.c.l.b16 %v891
      %v1238 = vunpack.c.h.b16 %v891
      %v1239 = vunpack.c.l.b16 %v892
      %v1240 = vunpack.c.h.b16 %v892
      %v1241 = vunpack.c.l.b16 %v893
      %v1242 = vunpack.c.h.b16 %v893
      %v1243 = vunpack.c.l.b16 %v894
      %v1244 = vunpack.c.h.b16 %v894
      %v1245 = vunpack.c.l.b16 %v895
      %v1246 = vunpack.c.h.b16 %v895
      %v1247 = vunpack.c.l.b16 %v896
      %v1248 = vunpack.c.h.b16 %v896
      %v1249 = vunpack.c.l.b16 %v897
      %v1250 = vunpack.c.h.b16 %v897
      %v1251 = vunpack.c.l.b16 %v898
      %v1252 = vunpack.c.h.b16 %v898
      %v1253 = vunpack.c.l.b16 %v899
      %v1254 = vunpack.c.h.b16 %v899
      %v1255 = vunpack.c.l.b16 %v900
      %v1256 = vunpack.c.h.b16 %v900
      %v1257 = vunpack.c.l.b16 %v901
      %v1258 = vunpack.c.h.b16 %v901
      %v1259 = vunpack.c.l.b16 %v902
      %v1260 = vunpack.c.h.b16 %v902
      %v1261 = vunpack.c.l.b16 %v903
      %v1262 = vunpack.c.h.b16 %v903
      %v1263 = vunpack.c.l.b16 %v904
      %v1264 = vunpack.c.h.b16 %v904
      %v1265 = vunpack.c.l.b16 %v905
      %v1266 = vunpack.c.h.b16 %v905
      %v1267 = vunpack.c.l.b16 %v906
      %v1268 = vunpack.c.h.b16 %v906
      %v1269 = vunpack.c.l.b16 %v907
      %v1270 = vunpack.c.h.b16 %v907
      %v1271 = vunpack.c.l.b16 %v908
      %v1272 = vunpack.c.h.b16 %v908
      %v1273 = vunpack.c.l.b16 %v909
      %v1274 = vunpack.c.h.b16 %v909
      %v1275 = vunpack.c.l.b16 %v910
      %v1276 = vunpack.c.h.b16 %v910
      %v1277 = vunpack.c.l.b16 %v911
      %v1278 = vunpack.c.h.b16 %v911
      %v1279 = vunpack.c.l.b16 %v912
      %v1280 = vunpack.c.h.b16 %v912
      %v1281 = vunpack.c.l.b16 %v913
      %v1282 = vunpack.c.h.b16 %v913
      %v1283 = vunpack.c.l.b16 %v914
      %v1284 = vunpack.c.h.b16 %v914
      %v1285 = vpack.c.b16 %v1237, %v1235
      %v1286 = vpack.c.b16 %v1238, %v1236
      %v1287 = vpack.c.b16 %v1241, %v1239
      %v1288 = vpack.c.b16 %v1242, %v1240
      %v1289 = vpack.c.b16 %v1245, %v1243
      %v1290 = vpack.c.b16 %v1246, %v1244
      %v1291 = vpack.c.b16 %v1249, %v1247
      %v1292 = vpack.c.b16 %v1250, %v1248
      %v1293 = vpack.c.b16 %v1253, %v1251
      %v1294 = vpack.c.b16 %v1254, %v1252
      %v1295 = vpack.c.b16 %v1257, %v1255
      %v1296 = vpack.c.b16 %v1258, %v1256
      %v1297 = vpack.c.b16 %v1261, %v1259
      %v1298 = vpack.c.b16 %v1262, %v1260
      %v1299 = vpack.c.b16 %v1265, %v1263
      %v1300 = vpack.c.b16 %v1266, %v1264
      %v1301 = vpack.c.b16 %v1269, %v1267
      %v1302 = vpack.c.b16 %v1270, %v1268
      %v1303 = vpack.c.b16 %v1273, %v1271
      %v1304 = vpack.c.b16 %v1274, %v1272
      %v1305 = vpack.c.b16 %v1277, %v1275
      %v1306 = vpack.c.b16 %v1278, %v1276
      %v1307 = vpack.c.b16 %v1281, %v1279
      %v1308 = vpack.c.b16 %v1282, %v1280
      %v1309 = vpack.c.b16 %v1283, %v1283
      %v1310 = vpack.c.b16 %v1284, %v1284
      %v1336 = vsel %vm1143, %v887, 0
      %v1339 = vsel %vm1143, %v889, 0
      %v1342 = vsel %vm1150, %v1309, 0
      %v1345 = vsel %vm1150, %v1310, 0
      %1347 = vmatprep.subr.bf16.mxu0 %v1286
      %1348 = vmatpush1.bf16.msra.mxu0 %v1285
      %1349 = vmatprep.subr.bf16.mxu0 %v1288
      %1350 = vmatpush1.bf16.msra.mxu0 %v1287
      %1351 = vmatprep.subr.bf16.mxu0 %v1290
      %1352 = vmatpush1.bf16.msra.mxu0 %v1289
      %1353 = vmatprep.subr.bf16.mxu0 %v1292
      %1354 = vmatpush1.bf16.msra.mxu0 %v1291
      %1355 = vmatprep.subr.bf16.mxu0 %v1294
      %1356 = vmatpush1.bf16.msra.mxu0 %v1293
      %1357 = vmatprep.subr.bf16.mxu0 %v1296
      %1358 = vmatpush1.bf16.msra.mxu0 %v1295
      %1359 = vmatprep.subr.bf16.mxu0 %v1298
      %1360 = vmatpush1.bf16.msra.mxu0 %v1297
      %1361 = vmatprep.subr.bf16.mxu0 %v1300
      %1362 = vmatpush1.bf16.msra.mxu0 %v1299
      %1363 = vmatprep.subr.bf16.mxu0 %v1302
      %1364 = vmatpush1.bf16.msra.mxu0 %v1301
      %1365 = vmatprep.subr.bf16.mxu0 %v1304
      %1366 = vmatpush1.bf16.msra.mxu0 %v1303
      %1367 = vmatprep.subr.bf16.mxu0 %v1306
      %1368 = vmatpush1.bf16.msra.mxu0 %v1305
      %1369 = vmatprep.subr.bf16.mxu0 %v1308
      %1370 = vmatpush1.bf16.msra.mxu0 %v1307
      %1371 = vmatprep.subr.bf16.mxu0 %v1345
      %1372 = vmatpush1.bf16.msra.mxu0 %v1342
      %1373 = vmatprep.subr.bf16.mxu0 0
      %1374 = vmatpush1.bf16.msra.mxu0 0
      %1375 = vmatprep.subr.bf16.mxu0 0
      %1376 = vmatpush1.bf16.msra.mxu0 0
      %1377 = vmatprep.subr.bf16.mxu0 0
      %1378 = vmatpush1.bf16.msra.mxu0 0
      %1379 = vmatprep.mubr.bf16.mxu0 %v1336
      %1380 = vmatmul.mubr.bf16.gmra.mrb[0].mxu0 %v886
      %v1381 = vpop.f32.mrb[0].mxu0
      %v1382 = vadd.f32 %v1192, %v1381
      %v1383 = vpop.f32.mrb[0].mxu0
      %v1384 = vadd.f32 %v1194, %v1383
      %v1385 = vpop.f32.mrb[0].mxu0
      %v1386 = vadd.f32 %v1196, %v1385
      %v1387 = vpop.f32.mrb[0].mxu0
      %v1388 = vadd.f32 %v1198, %v1387
      %1389 = vmatprep.mubr.bf16.mxu0 %v1339
      %1390 = vmatmul.mubr.bf16.gmra.mrb[0].mxu0 %v888
      %v1391 = vpop.f32.mrb[0].mxu0
      %v1392 = vadd.f32 %v1202, %v1391
      %v1393 = vpop.f32.mrb[0].mxu0
      %v1394 = vadd.f32 %v1204, %v1393
      %v1395 = vpop.f32.mrb[0].mxu0
      %v1396 = vadd.f32 %v1206, %v1395
      %v1397 = vpop.f32.mrb[0].mxu0
      %v1398 = vadd.f32 %v1208, %v1397
      %1399 = vdwg.mxu0
      %v1400 = vadd.s32 %v805, 2
      %v1401 = vadd.s32 %v806, 2
      %v1402 = vadd.s32 %v807, 2
      %v1403 = vadd.s32 %v808, 2
      %vm1404 = vcmp.eq.s32.totalorder %v799, %v1400
      %vm1405 = vcmp.eq.s32.totalorder %v799, %v1401
      %vm1406 = vcmp.eq.s32.totalorder %v799, %v1402
      %vm1407 = vcmp.eq.s32.totalorder %v799, %v1403
      %v1408 = vsel %vm1404, 1.0, 0.0
      %v1409 = vsel %vm1405, 1.0, 0.0
      %v1410 = vsel %vm1406, 1.0, 0.0
      %v1411 = vsel %vm1407, 1.0, 0.0
      %v1412 = vpack.c.bf16 %v1409, %v1408
      %v1413 = vpack.c.bf16 %v1411, %v1410
      %v1415 = vsel %vm819, %v1412, 0
      %v1418 = vsel %vm819, %v1413, 0
      %1420 = vmatprep.subr.bf16.mxu0 %v789
      %1421 = vmatpush1.bf16.msra.mxu0 %v788
      %1422 = vmatprep.subr.bf16.mxu0 %v791
      %1423 = vmatpush1.bf16.msra.mxu0 %v790
      %1424 = vmatprep.subr.bf16.mxu0 %v793
      %1425 = vmatpush1.bf16.msra.mxu0 %v792
      %1426 = vmatprep.subr.bf16.mxu0 %v795
      %1427 = vmatpush1.bf16.msra.mxu0 %v794
      %1428 = vmatprep.subr.bf16.mxu0 %v831
      %1429 = vmatpush1.bf16.msra.mxu0 %v828
      %1430 = vmatprep.subr.bf16.mxu0 0
      %1431 = vmatpush1.bf16.msra.mxu0 0
      %1432 = vmatprep.subr.bf16.mxu0 0
      %1433 = vmatpush1.bf16.msra.mxu0 0
      %1434 = vmatprep.subr.bf16.mxu0 0
      %1435 = vmatpush1.bf16.msra.mxu0 0
      %1436 = vmatprep.subr.bf16.mxu0 0
      %1437 = vmatpush1.bf16.msra.mxu0 0
      %1438 = vmatprep.subr.bf16.mxu0 0
      %1439 = vmatpush1.bf16.msra.mxu0 0
      %1440 = vmatprep.subr.bf16.mxu0 0
      %1441 = vmatpush1.bf16.msra.mxu0 0
      %1442 = vmatprep.subr.bf16.mxu0 0
      %1443 = vmatpush1.bf16.msra.mxu0 0
      %1444 = vmatprep.subr.bf16.mxu0 0
      %1445 = vmatpush1.bf16.msra.mxu0 0
      %1446 = vmatprep.subr.bf16.mxu0 0
      %1447 = vmatpush1.bf16.msra.mxu0 0
      %1448 = vmatprep.subr.bf16.mxu0 0
      %1449 = vmatpush1.bf16.msra.mxu0 0
      %1450 = vmatprep.subr.bf16.mxu0 0
      %1451 = vmatpush1.bf16.msra.mxu0 0
      %1452 = vmatprep.mubr.bf16.mxu0 0
      %1453 = vmatmul.mubr.bf16.gmra.mrb[0].mxu0 %v1415
      %v1454 = vpop.f32.mrb[0].mxu0
      %v1455 = vadd.f32 0.0, %v1454
      %v1456 = vpop.f32.mrb[0].mxu0
      %v1457 = vadd.f32 0.0, %v1456
      %v1458 = vpop.f32.mrb[0].mxu0
      %v1459 = vadd.f32 0.0, %v1458
      %v1460 = vpop.f32.mrb[0].mxu0
      %v1461 = vadd.f32 0.0, %v1460
      %1462 = vmatprep.mubr.bf16.mxu0 0
      %1463 = vmatmul.mubr.bf16.gmra.mrb[0].mxu0 %v1418
      %v1464 = vpop.f32.mrb[0].mxu0
      %v1465 = vadd.f32 0.0, %v1464
      %v1466 = vpop.f32.mrb[0].mxu0
      %v1467 = vadd.f32 0.0, %v1466
      %v1468 = vpop.f32.mrb[0].mxu0
      %v1469 = vadd.f32 0.0, %v1468
      %v1470 = vpop.f32.mrb[0].mxu0
      %v1471 = vadd.f32 0.0, %v1470
      %1472 = vdwg.mxu0
      %v1473 = vpack.c.bf16 %v1459, %v1455
      %v1474 = vpack.c.bf16 %v1461, %v1457
      %v1475 = vpack.c.bf16 %v1469, %v1465
      %v1476 = vpack.c.bf16 %v1471, %v1467
      %s1477 = scalar_lea.vmem %s1, 400
      %v1478 = vld [vmem:[%s1477] sm:$0xff]
      %v1479 = vld [vmem:[%s1477 + $0x8] sm:$0xff]
      %v1480 = vld [vmem:[%s1477 + $0x10] sm:$0xff]
      %v1481 = vld [vmem:[%s1477 + $0x18] sm:$0xff]
      %v1482 = vld [vmem:[%s1477 + $0x20] sm:$0xff]
      %v1483 = vld [vmem:[%s1477 + $0x28] sm:$0xff]
      %v1484 = vld [vmem:[%s1477 + $0x30] sm:$0xff]
      %v1485 = vld [vmem:[%s1477 + $0x38] sm:$0xff]
      %v1486 = vld [vmem:[%s1477 + $0x40] sm:$0xff]
      %v1487 = vld [vmem:[%s1477 + $0x48] sm:$0xff]
      %v1488 = vld [vmem:[%s1477 + $0x50] sm:$0xff]
      %v1489 = vld [vmem:[%s1477 + $0x58] sm:$0xff]
      %v1490 = vld [vmem:[%s1477 + $0x60] sm:$0xff]
      %v1491 = vld [vmem:[%s1477 + $0x68] sm:$0xff]
      %v1492 = vld [vmem:[%s1477 + $0x70] sm:$0xff]
      %v1493 = vld [vmem:[%s1477 + $0x78] sm:$0xff]
      %v1494 = vld [vmem:[%s1477 + $0x80] sm:$0xff]
      %v1495 = vld [vmem:[%s1477 + $0x88] sm:$0xff]
      %v1496 = vld [vmem:[%s1477 + $0x90] sm:$0xff]
      %v1497 = vld [vmem:[%s1477 + $0x98] sm:$0xff]
      %v1498 = vld [vmem:[%s1477 + $0xa0] sm:$0xff]
      %v1499 = vld [vmem:[%s1477 + $0xa8] sm:$0xff]
      %v1500 = vld [vmem:[%s1477 + $0xb0] sm:$0xff]
      %v1501 = vld [vmem:[%s1477 + $0xb8] sm:$0xff]
      %v1502 = vld [vmem:[%s1477 + $0xc0] sm:$0x77]
      %v1528 = vunpack.c.l.b16 %v1478
      %v1529 = vunpack.c.h.b16 %v1478
      %v1530 = vunpack.c.l.b16 %v1479
      %v1531 = vunpack.c.h.b16 %v1479
      %v1532 = vunpack.c.l.b16 %v1480
      %v1533 = vunpack.c.h.b16 %v1480
      %v1534 = vunpack.c.l.b16 %v1481
      %v1535 = vunpack.c.h.b16 %v1481
      %v1536 = vunpack.c.l.b16 %v1482
      %v1537 = vunpack.c.h.b16 %v1482
      %v1538 = vunpack.c.l.b16 %v1483
      %v1539 = vunpack.c.h.b16 %v1483
      %v1540 = vunpack.c.l.b16 %v1484
      %v1541 = vunpack.c.h.b16 %v1484
      %v1542 = vunpack.c.l.b16 %v1485
      %v1543 = vunpack.c.h.b16 %v1485
      %v1544 = vunpack.c.l.b16 %v1486
      %v1545 = vunpack.c.h.b16 %v1486
      %v1546 = vunpack.c.l.b16 %v1487
      %v1547 = vunpack.c.h.b16 %v1487
      %v1548 = vunpack.c.l.b16 %v1488
      %v1549 = vunpack.c.h.b16 %v1488
      %v1550 = vunpack.c.l.b16 %v1489
      %v1551 = vunpack.c.h.b16 %v1489
      %v1552 = vunpack.c.l.b16 %v1490
      %v1553 = vunpack.c.h.b16 %v1490
      %v1554 = vunpack.c.l.b16 %v1491
      %v1555 = vunpack.c.h.b16 %v1491
      %v1556 = vunpack.c.l.b16 %v1492
      %v1557 = vunpack.c.h.b16 %v1492
      %v1558 = vunpack.c.l.b16 %v1493
      %v1559 = vunpack.c.h.b16 %v1493
      %v1560 = vunpack.c.l.b16 %v1494
      %v1561 = vunpack.c.h.b16 %v1494
      %v1562 = vunpack.c.l.b16 %v1495
      %v1563 = vunpack.c.h.b16 %v1495
      %v1564 = vunpack.c.l.b16 %v1496
      %v1565 = vunpack.c.h.b16 %v1496
      %v1566 = vunpack.c.l.b16 %v1497
      %v1567 = vunpack.c.h.b16 %v1497
      %v1568 = vunpack.c.l.b16 %v1498
      %v1569 = vunpack.c.h.b16 %v1498
      %v1570 = vunpack.c.l.b16 %v1499
      %v1571 = vunpack.c.h.b16 %v1499
      %v1572 = vunpack.c.l.b16 %v1500
      %v1573 = vunpack.c.h.b16 %v1500
      %v1574 = vunpack.c.l.b16 %v1501
      %v1575 = vunpack.c.h.b16 %v1501
      %v1576 = vunpack.c.l.b16 %v1502
      %v1577 = vunpack.c.h.b16 %v1502
      %v1578 = vpack.c.b16 %v1530, %v1528
      %v1579 = vpack.c.b16 %v1531, %v1529
      %v1580 = vpack.c.b16 %v1534, %v1532
      %v1581 = vpack.c.b16 %v1535, %v1533
      %v1582 = vpack.c.b16 %v1538, %v1536
      %v1583 = vpack.c.b16 %v1539, %v1537
      %v1584 = vpack.c.b16 %v1542, %v1540
      %v1585 = vpack.c.b16 %v1543, %v1541
      %v1586 = vpack.c.b16 %v1546, %v1544
      %v1587 = vpack.c.b16 %v1547, %v1545
      %v1588 = vpack.c.b16 %v1550, %v1548
      %v1589 = vpack.c.b16 %v1551, %v1549
      %v1590 = vpack.c.b16 %v1554, %v1552
      %v1591 = vpack.c.b16 %v1555, %v1553
      %v1592 = vpack.c.b16 %v1558, %v1556
      %v1593 = vpack.c.b16 %v1559, %v1557
      %v1594 = vpack.c.b16 %v1562, %v1560
      %v1595 = vpack.c.b16 %v1563, %v1561
      %v1596 = vpack.c.b16 %v1566, %v1564
      %v1597 = vpack.c.b16 %v1567, %v1565
      %v1598 = vpack.c.b16 %v1570, %v1568
      %v1599 = vpack.c.b16 %v1571, %v1569
      %v1600 = vpack.c.b16 %v1574, %v1572
      %v1601 = vpack.c.b16 %v1575, %v1573
      %v1602 = vpack.c.b16 %v1576, %v1576
      %v1603 = vpack.c.b16 %v1577, %v1577
      %v1629 = vsel %vm1143, %v1474, 0
      %v1632 = vsel %vm1143, %v1476, 0
      %v1635 = vsel %vm1150, %v1602, 0
      %v1638 = vsel %vm1150, %v1603, 0
      %1640 = vmatprep.subr.bf16.mxu0 %v1579
      %1641 = vmatpush1.bf16.msra.mxu0 %v1578
      %1642 = vmatprep.subr.bf16.mxu0 %v1581
      %1643 = vmatpush1.bf16.msra.mxu0 %v1580
      %1644 = vmatprep.subr.bf16.mxu0 %v1583
      %1645 = vmatpush1.bf16.msra.mxu0 %v1582
      %1646 = vmatprep.subr.bf16.mxu0 %v1585
      %1647 = vmatpush1.bf16.msra.mxu0 %v1584
      %1648 = vmatprep.subr.bf16.mxu0 %v1587
      %1649 = vmatpush1.bf16.msra.mxu0 %v1586
      %1650 = vmatprep.subr.bf16.mxu0 %v1589
      %1651 = vmatpush1.bf16.msra.mxu0 %v1588
      %1652 = vmatprep.subr.bf16.mxu0 %v1591
      %1653 = vmatpush1.bf16.msra.mxu0 %v1590
      %1654 = vmatprep.subr.bf16.mxu0 %v1593
      %1655 = vmatpush1.bf16.msra.mxu0 %v1592
      %1656 = vmatprep.subr.bf16.mxu0 %v1595
      %1657 = vmatpush1.bf16.msra.mxu0 %v1594
      %1658 = vmatprep.subr.bf16.mxu0 %v1597
      %1659 = vmatpush1.bf16.msra.mxu0 %v1596
      %1660 = vmatprep.subr.bf16.mxu0 %v1599
      %1661 = vmatpush1.bf16.msra.mxu0 %v1598
      %1662 = vmatprep.subr.bf16.mxu0 %v1601
      %1663 = vmatpush1.bf16.msra.mxu0 %v1600
      %1664 = vmatprep.subr.bf16.mxu0 %v1638
      %1665 = vmatpush1.bf16.msra.mxu0 %v1635
      %1666 = vmatprep.subr.bf16.mxu0 0
      %1667 = vmatpush1.bf16.msra.mxu0 0
      %1668 = vmatprep.subr.bf16.mxu0 0
      %1669 = vmatpush1.bf16.msra.mxu0 0
      %1670 = vmatprep.subr.bf16.mxu0 0
      %1671 = vmatpush1.bf16.msra.mxu0 0
      %1672 = vmatprep.mubr.bf16.mxu0 %v1629
      %1673 = vmatmul.mubr.bf16.gmra.mrb[0].mxu0 %v1473
      %v1674 = vpop.f32.mrb[0].mxu0
      %v1675 = vadd.f32 0.0, %v1674
      %v1676 = vpop.f32.mrb[0].mxu0
      %v1677 = vadd.f32 0.0, %v1676
      %v1678 = vpop.f32.mrb[0].mxu0
      %v1679 = vadd.f32 0.0, %v1678
      %v1680 = vpop.f32.mrb[0].mxu0
      %v1681 = vadd.f32 0.0, %v1680
      %1682 = vmatprep.mubr.bf16.mxu0 %v1632
      %1683 = vmatmul.mubr.bf16.gmra.mrb[0].mxu0 %v1475
      %v1684 = vpop.f32.mrb[0].mxu0
      %v1685 = vadd.f32 0.0, %v1684
      %v1686 = vpop.f32.mrb[0].mxu0
      %v1687 = vadd.f32 0.0, %v1686
      %v1688 = vpop.f32.mrb[0].mxu0
      %v1689 = vadd.f32 0.0, %v1688
      %v1690 = vpop.f32.mrb[0].mxu0
      %v1691 = vadd.f32 0.0, %v1690
      %1692 = vdwg.mxu0
      %v1693 = vadd.f32 %v1382, %v1675
      %v1694 = vadd.f32 %v1384, %v1677
      %v1695 = vadd.f32 %v1386, %v1679
      %v1696 = vadd.f32 %v1388, %v1681
      %v1697 = vadd.f32 %v1392, %v1685
      %v1698 = vadd.f32 %v1394, %v1687
      %v1699 = vadd.f32 %v1396, %v1689
      %v1700 = vadd.f32 %v1398, %v1691
      %v1701 = vadd.s32 %v805, 3
      %v1702 = vadd.s32 %v806, 3
      %v1703 = vadd.s32 %v807, 3
      %v1704 = vadd.s32 %v808, 3
      %vm1705 = vcmp.eq.s32.totalorder %v799, %v1701
      %vm1706 = vcmp.eq.s32.totalorder %v799, %v1702
      %vm1707 = vcmp.eq.s32.totalorder %v799, %v1703
      %vm1708 = vcmp.eq.s32.totalorder %v799, %v1704
      %v1709 = vsel %vm1705, 1.0, 0.0
      %v1710 = vsel %vm1706, 1.0, 0.0
      %v1711 = vsel %vm1707, 1.0, 0.0
      %v1712 = vsel %vm1708, 1.0, 0.0
      %v1713 = vpack.c.bf16 %v1710, %v1709
      %v1714 = vpack.c.bf16 %v1712, %v1711
      %v1716 = vsel %vm819, %v1713, 0
      %v1719 = vsel %vm819, %v1714, 0
      %1721 = vmatprep.subr.bf16.mxu0 %v789
      %1722 = vmatpush1.bf16.msra.mxu0 %v788
      %1723 = vmatprep.subr.bf16.mxu0 %v791
      %1724 = vmatpush1.bf16.msra.mxu0 %v790
      %1725 = vmatprep.subr.bf16.mxu0 %v793
      %1726 = vmatpush1.bf16.msra.mxu0 %v792
      %1727 = vmatprep.subr.bf16.mxu0 %v795
      %1728 = vmatpush1.bf16.msra.mxu0 %v794
      %1729 = vmatprep.subr.bf16.mxu0 %v831
      %1730 = vmatpush1.bf16.msra.mxu0 %v828
      %1731 = vmatprep.subr.bf16.mxu0 0
      %1732 = vmatpush1.bf16.msra.mxu0 0
      %1733 = vmatprep.subr.bf16.mxu0 0
      %1734 = vmatpush1.bf16.msra.mxu0 0
      %1735 = vmatprep.subr.bf16.mxu0 0
      %1736 = vmatpush1.bf16.msra.mxu0 0
      %1737 = vmatprep.subr.bf16.mxu0 0
      %1738 = vmatpush1.bf16.msra.mxu0 0
      %1739 = vmatprep.subr.bf16.mxu0 0
      %1740 = vmatpush1.bf16.msra.mxu0 0
      %1741 = vmatprep.subr.bf16.mxu0 0
      %1742 = vmatpush1.bf16.msra.mxu0 0
      %1743 = vmatprep.subr.bf16.mxu0 0
      %1744 = vmatpush1.bf16.msra.mxu0 0
      %1745 = vmatprep.subr.bf16.mxu0 0
      %1746 = vmatpush1.bf16.msra.mxu0 0
      %1747 = vmatprep.subr.bf16.mxu0 0
      %1748 = vmatpush1.bf16.msra.mxu0 0
      %1749 = vmatprep.subr.bf16.mxu0 0
      %1750 = vmatpush1.bf16.msra.mxu0 0
      %1751 = vmatprep.subr.bf16.mxu0 0
      %1752 = vmatpush1.bf16.msra.mxu0 0
      %1753 = vmatprep.mubr.bf16.mxu0 0
      %1754 = vmatmul.mubr.bf16.gmra.mrb[0].mxu0 %v1716
      %v1755 = vpop.f32.mrb[0].mxu0
      %v1756 = vadd.f32 0.0, %v1755
      %v1757 = vpop.f32.mrb[0].mxu0
      %v1758 = vadd.f32 0.0, %v1757
      %v1759 = vpop.f32.mrb[0].mxu0
      %v1760 = vadd.f32 0.0, %v1759
      %v1761 = vpop.f32.mrb[0].mxu0
      %v1762 = vadd.f32 0.0, %v1761
      %1763 = vmatprep.mubr.bf16.mxu0 0
      %1764 = vmatmul.mubr.bf16.gmra.mrb[0].mxu0 %v1719
      %v1765 = vpop.f32.mrb[0].mxu0
      %v1766 = vadd.f32 0.0, %v1765
      %v1767 = vpop.f32.mrb[0].mxu0
      %v1768 = vadd.f32 0.0, %v1767
      %v1769 = vpop.f32.mrb[0].mxu0
      %v1770 = vadd.f32 0.0, %v1769
      %v1771 = vpop.f32.mrb[0].mxu0
      %v1772 = vadd.f32 0.0, %v1771
      %1773 = vdwg.mxu0
      %v1774 = vpack.c.bf16 %v1760, %v1756
      %v1775 = vpack.c.bf16 %v1762, %v1758
      %v1776 = vpack.c.bf16 %v1770, %v1766
      %v1777 = vpack.c.bf16 %v1772, %v1768
      %s1778 = scalar_lea.vmem %s1, 600
      %v1779 = vld [vmem:[%s1778] sm:$0xff]
      %v1780 = vld [vmem:[%s1778 + $0x8] sm:$0xff]
      %v1781 = vld [vmem:[%s1778 + $0x10] sm:$0xff]
      %v1782 = vld [vmem:[%s1778 + $0x18] sm:$0xff]
      %v1783 = vld [vmem:[%s1778 + $0x20] sm:$0xff]
      %v1784 = vld [vmem:[%s1778 + $0x28] sm:$0xff]
      %v1785 = vld [vmem:[%s1778 + $0x30] sm:$0xff]
      %v1786 = vld [vmem:[%s1778 + $0x38] sm:$0xff]
      %v1787 = vld [vmem:[%s1778 + $0x40] sm:$0xff]
      %v1788 = vld [vmem:[%s1778 + $0x48] sm:$0xff]
      %v1789 = vld [vmem:[%s1778 + $0x50] sm:$0xff]
      %v1790 = vld [vmem:[%s1778 + $0x58] sm:$0xff]
      %v1791 = vld [vmem:[%s1778 + $0x60] sm:$0xff]
      %v1792 = vld [vmem:[%s1778 + $0x68] sm:$0xff]
      %v1793 = vld [vmem:[%s1778 + $0x70] sm:$0xff]
      %v1794 = vld [vmem:[%s1778 + $0x78] sm:$0xff]
      %v1795 = vld [vmem:[%s1778 + $0x80] sm:$0xff]
      %v1796 = vld [vmem:[%s1778 + $0x88] sm:$0xff]
      %v1797 = vld [vmem:[%s1778 + $0x90] sm:$0xff]
      %v1798 = vld [vmem:[%s1778 + $0x98] sm:$0xff]
      %v1799 = vld [vmem:[%s1778 + $0xa0] sm:$0xff]
      %v1800 = vld [vmem:[%s1778 + $0xa8] sm:$0xff]
      %v1801 = vld [vmem:[%s1778 + $0xb0] sm:$0xff]
      %v1802 = vld [vmem:[%s1778 + $0xb8] sm:$0xff]
      %v1803 = vld [vmem:[%s1778 + $0xc0] sm:$0x77]
      %v1829 = vunpack.c.l.b16 %v1779
      %v1830 = vunpack.c.h.b16 %v1779
      %v1831 = vunpack.c.l.b16 %v1780
      %v1832 = vunpack.c.h.b16 %v1780
      %v1833 = vunpack.c.l.b16 %v1781
      %v1834 = vunpack.c.h.b16 %v1781
      %v1835 = vunpack.c.l.b16 %v1782
      %v1836 = vunpack.c.h.b16 %v1782
      %v1837 = vunpack.c.l.b16 %v1783
      %v1838 = vunpack.c.h.b16 %v1783
      %v1839 = vunpack.c.l.b16 %v1784
      %v1840 = vunpack.c.h.b16 %v1784
      %v1841 = vunpack.c.l.b16 %v1785
      %v1842 = vunpack.c.h.b16 %v1785
      %v1843 = vunpack.c.l.b16 %v1786
      %v1844 = vunpack.c.h.b16 %v1786
      %v1845 = vunpack.c.l.b16 %v1787
      %v1846 = vunpack.c.h.b16 %v1787
      %v1847 = vunpack.c.l.b16 %v1788
      %v1848 = vunpack.c.h.b16 %v1788
      %v1849 = vunpack.c.l.b16 %v1789
      %v1850 = vunpack.c.h.b16 %v1789
      %v1851 = vunpack.c.l.b16 %v1790
      %v1852 = vunpack.c.h.b16 %v1790
      %v1853 = vunpack.c.l.b16 %v1791
      %v1854 = vunpack.c.h.b16 %v1791
      %v1855 = vunpack.c.l.b16 %v1792
      %v1856 = vunpack.c.h.b16 %v1792
      %v1857 = vunpack.c.l.b16 %v1793
      %v1858 = vunpack.c.h.b16 %v1793
      %v1859 = vunpack.c.l.b16 %v1794
      %v1860 = vunpack.c.h.b16 %v1794
      %v1861 = vunpack.c.l.b16 %v1795
      %v1862 = vunpack.c.h.b16 %v1795
      %v1863 = vunpack.c.l.b16 %v1796
      %v1864 = vunpack.c.h.b16 %v1796
      %v1865 = vunpack.c.l.b16 %v1797
      %v1866 = vunpack.c.h.b16 %v1797
      %v1867 = vunpack.c.l.b16 %v1798
      %v1868 = vunpack.c.h.b16 %v1798
      %v1869 = vunpack.c.l.b16 %v1799
      %v1870 = vunpack.c.h.b16 %v1799
      %v1871 = vunpack.c.l.b16 %v1800
      %v1872 = vunpack.c.h.b16 %v1800
      %v1873 = vunpack.c.l.b16 %v1801
      %v1874 = vunpack.c.h.b16 %v1801
      %v1875 = vunpack.c.l.b16 %v1802
      %v1876 = vunpack.c.h.b16 %v1802
      %v1877 = vunpack.c.l.b16 %v1803
      %v1878 = vunpack.c.h.b16 %v1803
      %v1879 = vpack.c.b16 %v1831, %v1829
      %v1880 = vpack.c.b16 %v1832, %v1830
      %v1881 = vpack.c.b16 %v1835, %v1833
      %v1882 = vpack.c.b16 %v1836, %v1834
      %v1883 = vpack.c.b16 %v1839, %v1837
      %v1884 = vpack.c.b16 %v1840, %v1838
      %v1885 = vpack.c.b16 %v1843, %v1841
      %v1886 = vpack.c.b16 %v1844, %v1842
      %v1887 = vpack.c.b16 %v1847, %v1845
      %v1888 = vpack.c.b16 %v1848, %v1846
      %v1889 = vpack.c.b16 %v1851, %v1849
      %v1890 = vpack.c.b16 %v1852, %v1850
      %v1891 = vpack.c.b16 %v1855, %v1853
      %v1892 = vpack.c.b16 %v1856, %v1854
      %v1893 = vpack.c.b16 %v1859, %v1857
      %v1894 = vpack.c.b16 %v1860, %v1858
      %v1895 = vpack.c.b16 %v1863, %v1861
      %v1896 = vpack.c.b16 %v1864, %v1862
      %v1897 = vpack.c.b16 %v1867, %v1865
      %v1898 = vpack.c.b16 %v1868, %v1866
      %v1899 = vpack.c.b16 %v1871, %v1869
      %v1900 = vpack.c.b16 %v1872, %v1870
      %v1901 = vpack.c.b16 %v1875, %v1873
      %v1902 = vpack.c.b16 %v1876, %v1874
      %v1903 = vpack.c.b16 %v1877, %v1877
      %v1904 = vpack.c.b16 %v1878, %v1878
      %v1930 = vsel %vm1143, %v1775, 0
      %v1933 = vsel %vm1143, %v1777, 0
      %v1936 = vsel %vm1150, %v1903, 0
      %v1939 = vsel %vm1150, %v1904, 0
      %1941 = vmatprep.subr.bf16.mxu0 %v1880
      %1942 = vmatpush1.bf16.msra.mxu0 %v1879
      %1943 = vmatprep.subr.bf16.mxu0 %v1882
      %1944 = vmatpush1.bf16.msra.mxu0 %v1881
      %1945 = vmatprep.subr.bf16.mxu0 %v1884
      %1946 = vmatpush1.bf16.msra.mxu0 %v1883
      %1947 = vmatprep.subr.bf16.mxu0 %v1886
      %1948 = vmatpush1.bf16.msra.mxu0 %v1885
      %1949 = vmatprep.subr.bf16.mxu0 %v1888
      %1950 = vmatpush1.bf16.msra.mxu0 %v1887
      %1951 = vmatprep.subr.bf16.mxu0 %v1890
      %1952 = vmatpush1.bf16.msra.mxu0 %v1889
      %1953 = vmatprep.subr.bf16.mxu0 %v1892
      %1954 = vmatpush1.bf16.msra.mxu0 %v1891
      %1955 = vmatprep.subr.bf16.mxu0 %v1894
      %1956 = vmatpush1.bf16.msra.mxu0 %v1893
      %1957 = vmatprep.subr.bf16.mxu0 %v1896
      %1958 = vmatpush1.bf16.msra.mxu0 %v1895
      %1959 = vmatprep.subr.bf16.mxu0 %v1898
      %1960 = vmatpush1.bf16.msra.mxu0 %v1897
      %1961 = vmatprep.subr.bf16.mxu0 %v1900
      %1962 = vmatpush1.bf16.msra.mxu0 %v1899
      %1963 = vmatprep.subr.bf16.mxu0 %v1902
      %1964 = vmatpush1.bf16.msra.mxu0 %v1901
      %1965 = vmatprep.subr.bf16.mxu0 %v1939
      %1966 = vmatpush1.bf16.msra.mxu0 %v1936
      %1967 = vmatprep.subr.bf16.mxu0 0
      %1968 = vmatpush1.bf16.msra.mxu0 0
      %1969 = vmatprep.subr.bf16.mxu0 0
      %1970 = vmatpush1.bf16.msra.mxu0 0
      %1971 = vmatprep.subr.bf16.mxu0 0
      %1972 = vmatpush1.bf16.msra.mxu0 0
      %1973 = vmatprep.mubr.bf16.mxu0 %v1930
      %1974 = vmatmul.mubr.bf16.gmra.mrb[0].mxu0 %v1774
      %v1975 = vpop.f32.mrb[0].mxu0
      %v1976 = vadd.f32 0.0, %v1975
      %v1977 = vpop.f32.mrb[0].mxu0
      %v1978 = vadd.f32 0.0, %v1977
      %v1979 = vpop.f32.mrb[0].mxu0
      %v1980 = vadd.f32 0.0, %v1979
      %v1981 = vpop.f32.mrb[0].mxu0
      %v1982 = vadd.f32 0.0, %v1981
      %1983 = vmatprep.mubr.bf16.mxu0 %v1933
      %1984 = vmatmul.mubr.bf16.gmra.mrb[0].mxu0 %v1776
      %v1985 = vpop.f32.mrb[0].mxu0
      %v1986 = vadd.f32 0.0, %v1985
      %v1987 = vpop.f32.mrb[0].mxu0
      %v1988 = vadd.f32 0.0, %v1987
      %v1989 = vpop.f32.mrb[0].mxu0
      %v1990 = vadd.f32 0.0, %v1989
      %v1991 = vpop.f32.mrb[0].mxu0
      %v1992 = vadd.f32 0.0, %v1991
      %1993 = vdwg.mxu0
      %v1994 = vadd.f32 %v1693, %v1976
      %v1995 = vadd.f32 %v1694, %v1978
      %v1996 = vadd.f32 %v1695, %v1980
      %v1997 = vadd.f32 %v1696, %v1982
      %v1998 = vadd.f32 %v1697, %v1986
      %v1999 = vadd.f32 %v1698, %v1988
      %v2000 = vadd.f32 %v1699, %v1990
      %v2001 = vadd.f32 %v1700, %v1992
      %v2002 = vld [vmem:[%s2] sm:$0x3]
      %v2004 = vlaneseq
      %v2005 = vshrl.u32 %v2004, 7
      %v2006 = vsub.s32 0, %v2005
      %v2007 = vrot.slane %v2002, %v2006
      %v2008 = vlaneseq
      %v2009 = vshrl.u32 %v2008, 7
      %v2010 = vsub.s32 1, %v2009
      %v2011 = vrot.slane %v2002, %v2010
      %v2014 = vadd.f32 %v1994, %v2007
      %v2015 = vadd.f32 %v1995, %v2011
      %v2016 = vadd.f32 %v1996, %v2007
      %v2017 = vadd.f32 %v1997, %v2011
      %v2018 = vadd.f32 %v1998, %v2007
      %v2019 = vadd.f32 %v1999, %v2011
      %v2020 = vadd.f32 %v2000, %v2007
      %v2021 = vadd.f32 %v2001, %v2011
      %vm2022 = vcmp.ge.f32.partialorder %v2014, 0.0
      %vm2023 = vcmp.ge.f32.partialorder %v2015, 0.0
      %vm2024 = vcmp.ge.f32.partialorder %v2016, 0.0
      %vm2025 = vcmp.ge.f32.partialorder %v2017, 0.0
      %vm2026 = vcmp.ge.f32.partialorder %v2018, 0.0
      %vm2027 = vcmp.ge.f32.partialorder %v2019, 0.0
      %vm2028 = vcmp.ge.f32.partialorder %v2020, 0.0
      %vm2029 = vcmp.ge.f32.partialorder %v2021, 0.0
      %v2030 = vmul.f32 %v2014, 0.1
      %v2031 = vmul.f32 %v2015, 0.1
      %v2032 = vmul.f32 %v2016, 0.1
      %v2033 = vmul.f32 %v2017, 0.1
      %v2034 = vmul.f32 %v2018, 0.1
      %v2035 = vmul.f32 %v2019, 0.1
      %v2036 = vmul.f32 %v2020, 0.1
      %v2037 = vmul.f32 %v2021, 0.1
      %v2038 = vsel %vm2022, %v2014, %v2030
      %v2039 = vsel %vm2023, %v2015, %v2031
      %v2040 = vsel %vm2024, %v2016, %v2032
      %v2041 = vsel %vm2025, %v2017, %v2033
      %v2042 = vsel %vm2026, %v2018, %v2034
      %v2043 = vsel %vm2027, %v2019, %v2035
      %v2044 = vsel %vm2028, %v2020, %v2036
      %v2045 = vsel %vm2029, %v2021, %v2037
      %2046 = vst [vmem:[#allocation2] sm:$0xff] 0.0
      %2047 = vst [vmem:[#allocation2 + $0x8] sm:$0xff] 0.0
      %vm2048 = vcmask 130048
      %2049 = vst.msk [vmem:[#allocation2 + $0x10] sm:$0xff] %vm2048, 0.0
      %2050 = vst [vmem:[#allocation2 + $0x18] sm:$0xff] 0.0
      %2051 = vst [vmem:[#allocation2 + $0x20] sm:$0xff] 0.0
      %2052 = vst.msk [vmem:[#allocation2 + $0x28] sm:$0xff] %vm2048, 0.0
      %2053 = vst [vmem:[#allocation2 + $0x30] sm:$0xff] 0.0
      %2054 = vst [vmem:[#allocation2 + $0x38] sm:$0xff] 0.0
      %2055 = vst.msk [vmem:[#allocation2 + $0x40] sm:$0xff] %vm2048, 0.0
      %2056 = vst [vmem:[#allocation2 + $0x48] sm:$0xff] 0.0
      %2057 = vst [vmem:[#allocation2 + $0x50] sm:$0xff] 0.0
      %2058 = vst.msk [vmem:[#allocation2 + $0x58] sm:$0xff] %vm2048, 0.0
      %2059 = vst [vmem:[#allocation2 + $0x60] sm:$0x3] 0.0
      %2060 = vst [vmem:[#allocation2 + $0x68] sm:$0x3] 0.0
      %vm2061 = vcmask 123904
      %2062 = vst.msk [vmem:[#allocation2 + $0x70] sm:$0x3] %vm2061, 0.0
      %v2071 = vrot.slane %v2038, 7
      %v2072 = vrot.slane %v2039, 7
      %v2073 = vrot.slane %v2040, 7
      %v2074 = vsel %vm826, %v2071, %v2073
      %v2075 = vrot.slane %v2041, 7
      %v2076 = vsel %vm826, %v2072, %v2075
      %v2077 = vrot.slane %v2042, 7
      %v2078 = vsel %vm826, %v2073, %v2077
      %v2079 = vrot.slane %v2043, 7
      %v2080 = vsel %vm826, %v2075, %v2079
      %v2081 = vrot.slane %v2044, 7
      %v2082 = vsel %vm826, %v2077, %v2081
      %v2083 = vrot.slane %v2045, 7
      %v2084 = vsel %vm826, %v2079, %v2083
      %2085 = vrot.lane.b32.xlu0 %v2071, 8
      %v2086 = vpop.permute.xlu0 %2085
      %2087 = vrot.lane.b32.xlu0 %v2072, 8
      %v2088 = vpop.permute.xlu0 %2087
      %2089 = vrot.lane.b32.xlu0 %v2074, 8
      %v2090 = vpop.permute.xlu0 %2089
      %2091 = vrot.lane.b32.xlu0 %v2076, 8
      %v2092 = vpop.permute.xlu0 %2091
      %2093 = vrot.lane.b32.xlu0 %v2078, 8
      %v2094 = vpop.permute.xlu0 %2093
      %2095 = vrot.lane.b32.xlu0 %v2080, 8
      %v2096 = vpop.permute.xlu0 %2095
      %2097 = vrot.lane.b32.xlu0 %v2082, 8
      %v2098 = vpop.permute.xlu0 %2097
      %2099 = vrot.lane.b32.xlu0 %v2084, 8
      %v2100 = vpop.permute.xlu0 %2099
      %2101 = vrot.lane.b32.xlu0 %v2081, 8
      %v2102 = vpop.permute.xlu0 %2101
      %2103 = vrot.lane.b32.xlu0 %v2083, 8
      %v2104 = vpop.permute.xlu0 %2103
      %vm2105 = vcmask 64512
      %v2106 = vsel %vm2105, %v2086, %v2088
      %v2107 = vsel %vm2105, %v2090, %v2092
      %v2108 = vsel %vm2105, %v2094, %v2096
      %v2109 = vsel %vm2105, %v2098, %v2100
      %v2110 = vsel %vm2105, %v2102, %v2104
      %vm2126 = vcmask 1047617
      %2127 = vst.msk [vmem:[#allocation2] sm:$0xfe] %vm2126, %v2086
      %2128 = vst [vmem:[#allocation2 + $0x8] sm:$0xfe] %v2106
      %vm2129 = vcmask 64513
      %2130 = vst.msk [vmem:[#allocation2 + $0x10] sm:$0xfe] %vm2129, %v2088
      %vm2131 = vcmask 1047616
      %2132 = vst.msk [vmem:[#allocation2 + $0x18] sm:$0xff] %vm2131, %v2090
      %2133 = vst [vmem:[#allocation2 + $0x20] sm:$0xff] %v2107
      %2134 = vst.msk [vmem:[#allocation2 + $0x28] sm:$0xff] %vm2105, %v2092
      %2135 = vst.msk [vmem:[#allocation2 + $0x30] sm:$0xff] %vm2131, %v2094
      %2136 = vst [vmem:[#allocation2 + $0x38] sm:$0xff] %v2108
      %2137 = vst.msk [vmem:[#allocation2 + $0x40] sm:$0xff] %vm2105, %v2096
      %2138 = vst.msk [vmem:[#allocation2 + $0x48] sm:$0xff] %vm2131, %v2098
      %2139 = vst [vmem:[#allocation2 + $0x50] sm:$0xff] %v2109
      %2140 = vst.msk [vmem:[#allocation2 + $0x58] sm:$0xff] %vm2105, %v2100
      %vm2141 = vcmask 1040448
      %2142 = vst.msk [vmem:[#allocation2 + $0x60] sm:$0x1] %vm2141, %v2102
      %2143 = vst [vmem:[#allocation2 + $0x68] sm:$0x1] %v2110
      %vm2144 = vcmask 57344
      %2145 = vst.msk [vmem:[#allocation2 + $0x70] sm:$0x1] %vm2144, %v2104
      %v2146 = vld [vmem:[#allocation2] sm:$0xff]
      %v2147 = vld [vmem:[#allocation2 + $0x8] sm:$0xff]
      %v2148 = vld [vmem:[#allocation2 + $0x10] sm:$0xff]
      %v2149 = vld [vmem:[#allocation2 + $0x18] sm:$0xff]
      %v2150 = vld [vmem:[#allocation2 + $0x20] sm:$0xff]
      %v2151 = vld [vmem:[#allocation2 + $0x28] sm:$0xff]
      %v2152 = vld [vmem:[#allocation2 + $0x30] sm:$0xff]
      %v2153 = vld [vmem:[#allocation2 + $0x38] sm:$0xff]
      %v2154 = vld [vmem:[#allocation2 + $0x40] sm:$0xff]
      %v2155 = vld [vmem:[#allocation2 + $0x48] sm:$0xff]
      %v2156 = vld [vmem:[#allocation2 + $0x50] sm:$0xff]
      %v2157 = vld [vmem:[#allocation2 + $0x58] sm:$0xff]
      %v2158 = vld [vmem:[#allocation2 + $0x60] sm:$0x3]
      %v2159 = vld [vmem:[#allocation2 + $0x68] sm:$0x3]
      %v2160 = vld [vmem:[#allocation2 + $0x70] sm:$0x3]
      %v2161 = vpack.c.bf16 %v2149, %v2146
      %v2162 = vpack.c.bf16 %v2150, %v2147
      %v2163 = vpack.c.bf16 %v2151, %v2148
      %v2164 = vpack.c.bf16 %v2155, %v2152
      %v2165 = vpack.c.bf16 %v2156, %v2153
      %v2166 = vpack.c.bf16 %v2157, %v2154
      %v2167 = vpack.c.bf16 %v2158, %v2158
      %v2168 = vpack.c.bf16 %v2159, %v2159
      %v2169 = vpack.c.bf16 %v2160, %v2160
      %vm2170 = vcmask 277504
      %v2171 = vsel %vm2170, %v817, 0
      %v2174 = vsel %vm826, %v2167, 0
      %v2177 = vsel %vm826, %v2168, 0
      %v2180 = vsel %vm826, %v2169, 0
      %2182 = vmatprep.subr.bf16.mxu0 %v2162
      %2183 = vmatpush1.bf16.msra.mxu0 %v2161
      %2184 = vmatprep.subr.bf16.mxu0 %v2165
      %2185 = vmatpush1.bf16.msra.mxu0 %v2164
      %2186 = vmatprep.subr.bf16.mxu0 %v2177
      %2187 = vmatpush1.bf16.msra.mxu0 %v2174
      %2188 = vmatprep.subr.bf16.mxu0 0
      %2189 = vmatpush1.bf16.msra.mxu0 0
      %2190 = vmatprep.subr.bf16.mxu0 0
      %2191 = vmatpush1.bf16.msra.mxu0 0
      %2192 = vmatprep.subr.bf16.mxu0 0
      %2193 = vmatpush1.bf16.msra.mxu0 0
      %2194 = vmatprep.subr.bf16.mxu0 0
      %2195 = vmatpush1.bf16.msra.mxu0 0
      %2196 = vmatprep.subr.bf16.mxu0 0
      %2197 = vmatpush1.bf16.msra.mxu0 0
      %2198 = vmatprep.subr.bf16.mxu0 0
      %2199 = vmatpush1.bf16.msra.mxu0 0
      %2200 = vmatprep.subr.bf16.mxu0 0
      %2201 = vmatpush1.bf16.msra.mxu0 0
      %2202 = vmatprep.subr.bf16.mxu0 0
      %2203 = vmatpush1.bf16.msra.mxu0 0
      %2204 = vmatprep.subr.bf16.mxu0 0
      %2205 = vmatpush1.bf16.msra.mxu0 0
      %2206 = vmatprep.subr.bf16.mxu0 0
      %2207 = vmatpush1.bf16.msra.mxu0 0
      %2208 = vmatprep.subr.bf16.mxu0 0
      %2209 = vmatpush1.bf16.msra.mxu0 0
      %2210 = vmatprep.subr.bf16.mxu0 0
      %2211 = vmatpush1.bf16.msra.mxu0 0
      %2212 = vmatprep.subr.bf16.mxu0 0
      %2213 = vmatpush1.bf16.msra.mxu0 0
      %2214 = vmatprep.mubr.bf16.mxu0 0
      %2215 = vmatmul.mubr.bf16.gmra.mrb[0].mxu0 %v2171
      %v2216 = vpop.f32.mrb[0].mxu0
      %v2217 = vadd.f32 0.0, %v2216
      %v2218 = vpop.f32.mrb[0].mxu0
      %v2219 = vadd.f32 0.0, %v2218
      %v2220 = vpop.f32.mrb[0].mxu0
      %v2221 = vadd.f32 0.0, %v2220
      %v2222 = vpop.f32.mrb[0].mxu0
      %v2223 = vadd.f32 0.0, %v2222
      %2224 = vdwg.mxu0
      %2225 = vmatprep.subr.bf16.mxu0 0
      %2226 = vmatpush1.bf16.msra.mxu0 %v2163
      %2227 = vmatprep.subr.bf16.mxu0 0
      %2228 = vmatpush1.bf16.msra.mxu0 %v2166
      %2229 = vmatprep.subr.bf16.mxu0 0
      %2230 = vmatpush1.bf16.msra.mxu0 %v2180
      %2231 = vmatprep.subr.bf16.mxu0 0
      %2232 = vmatpush1.bf16.msra.mxu0 0
      %2233 = vmatprep.subr.bf16.mxu0 0
      %2234 = vmatpush1.bf16.msra.mxu0 0
      %2235 = vmatprep.subr.bf16.mxu0 0
      %2236 = vmatpush1.bf16.msra.mxu0 0
      %2237 = vmatprep.subr.bf16.mxu0 0
      %2238 = vmatpush1.bf16.msra.mxu0 0
      %2239 = vmatprep.subr.bf16.mxu0 0
      %2240 = vmatpush1.bf16.msra.mxu0 0
      %2241 = vmatprep.subr.bf16.mxu0 0
      %2242 = vmatpush1.bf16.msra.mxu0 0
      %2243 = vmatprep.subr.bf16.mxu0 0
      %2244 = vmatpush1.bf16.msra.mxu0 0
      %2245 = vmatprep.subr.bf16.mxu0 0
      %2246 = vmatpush1.bf16.msra.mxu0 0
      %2247 = vmatprep.subr.bf16.mxu0 0
      %2248 = vmatpush1.bf16.msra.mxu0 0
      %2249 = vmatprep.subr.bf16.mxu0 0
      %2250 = vmatpush1.bf16.msra.mxu0 0
      %2251 = vmatprep.subr.bf16.mxu0 0
      %2252 = vmatpush1.bf16.msra.mxu0 0
      %2253 = vmatprep.subr.bf16.mxu0 0
      %2254 = vmatpush1.bf16.msra.mxu0 0
      %2255 = vmatprep.subr.bf16.mxu0 0
      %2256 = vmatpush1.bf16.msra.mxu0 0
      %2257 = vmatprep.mubr.bf16.mxu0 0
      %2258 = vmatmul.mubr.bf16.gmra.mrb[0].mxu0 %v2171
      %v2259 = vpop.f32.mrb[0].mxu0
      %v2260 = vadd.f32 0.0, %v2259
      %v2261 = vpop.f32.mrb[0].mxu0
      %v2262 = vpop.f32.mrb[0].mxu0
      %v2263 = vadd.f32 0.0, %v2262
      %v2264 = vpop.f32.mrb[0].mxu0
      %2265 = vdwg.mxu0
      %v2266 = vpack.c.bf16 %v2221, %v2217
      %v2267 = vpack.c.bf16 %v2223, %v2219
      %v2268 = vpack.c.bf16 %v2263, %v2260
      %v2269 = vld [vmem:[%s3] sm:$0xff]
      %v2270 = vld [vmem:[%s3 + $0x8] sm:$0xff]
      %v2271 = vld [vmem:[%s3 + $0x10] sm:$0xff]
      %v2272 = vld [vmem:[%s3 + $0x18] sm:$0xff]
      %v2273 = vld [vmem:[%s3 + $0x20] sm:$0xff]
      %v2274 = vld [vmem:[%s3 + $0x28] sm:$0xff]
      %v2275 = vld [vmem:[%s3 + $0x30] sm:$0xff]
      %v2276 = vld [vmem:[%s3 + $0x38] sm:$0xff]
      %v2277 = vld [vmem:[%s3 + $0x40] sm:$0xff]
      %v2278 = vld [vmem:[%s3 + $0x48] sm:$0xff]
      %v2279 = vld [vmem:[%s3 + $0x50] sm:$0xff]
      %v2280 = vld [vmem:[%s3 + $0x58] sm:$0xff]
      %v2281 = vld [vmem:[%s3 + $0x60] sm:$0xff]
      %v2282 = vld [vmem:[%s3 + $0x68] sm:$0xff]
      %v2283 = vld [vmem:[%s3 + $0x70] sm:$0xff]
      %v2284 = vld [vmem:[%s3 + $0x78] sm:$0xff]
      %v2285 = vld [vmem:[%s3 + $0x80] sm:$0xff]
      %v2286 = vld [vmem:[%s3 + $0x88] sm:$0xff]
      %v2287 = vld [vmem:[%s3 + $0x90] sm:$0xff]
      %v2288 = vld [vmem:[%s3 + $0x98] sm:$0xff]
      %v2289 = vld [vmem:[%s3 + $0xa0] sm:$0xff]
      %v2290 = vld [vmem:[%s3 + $0xa8] sm:$0xff]
      %v2291 = vld [vmem:[%s3 + $0xb0] sm:$0xff]
      %v2292 = vld [vmem:[%s3 + $0xb8] sm:$0xff]
      %v2293 = vld [vmem:[%s3 + $0xc0] sm:$0xff]
      %v2294 = vld [vmem:[%s3 + $0xc8] sm:$0xff]
      %v2295 = vld [vmem:[%s3 + $0xd0] sm:$0xff]
      %v2296 = vld [vmem:[%s3 + $0xd8] sm:$0xff]
      %v2297 = vld [vmem:[%s3 + $0xe0] sm:$0xff]
      %v2298 = vld [vmem:[%s3 + $0xe8] sm:$0xff]
      %v2299 = vld [vmem:[%s3 + $0xf0] sm:$0xff]
      %v2300 = vld [vmem:[%s3 + $0xf8] sm:$0xff]
      %v2301 = vld [vmem:[%s3 + $0x100] sm:$0xff]
      %v2302 = vld [vmem:[%s3 + $0x108] sm:$0xff]
      %v2303 = vsel %vm2170, %v927, 0
      %2305 = vmatprep.subr.bf16.mxu0 %v2162
      %2306 = vmatpush1.bf16.msra.mxu0 %v2161
      %2307 = vmatprep.subr.bf16.mxu0 %v2165
      %2308 = vmatpush1.bf16.msra.mxu0 %v2164
      %2309 = vmatprep.subr.bf16.mxu0 %v2177
      %2310 = vmatpush1.bf16.msra.mxu0 %v2174
      %2311 = vmatprep.subr.bf16.mxu0 0
      %2312 = vmatpush1.bf16.msra.mxu0 0
      %2313 = vmatprep.subr.bf16.mxu0 0
      %2314 = vmatpush1.bf16.msra.mxu0 0
      %2315 = vmatprep.subr.bf16.mxu0 0
      %2316 = vmatpush1.bf16.msra.mxu0 0
      %2317 = vmatprep.subr.bf16.mxu0 0
      %2318 = vmatpush1.bf16.msra.mxu0 0
      %2319 = vmatprep.subr.bf16.mxu0 0
      %2320 = vmatpush1.bf16.msra.mxu0 0
      %2321 = vmatprep.subr.bf16.mxu0 0
      %2322 = vmatpush1.bf16.msra.mxu0 0
      %2323 = vmatprep.subr.bf16.mxu0 0
      %2324 = vmatpush1.bf16.msra.mxu0 0
      %2325 = vmatprep.subr.bf16.mxu0 0
      %2326 = vmatpush1.bf16.msra.mxu0 0
      %2327 = vmatprep.subr.bf16.mxu0 0
      %2328 = vmatpush1.bf16.msra.mxu0 0
      %2329 = vmatprep.subr.bf16.mxu0 0
      %2330 = vmatpush1.bf16.msra.mxu0 0
      %2331 = vmatprep.subr.bf16.mxu0 0
      %2332 = vmatpush1.bf16.msra.mxu0 0
      %2333 = vmatprep.subr.bf16.mxu0 0
      %2334 = vmatpush1.bf16.msra.mxu0 0
      %2335 = vmatprep.subr.bf16.mxu0 0
      %2336 = vmatpush1.bf16.msra.mxu0 0
      %2337 = vmatprep.mubr.bf16.mxu0 0
      %2338 = vmatmul.mubr.bf16.gmra.mrb[0].mxu0 %v2303
      %v2339 = vpop.f32.mrb[0].mxu0
      %v2340 = vadd.f32 0.0, %v2339
      %v2341 = vpop.f32.mrb[0].mxu0
      %v2342 = vadd.f32 0.0, %v2341
      %v2343 = vpop.f32.mrb[0].mxu0
      %v2344 = vadd.f32 0.0, %v2343
      %v2345 = vpop.f32.mrb[0].mxu0
      %v2346 = vadd.f32 0.0, %v2345
      %2347 = vdwg.mxu0
      %2348 = vmatprep.subr.bf16.mxu0 0
      %2349 = vmatpush1.bf16.msra.mxu0 %v2163
      %2350 = vmatprep.subr.bf16.mxu0 0
      %2351 = vmatpush1.bf16.msra.mxu0 %v2166
      %2352 = vmatprep.subr.bf16.mxu0 0
      %2353 = vmatpush1.bf16.msra.mxu0 %v2180
      %2354 = vmatprep.subr.bf16.mxu0 0
      %2355 = vmatpush1.bf16.msra.mxu0 0
      %2356 = vmatprep.subr.bf16.mxu0 0
      %2357 = vmatpush1.bf16.msra.mxu0 0
      %2358 = vmatprep.subr.bf16.mxu0 0
      %2359 = vmatpush1.bf16.msra.mxu0 0
      %2360 = vmatprep.subr.bf16.mxu0 0
      %2361 = vmatpush1.bf16.msra.mxu0 0
      %2362 = vmatprep.subr.bf16.mxu0 0
      %2363 = vmatpush1.bf16.msra.mxu0 0
      %2364 = vmatprep.subr.bf16.mxu0 0
      %2365 = vmatpush1.bf16.msra.mxu0 0
      %2366 = vmatprep.subr.bf16.mxu0 0
      %2367 = vmatpush1.bf16.msra.mxu0 0
      %2368 = vmatprep.subr.bf16.mxu0 0
      %2369 = vmatpush1.bf16.msra.mxu0 0
      %2370 = vmatprep.subr.bf16.mxu0 0
      %2371 = vmatpush1.bf16.msra.mxu0 0
      %2372 = vmatprep.subr.bf16.mxu0 0
      %2373 = vmatpush1.bf16.msra.mxu0 0
      %2374 = vmatprep.subr.bf16.mxu0 0
      %2375 = vmatpush1.bf16.msra.mxu0 0
      %2376 = vmatprep.subr.bf16.mxu0 0
      %2377 = vmatpush1.bf16.msra.mxu0 0
      %2378 = vmatprep.subr.bf16.mxu0 0
      %2379 = vmatpush1.bf16.msra.mxu0 0
      %2380 = vmatprep.mubr.bf16.mxu0 0
      %2381 = vmatmul.mubr.bf16.gmra.mrb[0].mxu0 %v2303
      %v2382 = vpop.f32.mrb[0].mxu0
      %v2383 = vadd.f32 0.0, %v2382
      %v2384 = vpop.f32.mrb[0].mxu0
      %v2385 = vpop.f32.mrb[0].mxu0
      %v2386 = vadd.f32 0.0, %v2385
      %v2387 = vpop.f32.mrb[0].mxu0
      %2388 = vdwg.mxu0
      %v2389 = vpack.c.bf16 %v2344, %v2340
      %v2390 = vpack.c.bf16 %v2346, %v2342
      %v2391 = vpack.c.bf16 %v2386, %v2383
      %s2392 = scalar_lea.vmem %s3, 272
      %v2393 = vld [vmem:[%s2392] sm:$0xff]
      %v2394 = vld [vmem:[%s2392 + $0x8] sm:$0xff]
      %v2395 = vld [vmem:[%s2392 + $0x10] sm:$0xff]
      %v2396 = vld [vmem:[%s2392 + $0x18] sm:$0xff]
      %v2397 = vld [vmem:[%s2392 + $0x20] sm:$0xff]
      %v2398 = vld [vmem:[%s2392 + $0x28] sm:$0xff]
      %v2399 = vld [vmem:[%s2392 + $0x30] sm:$0xff]
      %v2400 = vld [vmem:[%s2392 + $0x38] sm:$0xff]
      %v2401 = vld [vmem:[%s2392 + $0x40] sm:$0xff]
      %v2402 = vld [vmem:[%s2392 + $0x48] sm:$0xff]
      %v2403 = vld [vmem:[%s2392 + $0x50] sm:$0xff]
      %v2404 = vld [vmem:[%s2392 + $0x58] sm:$0xff]
      %v2405 = vld [vmem:[%s2392 + $0x60] sm:$0xff]
      %v2406 = vld [vmem:[%s2392 + $0x68] sm:$0xff]
      %v2407 = vld [vmem:[%s2392 + $0x70] sm:$0xff]
      %v2408 = vld [vmem:[%s2392 + $0x78] sm:$0xff]
      %v2409 = vld [vmem:[%s2392 + $0x80] sm:$0xff]
      %v2410 = vld [vmem:[%s2392 + $0x88] sm:$0xff]
      %v2411 = vld [vmem:[%s2392 + $0x90] sm:$0xff]
      %v2412 = vld [vmem:[%s2392 + $0x98] sm:$0xff]
      %v2413 = vld [vmem:[%s2392 + $0xa0] sm:$0xff]
      %v2414 = vld [vmem:[%s2392 + $0xa8] sm:$0xff]
      %v2415 = vld [vmem:[%s2392 + $0xb0] sm:$0xff]
      %v2416 = vld [vmem:[%s2392 + $0xb8] sm:$0xff]
      %v2417 = vld [vmem:[%s2392 + $0xc0] sm:$0xff]
      %v2418 = vld [vmem:[%s2392 + $0xc8] sm:$0xff]
      %v2419 = vld [vmem:[%s2392 + $0xd0] sm:$0xff]
      %v2420 = vld [vmem:[%s2392 + $0xd8] sm:$0xff]
      %v2421 = vld [vmem:[%s2392 + $0xe0] sm:$0xff]
      %v2422 = vld [vmem:[%s2392 + $0xe8] sm:$0xff]
      %v2423 = vld [vmem:[%s2392 + $0xf0] sm:$0xff]
      %v2424 = vld [vmem:[%s2392 + $0xf8] sm:$0xff]
      %v2425 = vld [vmem:[%s2392 + $0x100] sm:$0xff]
      %v2426 = vld [vmem:[%s2392 + $0x108] sm:$0xff]
      %v2461 = vunpack.c.l.b16 %v2393
      %v2462 = vunpack.c.h.b16 %v2393
      %v2463 = vunpack.c.l.b16 %v2394
      %v2464 = vunpack.c.h.b16 %v2394
      %v2465 = vunpack.c.l.b16 %v2395
      %v2466 = vunpack.c.h.b16 %v2395
      %v2467 = vunpack.c.l.b16 %v2396
      %v2468 = vunpack.c.h.b16 %v2396
      %v2469 = vunpack.c.l.b16 %v2397
      %v2470 = vunpack.c.h.b16 %v2397
      %v2471 = vunpack.c.l.b16 %v2398
      %v2472 = vunpack.c.h.b16 %v2398
      %v2473 = vunpack.c.l.b16 %v2399
      %v2474 = vunpack.c.h.b16 %v2399
      %v2475 = vunpack.c.l.b16 %v2400
      %v2476 = vunpack.c.h.b16 %v2400
      %v2477 = vunpack.c.l.b16 %v2401
      %v2478 = vunpack.c.h.b16 %v2401
      %v2479 = vunpack.c.l.b16 %v2402
      %v2480 = vunpack.c.h.b16 %v2402
      %v2481 = vunpack.c.l.b16 %v2403
      %v2482 = vunpack.c.h.b16 %v2403
      %v2483 = vunpack.c.l.b16 %v2404
      %v2484 = vunpack.c.h.b16 %v2404
      %v2485 = vunpack.c.l.b16 %v2405
      %v2486 = vunpack.c.h.b16 %v2405
      %v2487 = vunpack.c.l.b16 %v2406
      %v2488 = vunpack.c.h.b16 %v2406
      %v2489 = vunpack.c.l.b16 %v2407
      %v2490 = vunpack.c.h.b16 %v2407
      %v2491 = vunpack.c.l.b16 %v2408
      %v2492 = vunpack.c.h.b16 %v2408
      %v2493 = vunpack.c.l.b16 %v2409
      %v2494 = vunpack.c.h.b16 %v2409
      %v2495 = vunpack.c.l.b16 %v2410
      %v2496 = vunpack.c.h.b16 %v2410
      %v2497 = vunpack.c.l.b16 %v2411
      %v2498 = vunpack.c.h.b16 %v2411
      %v2499 = vunpack.c.l.b16 %v2412
      %v2500 = vunpack.c.h.b16 %v2412
      %v2501 = vunpack.c.l.b16 %v2413
      %v2502 = vunpack.c.h.b16 %v2413
      %v2503 = vunpack.c.l.b16 %v2414
      %v2504 = vunpack.c.h.b16 %v2414
      %v2505 = vunpack.c.l.b16 %v2415
      %v2506 = vunpack.c.h.b16 %v2415
      %v2507 = vunpack.c.l.b16 %v2416
      %v2508 = vunpack.c.h.b16 %v2416
      %v2509 = vunpack.c.l.b16 %v2417
      %v2510 = vunpack.c.h.b16 %v2417
      %v2511 = vunpack.c.l.b16 %v2418
      %v2512 = vunpack.c.h.b16 %v2418
      %v2513 = vunpack.c.l.b16 %v2419
      %v2514 = vunpack.c.h.b16 %v2419
      %v2515 = vunpack.c.l.b16 %v2420
      %v2516 = vunpack.c.h.b16 %v2420
      %v2517 = vunpack.c.l.b16 %v2421
      %v2518 = vunpack.c.h.b16 %v2421
      %v2519 = vunpack.c.l.b16 %v2422
      %v2520 = vunpack.c.h.b16 %v2422
      %v2521 = vunpack.c.l.b16 %v2423
      %v2522 = vunpack.c.h.b16 %v2423
      %v2523 = vunpack.c.l.b16 %v2424
      %v2524 = vunpack.c.h.b16 %v2424
      %v2525 = vunpack.c.l.b16 %v2425
      %v2526 = vunpack.c.h.b16 %v2425
      %v2527 = vunpack.c.l.b16 %v2426
      %v2528 = vunpack.c.h.b16 %v2426
      %v2529 = vpack.c.b16 %v2463, %v2461
      %v2530 = vpack.c.b16 %v2464, %v2462
      %v2531 = vpack.c.b16 %v2467, %v2465
      %v2532 = vpack.c.b16 %v2468, %v2466
      %v2533 = vpack.c.b16 %v2471, %v2469
      %v2534 = vpack.c.b16 %v2472, %v2470
      %v2535 = vpack.c.b16 %v2475, %v2473
      %v2536 = vpack.c.b16 %v2476, %v2474
      %v2537 = vpack.c.b16 %v2479, %v2477
      %v2538 = vpack.c.b16 %v2480, %v2478
      %v2539 = vpack.c.b16 %v2483, %v2481
      %v2540 = vpack.c.b16 %v2484, %v2482
      %v2541 = vpack.c.b16 %v2487, %v2485
      %v2542 = vpack.c.b16 %v2488, %v2486
      %v2543 = vpack.c.b16 %v2491, %v2489
      %v2544 = vpack.c.b16 %v2492, %v2490
      %v2545 = vpack.c.b16 %v2495, %v2493
      %v2546 = vpack.c.b16 %v2496, %v2494
      %v2547 = vpack.c.b16 %v2499, %v2497
      %v2548 = vpack.c.b16 %v2500, %v2498
      %v2549 = vpack.c.b16 %v2503, %v2501
      %v2550 = vpack.c.b16 %v2504, %v2502
      %v2551 = vpack.c.b16 %v2507, %v2505
      %v2552 = vpack.c.b16 %v2508, %v2506
      %v2553 = vpack.c.b16 %v2511, %v2509
      %v2554 = vpack.c.b16 %v2512, %v2510
      %v2555 = vpack.c.b16 %v2515, %v2513
      %v2556 = vpack.c.b16 %v2516, %v2514
      %v2557 = vpack.c.b16 %v2519, %v2517
      %v2558 = vpack.c.b16 %v2520, %v2518
      %v2559 = vpack.c.b16 %v2523, %v2521
      %v2560 = vpack.c.b16 %v2524, %v2522
      %v2561 = vpack.c.b16 %v2527, %v2525
      %v2562 = vpack.c.b16 %v2528, %v2526
      %v2598 = vsel %vm2048, %v2391, 0
      %2600 = vmatprep.subr.bf16.mxu0 %v2530
      %2601 = vmatpush1.bf16.msra.mxu0 %v2529
      %2602 = vmatprep.subr.bf16.mxu0 %v2532
      %2603 = vmatpush1.bf16.msra.mxu0 %v2531
      %2604 = vmatprep.subr.bf16.mxu0 %v2534
      %2605 = vmatpush1.bf16.msra.mxu0 %v2533
      %2606 = vmatprep.subr.bf16.mxu0 %v2536
      %2607 = vmatpush1.bf16.msra.mxu0 %v2535
      %2608 = vmatprep.subr.bf16.mxu0 %v2538
      %2609 = vmatpush1.bf16.msra.mxu0 %v2537
      %2610 = vmatprep.subr.bf16.mxu0 %v2540
      %2611 = vmatpush1.bf16.msra.mxu0 %v2539
      %2612 = vmatprep.subr.bf16.mxu0 %v2542
      %2613 = vmatpush1.bf16.msra.mxu0 %v2541
      %2614 = vmatprep.subr.bf16.mxu0 %v2544
      %2615 = vmatpush1.bf16.msra.mxu0 %v2543
      %2616 = vmatprep.subr.bf16.mxu0 %v2546
      %2617 = vmatpush1.bf16.msra.mxu0 %v2545
      %2618 = vmatprep.subr.bf16.mxu0 %v2548
      %2619 = vmatpush1.bf16.msra.mxu0 %v2547
      %2620 = vmatprep.subr.bf16.mxu0 %v2550
      %2621 = vmatpush1.bf16.msra.mxu0 %v2549
      %2622 = vmatprep.subr.bf16.mxu0 %v2552
      %2623 = vmatpush1.bf16.msra.mxu0 %v2551
      %2624 = vmatprep.subr.bf16.mxu0 %v2554
      %2625 = vmatpush1.bf16.msra.mxu0 %v2553
      %2626 = vmatprep.subr.bf16.mxu0 %v2556
      %2627 = vmatpush1.bf16.msra.mxu0 %v2555
      %2628 = vmatprep.subr.bf16.mxu0 %v2558
      %2629 = vmatpush1.bf16.msra.mxu0 %v2557
      %2630 = vmatprep.subr.bf16.mxu0 %v2560
      %2631 = vmatpush1.bf16.msra.mxu0 %v2559
      %2632 = vmatprep.mubr.bf16.mxu0 %v2390
      %2633 = vmatmul.mubr.bf16.gmra.mrb[0].mxu0 %v2389
      %v2634 = vpop.f32.mrb[0].mxu0
      %v2635 = vadd.f32 0.0, %v2634
      %v2636 = vpop.f32.mrb[0].mxu0
      %v2637 = vadd.f32 0.0, %v2636
      %v2638 = vpop.f32.mrb[0].mxu0
      %v2639 = vadd.f32 0.0, %v2638
      %v2640 = vpop.f32.mrb[0].mxu0
      %v2641 = vadd.f32 0.0, %v2640
      %2642 = vdwg.mxu0
      %2643 = vmatprep.subr.bf16.mxu0 %v2562
      %2644 = vmatpush1.bf16.msra.mxu0 %v2561
      %2645 = vmatprep.subr.bf16.mxu0 0
      %2646 = vmatpush1.bf16.msra.mxu0 0
      %2647 = vmatprep.subr.bf16.mxu0 0
      %2648 = vmatpush1.bf16.msra.mxu0 0
      %2649 = vmatprep.subr.bf16.mxu0 0
      %2650 = vmatpush1.bf16.msra.mxu0 0
      %2651 = vmatprep.subr.bf16.mxu0 0
      %2652 = vmatpush1.bf16.msra.mxu0 0
      %2653 = vmatprep.subr.bf16.mxu0 0
      %2654 = vmatpush1.bf16.msra.mxu0 0
      %2655 = vmatprep.subr.bf16.mxu0 0
      %2656 = vmatpush1.bf16.msra.mxu0 0
      %2657 = vmatprep.subr.bf16.mxu0 0
      %2658 = vmatpush1.bf16.msra.mxu0 0
      %2659 = vmatprep.subr.bf16.mxu0 0
      %2660 = vmatpush1.bf16.msra.mxu0 0
      %2661 = vmatprep.subr.bf16.mxu0 0
      %2662 = vmatpush1.bf16.msra.mxu0 0
      %2663 = vmatprep.subr.bf16.mxu0 0
      %2664 = vmatpush1.bf16.msra.mxu0 0
      %2665 = vmatprep.subr.bf16.mxu0 0
      %2666 = vmatpush1.bf16.msra.mxu0 0
      %2667 = vmatprep.subr.bf16.mxu0 0
      %2668 = vmatpush1.bf16.msra.mxu0 0
      %2669 = vmatprep.subr.bf16.mxu0 0
      %2670 = vmatpush1.bf16.msra.mxu0 0
      %2671 = vmatprep.subr.bf16.mxu0 0
      %2672 = vmatpush1.bf16.msra.mxu0 0
      %2673 = vmatprep.subr.bf16.mxu0 0
      %2674 = vmatpush1.bf16.msra.mxu0 0
      %2675 = vmatprep.mubr.bf16.mxu0 0
      %2676 = vmatmul.mubr.bf16.gmra.mrb[0].mxu0 %v2598
      %v2677 = vpop.f32.mrb[0].mxu0
      %v2678 = vadd.f32 %v2635, %v2677
      %v2679 = vpop.f32.mrb[0].mxu0
      %v2680 = vadd.f32 %v2637, %v2679
      %v2681 = vpop.f32.mrb[0].mxu0
      %v2682 = vadd.f32 %v2639, %v2681
      %v2683 = vpop.f32.mrb[0].mxu0
      %v2684 = vadd.f32 %v2641, %v2683
      %2685 = vdwg.mxu0
      %v2720 = vunpack.c.l.b16 %v2269
      %v2721 = vunpack.c.h.b16 %v2269
      %v2722 = vunpack.c.l.b16 %v2270
      %v2723 = vunpack.c.h.b16 %v2270
      %v2724 = vunpack.c.l.b16 %v2271
      %v2725 = vunpack.c.h.b16 %v2271
      %v2726 = vunpack.c.l.b16 %v2272
      %v2727 = vunpack.c.h.b16 %v2272
      %v2728 = vunpack.c.l.b16 %v2273
      %v2729 = vunpack.c.h.b16 %v2273
      %v2730 = vunpack.c.l.b16 %v2274
      %v2731 = vunpack.c.h.b16 %v2274
      %v2732 = vunpack.c.l.b16 %v2275
      %v2733 = vunpack.c.h.b16 %v2275
      %v2734 = vunpack.c.l.b16 %v2276
      %v2735 = vunpack.c.h.b16 %v2276
      %v2736 = vunpack.c.l.b16 %v2277
      %v2737 = vunpack.c.h.b16 %v2277
      %v2738 = vunpack.c.l.b16 %v2278
      %v2739 = vunpack.c.h.b16 %v2278
      %v2740 = vunpack.c.l.b16 %v2279
      %v2741 = vunpack.c.h.b16 %v2279
      %v2742 = vunpack.c.l.b16 %v2280
      %v2743 = vunpack.c.h.b16 %v2280
      %v2744 = vunpack.c.l.b16 %v2281
      %v2745 = vunpack.c.h.b16 %v2281
      %v2746 = vunpack.c.l.b16 %v2282
      %v2747 = vunpack.c.h.b16 %v2282
      %v2748 = vunpack.c.l.b16 %v2283
      %v2749 = vunpack.c.h.b16 %v2283
      %v2750 = vunpack.c.l.b16 %v2284
      %v2751 = vunpack.c.h.b16 %v2284
      %v2752 = vunpack.c.l.b16 %v2285
      %v2753 = vunpack.c.h.b16 %v2285
      %v2754 = vunpack.c.l.b16 %v2286
      %v2755 = vunpack.c.h.b16 %v2286
      %v2756 = vunpack.c.l.b16 %v2287
      %v2757 = vunpack.c.h.b16 %v2287
      %v2758 = vunpack.c.l.b16 %v2288
      %v2759 = vunpack.c.h.b16 %v2288
      %v2760 = vunpack.c.l.b16 %v2289
      %v2761 = vunpack.c.h.b16 %v2289
      %v2762 = vunpack.c.l.b16 %v2290
      %v2763 = vunpack.c.h.b16 %v2290
      %v2764 = vunpack.c.l.b16 %v2291
      %v2765 = vunpack.c.h.b16 %v2291
      %v2766 = vunpack.c.l.b16 %v2292
      %v2767 = vunpack.c.h.b16 %v2292
      %v2768 = vunpack.c.l.b16 %v2293
      %v2769 = vunpack.c.h.b16 %v2293
      %v2770 = vunpack.c.l.b16 %v2294
      %v2771 = vunpack.c.h.b16 %v2294
      %v2772 = vunpack.c.l.b16 %v2295
      %v2773 = vunpack.c.h.b16 %v2295
      %v2774 = vunpack.c.l.b16 %v2296
      %v2775 = vunpack.c.h.b16 %v2296
      %v2776 = vunpack.c.l.b16 %v2297
      %v2777 = vunpack.c.h.b16 %v2297
      %v2778 = vunpack.c.l.b16 %v2298
      %v2779 = vunpack.c.h.b16 %v2298
      %v2780 = vunpack.c.l.b16 %v2299
      %v2781 = vunpack.c.h.b16 %v2299
      %v2782 = vunpack.c.l.b16 %v2300
      %v2783 = vunpack.c.h.b16 %v2300
      %v2784 = vunpack.c.l.b16 %v2301
      %v2785 = vunpack.c.h.b16 %v2301
      %v2786 = vunpack.c.l.b16 %v2302
      %v2787 = vunpack.c.h.b16 %v2302
      %v2788 = vpack.c.b16 %v2722, %v2720
      %v2789 = vpack.c.b16 %v2723, %v2721
      %v2790 = vpack.c.b16 %v2726, %v2724
      %v2791 = vpack.c.b16 %v2727, %v2725
      %v2792 = vpack.c.b16 %v2730, %v2728
      %v2793 = vpack.c.b16 %v2731, %v2729
      %v2794 = vpack.c.b16 %v2734, %v2732
      %v2795 = vpack.c.b16 %v2735, %v2733
      %v2796 = vpack.c.b16 %v2738, %v2736
      %v2797 = vpack.c.b16 %v2739, %v2737
      %v2798 = vpack.c.b16 %v2742, %v2740
      %v2799 = vpack.c.b16 %v2743, %v2741
      %v2800 = vpack.c.b16 %v2746, %v2744
      %v2801 = vpack.c.b16 %v2747, %v2745
      %v2802 = vpack.c.b16 %v2750, %v2748
      %v2803 = vpack.c.b16 %v2751, %v2749
      %v2804 = vpack.c.b16 %v2754, %v2752
      %v2805 = vpack.c.b16 %v2755, %v2753
      %v2806 = vpack.c.b16 %v2758, %v2756
      %v2807 = vpack.c.b16 %v2759, %v2757
      %v2808 = vpack.c.b16 %v2762, %v2760
      %v2809 = vpack.c.b16 %v2763, %v2761
      %v2810 = vpack.c.b16 %v2766, %v2764
      %v2811 = vpack.c.b16 %v2767, %v2765
      %v2812 = vpack.c.b16 %v2770, %v2768
      %v2813 = vpack.c.b16 %v2771, %v2769
      %v2814 = vpack.c.b16 %v2774, %v2772
      %v2815 = vpack.c.b16 %v2775, %v2773
      %v2816 = vpack.c.b16 %v2778, %v2776
      %v2817 = vpack.c.b16 %v2779, %v2777
      %v2818 = vpack.c.b16 %v2782, %v2780
      %v2819 = vpack.c.b16 %v2783, %v2781
      %v2820 = vpack.c.b16 %v2786, %v2784
      %v2821 = vpack.c.b16 %v2787, %v2785
      %v2857 = vsel %vm2048, %v2268, 0
      %2859 = vmatprep.subr.bf16.mxu0 %v2789
      %2860 = vmatpush1.bf16.msra.mxu0 %v2788
      %2861 = vmatprep.subr.bf16.mxu0 %v2791
      %2862 = vmatpush1.bf16.msra.mxu0 %v2790
      %2863 = vmatprep.subr.bf16.mxu0 %v2793
      %2864 = vmatpush1.bf16.msra.mxu0 %v2792
      %2865 = vmatprep.subr.bf16.mxu0 %v2795
      %2866 = vmatpush1.bf16.msra.mxu0 %v2794
      %2867 = vmatprep.subr.bf16.mxu0 %v2797
      %2868 = vmatpush1.bf16.msra.mxu0 %v2796
      %2869 = vmatprep.subr.bf16.mxu0 %v2799
      %2870 = vmatpush1.bf16.msra.mxu0 %v2798
      %2871 = vmatprep.subr.bf16.mxu0 %v2801
      %2872 = vmatpush1.bf16.msra.mxu0 %v2800
      %2873 = vmatprep.subr.bf16.mxu0 %v2803
      %2874 = vmatpush1.bf16.msra.mxu0 %v2802
      %2875 = vmatprep.subr.bf16.mxu0 %v2805
      %2876 = vmatpush1.bf16.msra.mxu0 %v2804
      %2877 = vmatprep.subr.bf16.mxu0 %v2807
      %2878 = vmatpush1.bf16.msra.mxu0 %v2806
      %2879 = vmatprep.subr.bf16.mxu0 %v2809
      %2880 = vmatpush1.bf16.msra.mxu0 %v2808
      %2881 = vmatprep.subr.bf16.mxu0 %v2811
      %2882 = vmatpush1.bf16.msra.mxu0 %v2810
      %2883 = vmatprep.subr.bf16.mxu0 %v2813
      %2884 = vmatpush1.bf16.msra.mxu0 %v2812
      %2885 = vmatprep.subr.bf16.mxu0 %v2815
      %2886 = vmatpush1.bf16.msra.mxu0 %v2814
      %2887 = vmatprep.subr.bf16.mxu0 %v2817
      %2888 = vmatpush1.bf16.msra.mxu0 %v2816
      %2889 = vmatprep.subr.bf16.mxu0 %v2819
      %2890 = vmatpush1.bf16.msra.mxu0 %v2818
      %2891 = vmatprep.mubr.bf16.mxu0 %v2267
      %2892 = vmatmul.mubr.bf16.gmra.mrb[0].mxu0 %v2266
      %v2893 = vpop.f32.mrb[0].mxu0
      %v2894 = vadd.f32 %v2678, %v2893
      %v2895 = vpop.f32.mrb[0].mxu0
      %v2896 = vadd.f32 %v2680, %v2895
      %v2897 = vpop.f32.mrb[0].mxu0
      %v2898 = vadd.f32 %v2682, %v2897
      %v2899 = vpop.f32.mrb[0].mxu0
      %v2900 = vadd.f32 %v2684, %v2899
      %2901 = vdwg.mxu0
      %2902 = vmatprep.subr.bf16.mxu0 %v2821
      %2903 = vmatpush1.bf16.msra.mxu0 %v2820
      %2904 = vmatprep.subr.bf16.mxu0 0
      %2905 = vmatpush1.bf16.msra.mxu0 0
      %2906 = vmatprep.subr.bf16.mxu0 0
      %2907 = vmatpush1.bf16.msra.mxu0 0
      %2908 = vmatprep.subr.bf16.mxu0 0
      %2909 = vmatpush1.bf16.msra.mxu0 0
      %2910 = vmatprep.subr.bf16.mxu0 0
      %2911 = vmatpush1.bf16.msra.mxu0 0
      %2912 = vmatprep.subr.bf16.mxu0 0
      %2913 = vmatpush1.bf16.msra.mxu0 0
      %2914 = vmatprep.subr.bf16.mxu0 0
      %2915 = vmatpush1.bf16.msra.mxu0 0
      %2916 = vmatprep.subr.bf16.mxu0 0
      %2917 = vmatpush1.bf16.msra.mxu0 0
      %2918 = vmatprep.subr.bf16.mxu0 0
      %2919 = vmatpush1.bf16.msra.mxu0 0
      %2920 = vmatprep.subr.bf16.mxu0 0
      %2921 = vmatpush1.bf16.msra.mxu0 0
      %2922 = vmatprep.subr.bf16.mxu0 0
      %2923 = vmatpush1.bf16.msra.mxu0 0
      %2924 = vmatprep.subr.bf16.mxu0 0
      %2925 = vmatpush1.bf16.msra.mxu0 0
      %2926 = vmatprep.subr.bf16.mxu0 0
      %2927 = vmatpush1.bf16.msra.mxu0 0
      %2928 = vmatprep.subr.bf16.mxu0 0
      %2929 = vmatpush1.bf16.msra.mxu0 0
      %2930 = vmatprep.subr.bf16.mxu0 0
      %2931 = vmatpush1.bf16.msra.mxu0 0
      %2932 = vmatprep.subr.bf16.mxu0 0
      %2933 = vmatpush1.bf16.msra.mxu0 0
      %2934 = vmatprep.mubr.bf16.mxu0 0
      %2935 = vmatmul.mubr.bf16.gmra.mrb[0].mxu0 %v2857
      %v2936 = vpop.f32.mrb[0].mxu0
      %v2937 = vadd.f32 %v2894, %v2936
      %v2938 = vpop.f32.mrb[0].mxu0
      %v2939 = vadd.f32 %v2896, %v2938
      %v2940 = vpop.f32.mrb[0].mxu0
      %v2941 = vadd.f32 %v2898, %v2940
      %v2942 = vpop.f32.mrb[0].mxu0
      %v2943 = vadd.f32 %v2900, %v2942
      %2944 = vdwg.mxu0
      %v2945 = vsel %vm2170, %v1412, 0
      %2947 = vmatprep.subr.bf16.mxu0 %v2162
      %2948 = vmatpush1.bf16.msra.mxu0 %v2161
      %2949 = vmatprep.subr.bf16.mxu0 %v2165
      %2950 = vmatpush1.bf16.msra.mxu0 %v2164
      %2951 = vmatprep.subr.bf16.mxu0 %v2177
      %2952 = vmatpush1.bf16.msra.mxu0 %v2174
      %2953 = vmatprep.subr.bf16.mxu0 0
      %2954 = vmatpush1.bf16.msra.mxu0 0
      %2955 = vmatprep.subr.bf16.mxu0 0
      %2956 = vmatpush1.bf16.msra.mxu0 0
      %2957 = vmatprep.subr.bf16.mxu0 0
      %2958 = vmatpush1.bf16.msra.mxu0 0
      %2959 = vmatprep.subr.bf16.mxu0 0
      %2960 = vmatpush1.bf16.msra.mxu0 0
      %2961 = vmatprep.subr.bf16.mxu0 0
      %2962 = vmatpush1.bf16.msra.mxu0 0
      %2963 = vmatprep.subr.bf16.mxu0 0
      %2964 = vmatpush1.bf16.msra.mxu0 0
      %2965 = vmatprep.subr.bf16.mxu0 0
      %2966 = vmatpush1.bf16.msra.mxu0 0
      %2967 = vmatprep.subr.bf16.mxu0 0
      %2968 = vmatpush1.bf16.msra.mxu0 0
      %2969 = vmatprep.subr.bf16.mxu0 0
      %2970 = vmatpush1.bf16.msra.mxu0 0
      %2971 = vmatprep.subr.bf16.mxu0 0
      %2972 = vmatpush1.bf16.msra.mxu0 0
      %2973 = vmatprep.subr.bf16.mxu0 0
      %2974 = vmatpush1.bf16.msra.mxu0 0
      %2975 = vmatprep.subr.bf16.mxu0 0
      %2976 = vmatpush1.bf16.msra.mxu0 0
      %2977 = vmatprep.subr.bf16.mxu0 0
      %2978 = vmatpush1.bf16.msra.mxu0 0
      %2979 = vmatprep.mubr.bf16.mxu0 0
      %2980 = vmatmul.mubr.bf16.gmra.mrb[0].mxu0 %v2945
      %v2981 = vpop.f32.mrb[0].mxu0
      %v2982 = vadd.f32 0.0, %v2981
      %v2983 = vpop.f32.mrb[0].mxu0
      %v2984 = vadd.f32 0.0, %v2983
      %v2985 = vpop.f32.mrb[0].mxu0
      %v2986 = vadd.f32 0.0, %v2985
      %v2987 = vpop.f32.mrb[0].mxu0
      %v2988 = vadd.f32 0.0, %v2987
      %2989 = vdwg.mxu0
      %2990 = vmatprep.subr.bf16.mxu0 0
      %2991 = vmatpush1.bf16.msra.mxu0 %v2163
      %2992 = vmatprep.subr.bf16.mxu0 0
      %2993 = vmatpush1.bf16.msra.mxu0 %v2166
      %2994 = vmatprep.subr.bf16.mxu0 0
      %2995 = vmatpush1.bf16.msra.mxu0 %v2180
      %2996 = vmatprep.subr.bf16.mxu0 0
      %2997 = vmatpush1.bf16.msra.mxu0 0
      %2998 = vmatprep.subr.bf16.mxu0 0
      %2999 = vmatpush1.bf16.msra.mxu0 0
      %3000 = vmatprep.subr.bf16.mxu0 0
      %3001 = vmatpush1.bf16.msra.mxu0 0
      %3002 = vmatprep.subr.bf16.mxu0 0
      %3003 = vmatpush1.bf16.msra.mxu0 0
      %3004 = vmatprep.subr.bf16.mxu0 0
      %3005 = vmatpush1.bf16.msra.mxu0 0
      %3006 = vmatprep.subr.bf16.mxu0 0
      %3007 = vmatpush1.bf16.msra.mxu0 0
      %3008 = vmatprep.subr.bf16.mxu0 0
      %3009 = vmatpush1.bf16.msra.mxu0 0
      %3010 = vmatprep.subr.bf16.mxu0 0
      %3011 = vmatpush1.bf16.msra.mxu0 0
      %3012 = vmatprep.subr.bf16.mxu0 0
      %3013 = vmatpush1.bf16.msra.mxu0 0
      %3014 = vmatprep.subr.bf16.mxu0 0
      %3015 = vmatpush1.bf16.msra.mxu0 0
      %3016 = vmatprep.subr.bf16.mxu0 0
      %3017 = vmatpush1.bf16.msra.mxu0 0
      %3018 = vmatprep.subr.bf16.mxu0 0
      %3019 = vmatpush1.bf16.msra.mxu0 0
      %3020 = vmatprep.subr.bf16.mxu0 0
      %3021 = vmatpush1.bf16.msra.mxu0 0
      %3022 = vmatprep.mubr.bf16.mxu0 0
      %3023 = vmatmul.mubr.bf16.gmra.mrb[0].mxu0 %v2945
      %v3024 = vpop.f32.mrb[0].mxu0
      %v3025 = vadd.f32 0.0, %v3024
      %v3026 = vpop.f32.mrb[0].mxu0
      %v3027 = vpop.f32.mrb[0].mxu0
      %v3028 = vadd.f32 0.0, %v3027
      %v3029 = vpop.f32.mrb[0].mxu0
      %3030 = vdwg.mxu0
      %v3031 = vpack.c.bf16 %v2986, %v2982
      %v3032 = vpack.c.bf16 %v2988, %v2984
      %v3033 = vpack.c.bf16 %v3028, %v3025
      %s3034 = scalar_lea.vmem %s3, 544
      %v3035 = vld [vmem:[%s3034] sm:$0xff]
      %v3036 = vld [vmem:[%s3034 + $0x8] sm:$0xff]
      %v3037 = vld [vmem:[%s3034 + $0x10] sm:$0xff]
      %v3038 = vld [vmem:[%s3034 + $0x18] sm:$0xff]
      %v3039 = vld [vmem:[%s3034 + $0x20] sm:$0xff]
      %v3040 = vld [vmem:[%s3034 + $0x28] sm:$0xff]
      %v3041 = vld [vmem:[%s3034 + $0x30] sm:$0xff]
      %v3042 = vld [vmem:[%s3034 + $0x38] sm:$0xff]
      %v3043 = vld [vmem:[%s3034 + $0x40] sm:$0xff]
      %v3044 = vld [vmem:[%s3034 + $0x48] sm:$0xff]
      %v3045 = vld [vmem:[%s3034 + $0x50] sm:$0xff]
      %v3046 = vld [vmem:[%s3034 + $0x58] sm:$0xff]
      %v3047 = vld [vmem:[%s3034 + $0x60] sm:$0xff]
      %v3048 = vld [vmem:[%s3034 + $0x68] sm:$0xff]
      %v3049 = vld [vmem:[%s3034 + $0x70] sm:$0xff]
      %v3050 = vld [vmem:[%s3034 + $0x78] sm:$0xff]
      %v3051 = vld [vmem:[%s3034 + $0x80] sm:$0xff]
      %v3052 = vld [vmem:[%s3034 + $0x88] sm:$0xff]
      %v3053 = vld [vmem:[%s3034 + $0x90] sm:$0xff]
      %v3054 = vld [vmem:[%s3034 + $0x98] sm:$0xff]
      %v3055 = vld [vmem:[%s3034 + $0xa0] sm:$0xff]
      %v3056 = vld [vmem:[%s3034 + $0xa8] sm:$0xff]
      %v3057 = vld [vmem:[%s3034 + $0xb0] sm:$0xff]
      %v3058 = vld [vmem:[%s3034 + $0xb8] sm:$0xff]
      %v3059 = vld [vmem:[%s3034 + $0xc0] sm:$0xff]
      %v3060 = vld [vmem:[%s3034 + $0xc8] sm:$0xff]
      %v3061 = vld [vmem:[%s3034 + $0xd0] sm:$0xff]
      %v3062 = vld [vmem:[%s3034 + $0xd8] sm:$0xff]
      %v3063 = vld [vmem:[%s3034 + $0xe0] sm:$0xff]
      %v3064 = vld [vmem:[%s3034 + $0xe8] sm:$0xff]
      %v3065 = vld [vmem:[%s3034 + $0xf0] sm:$0xff]
      %v3066 = vld [vmem:[%s3034 + $0xf8] sm:$0xff]
      %v3067 = vld [vmem:[%s3034 + $0x100] sm:$0xff]
      %v3068 = vld [vmem:[%s3034 + $0x108] sm:$0xff]
      %v3103 = vunpack.c.l.b16 %v3035
      %v3104 = vunpack.c.h.b16 %v3035
      %v3105 = vunpack.c.l.b16 %v3036
      %v3106 = vunpack.c.h.b16 %v3036
      %v3107 = vunpack.c.l.b16 %v3037
      %v3108 = vunpack.c.h.b16 %v3037
      %v3109 = vunpack.c.l.b16 %v3038
      %v3110 = vunpack.c.h.b16 %v3038
      %v3111 = vunpack.c.l.b16 %v3039
      %v3112 = vunpack.c.h.b16 %v3039
      %v3113 = vunpack.c.l.b16 %v3040
      %v3114 = vunpack.c.h.b16 %v3040
      %v3115 = vunpack.c.l.b16 %v3041
      %v3116 = vunpack.c.h.b16 %v3041
      %v3117 = vunpack.c.l.b16 %v3042
      %v3118 = vunpack.c.h.b16 %v3042
      %v3119 = vunpack.c.l.b16 %v3043
      %v3120 = vunpack.c.h.b16 %v3043
      %v3121 = vunpack.c.l.b16 %v3044
      %v3122 = vunpack.c.h.b16 %v3044
      %v3123 = vunpack.c.l.b16 %v3045
      %v3124 = vunpack.c.h.b16 %v3045
      %v3125 = vunpack.c.l.b16 %v3046
      %v3126 = vunpack.c.h.b16 %v3046
      %v3127 = vunpack.c.l.b16 %v3047
      %v3128 = vunpack.c.h.b16 %v3047
      %v3129 = vunpack.c.l.b16 %v3048
      %v3130 = vunpack.c.h.b16 %v3048
      %v3131 = vunpack.c.l.b16 %v3049
      %v3132 = vunpack.c.h.b16 %v3049
      %v3133 = vunpack.c.l.b16 %v3050
      %v3134 = vunpack.c.h.b16 %v3050
      %v3135 = vunpack.c.l.b16 %v3051
      %v3136 = vunpack.c.h.b16 %v3051
      %v3137 = vunpack.c.l.b16 %v3052
      %v3138 = vunpack.c.h.b16 %v3052
      %v3139 = vunpack.c.l.b16 %v3053
      %v3140 = vunpack.c.h.b16 %v3053
      %v3141 = vunpack.c.l.b16 %v3054
      %v3142 = vunpack.c.h.b16 %v3054
      %v3143 = vunpack.c.l.b16 %v3055
      %v3144 = vunpack.c.h.b16 %v3055
      %v3145 = vunpack.c.l.b16 %v3056
      %v3146 = vunpack.c.h.b16 %v3056
      %v3147 = vunpack.c.l.b16 %v3057
      %v3148 = vunpack.c.h.b16 %v3057
      %v3149 = vunpack.c.l.b16 %v3058
      %v3150 = vunpack.c.h.b16 %v3058
      %v3151 = vunpack.c.l.b16 %v3059
      %v3152 = vunpack.c.h.b16 %v3059
      %v3153 = vunpack.c.l.b16 %v3060
      %v3154 = vunpack.c.h.b16 %v3060
      %v3155 = vunpack.c.l.b16 %v3061
      %v3156 = vunpack.c.h.b16 %v3061
      %v3157 = vunpack.c.l.b16 %v3062
      %v3158 = vunpack.c.h.b16 %v3062
      %v3159 = vunpack.c.l.b16 %v3063
      %v3160 = vunpack.c.h.b16 %v3063
      %v3161 = vunpack.c.l.b16 %v3064
      %v3162 = vunpack.c.h.b16 %v3064
      %v3163 = vunpack.c.l.b16 %v3065
      %v3164 = vunpack.c.h.b16 %v3065
      %v3165 = vunpack.c.l.b16 %v3066
      %v3166 = vunpack.c.h.b16 %v3066
      %v3167 = vunpack.c.l.b16 %v3067
      %v3168 = vunpack.c.h.b16 %v3067
      %v3169 = vunpack.c.l.b16 %v3068
      %v3170 = vunpack.c.h.b16 %v3068
      %v3171 = vpack.c.b16 %v3105, %v3103
      %v3172 = vpack.c.b16 %v3106, %v3104
      %v3173 = vpack.c.b16 %v3109, %v3107
      %v3174 = vpack.c.b16 %v3110, %v3108
      %v3175 = vpack.c.b16 %v3113, %v3111
      %v3176 = vpack.c.b16 %v3114, %v3112
      %v3177 = vpack.c.b16 %v3117, %v3115
      %v3178 = vpack.c.b16 %v3118, %v3116
      %v3179 = vpack.c.b16 %v3121, %v3119
      %v3180 = vpack.c.b16 %v3122, %v3120
      %v3181 = vpack.c.b16 %v3125, %v3123
      %v3182 = vpack.c.b16 %v3126, %v3124
      %v3183 = vpack.c.b16 %v3129, %v3127
      %v3184 = vpack.c.b16 %v3130, %v3128
      %v3185 = vpack.c.b16 %v3133, %v3131
      %v3186 = vpack.c.b16 %v3134, %v3132
      %v3187 = vpack.c.b16 %v3137, %v3135
      %v3188 = vpack.c.b16 %v3138, %v3136
      %v3189 = vpack.c.b16 %v3141, %v3139
      %v3190 = vpack.c.b16 %v3142, %v3140
      %v3191 = vpack.c.b16 %v3145, %v3143
      %v3192 = vpack.c.b16 %v3146, %v3144
      %v3193 = vpack.c.b16 %v3149, %v3147
      %v3194 = vpack.c.b16 %v3150, %v3148
      %v3195 = vpack.c.b16 %v3153, %v3151
      %v3196 = vpack.c.b16 %v3154, %v3152
      %v3197 = vpack.c.b16 %v3157, %v3155
      %v3198 = vpack.c.b16 %v3158, %v3156
      %v3199 = vpack.c.b16 %v3161, %v3159
      %v3200 = vpack.c.b16 %v3162, %v3160
      %v3201 = vpack.c.b16 %v3165, %v3163
      %v3202 = vpack.c.b16 %v3166, %v3164
      %v3203 = vpack.c.b16 %v3169, %v3167
      %v3204 = vpack.c.b16 %v3170, %v3168
      %v3240 = vsel %vm2048, %v3033, 0
      %3242 = vmatprep.subr.bf16.mxu0 %v3172
      %3243 = vmatpush1.bf16.msra.mxu0 %v3171
      %3244 = vmatprep.subr.bf16.mxu0 %v3174
      %3245 = vmatpush1.bf16.msra.mxu0 %v3173
      %3246 = vmatprep.subr.bf16.mxu0 %v3176
      %3247 = vmatpush1.bf16.msra.mxu0 %v3175
      %3248 = vmatprep.subr.bf16.mxu0 %v3178
      %3249 = vmatpush1.bf16.msra.mxu0 %v3177
      %3250 = vmatprep.subr.bf16.mxu0 %v3180
      %3251 = vmatpush1.bf16.msra.mxu0 %v3179
      %3252 = vmatprep.subr.bf16.mxu0 %v3182
      %3253 = vmatpush1.bf16.msra.mxu0 %v3181
      %3254 = vmatprep.subr.bf16.mxu0 %v3184
      %3255 = vmatpush1.bf16.msra.mxu0 %v3183
      %3256 = vmatprep.subr.bf16.mxu0 %v3186
      %3257 = vmatpush1.bf16.msra.mxu0 %v3185
      %3258 = vmatprep.subr.bf16.mxu0 %v3188
      %3259 = vmatpush1.bf16.msra.mxu0 %v3187
      %3260 = vmatprep.subr.bf16.mxu0 %v3190
      %3261 = vmatpush1.bf16.msra.mxu0 %v3189
      %3262 = vmatprep.subr.bf16.mxu0 %v3192
      %3263 = vmatpush1.bf16.msra.mxu0 %v3191
      %3264 = vmatprep.subr.bf16.mxu0 %v3194
      %3265 = vmatpush1.bf16.msra.mxu0 %v3193
      %3266 = vmatprep.subr.bf16.mxu0 %v3196
      %3267 = vmatpush1.bf16.msra.mxu0 %v3195
      %3268 = vmatprep.subr.bf16.mxu0 %v3198
      %3269 = vmatpush1.bf16.msra.mxu0 %v3197
      %3270 = vmatprep.subr.bf16.mxu0 %v3200
      %3271 = vmatpush1.bf16.msra.mxu0 %v3199
      %3272 = vmatprep.subr.bf16.mxu0 %v3202
      %3273 = vmatpush1.bf16.msra.mxu0 %v3201
      %3274 = vmatprep.mubr.bf16.mxu0 %v3032
      %3275 = vmatmul.mubr.bf16.gmra.mrb[0].mxu0 %v3031
      %v3276 = vpop.f32.mrb[0].mxu0
      %v3277 = vadd.f32 0.0, %v3276
      %v3278 = vpop.f32.mrb[0].mxu0
      %v3279 = vadd.f32 0.0, %v3278
      %v3280 = vpop.f32.mrb[0].mxu0
      %v3281 = vadd.f32 0.0, %v3280
      %v3282 = vpop.f32.mrb[0].mxu0
      %v3283 = vadd.f32 0.0, %v3282
      %3284 = vdwg.mxu0
      %3285 = vmatprep.subr.bf16.mxu0 %v3204
      %3286 = vmatpush1.bf16.msra.mxu0 %v3203
      %3287 = vmatprep.subr.bf16.mxu0 0
      %3288 = vmatpush1.bf16.msra.mxu0 0
      %3289 = vmatprep.subr.bf16.mxu0 0
      %3290 = vmatpush1.bf16.msra.mxu0 0
      %3291 = vmatprep.subr.bf16.mxu0 0
      %3292 = vmatpush1.bf16.msra.mxu0 0
      %3293 = vmatprep.subr.bf16.mxu0 0
      %3294 = vmatpush1.bf16.msra.mxu0 0
      %3295 = vmatprep.subr.bf16.mxu0 0
      %3296 = vmatpush1.bf16.msra.mxu0 0
      %3297 = vmatprep.subr.bf16.mxu0 0
      %3298 = vmatpush1.bf16.msra.mxu0 0
      %3299 = vmatprep.subr.bf16.mxu0 0
      %3300 = vmatpush1.bf16.msra.mxu0 0
      %3301 = vmatprep.subr.bf16.mxu0 0
      %3302 = vmatpush1.bf16.msra.mxu0 0
      %3303 = vmatprep.subr.bf16.mxu0 0
      %3304 = vmatpush1.bf16.msra.mxu0 0
      %3305 = vmatprep.subr.bf16.mxu0 0
      %3306 = vmatpush1.bf16.msra.mxu0 0
      %3307 = vmatprep.subr.bf16.mxu0 0
      %3308 = vmatpush1.bf16.msra.mxu0 0
      %3309 = vmatprep.subr.bf16.mxu0 0
      %3310 = vmatpush1.bf16.msra.mxu0 0
      %3311 = vmatprep.subr.bf16.mxu0 0
      %3312 = vmatpush1.bf16.msra.mxu0 0
      %3313 = vmatprep.subr.bf16.mxu0 0
      %3314 = vmatpush1.bf16.msra.mxu0 0
      %3315 = vmatprep.subr.bf16.mxu0 0
      %3316 = vmatpush1.bf16.msra.mxu0 0
      %3317 = vmatprep.mubr.bf16.mxu0 0
      %3318 = vmatmul.mubr.bf16.gmra.mrb[0].mxu0 %v3240
      %v3319 = vpop.f32.mrb[0].mxu0
      %v3320 = vadd.f32 %v3277, %v3319
      %v3321 = vpop.f32.mrb[0].mxu0
      %v3322 = vadd.f32 %v3279, %v3321
      %v3323 = vpop.f32.mrb[0].mxu0
      %v3324 = vadd.f32 %v3281, %v3323
      %v3325 = vpop.f32.mrb[0].mxu0
      %v3326 = vadd.f32 %v3283, %v3325
      %3327 = vdwg.mxu0
      %v3328 = vadd.f32 %v2937, %v3320
      %v3329 = vadd.f32 %v2939, %v3322
      %v3330 = vadd.f32 %v2941, %v3324
      %v3331 = vadd.f32 %v2943, %v3326
      %v3332 = vsel %vm2170, %v1713, 0
      %3334 = vmatprep.subr.bf16.mxu0 %v2162
      %3335 = vmatpush1.bf16.msra.mxu0 %v2161
      %3336 = vmatprep.subr.bf16.mxu0 %v2165
      %3337 = vmatpush1.bf16.msra.mxu0 %v2164
      %3338 = vmatprep.subr.bf16.mxu0 %v2177
      %3339 = vmatpush1.bf16.msra.mxu0 %v2174
      %3340 = vmatprep.subr.bf16.mxu0 0
      %3341 = vmatpush1.bf16.msra.mxu0 0
      %3342 = vmatprep.subr.bf16.mxu0 0
      %3343 = vmatpush1.bf16.msra.mxu0 0
      %3344 = vmatprep.subr.bf16.mxu0 0
      %3345 = vmatpush1.bf16.msra.mxu0 0
      %3346 = vmatprep.subr.bf16.mxu0 0
      %3347 = vmatpush1.bf16.msra.mxu0 0
      %3348 = vmatprep.subr.bf16.mxu0 0
      %3349 = vmatpush1.bf16.msra.mxu0 0
      %3350 = vmatprep.subr.bf16.mxu0 0
      %3351 = vmatpush1.bf16.msra.mxu0 0
      %3352 = vmatprep.subr.bf16.mxu0 0
      %3353 = vmatpush1.bf16.msra.mxu0 0
      %3354 = vmatprep.subr.bf16.mxu0 0
      %3355 = vmatpush1.bf16.msra.mxu0 0
      %3356 = vmatprep.subr.bf16.mxu0 0
      %3357 = vmatpush1.bf16.msra.mxu0 0
      %3358 = vmatprep.subr.bf16.mxu0 0
      %3359 = vmatpush1.bf16.msra.mxu0 0
      %3360 = vmatprep.subr.bf16.mxu0 0
      %3361 = vmatpush1.bf16.msra.mxu0 0
      %3362 = vmatprep.subr.bf16.mxu0 0
      %3363 = vmatpush1.bf16.msra.mxu0 0
      %3364 = vmatprep.subr.bf16.mxu0 0
      %3365 = vmatpush1.bf16.msra.mxu0 0
      %3366 = vmatprep.mubr.bf16.mxu0 0
      %3367 = vmatmul.mubr.bf16.gmra.mrb[0].mxu0 %v3332
      %v3368 = vpop.f32.mrb[0].mxu0
      %v3369 = vadd.f32 0.0, %v3368
      %v3370 = vpop.f32.mrb[0].mxu0
      %v3371 = vadd.f32 0.0, %v3370
      %v3372 = vpop.f32.mrb[0].mxu0
      %v3373 = vadd.f32 0.0, %v3372
      %v3374 = vpop.f32.mrb[0].mxu0
      %v3375 = vadd.f32 0.0, %v3374
      %3376 = vdwg.mxu0
      %3377 = vmatprep.subr.bf16.mxu0 0
      %3378 = vmatpush1.bf16.msra.mxu0 %v2163
      %3379 = vmatprep.subr.bf16.mxu0 0
      %3380 = vmatpush1.bf16.msra.mxu0 %v2166
      %3381 = vmatprep.subr.bf16.mxu0 0
      %3382 = vmatpush1.bf16.msra.mxu0 %v2180
      %3383 = vmatprep.subr.bf16.mxu0 0
      %3384 = vmatpush1.bf16.msra.mxu0 0
      %3385 = vmatprep.subr.bf16.mxu0 0
      %3386 = vmatpush1.bf16.msra.mxu0 0
      %3387 = vmatprep.subr.bf16.mxu0 0
      %3388 = vmatpush1.bf16.msra.mxu0 0
      %3389 = vmatprep.subr.bf16.mxu0 0
      %3390 = vmatpush1.bf16.msra.mxu0 0
      %3391 = vmatprep.subr.bf16.mxu0 0
      %3392 = vmatpush1.bf16.msra.mxu0 0
      %3393 = vmatprep.subr.bf16.mxu0 0
      %3394 = vmatpush1.bf16.msra.mxu0 0
      %3395 = vmatprep.subr.bf16.mxu0 0
      %3396 = vmatpush1.bf16.msra.mxu0 0
      %3397 = vmatprep.subr.bf16.mxu0 0
      %3398 = vmatpush1.bf16.msra.mxu0 0
      %3399 = vmatprep.subr.bf16.mxu0 0
      %3400 = vmatpush1.bf16.msra.mxu0 0
      %3401 = vmatprep.subr.bf16.mxu0 0
      %3402 = vmatpush1.bf16.msra.mxu0 0
      %3403 = vmatprep.subr.bf16.mxu0 0
      %3404 = vmatpush1.bf16.msra.mxu0 0
      %3405 = vmatprep.subr.bf16.mxu0 0
      %3406 = vmatpush1.bf16.msra.mxu0 0
      %3407 = vmatprep.subr.bf16.mxu0 0
      %3408 = vmatpush1.bf16.msra.mxu0 0
      %3409 = vmatprep.mubr.bf16.mxu0 0
      %3410 = vmatmul.mubr.bf16.gmra.mrb[0].mxu0 %v3332
      %v3411 = vpop.f32.mrb[0].mxu0
      %v3412 = vadd.f32 0.0, %v3411
      %v3413 = vpop.f32.mrb[0].mxu0
      %v3414 = vpop.f32.mrb[0].mxu0
      %v3415 = vadd.f32 0.0, %v3414
      %v3416 = vpop.f32.mrb[0].mxu0
      %3417 = vdwg.mxu0
      %v3418 = vpack.c.bf16 %v3373, %v3369
      %v3419 = vpack.c.bf16 %v3375, %v3371
      %v3420 = vpack.c.bf16 %v3415, %v3412
      %s3421 = scalar_lea.vmem %s3, 816
      %v3422 = vld [vmem:[%s3421] sm:$0xff]
      %v3423 = vld [vmem:[%s3421 + $0x8] sm:$0xff]
      %v3424 = vld [vmem:[%s3421 + $0x10] sm:$0xff]
      %v3425 = vld [vmem:[%s3421 + $0x18] sm:$0xff]
      %v3426 = vld [vmem:[%s3421 + $0x20] sm:$0xff]
      %v3427 = vld [vmem:[%s3421 + $0x28] sm:$0xff]
      %v3428 = vld [vmem:[%s3421 + $0x30] sm:$0xff]
      %v3429 = vld [vmem:[%s3421 + $0x38] sm:$0xff]
      %v3430 = vld [vmem:[%s3421 + $0x40] sm:$0xff]
      %v3431 = vld [vmem:[%s3421 + $0x48] sm:$0xff]
      %v3432 = vld [vmem:[%s3421 + $0x50] sm:$0xff]
      %v3433 = vld [vmem:[%s3421 + $0x58] sm:$0xff]
      %v3434 = vld [vmem:[%s3421 + $0x60] sm:$0xff]
      %v3435 = vld [vmem:[%s3421 + $0x68] sm:$0xff]
      %v3436 = vld [vmem:[%s3421 + $0x70] sm:$0xff]
      %v3437 = vld [vmem:[%s3421 + $0x78] sm:$0xff]
      %v3438 = vld [vmem:[%s3421 + $0x80] sm:$0xff]
      %v3439 = vld [vmem:[%s3421 + $0x88] sm:$0xff]
      %v3440 = vld [vmem:[%s3421 + $0x90] sm:$0xff]
      %v3441 = vld [vmem:[%s3421 + $0x98] sm:$0xff]
      %v3442 = vld [vmem:[%s3421 + $0xa0] sm:$0xff]
      %v3443 = vld [vmem:[%s3421 + $0xa8] sm:$0xff]
      %v3444 = vld [vmem:[%s3421 + $0xb0] sm:$0xff]
      %v3445 = vld [vmem:[%s3421 + $0xb8] sm:$0xff]
      %v3446 = vld [vmem:[%s3421 + $0xc0] sm:$0xff]
      %v3447 = vld [vmem:[%s3421 + $0xc8] sm:$0xff]
      %v3448 = vld [vmem:[%s3421 + $0xd0] sm:$0xff]
      %v3449 = vld [vmem:[%s3421 + $0xd8] sm:$0xff]
      %v3450 = vld [vmem:[%s3421 + $0xe0] sm:$0xff]
      %v3451 = vld [vmem:[%s3421 + $0xe8] sm:$0xff]
      %v3452 = vld [vmem:[%s3421 + $0xf0] sm:$0xff]
      %v3453 = vld [vmem:[%s3421 + $0xf8] sm:$0xff]
      %v3454 = vld [vmem:[%s3421 + $0x100] sm:$0xff]
      %v3455 = vld [vmem:[%s3421 + $0x108] sm:$0xff]
      %v3490 = vunpack.c.l.b16 %v3422
      %v3491 = vunpack.c.h.b16 %v3422
      %v3492 = vunpack.c.l.b16 %v3423
      %v3493 = vunpack.c.h.b16 %v3423
      %v3494 = vunpack.c.l.b16 %v3424
      %v3495 = vunpack.c.h.b16 %v3424
      %v3496 = vunpack.c.l.b16 %v3425
      %v3497 = vunpack.c.h.b16 %v3425
      %v3498 = vunpack.c.l.b16 %v3426
      %v3499 = vunpack.c.h.b16 %v3426
      %v3500 = vunpack.c.l.b16 %v3427
      %v3501 = vunpack.c.h.b16 %v3427
      %v3502 = vunpack.c.l.b16 %v3428
      %v3503 = vunpack.c.h.b16 %v3428
      %v3504 = vunpack.c.l.b16 %v3429
      %v3505 = vunpack.c.h.b16 %v3429
      %v3506 = vunpack.c.l.b16 %v3430
      %v3507 = vunpack.c.h.b16 %v3430
      %v3508 = vunpack.c.l.b16 %v3431
      %v3509 = vunpack.c.h.b16 %v3431
      %v3510 = vunpack.c.l.b16 %v3432
      %v3511 = vunpack.c.h.b16 %v3432
      %v3512 = vunpack.c.l.b16 %v3433
      %v3513 = vunpack.c.h.b16 %v3433
      %v3514 = vunpack.c.l.b16 %v3434
      %v3515 = vunpack.c.h.b16 %v3434
      %v3516 = vunpack.c.l.b16 %v3435
      %v3517 = vunpack.c.h.b16 %v3435
      %v3518 = vunpack.c.l.b16 %v3436
      %v3519 = vunpack.c.h.b16 %v3436
      %v3520 = vunpack.c.l.b16 %v3437
      %v3521 = vunpack.c.h.b16 %v3437
      %v3522 = vunpack.c.l.b16 %v3438
      %v3523 = vunpack.c.h.b16 %v3438
      %v3524 = vunpack.c.l.b16 %v3439
      %v3525 = vunpack.c.h.b16 %v3439
      %v3526 = vunpack.c.l.b16 %v3440
      %v3527 = vunpack.c.h.b16 %v3440
      %v3528 = vunpack.c.l.b16 %v3441
      %v3529 = vunpack.c.h.b16 %v3441
      %v3530 = vunpack.c.l.b16 %v3442
      %v3531 = vunpack.c.h.b16 %v3442
      %v3532 = vunpack.c.l.b16 %v3443
      %v3533 = vunpack.c.h.b16 %v3443
      %v3534 = vunpack.c.l.b16 %v3444
      %v3535 = vunpack.c.h.b16 %v3444
      %v3536 = vunpack.c.l.b16 %v3445
      %v3537 = vunpack.c.h.b16 %v3445
      %v3538 = vunpack.c.l.b16 %v3446
      %v3539 = vunpack.c.h.b16 %v3446
      %v3540 = vunpack.c.l.b16 %v3447
      %v3541 = vunpack.c.h.b16 %v3447
      %v3542 = vunpack.c.l.b16 %v3448
      %v3543 = vunpack.c.h.b16 %v3448
      %v3544 = vunpack.c.l.b16 %v3449
      %v3545 = vunpack.c.h.b16 %v3449
      %v3546 = vunpack.c.l.b16 %v3450
      %v3547 = vunpack.c.h.b16 %v3450
      %v3548 = vunpack.c.l.b16 %v3451
      %v3549 = vunpack.c.h.b16 %v3451
      %v3550 = vunpack.c.l.b16 %v3452
      %v3551 = vunpack.c.h.b16 %v3452
      %v3552 = vunpack.c.l.b16 %v3453
      %v3553 = vunpack.c.h.b16 %v3453
      %v3554 = vunpack.c.l.b16 %v3454
      %v3555 = vunpack.c.h.b16 %v3454
      %v3556 = vunpack.c.l.b16 %v3455
      %v3557 = vunpack.c.h.b16 %v3455
      %v3558 = vpack.c.b16 %v3492, %v3490
      %v3559 = vpack.c.b16 %v3493, %v3491
      %v3560 = vpack.c.b16 %v3496, %v3494
      %v3561 = vpack.c.b16 %v3497, %v3495
      %v3562 = vpack.c.b16 %v3500, %v3498
      %v3563 = vpack.c.b16 %v3501, %v3499
      %v3564 = vpack.c.b16 %v3504, %v3502
      %v3565 = vpack.c.b16 %v3505, %v3503
      %v3566 = vpack.c.b16 %v3508, %v3506
      %v3567 = vpack.c.b16 %v3509, %v3507
      %v3568 = vpack.c.b16 %v3512, %v3510
      %v3569 = vpack.c.b16 %v3513, %v3511
      %v3570 = vpack.c.b16 %v3516, %v3514
      %v3571 = vpack.c.b16 %v3517, %v3515
      %v3572 = vpack.c.b16 %v3520, %v3518
      %v3573 = vpack.c.b16 %v3521, %v3519
      %v3574 = vpack.c.b16 %v3524, %v3522
      %v3575 = vpack.c.b16 %v3525, %v3523
      %v3576 = vpack.c.b16 %v3528, %v3526
      %v3577 = vpack.c.b16 %v3529, %v3527
      %v3578 = vpack.c.b16 %v3532, %v3530
      %v3579 = vpack.c.b16 %v3533, %v3531
      %v3580 = vpack.c.b16 %v3536, %v3534
      %v3581 = vpack.c.b16 %v3537, %v3535
      %v3582 = vpack.c.b16 %v3540, %v3538
      %v3583 = vpack.c.b16 %v3541, %v3539
      %v3584 = vpack.c.b16 %v3544, %v3542
      %v3585 = vpack.c.b16 %v3545, %v3543
      %v3586 = vpack.c.b16 %v3548, %v3546
      %v3587 = vpack.c.b16 %v3549, %v3547
      %v3588 = vpack.c.b16 %v3552, %v3550
      %v3589 = vpack.c.b16 %v3553, %v3551
      %v3590 = vpack.c.b16 %v3556, %v3554
      %v3591 = vpack.c.b16 %v3557, %v3555
      %v3627 = vsel %vm2048, %v3420, 0
      %3629 = vmatprep.subr.bf16.mxu0 %v3559
      %3630 = vmatpush1.bf16.msra.mxu0 %v3558
      %3631 = vmatprep.subr.bf16.mxu0 %v3561
      %3632 = vmatpush1.bf16.msra.mxu0 %v3560
      %3633 = vmatprep.subr.bf16.mxu0 %v3563
      %3634 = vmatpush1.bf16.msra.mxu0 %v3562
      %3635 = vmatprep.subr.bf16.mxu0 %v3565
      %3636 = vmatpush1.bf16.msra.mxu0 %v3564
      %3637 = vmatprep.subr.bf16.mxu0 %v3567
      %3638 = vmatpush1.bf16.msra.mxu0 %v3566
      %3639 = vmatprep.subr.bf16.mxu0 %v3569
      %3640 = vmatpush1.bf16.msra.mxu0 %v3568
      %3641 = vmatprep.subr.bf16.mxu0 %v3571
      %3642 = vmatpush1.bf16.msra.mxu0 %v3570
      %3643 = vmatprep.subr.bf16.mxu0 %v3573
      %3644 = vmatpush1.bf16.msra.mxu0 %v3572
      %3645 = vmatprep.subr.bf16.mxu0 %v3575
      %3646 = vmatpush1.bf16.msra.mxu0 %v3574
      %3647 = vmatprep.subr.bf16.mxu0 %v3577
      %3648 = vmatpush1.bf16.msra.mxu0 %v3576
      %3649 = vmatprep.subr.bf16.mxu0 %v3579
      %3650 = vmatpush1.bf16.msra.mxu0 %v3578
      %3651 = vmatprep.subr.bf16.mxu0 %v3581
      %3652 = vmatpush1.bf16.msra.mxu0 %v3580
      %3653 = vmatprep.subr.bf16.mxu0 %v3583
      %3654 = vmatpush1.bf16.msra.mxu0 %v3582
      %3655 = vmatprep.subr.bf16.mxu0 %v3585
      %3656 = vmatpush1.bf16.msra.mxu0 %v3584
      %3657 = vmatprep.subr.bf16.mxu0 %v3587
      %3658 = vmatpush1.bf16.msra.mxu0 %v3586
      %3659 = vmatprep.subr.bf16.mxu0 %v3589
      %3660 = vmatpush1.bf16.msra.mxu0 %v3588
      %3661 = vmatprep.mubr.bf16.mxu0 %v3419
      %3662 = vmatmul.mubr.bf16.gmra.mrb[0].mxu0 %v3418
      %v3663 = vpop.f32.mrb[0].mxu0
      %v3664 = vadd.f32 0.0, %v3663
      %v3665 = vpop.f32.mrb[0].mxu0
      %v3666 = vadd.f32 0.0, %v3665
      %v3667 = vpop.f32.mrb[0].mxu0
      %v3668 = vadd.f32 0.0, %v3667
      %v3669 = vpop.f32.mrb[0].mxu0
      %v3670 = vadd.f32 0.0, %v3669
      %3671 = vdwg.mxu0
      %3672 = vmatprep.subr.bf16.mxu0 %v3591
      %3673 = vmatpush1.bf16.msra.mxu0 %v3590
      %3674 = vmatprep.subr.bf16.mxu0 0
      %3675 = vmatpush1.bf16.msra.mxu0 0
      %3676 = vmatprep.subr.bf16.mxu0 0
      %3677 = vmatpush1.bf16.msra.mxu0 0
      %3678 = vmatprep.subr.bf16.mxu0 0
      %3679 = vmatpush1.bf16.msra.mxu0 0
      %3680 = vmatprep.subr.bf16.mxu0 0
      %3681 = vmatpush1.bf16.msra.mxu0 0
      %3682 = vmatprep.subr.bf16.mxu0 0
      %3683 = vmatpush1.bf16.msra.mxu0 0
      %3684 = vmatprep.subr.bf16.mxu0 0
      %3685 = vmatpush1.bf16.msra.mxu0 0
      %3686 = vmatprep.subr.bf16.mxu0 0
      %3687 = vmatpush1.bf16.msra.mxu0 0
      %3688 = vmatprep.subr.bf16.mxu0 0
      %3689 = vmatpush1.bf16.msra.mxu0 0
      %3690 = vmatprep.subr.bf16.mxu0 0
      %3691 = vmatpush1.bf16.msra.mxu0 0
      %3692 = vmatprep.subr.bf16.mxu0 0
      %3693 = vmatpush1.bf16.msra.mxu0 0
      %3694 = vmatprep.subr.bf16.mxu0 0
      %3695 = vmatpush1.bf16.msra.mxu0 0
      %3696 = vmatprep.subr.bf16.mxu0 0
      %3697 = vmatpush1.bf16.msra.mxu0 0
      %3698 = vmatprep.subr.bf16.mxu0 0
      %3699 = vmatpush1.bf16.msra.mxu0 0
      %3700 = vmatprep.subr.bf16.mxu0 0
      %3701 = vmatpush1.bf16.msra.mxu0 0
      %3702 = vmatprep.subr.bf16.mxu0 0
      %3703 = vmatpush1.bf16.msra.mxu0 0
      %3704 = vmatprep.mubr.bf16.mxu0 0
      %3705 = vmatmul.mubr.bf16.gmra.mrb[0].mxu0 %v3627
      %v3706 = vpop.f32.mrb[0].mxu0
      %v3707 = vadd.f32 %v3664, %v3706
      %v3708 = vpop.f32.mrb[0].mxu0
      %v3709 = vadd.f32 %v3666, %v3708
      %v3710 = vpop.f32.mrb[0].mxu0
      %v3711 = vadd.f32 %v3668, %v3710
      %v3712 = vpop.f32.mrb[0].mxu0
      %v3713 = vadd.f32 %v3670, %v3712
      %3714 = vdwg.mxu0
      %v3715 = vadd.f32 %v3328, %v3707
      %v3716 = vadd.f32 %v3329, %v3709
      %v3717 = vadd.f32 %v3330, %v3711
      %v3718 = vadd.f32 %v3331, %v3713
      %v3719 = vld [vmem:[%s4] sm:$0x3]
      %v3721 = vlaneseq
      %v3722 = vshrl.u32 %v3721, 7
      %v3723 = vsub.s32 0, %v3722
      %v3724 = vrot.slane %v3719, %v3723
      %v3725 = vlaneseq
      %v3726 = vshrl.u32 %v3725, 7
      %v3727 = vsub.s32 1, %v3726
      %v3728 = vrot.slane %v3719, %v3727
      %v3731 = vadd.f32 %v3715, %v3724
      %v3732 = vadd.f32 %v3716, %v3728
      %v3733 = vadd.f32 %v3717, %v3724
      %v3734 = vadd.f32 %v3718, %v3728
      %vm3735 = vcmp.ge.f32.partialorder %v3731, 0.0
      %vm3736 = vcmp.ge.f32.partialorder %v3732, 0.0
      %vm3737 = vcmp.ge.f32.partialorder %v3733, 0.0
      %vm3738 = vcmp.ge.f32.partialorder %v3734, 0.0
      %v3739 = vmul.f32 %v3731, 0.1
      %v3740 = vmul.f32 %v3732, 0.1
      %v3741 = vmul.f32 %v3733, 0.1
      %v3742 = vmul.f32 %v3734, 0.1
      %v3743 = vsel %vm3735, %v3731, %v3739
      %v3744 = vsel %vm3736, %v3732, %v3740
      %v3745 = vsel %vm3737, %v3733, %v3741
      %v3746 = vsel %vm3738, %v3734, %v3742
      %3747 = vst [vmem:[#allocation3] sm:$0xff] 0.0
      %3748 = vst [vmem:[#allocation3 + $0x8] sm:$0xff] 0.0
      %vm3749 = vcmask 261120
      %3750 = vst.msk [vmem:[#allocation3 + $0x10] sm:$0xff] %vm3749, 0.0
      %3751 = vst [vmem:[#allocation3 + $0x18] sm:$0xff] 0.0
      %3752 = vst [vmem:[#allocation3 + $0x20] sm:$0xff] 0.0
      %3753 = vst.msk [vmem:[#allocation3 + $0x28] sm:$0xff] %vm3749, 0.0
      %3754 = vst [vmem:[#allocation3 + $0x30] sm:$0x3] 0.0
      %3755 = vst [vmem:[#allocation3 + $0x38] sm:$0x3] 0.0
      %vm3756 = vcmask 254976
      %3757 = vst.msk [vmem:[#allocation3 + $0x40] sm:$0x3] %vm3756, 0.0
      %v3762 = vrot.slane %v3743, 7
      %v3763 = vrot.slane %v3744, 7
      %v3764 = vrot.slane %v3745, 7
      %v3765 = vsel %vm826, %v3762, %v3764
      %v3766 = vrot.slane %v3746, 7
      %v3767 = vsel %vm826, %v3763, %v3766
      %3768 = vrot.lane.b32.xlu0 %v3762, 16
      %v3769 = vpop.permute.xlu0 %3768
      %3770 = vrot.lane.b32.xlu0 %v3763, 16
      %v3771 = vpop.permute.xlu0 %3770
      %3772 = vrot.lane.b32.xlu0 %v3765, 16
      %v3773 = vpop.permute.xlu0 %3772
      %3774 = vrot.lane.b32.xlu0 %v3767, 16
      %v3775 = vpop.permute.xlu0 %3774
      %3776 = vrot.lane.b32.xlu0 %v3764, 16
      %v3777 = vpop.permute.xlu0 %3776
      %3778 = vrot.lane.b32.xlu0 %v3766, 16
      %v3779 = vpop.permute.xlu0 %3778
      %v3780 = vsel %vm2048, %v3769, %v3771
      %v3781 = vsel %vm2048, %v3773, %v3775
      %v3782 = vsel %vm2048, %v3777, %v3779
      %vm3792 = vcmask 1047681
      %3793 = vst.msk [vmem:[#allocation3] sm:$0xfe] %vm3792, %v3769
      %3794 = vst [vmem:[#allocation3 + $0x8] sm:$0xfe] %v3780
      %vm3795 = vcmask 130049
      %3796 = vst.msk [vmem:[#allocation3 + $0x10] sm:$0xfe] %vm3795, %v3771
      %vm3797 = vcmask 1047680
      %3798 = vst.msk [vmem:[#allocation3 + $0x18] sm:$0xff] %vm3797, %v3773
      %3799 = vst [vmem:[#allocation3 + $0x20] sm:$0xff] %v3781
      %3800 = vst.msk [vmem:[#allocation3 + $0x28] sm:$0xff] %vm2048, %v3775
      %vm3801 = vcmask 1040512
      %3802 = vst.msk [vmem:[#allocation3 + $0x30] sm:$0x1] %vm3801, %v3777
      %3803 = vst [vmem:[#allocation3 + $0x38] sm:$0x1] %v3782
      %vm3804 = vcmask 122880
      %3805 = vst.msk [vmem:[#allocation3 + $0x40] sm:$0x1] %vm3804, %v3779
      %v3806 = vld [vmem:[#allocation3] sm:$0xff]
      %v3807 = vld [vmem:[#allocation3 + $0x8] sm:$0xff]
      %v3808 = vld [vmem:[#allocation3 + $0x10] sm:$0xff]
      %v3809 = vld [vmem:[#allocation3 + $0x18] sm:$0xff]
      %v3810 = vld [vmem:[#allocation3 + $0x20] sm:$0xff]
      %v3811 = vld [vmem:[#allocation3 + $0x28] sm:$0xff]
      %v3812 = vld [vmem:[#allocation3 + $0x30] sm:$0x3]
      %v3813 = vld [vmem:[#allocation3 + $0x38] sm:$0x3]
      %v3814 = vld [vmem:[#allocation3 + $0x40] sm:$0x3]
      %v3815 = vpack.c.bf16 %v3809, %v3806
      %v3816 = vpack.c.bf16 %v3810, %v3807
      %v3817 = vpack.c.bf16 %v3811, %v3808
      %v3818 = vpack.c.bf16 %v3812, %v3812
      %v3819 = vpack.c.bf16 %v3813, %v3813
      %v3820 = vpack.c.bf16 %v3814, %v3814
      %v3821 = vpack.c.bf16 %v813, %v813
      %vm3822 = vcmask 146432
      %v3824 = vsel %vm3822, %v3821, 0
      %v3827 = vsel %vm826, %v3818, 0
      %v3830 = vsel %vm826, %v3819, 0
      %v3833 = vsel %vm826, %v3820, 0
      %3835 = vmatprep.subr.bf16.mxu0 %v3816
      %3836 = vmatpush1.bf16.msra.mxu0 %v3815
      %3837 = vmatprep.subr.bf16.mxu0 %v3830
      %3838 = vmatpush1.bf16.msra.mxu0 %v3827
      %3839 = vmatprep.subr.bf16.mxu0 0
      %3840 = vmatpush1.bf16.msra.mxu0 0
      %3841 = vmatprep.subr.bf16.mxu0 0
      %3842 = vmatpush1.bf16.msra.mxu0 0
      %3843 = vmatprep.subr.bf16.mxu0 0
      %3844 = vmatpush1.bf16.msra.mxu0 0
      %3845 = vmatprep.subr.bf16.mxu0 0
      %3846 = vmatpush1.bf16.msra.mxu0 0
      %3847 = vmatprep.subr.bf16.mxu0 0
      %3848 = vmatpush1.bf16.msra.mxu0 0
      %3849 = vmatprep.subr.bf16.mxu0 0
      %3850 = vmatpush1.bf16.msra.mxu0 0
      %3851 = vmatprep.subr.bf16.mxu0 0
      %3852 = vmatpush1.bf16.msra.mxu0 0
      %3853 = vmatprep.subr.bf16.mxu0 0
      %3854 = vmatpush1.bf16.msra.mxu0 0
      %3855 = vmatprep.subr.bf16.mxu0 0
      %3856 = vmatpush1.bf16.msra.mxu0 0
      %3857 = vmatprep.subr.bf16.mxu0 0
      %3858 = vmatpush1.bf16.msra.mxu0 0
      %3859 = vmatprep.subr.bf16.mxu0 0
      %3860 = vmatpush1.bf16.msra.mxu0 0
      %3861 = vmatprep.subr.bf16.mxu0 0
      %3862 = vmatpush1.bf16.msra.mxu0 0
      %3863 = vmatprep.subr.bf16.mxu0 0
      %3864 = vmatpush1.bf16.msra.mxu0 0
      %3865 = vmatprep.subr.bf16.mxu0 0
      %3866 = vmatpush1.bf16.msra.mxu0 0
      %3867 = vmatprep.mubr.bf16.mxu0 0
      %3868 = vmatmul.mubr.bf16.gmra.mrb[0].mxu0 %v3824
      %v3869 = vpop.f32.mrb[0].mxu0
      %v3870 = vadd.f32 0.0, %v3869
      %v3871 = vpop.f32.mrb[0].mxu0
      %v3872 = vadd.f32 0.0, %v3871
      %v3873 = vpop.f32.mrb[0].mxu0
      %v3874 = vpop.f32.mrb[0].mxu0
      %3875 = vdwg.mxu0
      %3876 = vmatprep.subr.bf16.mxu0 0
      %3877 = vmatpush1.bf16.msra.mxu0 %v3817
      %3878 = vmatprep.subr.bf16.mxu0 0
      %3879 = vmatpush1.bf16.msra.mxu0 %v3833
      %3880 = vmatprep.subr.bf16.mxu0 0
      %3881 = vmatpush1.bf16.msra.mxu0 0
      %3882 = vmatprep.subr.bf16.mxu0 0
      %3883 = vmatpush1.bf16.msra.mxu0 0
      %3884 = vmatprep.subr.bf16.mxu0 0
      %3885 = vmatpush1.bf16.msra.mxu0 0
      %3886 = vmatprep.subr.bf16.mxu0 0
      %3887 = vmatpush1.bf16.msra.mxu0 0
      %3888 = vmatprep.subr.bf16.mxu0 0
      %3889 = vmatpush1.bf16.msra.mxu0 0
      %3890 = vmatprep.subr.bf16.mxu0 0
      %3891 = vmatpush1.bf16.msra.mxu0 0
      %3892 = vmatprep.subr.bf16.mxu0 0
      %3893 = vmatpush1.bf16.msra.mxu0 0
      %3894 = vmatprep.subr.bf16.mxu0 0
      %3895 = vmatpush1.bf16.msra.mxu0 0
      %3896 = vmatprep.subr.bf16.mxu0 0
      %3897 = vmatpush1.bf16.msra.mxu0 0
      %3898 = vmatprep.subr.bf16.mxu0 0
      %3899 = vmatpush1.bf16.msra.mxu0 0
      %3900 = vmatprep.subr.bf16.mxu0 0
      %3901 = vmatpush1.bf16.msra.mxu0 0
      %3902 = vmatprep.subr.bf16.mxu0 0
      %3903 = vmatpush1.bf16.msra.mxu0 0
      %3904 = vmatprep.subr.bf16.mxu0 0
      %3905 = vmatpush1.bf16.msra.mxu0 0
      %3906 = vmatprep.subr.bf16.mxu0 0
      %3907 = vmatpush1.bf16.msra.mxu0 0
      %3908 = vmatprep.mubr.bf16.mxu0 0
      %3909 = vmatmul.mubr.bf16.gmra.mrb[0].mxu0 %v3824
      %v3910 = vpop.f32.mrb[0].mxu0
      %v3911 = vadd.f32 0.0, %v3910
      %v3912 = vpop.f32.mrb[0].mxu0
      %v3913 = vpop.f32.mrb[0].mxu0
      %v3914 = vpop.f32.mrb[0].mxu0
      %3915 = vdwg.mxu0
      %v3916 = vpack.c.bf16 %v3870, %v3870
      %v3917 = vpack.c.bf16 %v3872, %v3872
      %v3918 = vpack.c.bf16 %v3911, %v3911
      %v3919 = vld [vmem:[%s5] sm:$0xff]
      %v3920 = vld [vmem:[%s5 + $0x8] sm:$0xff]
      %v3921 = vld [vmem:[%s5 + $0x10] sm:$0xff]
      %v3922 = vld [vmem:[%s5 + $0x18] sm:$0xff]
      %v3923 = vld [vmem:[%s5 + $0x20] sm:$0xff]
      %v3924 = vld [vmem:[%s5 + $0x28] sm:$0xff]
      %v3925 = vld [vmem:[%s5 + $0x30] sm:$0xff]
      %v3926 = vld [vmem:[%s5 + $0x38] sm:$0xff]
      %v3927 = vld [vmem:[%s5 + $0x40] sm:$0xff]
      %v3928 = vld [vmem:[%s5 + $0x48] sm:$0xff]
      %v3929 = vld [vmem:[%s5 + $0x50] sm:$0xff]
      %v3930 = vld [vmem:[%s5 + $0x58] sm:$0xff]
      %v3931 = vld [vmem:[%s5 + $0x60] sm:$0xff]
      %v3932 = vld [vmem:[%s5 + $0x68] sm:$0xff]
      %v3933 = vld [vmem:[%s5 + $0x70] sm:$0xff]
      %v3934 = vld [vmem:[%s5 + $0x78] sm:$0xff]
      %v3935 = vld [vmem:[%s5 + $0x80] sm:$0xff]
      %v3936 = vld [vmem:[%s5 + $0x88] sm:$0xff]
      %v3937 = vld [vmem:[%s5 + $0x90] sm:$0xff]
      %v3938 = vld [vmem:[%s5 + $0x98] sm:$0xff]
      %v3939 = vld [vmem:[%s5 + $0xa0] sm:$0xff]
      %v3940 = vld [vmem:[%s5 + $0xa8] sm:$0xff]
      %v3941 = vld [vmem:[%s5 + $0xb0] sm:$0xff]
      %v3942 = vld [vmem:[%s5 + $0xb8] sm:$0xff]
      %v3943 = vld [vmem:[%s5 + $0xc0] sm:$0xff]
      %v3944 = vld [vmem:[%s5 + $0xc8] sm:$0xff]
      %v3945 = vld [vmem:[%s5 + $0xd0] sm:$0xff]
      %v3946 = vld [vmem:[%s5 + $0xd8] sm:$0xff]
      %v3947 = vld [vmem:[%s5 + $0xe0] sm:$0xff]
      %v3948 = vld [vmem:[%s5 + $0xe8] sm:$0xff]
      %v3949 = vld [vmem:[%s5 + $0xf0] sm:$0xff]
      %v3950 = vld [vmem:[%s5 + $0xf8] sm:$0xff]
      %v3951 = vld [vmem:[%s5 + $0x100] sm:$0xff]
      %v3952 = vld [vmem:[%s5 + $0x108] sm:$0xff]
      %v3953 = vld [vmem:[%s5 + $0x110] sm:$0xff]
      %v3954 = vld [vmem:[%s5 + $0x118] sm:$0xff]
      %v3955 = vpack.c.bf16 %v923, %v923
      %v3957 = vsel %vm3822, %v3955, 0
      %3959 = vmatprep.subr.bf16.mxu0 %v3816
      %3960 = vmatpush1.bf16.msra.mxu0 %v3815
      %3961 = vmatprep.subr.bf16.mxu0 %v3830
      %3962 = vmatpush1.bf16.msra.mxu0 %v3827
      %3963 = vmatprep.subr.bf16.mxu0 0
      %3964 = vmatpush1.bf16.msra.mxu0 0
      %3965 = vmatprep.subr.bf16.mxu0 0
      %3966 = vmatpush1.bf16.msra.mxu0 0
      %3967 = vmatprep.subr.bf16.mxu0 0
      %3968 = vmatpush1.bf16.msra.mxu0 0
      %3969 = vmatprep.subr.bf16.mxu0 0
      %3970 = vmatpush1.bf16.msra.mxu0 0
      %3971 = vmatprep.subr.bf16.mxu0 0
      %3972 = vmatpush1.bf16.msra.mxu0 0
      %3973 = vmatprep.subr.bf16.mxu0 0
      %3974 = vmatpush1.bf16.msra.mxu0 0
      %3975 = vmatprep.subr.bf16.mxu0 0
      %3976 = vmatpush1.bf16.msra.mxu0 0
      %3977 = vmatprep.subr.bf16.mxu0 0
      %3978 = vmatpush1.bf16.msra.mxu0 0
      %3979 = vmatprep.subr.bf16.mxu0 0
      %3980 = vmatpush1.bf16.msra.mxu0 0
      %3981 = vmatprep.subr.bf16.mxu0 0
      %3982 = vmatpush1.bf16.msra.mxu0 0
      %3983 = vmatprep.subr.bf16.mxu0 0
      %3984 = vmatpush1.bf16.msra.mxu0 0
      %3985 = vmatprep.subr.bf16.mxu0 0
      %3986 = vmatpush1.bf16.msra.mxu0 0
      %3987 = vmatprep.subr.bf16.mxu0 0
      %3988 = vmatpush1.bf16.msra.mxu0 0
      %3989 = vmatprep.subr.bf16.mxu0 0
      %3990 = vmatpush1.bf16.msra.mxu0 0
      %3991 = vmatprep.mubr.bf16.mxu0 0
      %3992 = vmatmul.mubr.bf16.gmra.mrb[0].mxu0 %v3957
      %v3993 = vpop.f32.mrb[0].mxu0
      %v3994 = vadd.f32 0.0, %v3993
      %v3995 = vpop.f32.mrb[0].mxu0
      %v3996 = vadd.f32 0.0, %v3995
      %v3997 = vpop.f32.mrb[0].mxu0
      %v3998 = vpop.f32.mrb[0].mxu0
      %3999 = vdwg.mxu0
      %4000 = vmatprep.subr.bf16.mxu0 0
      %4001 = vmatpush1.bf16.msra.mxu0 %v3817
      %4002 = vmatprep.subr.bf16.mxu0 0
      %4003 = vmatpush1.bf16.msra.mxu0 %v3833
      %4004 = vmatprep.subr.bf16.mxu0 0
      %4005 = vmatpush1.bf16.msra.mxu0 0
      %4006 = vmatprep.subr.bf16.mxu0 0
      %4007 = vmatpush1.bf16.msra.mxu0 0
      %4008 = vmatprep.subr.bf16.mxu0 0
      %4009 = vmatpush1.bf16.msra.mxu0 0
      %4010 = vmatprep.subr.bf16.mxu0 0
      %4011 = vmatpush1.bf16.msra.mxu0 0
      %4012 = vmatprep.subr.bf16.mxu0 0
      %4013 = vmatpush1.bf16.msra.mxu0 0
      %4014 = vmatprep.subr.bf16.mxu0 0
      %4015 = vmatpush1.bf16.msra.mxu0 0
      %4016 = vmatprep.subr.bf16.mxu0 0
      %4017 = vmatpush1.bf16.msra.mxu0 0
      %4018 = vmatprep.subr.bf16.mxu0 0
      %4019 = vmatpush1.bf16.msra.mxu0 0
      %4020 = vmatprep.subr.bf16.mxu0 0
      %4021 = vmatpush1.bf16.msra.mxu0 0
      %4022 = vmatprep.subr.bf16.mxu0 0
      %4023 = vmatpush1.bf16.msra.mxu0 0
      %4024 = vmatprep.subr.bf16.mxu0 0
      %4025 = vmatpush1.bf16.msra.mxu0 0
      %4026 = vmatprep.subr.bf16.mxu0 0
      %4027 = vmatpush1.bf16.msra.mxu0 0
      %4028 = vmatprep.subr.bf16.mxu0 0
      %4029 = vmatpush1.bf16.msra.mxu0 0
      %4030 = vmatprep.subr.bf16.mxu0 0
      %4031 = vmatpush1.bf16.msra.mxu0 0
      %4032 = vmatprep.mubr.bf16.mxu0 0
      %4033 = vmatmul.mubr.bf16.gmra.mrb[0].mxu0 %v3957
      %v4034 = vpop.f32.mrb[0].mxu0
      %v4035 = vadd.f32 0.0, %v4034
      %v4036 = vpop.f32.mrb[0].mxu0
      %v4037 = vpop.f32.mrb[0].mxu0
      %v4038 = vpop.f32.mrb[0].mxu0
      %4039 = vdwg.mxu0
      %v4040 = vpack.c.bf16 %v3994, %v3994
      %v4041 = vpack.c.bf16 %v3996, %v3996
      %v4042 = vpack.c.bf16 %v4035, %v4035
      %s4043 = scalar_lea.vmem %s5, 288
      %v4044 = vld [vmem:[%s4043] sm:$0xff]
      %v4045 = vld [vmem:[%s4043 + $0x8] sm:$0xff]
      %v4046 = vld [vmem:[%s4043 + $0x10] sm:$0xff]
      %v4047 = vld [vmem:[%s4043 + $0x18] sm:$0xff]
      %v4048 = vld [vmem:[%s4043 + $0x20] sm:$0xff]
      %v4049 = vld [vmem:[%s4043 + $0x28] sm:$0xff]
      %v4050 = vld [vmem:[%s4043 + $0x30] sm:$0xff]
      %v4051 = vld [vmem:[%s4043 + $0x38] sm:$0xff]
      %v4052 = vld [vmem:[%s4043 + $0x40] sm:$0xff]
      %v4053 = vld [vmem:[%s4043 + $0x48] sm:$0xff]
      %v4054 = vld [vmem:[%s4043 + $0x50] sm:$0xff]
      %v4055 = vld [vmem:[%s4043 + $0x58] sm:$0xff]
      %v4056 = vld [vmem:[%s4043 + $0x60] sm:$0xff]
      %v4057 = vld [vmem:[%s4043 + $0x68] sm:$0xff]
      %v4058 = vld [vmem:[%s4043 + $0x70] sm:$0xff]
      %v4059 = vld [vmem:[%s4043 + $0x78] sm:$0xff]
      %v4060 = vld [vmem:[%s4043 + $0x80] sm:$0xff]
      %v4061 = vld [vmem:[%s4043 + $0x88] sm:$0xff]
      %v4062 = vld [vmem:[%s4043 + $0x90] sm:$0xff]
      %v4063 = vld [vmem:[%s4043 + $0x98] sm:$0xff]
      %v4064 = vld [vmem:[%s4043 + $0xa0] sm:$0xff]
      %v4065 = vld [vmem:[%s4043 + $0xa8] sm:$0xff]
      %v4066 = vld [vmem:[%s4043 + $0xb0] sm:$0xff]
      %v4067 = vld [vmem:[%s4043 + $0xb8] sm:$0xff]
      %v4068 = vld [vmem:[%s4043 + $0xc0] sm:$0xff]
      %v4069 = vld [vmem:[%s4043 + $0xc8] sm:$0xff]
      %v4070 = vld [vmem:[%s4043 + $0xd0] sm:$0xff]
      %v4071 = vld [vmem:[%s4043 + $0xd8] sm:$0xff]
      %v4072 = vld [vmem:[%s4043 + $0xe0] sm:$0xff]
      %v4073 = vld [vmem:[%s4043 + $0xe8] sm:$0xff]
      %v4074 = vld [vmem:[%s4043 + $0xf0] sm:$0xff]
      %v4075 = vld [vmem:[%s4043 + $0xf8] sm:$0xff]
      %v4076 = vld [vmem:[%s4043 + $0x100] sm:$0xff]
      %v4077 = vld [vmem:[%s4043 + $0x108] sm:$0xff]
      %v4078 = vld [vmem:[%s4043 + $0x110] sm:$0xff]
      %v4079 = vld [vmem:[%s4043 + $0x118] sm:$0xff]
      %v4116 = vunpack.c.l.b16 %v4044
      %v4117 = vunpack.c.h.b16 %v4044
      %v4118 = vunpack.c.l.b16 %v4045
      %v4119 = vunpack.c.h.b16 %v4045
      %v4120 = vunpack.c.l.b16 %v4046
      %v4121 = vunpack.c.h.b16 %v4046
      %v4122 = vunpack.c.l.b16 %v4047
      %v4123 = vunpack.c.h.b16 %v4047
      %v4124 = vunpack.c.l.b16 %v4048
      %v4125 = vunpack.c.h.b16 %v4048
      %v4126 = vunpack.c.l.b16 %v4049
      %v4127 = vunpack.c.h.b16 %v4049
      %v4128 = vunpack.c.l.b16 %v4050
      %v4129 = vunpack.c.h.b16 %v4050
      %v4130 = vunpack.c.l.b16 %v4051
      %v4131 = vunpack.c.h.b16 %v4051
      %v4132 = vunpack.c.l.b16 %v4052
      %v4133 = vunpack.c.h.b16 %v4052
      %v4134 = vunpack.c.l.b16 %v4053
      %v4135 = vunpack.c.h.b16 %v4053
      %v4136 = vunpack.c.l.b16 %v4054
      %v4137 = vunpack.c.h.b16 %v4054
      %v4138 = vunpack.c.l.b16 %v4055
      %v4139 = vunpack.c.h.b16 %v4055
      %v4140 = vunpack.c.l.b16 %v4056
      %v4141 = vunpack.c.h.b16 %v4056
      %v4142 = vunpack.c.l.b16 %v4057
      %v4143 = vunpack.c.h.b16 %v4057
      %v4144 = vunpack.c.l.b16 %v4058
      %v4145 = vunpack.c.h.b16 %v4058
      %v4146 = vunpack.c.l.b16 %v4059
      %v4147 = vunpack.c.h.b16 %v4059
      %v4148 = vunpack.c.l.b16 %v4060
      %v4149 = vunpack.c.h.b16 %v4060
      %v4150 = vunpack.c.l.b16 %v4061
      %v4151 = vunpack.c.h.b16 %v4061
      %v4152 = vunpack.c.l.b16 %v4062
      %v4153 = vunpack.c.h.b16 %v4062
      %v4154 = vunpack.c.l.b16 %v4063
      %v4155 = vunpack.c.h.b16 %v4063
      %v4156 = vunpack.c.l.b16 %v4064
      %v4157 = vunpack.c.h.b16 %v4064
      %v4158 = vunpack.c.l.b16 %v4065
      %v4159 = vunpack.c.h.b16 %v4065
      %v4160 = vunpack.c.l.b16 %v4066
      %v4161 = vunpack.c.h.b16 %v4066
      %v4162 = vunpack.c.l.b16 %v4067
      %v4163 = vunpack.c.h.b16 %v4067
      %v4164 = vunpack.c.l.b16 %v4068
      %v4165 = vunpack.c.h.b16 %v4068
      %v4166 = vunpack.c.l.b16 %v4069
      %v4167 = vunpack.c.h.b16 %v4069
      %v4168 = vunpack.c.l.b16 %v4070
      %v4169 = vunpack.c.h.b16 %v4070
      %v4170 = vunpack.c.l.b16 %v4071
      %v4171 = vunpack.c.h.b16 %v4071
      %v4172 = vunpack.c.l.b16 %v4072
      %v4173 = vunpack.c.h.b16 %v4072
      %v4174 = vunpack.c.l.b16 %v4073
      %v4175 = vunpack.c.h.b16 %v4073
      %v4176 = vunpack.c.l.b16 %v4074
      %v4177 = vunpack.c.h.b16 %v4074
      %v4178 = vunpack.c.l.b16 %v4075
      %v4179 = vunpack.c.h.b16 %v4075
      %v4180 = vunpack.c.l.b16 %v4076
      %v4181 = vunpack.c.h.b16 %v4076
      %v4182 = vunpack.c.l.b16 %v4077
      %v4183 = vunpack.c.h.b16 %v4077
      %v4184 = vunpack.c.l.b16 %v4078
      %v4185 = vunpack.c.h.b16 %v4078
      %v4186 = vunpack.c.l.b16 %v4079
      %v4187 = vunpack.c.h.b16 %v4079
      %v4188 = vpack.c.b16 %v4118, %v4116
      %v4189 = vpack.c.b16 %v4119, %v4117
      %v4190 = vpack.c.b16 %v4122, %v4120
      %v4191 = vpack.c.b16 %v4123, %v4121
      %v4192 = vpack.c.b16 %v4126, %v4124
      %v4193 = vpack.c.b16 %v4127, %v4125
      %v4194 = vpack.c.b16 %v4130, %v4128
      %v4195 = vpack.c.b16 %v4131, %v4129
      %v4196 = vpack.c.b16 %v4134, %v4132
      %v4197 = vpack.c.b16 %v4135, %v4133
      %v4198 = vpack.c.b16 %v4138, %v4136
      %v4199 = vpack.c.b16 %v4139, %v4137
      %v4200 = vpack.c.b16 %v4142, %v4140
      %v4201 = vpack.c.b16 %v4143, %v4141
      %v4202 = vpack.c.b16 %v4146, %v4144
      %v4203 = vpack.c.b16 %v4147, %v4145
      %v4204 = vpack.c.b16 %v4150, %v4148
      %v4205 = vpack.c.b16 %v4151, %v4149
      %v4206 = vpack.c.b16 %v4154, %v4152
      %v4207 = vpack.c.b16 %v4155, %v4153
      %v4208 = vpack.c.b16 %v4158, %v4156
      %v4209 = vpack.c.b16 %v4159, %v4157
      %v4210 = vpack.c.b16 %v4162, %v4160
      %v4211 = vpack.c.b16 %v4163, %v4161
      %v4212 = vpack.c.b16 %v4166, %v4164
      %v4213 = vpack.c.b16 %v4167, %v4165
      %v4214 = vpack.c.b16 %v4170, %v4168
      %v4215 = vpack.c.b16 %v4171, %v4169
      %v4216 = vpack.c.b16 %v4174, %v4172
      %v4217 = vpack.c.b16 %v4175, %v4173
      %v4218 = vpack.c.b16 %v4178, %v4176
      %v4219 = vpack.c.b16 %v4179, %v4177
      %v4220 = vpack.c.b16 %v4182, %v4180
      %v4221 = vpack.c.b16 %v4183, %v4181
      %v4222 = vpack.c.b16 %v4186, %v4184
      %v4223 = vpack.c.b16 %v4187, %v4185
      %v4261 = vsel %vm3749, %v4042, 0
      %4263 = vmatprep.subr.bf16.mxu0 %v4189
      %4264 = vmatpush1.bf16.msra.mxu0 %v4188
      %4265 = vmatprep.subr.bf16.mxu0 %v4191
      %4266 = vmatpush1.bf16.msra.mxu0 %v4190
      %4267 = vmatprep.subr.bf16.mxu0 %v4193
      %4268 = vmatpush1.bf16.msra.mxu0 %v4192
      %4269 = vmatprep.subr.bf16.mxu0 %v4195
      %4270 = vmatpush1.bf16.msra.mxu0 %v4194
      %4271 = vmatprep.subr.bf16.mxu0 %v4197
      %4272 = vmatpush1.bf16.msra.mxu0 %v4196
      %4273 = vmatprep.subr.bf16.mxu0 %v4199
      %4274 = vmatpush1.bf16.msra.mxu0 %v4198
      %4275 = vmatprep.subr.bf16.mxu0 %v4201
      %4276 = vmatpush1.bf16.msra.mxu0 %v4200
      %4277 = vmatprep.subr.bf16.mxu0 %v4203
      %4278 = vmatpush1.bf16.msra.mxu0 %v4202
      %4279 = vmatprep.subr.bf16.mxu0 %v4205
      %4280 = vmatpush1.bf16.msra.mxu0 %v4204
      %4281 = vmatprep.subr.bf16.mxu0 %v4207
      %4282 = vmatpush1.bf16.msra.mxu0 %v4206
      %4283 = vmatprep.subr.bf16.mxu0 %v4209
      %4284 = vmatpush1.bf16.msra.mxu0 %v4208
      %4285 = vmatprep.subr.bf16.mxu0 %v4211
      %4286 = vmatpush1.bf16.msra.mxu0 %v4210
      %4287 = vmatprep.subr.bf16.mxu0 %v4213
      %4288 = vmatpush1.bf16.msra.mxu0 %v4212
      %4289 = vmatprep.subr.bf16.mxu0 %v4215
      %4290 = vmatpush1.bf16.msra.mxu0 %v4214
      %4291 = vmatprep.subr.bf16.mxu0 %v4217
      %4292 = vmatpush1.bf16.msra.mxu0 %v4216
      %4293 = vmatprep.subr.bf16.mxu0 %v4219
      %4294 = vmatpush1.bf16.msra.mxu0 %v4218
      %4295 = vmatprep.mubr.bf16.mxu0 %v4041
      %4296 = vmatmul.mubr.bf16.gmra.mrb[0].mxu0 %v4040
      %v4297 = vpop.f32.mrb[0].mxu0
      %v4298 = vadd.f32 0.0, %v4297
      %v4299 = vpop.f32.mrb[0].mxu0
      %v4300 = vadd.f32 0.0, %v4299
      %v4301 = vpop.f32.mrb[0].mxu0
      %v4302 = vpop.f32.mrb[0].mxu0
      %4303 = vdwg.mxu0
      %4304 = vmatprep.subr.bf16.mxu0 %v4221
      %4305 = vmatpush1.bf16.msra.mxu0 %v4220
      %4306 = vmatprep.subr.bf16.mxu0 %v4223
      %4307 = vmatpush1.bf16.msra.mxu0 %v4222
      %4308 = vmatprep.subr.bf16.mxu0 0
      %4309 = vmatpush1.bf16.msra.mxu0 0
      %4310 = vmatprep.subr.bf16.mxu0 0
      %4311 = vmatpush1.bf16.msra.mxu0 0
      %4312 = vmatprep.subr.bf16.mxu0 0
      %4313 = vmatpush1.bf16.msra.mxu0 0
      %4314 = vmatprep.subr.bf16.mxu0 0
      %4315 = vmatpush1.bf16.msra.mxu0 0
      %4316 = vmatprep.subr.bf16.mxu0 0
      %4317 = vmatpush1.bf16.msra.mxu0 0
      %4318 = vmatprep.subr.bf16.mxu0 0
      %4319 = vmatpush1.bf16.msra.mxu0 0
      %4320 = vmatprep.subr.bf16.mxu0 0
      %4321 = vmatpush1.bf16.msra.mxu0 0
      %4322 = vmatprep.subr.bf16.mxu0 0
      %4323 = vmatpush1.bf16.msra.mxu0 0
      %4324 = vmatprep.subr.bf16.mxu0 0
      %4325 = vmatpush1.bf16.msra.mxu0 0
      %4326 = vmatprep.subr.bf16.mxu0 0
      %4327 = vmatpush1.bf16.msra.mxu0 0
      %4328 = vmatprep.subr.bf16.mxu0 0
      %4329 = vmatpush1.bf16.msra.mxu0 0
      %4330 = vmatprep.subr.bf16.mxu0 0
      %4331 = vmatpush1.bf16.msra.mxu0 0
      %4332 = vmatprep.subr.bf16.mxu0 0
      %4333 = vmatpush1.bf16.msra.mxu0 0
      %4334 = vmatprep.subr.bf16.mxu0 0
      %4335 = vmatpush1.bf16.msra.mxu0 0
      %4336 = vmatprep.mubr.bf16.mxu0 0
      %4337 = vmatmul.mubr.bf16.gmra.mrb[0].mxu0 %v4261
      %v4338 = vpop.f32.mrb[0].mxu0
      %v4339 = vadd.f32 %v4298, %v4338
      %v4340 = vpop.f32.mrb[0].mxu0
      %v4341 = vadd.f32 %v4300, %v4340
      %v4342 = vpop.f32.mrb[0].mxu0
      %v4343 = vpop.f32.mrb[0].mxu0
      %4344 = vdwg.mxu0
      %v4381 = vunpack.c.l.b16 %v3919
      %v4382 = vunpack.c.h.b16 %v3919
      %v4383 = vunpack.c.l.b16 %v3920
      %v4384 = vunpack.c.h.b16 %v3920
      %v4385 = vunpack.c.l.b16 %v3921
      %v4386 = vunpack.c.h.b16 %v3921
      %v4387 = vunpack.c.l.b16 %v3922
      %v4388 = vunpack.c.h.b16 %v3922
      %v4389 = vunpack.c.l.b16 %v3923
      %v4390 = vunpack.c.h.b16 %v3923
      %v4391 = vunpack.c.l.b16 %v3924
      %v4392 = vunpack.c.h.b16 %v3924
      %v4393 = vunpack.c.l.b16 %v3925
      %v4394 = vunpack.c.h.b16 %v3925
      %v4395 = vunpack.c.l.b16 %v3926
      %v4396 = vunpack.c.h.b16 %v3926
      %v4397 = vunpack.c.l.b16 %v3927
      %v4398 = vunpack.c.h.b16 %v3927
      %v4399 = vunpack.c.l.b16 %v3928
      %v4400 = vunpack.c.h.b16 %v3928
      %v4401 = vunpack.c.l.b16 %v3929
      %v4402 = vunpack.c.h.b16 %v3929
      %v4403 = vunpack.c.l.b16 %v3930
      %v4404 = vunpack.c.h.b16 %v3930
      %v4405 = vunpack.c.l.b16 %v3931
      %v4406 = vunpack.c.h.b16 %v3931
      %v4407 = vunpack.c.l.b16 %v3932
      %v4408 = vunpack.c.h.b16 %v3932
      %v4409 = vunpack.c.l.b16 %v3933
      %v4410 = vunpack.c.h.b16 %v3933
      %v4411 = vunpack.c.l.b16 %v3934
      %v4412 = vunpack.c.h.b16 %v3934
      %v4413 = vunpack.c.l.b16 %v3935
      %v4414 = vunpack.c.h.b16 %v3935
      %v4415 = vunpack.c.l.b16 %v3936
      %v4416 = vunpack.c.h.b16 %v3936
      %v4417 = vunpack.c.l.b16 %v3937
      %v4418 = vunpack.c.h.b16 %v3937
      %v4419 = vunpack.c.l.b16 %v3938
      %v4420 = vunpack.c.h.b16 %v3938
      %v4421 = vunpack.c.l.b16 %v3939
      %v4422 = vunpack.c.h.b16 %v3939
      %v4423 = vunpack.c.l.b16 %v3940
      %v4424 = vunpack.c.h.b16 %v3940
      %v4425 = vunpack.c.l.b16 %v3941
      %v4426 = vunpack.c.h.b16 %v3941
      %v4427 = vunpack.c.l.b16 %v3942
      %v4428 = vunpack.c.h.b16 %v3942
      %v4429 = vunpack.c.l.b16 %v3943
      %v4430 = vunpack.c.h.b16 %v3943
      %v4431 = vunpack.c.l.b16 %v3944
      %v4432 = vunpack.c.h.b16 %v3944
      %v4433 = vunpack.c.l.b16 %v3945
      %v4434 = vunpack.c.h.b16 %v3945
      %v4435 = vunpack.c.l.b16 %v3946
      %v4436 = vunpack.c.h.b16 %v3946
      %v4437 = vunpack.c.l.b16 %v3947
      %v4438 = vunpack.c.h.b16 %v3947
      %v4439 = vunpack.c.l.b16 %v3948
      %v4440 = vunpack.c.h.b16 %v3948
      %v4441 = vunpack.c.l.b16 %v3949
      %v4442 = vunpack.c.h.b16 %v3949
      %v4443 = vunpack.c.l.b16 %v3950
      %v4444 = vunpack.c.h.b16 %v3950
      %v4445 = vunpack.c.l.b16 %v3951
      %v4446 = vunpack.c.h.b16 %v3951
      %v4447 = vunpack.c.l.b16 %v3952
      %v4448 = vunpack.c.h.b16 %v3952
      %v4449 = vunpack.c.l.b16 %v3953
      %v4450 = vunpack.c.h.b16 %v3953
      %v4451 = vunpack.c.l.b16 %v3954
      %v4452 = vunpack.c.h.b16 %v3954
      %v4453 = vpack.c.b16 %v4383, %v4381
      %v4454 = vpack.c.b16 %v4384, %v4382
      %v4455 = vpack.c.b16 %v4387, %v4385
      %v4456 = vpack.c.b16 %v4388, %v4386
      %v4457 = vpack.c.b16 %v4391, %v4389
      %v4458 = vpack.c.b16 %v4392, %v4390
      %v4459 = vpack.c.b16 %v4395, %v4393
      %v4460 = vpack.c.b16 %v4396, %v4394
      %v4461 = vpack.c.b16 %v4399, %v4397
      %v4462 = vpack.c.b16 %v4400, %v4398
      %v4463 = vpack.c.b16 %v4403, %v4401
      %v4464 = vpack.c.b16 %v4404, %v4402
      %v4465 = vpack.c.b16 %v4407, %v4405
      %v4466 = vpack.c.b16 %v4408, %v4406
      %v4467 = vpack.c.b16 %v4411, %v4409
      %v4468 = vpack.c.b16 %v4412, %v4410
      %v4469 = vpack.c.b16 %v4415, %v4413
      %v4470 = vpack.c.b16 %v4416, %v4414
      %v4471 = vpack.c.b16 %v4419, %v4417
      %v4472 = vpack.c.b16 %v4420, %v4418
      %v4473 = vpack.c.b16 %v4423, %v4421
      %v4474 = vpack.c.b16 %v4424, %v4422
      %v4475 = vpack.c.b16 %v4427, %v4425
      %v4476 = vpack.c.b16 %v4428, %v4426
      %v4477 = vpack.c.b16 %v4431, %v4429
      %v4478 = vpack.c.b16 %v4432, %v4430
      %v4479 = vpack.c.b16 %v4435, %v4433
      %v4480 = vpack.c.b16 %v4436, %v4434
      %v4481 = vpack.c.b16 %v4439, %v4437
      %v4482 = vpack.c.b16 %v4440, %v4438
      %v4483 = vpack.c.b16 %v4443, %v4441
      %v4484 = vpack.c.b16 %v4444, %v4442
      %v4485 = vpack.c.b16 %v4447, %v4445
      %v4486 = vpack.c.b16 %v4448, %v4446
      %v4487 = vpack.c.b16 %v4451, %v4449
      %v4488 = vpack.c.b16 %v4452, %v4450
      %v4526 = vsel %vm3749, %v3918, 0
      %4528 = vmatprep.subr.bf16.mxu0 %v4454
      %4529 = vmatpush1.bf16.msra.mxu0 %v4453
      %4530 = vmatprep.subr.bf16.mxu0 %v4456
      %4531 = vmatpush1.bf16.msra.mxu0 %v4455
      %4532 = vmatprep.subr.bf16.mxu0 %v4458
      %4533 = vmatpush1.bf16.msra.mxu0 %v4457
      %4534 = vmatprep.subr.bf16.mxu0 %v4460
      %4535 = vmatpush1.bf16.msra.mxu0 %v4459
      %4536 = vmatprep.subr.bf16.mxu0 %v4462
      %4537 = vmatpush1.bf16.msra.mxu0 %v4461
      %4538 = vmatprep.subr.bf16.mxu0 %v4464
      %4539 = vmatpush1.bf16.msra.mxu0 %v4463
      %4540 = vmatprep.subr.bf16.mxu0 %v4466
      %4541 = vmatpush1.bf16.msra.mxu0 %v4465
      %4542 = vmatprep.subr.bf16.mxu0 %v4468
      %4543 = vmatpush1.bf16.msra.mxu0 %v4467
      %4544 = vmatprep.subr.bf16.mxu0 %v4470
      %4545 = vmatpush1.bf16.msra.mxu0 %v4469
      %4546 = vmatprep.subr.bf16.mxu0 %v4472
      %4547 = vmatpush1.bf16.msra.mxu0 %v4471
      %4548 = vmatprep.subr.bf16.mxu0 %v4474
      %4549 = vmatpush1.bf16.msra.mxu0 %v4473
      %4550 = vmatprep.subr.bf16.mxu0 %v4476
      %4551 = vmatpush1.bf16.msra.mxu0 %v4475
      %4552 = vmatprep.subr.bf16.mxu0 %v4478
      %4553 = vmatpush1.bf16.msra.mxu0 %v4477
      %4554 = vmatprep.subr.bf16.mxu0 %v4480
      %4555 = vmatpush1.bf16.msra.mxu0 %v4479
      %4556 = vmatprep.subr.bf16.mxu0 %v4482
      %4557 = vmatpush1.bf16.msra.mxu0 %v4481
      %4558 = vmatprep.subr.bf16.mxu0 %v4484
      %4559 = vmatpush1.bf16.msra.mxu0 %v4483
      %4560 = vmatprep.mubr.bf16.mxu0 %v3917
      %4561 = vmatmul.mubr.bf16.gmra.mrb[0].mxu0 %v3916
      %v4562 = vpop.f32.mrb[0].mxu0
      %v4563 = vadd.f32 %v4339, %v4562
      %v4564 = vpop.f32.mrb[0].mxu0
      %v4565 = vadd.f32 %v4341, %v4564
      %v4566 = vpop.f32.mrb[0].mxu0
      %v4567 = vpop.f32.mrb[0].mxu0
      %4568 = vdwg.mxu0
      %4569 = vmatprep.subr.bf16.mxu0 %v4486
      %4570 = vmatpush1.bf16.msra.mxu0 %v4485
      %4571 = vmatprep.subr.bf16.mxu0 %v4488
      %4572 = vmatpush1.bf16.msra.mxu0 %v4487
      %4573 = vmatprep.subr.bf16.mxu0 0
      %4574 = vmatpush1.bf16.msra.mxu0 0
      %4575 = vmatprep.subr.bf16.mxu0 0
      %4576 = vmatpush1.bf16.msra.mxu0 0
      %4577 = vmatprep.subr.bf16.mxu0 0
      %4578 = vmatpush1.bf16.msra.mxu0 0
      %4579 = vmatprep.subr.bf16.mxu0 0
      %4580 = vmatpush1.bf16.msra.mxu0 0
      %4581 = vmatprep.subr.bf16.mxu0 0
      %4582 = vmatpush1.bf16.msra.mxu0 0
      %4583 = vmatprep.subr.bf16.mxu0 0
      %4584 = vmatpush1.bf16.msra.mxu0 0
      %4585 = vmatprep.subr.bf16.mxu0 0
      %4586 = vmatpush1.bf16.msra.mxu0 0
      %4587 = vmatprep.subr.bf16.mxu0 0
      %4588 = vmatpush1.bf16.msra.mxu0 0
      %4589 = vmatprep.subr.bf16.mxu0 0
      %4590 = vmatpush1.bf16.msra.mxu0 0
      %4591 = vmatprep.subr.bf16.mxu0 0
      %4592 = vmatpush1.bf16.msra.mxu0 0
      %4593 = vmatprep.subr.bf16.mxu0 0
      %4594 = vmatpush1.bf16.msra.mxu0 0
      %4595 = vmatprep.subr.bf16.mxu0 0
      %4596 = vmatpush1.bf16.msra.mxu0 0
      %4597 = vmatprep.subr.bf16.mxu0 0
      %4598 = vmatpush1.bf16.msra.mxu0 0
      %4599 = vmatprep.subr.bf16.mxu0 0
      %4600 = vmatpush1.bf16.msra.mxu0 0
      %4601 = vmatprep.mubr.bf16.mxu0 0
      %4602 = vmatmul.mubr.bf16.gmra.mrb[0].mxu0 %v4526
      %v4603 = vpop.f32.mrb[0].mxu0
      %v4604 = vadd.f32 %v4563, %v4603
      %v4605 = vpop.f32.mrb[0].mxu0
      %v4606 = vadd.f32 %v4565, %v4605
      %v4607 = vpop.f32.mrb[0].mxu0
      %v4608 = vpop.f32.mrb[0].mxu0
      %4609 = vdwg.mxu0
      %v4610 = vpack.c.bf16 %v1408, %v1408
      %v4612 = vsel %vm3822, %v4610, 0
      %4614 = vmatprep.subr.bf16.mxu0 %v3816
      %4615 = vmatpush1.bf16.msra.mxu0 %v3815
      %4616 = vmatprep.subr.bf16.mxu0 %v3830
      %4617 = vmatpush1.bf16.msra.mxu0 %v3827
      %4618 = vmatprep.subr.bf16.mxu0 0
      %4619 = vmatpush1.bf16.msra.mxu0 0
      %4620 = vmatprep.subr.bf16.mxu0 0
      %4621 = vmatpush1.bf16.msra.mxu0 0
      %4622 = vmatprep.subr.bf16.mxu0 0
      %4623 = vmatpush1.bf16.msra.mxu0 0
      %4624 = vmatprep.subr.bf16.mxu0 0
      %4625 = vmatpush1.bf16.msra.mxu0 0
      %4626 = vmatprep.subr.bf16.mxu0 0
      %4627 = vmatpush1.bf16.msra.mxu0 0
      %4628 = vmatprep.subr.bf16.mxu0 0
      %4629 = vmatpush1.bf16.msra.mxu0 0
      %4630 = vmatprep.subr.bf16.mxu0 0
      %4631 = vmatpush1.bf16.msra.mxu0 0
      %4632 = vmatprep.subr.bf16.mxu0 0
      %4633 = vmatpush1.bf16.msra.mxu0 0
      %4634 = vmatprep.subr.bf16.mxu0 0
      %4635 = vmatpush1.bf16.msra.mxu0 0
      %4636 = vmatprep.subr.bf16.mxu0 0
      %4637 = vmatpush1.bf16.msra.mxu0 0
      %4638 = vmatprep.subr.bf16.mxu0 0
      %4639 = vmatpush1.bf16.msra.mxu0 0
      %4640 = vmatprep.subr.bf16.mxu0 0
      %4641 = vmatpush1.bf16.msra.mxu0 0
      %4642 = vmatprep.subr.bf16.mxu0 0
      %4643 = vmatpush1.bf16.msra.mxu0 0
      %4644 = vmatprep.subr.bf16.mxu0 0
      %4645 = vmatpush1.bf16.msra.mxu0 0
      %4646 = vmatprep.mubr.bf16.mxu0 0
      %4647 = vmatmul.mubr.bf16.gmra.mrb[0].mxu0 %v4612
      %v4648 = vpop.f32.mrb[0].mxu0
      %v4649 = vadd.f32 0.0, %v4648
      %v4650 = vpop.f32.mrb[0].mxu0
      %v4651 = vadd.f32 0.0, %v4650
      %v4652 = vpop.f32.mrb[0].mxu0
      %v4653 = vpop.f32.mrb[0].mxu0
      %4654 = vdwg.mxu0
      %4655 = vmatprep.subr.bf16.mxu0 0
      %4656 = vmatpush1.bf16.msra.mxu0 %v3817
      %4657 = vmatprep.subr.bf16.mxu0 0
      %4658 = vmatpush1.bf16.msra.mxu0 %v3833
      %4659 = vmatprep.subr.bf16.mxu0 0
      %4660 = vmatpush1.bf16.msra.mxu0 0
      %4661 = vmatprep.subr.bf16.mxu0 0
      %4662 = vmatpush1.bf16.msra.mxu0 0
      %4663 = vmatprep.subr.bf16.mxu0 0
      %4664 = vmatpush1.bf16.msra.mxu0 0
      %4665 = vmatprep.subr.bf16.mxu0 0
      %4666 = vmatpush1.bf16.msra.mxu0 0
      %4667 = vmatprep.subr.bf16.mxu0 0
      %4668 = vmatpush1.bf16.msra.mxu0 0
      %4669 = vmatprep.subr.bf16.mxu0 0
      %4670 = vmatpush1.bf16.msra.mxu0 0
      %4671 = vmatprep.subr.bf16.mxu0 0
      %4672 = vmatpush1.bf16.msra.mxu0 0
      %4673 = vmatprep.subr.bf16.mxu0 0
      %4674 = vmatpush1.bf16.msra.mxu0 0
      %4675 = vmatprep.subr.bf16.mxu0 0
      %4676 = vmatpush1.bf16.msra.mxu0 0
      %4677 = vmatprep.subr.bf16.mxu0 0
      %4678 = vmatpush1.bf16.msra.mxu0 0
      %4679 = vmatprep.subr.bf16.mxu0 0
      %4680 = vmatpush1.bf16.msra.mxu0 0
      %4681 = vmatprep.subr.bf16.mxu0 0
      %4682 = vmatpush1.bf16.msra.mxu0 0
      %4683 = vmatprep.subr.bf16.mxu0 0
      %4684 = vmatpush1.bf16.msra.mxu0 0
      %4685 = vmatprep.subr.bf16.mxu0 0
      %4686 = vmatpush1.bf16.msra.mxu0 0
      %4687 = vmatprep.mubr.bf16.mxu0 0
      %4688 = vmatmul.mubr.bf16.gmra.mrb[0].mxu0 %v4612
      %v4689 = vpop.f32.mrb[0].mxu0
      %v4690 = vadd.f32 0.0, %v4689
      %v4691 = vpop.f32.mrb[0].mxu0
      %v4692 = vpop.f32.mrb[0].mxu0
      %v4693 = vpop.f32.mrb[0].mxu0
      %4694 = vdwg.mxu0
      %v4695 = vpack.c.bf16 %v4649, %v4649
      %v4696 = vpack.c.bf16 %v4651, %v4651
      %v4697 = vpack.c.bf16 %v4690, %v4690
      %s4698 = scalar_lea.vmem %s5, 576
      %v4699 = vld [vmem:[%s4698] sm:$0xff]
      %v4700 = vld [vmem:[%s4698 + $0x8] sm:$0xff]
      %v4701 = vld [vmem:[%s4698 + $0x10] sm:$0xff]
      %v4702 = vld [vmem:[%s4698 + $0x18] sm:$0xff]
      %v4703 = vld [vmem:[%s4698 + $0x20] sm:$0xff]
      %v4704 = vld [vmem:[%s4698 + $0x28] sm:$0xff]
      %v4705 = vld [vmem:[%s4698 + $0x30] sm:$0xff]
      %v4706 = vld [vmem:[%s4698 + $0x38] sm:$0xff]
      %v4707 = vld [vmem:[%s4698 + $0x40] sm:$0xff]
      %v4708 = vld [vmem:[%s4698 + $0x48] sm:$0xff]
      %v4709 = vld [vmem:[%s4698 + $0x50] sm:$0xff]
      %v4710 = vld [vmem:[%s4698 + $0x58] sm:$0xff]
      %v4711 = vld [vmem:[%s4698 + $0x60] sm:$0xff]
      %v4712 = vld [vmem:[%s4698 + $0x68] sm:$0xff]
      %v4713 = vld [vmem:[%s4698 + $0x70] sm:$0xff]
      %v4714 = vld [vmem:[%s4698 + $0x78] sm:$0xff]
      %v4715 = vld [vmem:[%s4698 + $0x80] sm:$0xff]
      %v4716 = vld [vmem:[%s4698 + $0x88] sm:$0xff]
      %v4717 = vld [vmem:[%s4698 + $0x90] sm:$0xff]
      %v4718 = vld [vmem:[%s4698 + $0x98] sm:$0xff]
      %v4719 = vld [vmem:[%s4698 + $0xa0] sm:$0xff]
      %v4720 = vld [vmem:[%s4698 + $0xa8] sm:$0xff]
      %v4721 = vld [vmem:[%s4698 + $0xb0] sm:$0xff]
      %v4722 = vld [vmem:[%s4698 + $0xb8] sm:$0xff]
      %v4723 = vld [vmem:[%s4698 + $0xc0] sm:$0xff]
      %v4724 = vld [vmem:[%s4698 + $0xc8] sm:$0xff]
      %v4725 = vld [vmem:[%s4698 + $0xd0] sm:$0xff]
      %v4726 = vld [vmem:[%s4698 + $0xd8] sm:$0xff]
      %v4727 = vld [vmem:[%s4698 + $0xe0] sm:$0xff]
      %v4728 = vld [vmem:[%s4698 + $0xe8] sm:$0xff]
      %v4729 = vld [vmem:[%s4698 + $0xf0] sm:$0xff]
      %v4730 = vld [vmem:[%s4698 + $0xf8] sm:$0xff]
      %v4731 = vld [vmem:[%s4698 + $0x100] sm:$0xff]
      %v4732 = vld [vmem:[%s4698 + $0x108] sm:$0xff]
      %v4733 = vld [vmem:[%s4698 + $0x110] sm:$0xff]
      %v4734 = vld [vmem:[%s4698 + $0x118] sm:$0xff]
      %v4771 = vunpack.c.l.b16 %v4699
      %v4772 = vunpack.c.h.b16 %v4699
      %v4773 = vunpack.c.l.b16 %v4700
      %v4774 = vunpack.c.h.b16 %v4700
      %v4775 = vunpack.c.l.b16 %v4701
      %v4776 = vunpack.c.h.b16 %v4701
      %v4777 = vunpack.c.l.b16 %v4702
      %v4778 = vunpack.c.h.b16 %v4702
      %v4779 = vunpack.c.l.b16 %v4703
      %v4780 = vunpack.c.h.b16 %v4703
      %v4781 = vunpack.c.l.b16 %v4704
      %v4782 = vunpack.c.h.b16 %v4704
      %v4783 = vunpack.c.l.b16 %v4705
      %v4784 = vunpack.c.h.b16 %v4705
      %v4785 = vunpack.c.l.b16 %v4706
      %v4786 = vunpack.c.h.b16 %v4706
      %v4787 = vunpack.c.l.b16 %v4707
      %v4788 = vunpack.c.h.b16 %v4707
      %v4789 = vunpack.c.l.b16 %v4708
      %v4790 = vunpack.c.h.b16 %v4708
      %v4791 = vunpack.c.l.b16 %v4709
      %v4792 = vunpack.c.h.b16 %v4709
      %v4793 = vunpack.c.l.b16 %v4710
      %v4794 = vunpack.c.h.b16 %v4710
      %v4795 = vunpack.c.l.b16 %v4711
      %v4796 = vunpack.c.h.b16 %v4711
      %v4797 = vunpack.c.l.b16 %v4712
      %v4798 = vunpack.c.h.b16 %v4712
      %v4799 = vunpack.c.l.b16 %v4713
      %v4800 = vunpack.c.h.b16 %v4713
      %v4801 = vunpack.c.l.b16 %v4714
      %v4802 = vunpack.c.h.b16 %v4714
      %v4803 = vunpack.c.l.b16 %v4715
      %v4804 = vunpack.c.h.b16 %v4715
      %v4805 = vunpack.c.l.b16 %v4716
      %v4806 = vunpack.c.h.b16 %v4716
      %v4807 = vunpack.c.l.b16 %v4717
      %v4808 = vunpack.c.h.b16 %v4717
      %v4809 = vunpack.c.l.b16 %v4718
      %v4810 = vunpack.c.h.b16 %v4718
      %v4811 = vunpack.c.l.b16 %v4719
      %v4812 = vunpack.c.h.b16 %v4719
      %v4813 = vunpack.c.l.b16 %v4720
      %v4814 = vunpack.c.h.b16 %v4720
      %v4815 = vunpack.c.l.b16 %v4721
      %v4816 = vunpack.c.h.b16 %v4721
      %v4817 = vunpack.c.l.b16 %v4722
      %v4818 = vunpack.c.h.b16 %v4722
      %v4819 = vunpack.c.l.b16 %v4723
      %v4820 = vunpack.c.h.b16 %v4723
      %v4821 = vunpack.c.l.b16 %v4724
      %v4822 = vunpack.c.h.b16 %v4724
      %v4823 = vunpack.c.l.b16 %v4725
      %v4824 = vunpack.c.h.b16 %v4725
      %v4825 = vunpack.c.l.b16 %v4726
      %v4826 = vunpack.c.h.b16 %v4726
      %v4827 = vunpack.c.l.b16 %v4727
      %v4828 = vunpack.c.h.b16 %v4727
      %v4829 = vunpack.c.l.b16 %v4728
      %v4830 = vunpack.c.h.b16 %v4728
      %v4831 = vunpack.c.l.b16 %v4729
      %v4832 = vunpack.c.h.b16 %v4729
      %v4833 = vunpack.c.l.b16 %v4730
      %v4834 = vunpack.c.h.b16 %v4730
      %v4835 = vunpack.c.l.b16 %v4731
      %v4836 = vunpack.c.h.b16 %v4731
      %v4837 = vunpack.c.l.b16 %v4732
      %v4838 = vunpack.c.h.b16 %v4732
      %v4839 = vunpack.c.l.b16 %v4733
      %v4840 = vunpack.c.h.b16 %v4733
      %v4841 = vunpack.c.l.b16 %v4734
      %v4842 = vunpack.c.h.b16 %v4734
      %v4843 = vpack.c.b16 %v4773, %v4771
      %v4844 = vpack.c.b16 %v4774, %v4772
      %v4845 = vpack.c.b16 %v4777, %v4775
      %v4846 = vpack.c.b16 %v4778, %v4776
      %v4847 = vpack.c.b16 %v4781, %v4779
      %v4848 = vpack.c.b16 %v4782, %v4780
      %v4849 = vpack.c.b16 %v4785, %v4783
      %v4850 = vpack.c.b16 %v4786, %v4784
      %v4851 = vpack.c.b16 %v4789, %v4787
      %v4852 = vpack.c.b16 %v4790, %v4788
      %v4853 = vpack.c.b16 %v4793, %v4791
      %v4854 = vpack.c.b16 %v4794, %v4792
      %v4855 = vpack.c.b16 %v4797, %v4795
      %v4856 = vpack.c.b16 %v4798, %v4796
      %v4857 = vpack.c.b16 %v4801, %v4799
      %v4858 = vpack.c.b16 %v4802, %v4800
      %v4859 = vpack.c.b16 %v4805, %v4803
      %v4860 = vpack.c.b16 %v4806, %v4804
      %v4861 = vpack.c.b16 %v4809, %v4807
      %v4862 = vpack.c.b16 %v4810, %v4808
      %v4863 = vpack.c.b16 %v4813, %v4811
      %v4864 = vpack.c.b16 %v4814, %v4812
      %v4865 = vpack.c.b16 %v4817, %v4815
      %v4866 = vpack.c.b16 %v4818, %v4816
      %v4867 = vpack.c.b16 %v4821, %v4819
      %v4868 = vpack.c.b16 %v4822, %v4820
      %v4869 = vpack.c.b16 %v4825, %v4823
      %v4870 = vpack.c.b16 %v4826, %v4824
      %v4871 = vpack.c.b16 %v4829, %v4827
      %v4872 = vpack.c.b16 %v4830, %v4828
      %v4873 = vpack.c.b16 %v4833, %v4831
      %v4874 = vpack.c.b16 %v4834, %v4832
      %v4875 = vpack.c.b16 %v4837, %v4835
      %v4876 = vpack.c.b16 %v4838, %v4836
      %v4877 = vpack.c.b16 %v4841, %v4839
      %v4878 = vpack.c.b16 %v4842, %v4840
      %v4916 = vsel %vm3749, %v4697, 0
      %4918 = vmatprep.subr.bf16.mxu0 %v4844
      %4919 = vmatpush1.bf16.msra.mxu0 %v4843
      %4920 = vmatprep.subr.bf16.mxu0 %v4846
      %4921 = vmatpush1.bf16.msra.mxu0 %v4845
      %4922 = vmatprep.subr.bf16.mxu0 %v4848
      %4923 = vmatpush1.bf16.msra.mxu0 %v4847
      %4924 = vmatprep.subr.bf16.mxu0 %v4850
      %4925 = vmatpush1.bf16.msra.mxu0 %v4849
      %4926 = vmatprep.subr.bf16.mxu0 %v4852
      %4927 = vmatpush1.bf16.msra.mxu0 %v4851
      %4928 = vmatprep.subr.bf16.mxu0 %v4854
      %4929 = vmatpush1.bf16.msra.mxu0 %v4853
      %4930 = vmatprep.subr.bf16.mxu0 %v4856
      %4931 = vmatpush1.bf16.msra.mxu0 %v4855
      %4932 = vmatprep.subr.bf16.mxu0 %v4858
      %4933 = vmatpush1.bf16.msra.mxu0 %v4857
      %4934 = vmatprep.subr.bf16.mxu0 %v4860
      %4935 = vmatpush1.bf16.msra.mxu0 %v4859
      %4936 = vmatprep.subr.bf16.mxu0 %v4862
      %4937 = vmatpush1.bf16.msra.mxu0 %v4861
      %4938 = vmatprep.subr.bf16.mxu0 %v4864
      %4939 = vmatpush1.bf16.msra.mxu0 %v4863
      %4940 = vmatprep.subr.bf16.mxu0 %v4866
      %4941 = vmatpush1.bf16.msra.mxu0 %v4865
      %4942 = vmatprep.subr.bf16.mxu0 %v4868
      %4943 = vmatpush1.bf16.msra.mxu0 %v4867
      %4944 = vmatprep.subr.bf16.mxu0 %v4870
      %4945 = vmatpush1.bf16.msra.mxu0 %v4869
      %4946 = vmatprep.subr.bf16.mxu0 %v4872
      %4947 = vmatpush1.bf16.msra.mxu0 %v4871
      %4948 = vmatprep.subr.bf16.mxu0 %v4874
      %4949 = vmatpush1.bf16.msra.mxu0 %v4873
      %4950 = vmatprep.mubr.bf16.mxu0 %v4696
      %4951 = vmatmul.mubr.bf16.gmra.mrb[0].mxu0 %v4695
      %v4952 = vpop.f32.mrb[0].mxu0
      %v4953 = vadd.f32 0.0, %v4952
      %v4954 = vpop.f32.mrb[0].mxu0
      %v4955 = vadd.f32 0.0, %v4954
      %v4956 = vpop.f32.mrb[0].mxu0
      %v4957 = vpop.f32.mrb[0].mxu0
      %4958 = vdwg.mxu0
      %4959 = vmatprep.subr.bf16.mxu0 %v4876
      %4960 = vmatpush1.bf16.msra.mxu0 %v4875
      %4961 = vmatprep.subr.bf16.mxu0 %v4878
      %4962 = vmatpush1.bf16.msra.mxu0 %v4877
      %4963 = vmatprep.subr.bf16.mxu0 0
      %4964 = vmatpush1.bf16.msra.mxu0 0
      %4965 = vmatprep.subr.bf16.mxu0 0
      %4966 = vmatpush1.bf16.msra.mxu0 0
      %4967 = vmatprep.subr.bf16.mxu0 0
      %4968 = vmatpush1.bf16.msra.mxu0 0
      %4969 = vmatprep.subr.bf16.mxu0 0
      %4970 = vmatpush1.bf16.msra.mxu0 0
      %4971 = vmatprep.subr.bf16.mxu0 0
      %4972 = vmatpush1.bf16.msra.mxu0 0
      %4973 = vmatprep.subr.bf16.mxu0 0
      %4974 = vmatpush1.bf16.msra.mxu0 0
      %4975 = vmatprep.subr.bf16.mxu0 0
      %4976 = vmatpush1.bf16.msra.mxu0 0
      %4977 = vmatprep.subr.bf16.mxu0 0
      %4978 = vmatpush1.bf16.msra.mxu0 0
      %4979 = vmatprep.subr.bf16.mxu0 0
      %4980 = vmatpush1.bf16.msra.mxu0 0
      %4981 = vmatprep.subr.bf16.mxu0 0
      %4982 = vmatpush1.bf16.msra.mxu0 0
      %4983 = vmatprep.subr.bf16.mxu0 0
      %4984 = vmatpush1.bf16.msra.mxu0 0
      %4985 = vmatprep.subr.bf16.mxu0 0
      %4986 = vmatpush1.bf16.msra.mxu0 0
      %4987 = vmatprep.subr.bf16.mxu0 0
      %4988 = vmatpush1.bf16.msra.mxu0 0
      %4989 = vmatprep.subr.bf16.mxu0 0
      %4990 = vmatpush1.bf16.msra.mxu0 0
      %4991 = vmatprep.mubr.bf16.mxu0 0
      %4992 = vmatmul.mubr.bf16.gmra.mrb[0].mxu0 %v4916
      %v4993 = vpop.f32.mrb[0].mxu0
      %v4994 = vadd.f32 %v4953, %v4993
      %v4995 = vpop.f32.mrb[0].mxu0
      %v4996 = vadd.f32 %v4955, %v4995
      %v4997 = vpop.f32.mrb[0].mxu0
      %v4998 = vpop.f32.mrb[0].mxu0
      %4999 = vdwg.mxu0
      %v5000 = vadd.f32 %v4604, %v4994
      %v5001 = vadd.f32 %v4606, %v4996
      %v5002 = vpack.c.bf16 %v1709, %v1709
      %v5004 = vsel %vm3822, %v5002, 0
      %5006 = vmatprep.subr.bf16.mxu0 %v3816
      %5007 = vmatpush1.bf16.msra.mxu0 %v3815
      %5008 = vmatprep.subr.bf16.mxu0 %v3830
      %5009 = vmatpush1.bf16.msra.mxu0 %v3827
      %5010 = vmatprep.subr.bf16.mxu0 0
      %5011 = vmatpush1.bf16.msra.mxu0 0
      %5012 = vmatprep.subr.bf16.mxu0 0
      %5013 = vmatpush1.bf16.msra.mxu0 0
      %5014 = vmatprep.subr.bf16.mxu0 0
      %5015 = vmatpush1.bf16.msra.mxu0 0
      %5016 = vmatprep.subr.bf16.mxu0 0
      %5017 = vmatpush1.bf16.msra.mxu0 0
      %5018 = vmatprep.subr.bf16.mxu0 0
      %5019 = vmatpush1.bf16.msra.mxu0 0
      %5020 = vmatprep.subr.bf16.mxu0 0
      %5021 = vmatpush1.bf16.msra.mxu0 0
      %5022 = vmatprep.subr.bf16.mxu0 0
      %5023 = vmatpush1.bf16.msra.mxu0 0
      %5024 = vmatprep.subr.bf16.mxu0 0
      %5025 = vmatpush1.bf16.msra.mxu0 0
      %5026 = vmatprep.subr.bf16.mxu0 0
      %5027 = vmatpush1.bf16.msra.mxu0 0
      %5028 = vmatprep.subr.bf16.mxu0 0
      %5029 = vmatpush1.bf16.msra.mxu0 0
      %5030 = vmatprep.subr.bf16.mxu0 0
      %5031 = vmatpush1.bf16.msra.mxu0 0
      %5032 = vmatprep.subr.bf16.mxu0 0
      %5033 = vmatpush1.bf16.msra.mxu0 0
      %5034 = vmatprep.subr.bf16.mxu0 0
      %5035 = vmatpush1.bf16.msra.mxu0 0
      %5036 = vmatprep.subr.bf16.mxu0 0
      %5037 = vmatpush1.bf16.msra.mxu0 0
      %5038 = vmatprep.mubr.bf16.mxu0 0
      %5039 = vmatmul.mubr.bf16.gmra.mrb[0].mxu0 %v5004
      %v5040 = vpop.f32.mrb[0].mxu0
      %v5041 = vadd.f32 0.0, %v5040
      %v5042 = vpop.f32.mrb[0].mxu0
      %v5043 = vadd.f32 0.0, %v5042
      %v5044 = vpop.f32.mrb[0].mxu0
      %v5045 = vpop.f32.mrb[0].mxu0
      %5046 = vdwg.mxu0
      %5047 = vmatprep.subr.bf16.mxu0 0
      %5048 = vmatpush1.bf16.msra.mxu0 %v3817
      %5049 = vmatprep.subr.bf16.mxu0 0
      %5050 = vmatpush1.bf16.msra.mxu0 %v3833
      %5051 = vmatprep.subr.bf16.mxu0 0
      %5052 = vmatpush1.bf16.msra.mxu0 0
      %5053 = vmatprep.subr.bf16.mxu0 0
      %5054 = vmatpush1.bf16.msra.mxu0 0
      %5055 = vmatprep.subr.bf16.mxu0 0
      %5056 = vmatpush1.bf16.msra.mxu0 0
      %5057 = vmatprep.subr.bf16.mxu0 0
      %5058 = vmatpush1.bf16.msra.mxu0 0
      %5059 = vmatprep.subr.bf16.mxu0 0
      %5060 = vmatpush1.bf16.msra.mxu0 0
      %5061 = vmatprep.subr.bf16.mxu0 0
      %5062 = vmatpush1.bf16.msra.mxu0 0
      %5063 = vmatprep.subr.bf16.mxu0 0
      %5064 = vmatpush1.bf16.msra.mxu0 0
      %5065 = vmatprep.subr.bf16.mxu0 0
      %5066 = vmatpush1.bf16.msra.mxu0 0
      %5067 = vmatprep.subr.bf16.mxu0 0
      %5068 = vmatpush1.bf16.msra.mxu0 0
      %5069 = vmatprep.subr.bf16.mxu0 0
      %5070 = vmatpush1.bf16.msra.mxu0 0
      %5071 = vmatprep.subr.bf16.mxu0 0
      %5072 = vmatpush1.bf16.msra.mxu0 0
      %5073 = vmatprep.subr.bf16.mxu0 0
      %5074 = vmatpush1.bf16.msra.mxu0 0
      %5075 = vmatprep.subr.bf16.mxu0 0
      %5076 = vmatpush1.bf16.msra.mxu0 0
      %5077 = vmatprep.subr.bf16.mxu0 0
      %5078 = vmatpush1.bf16.msra.mxu0 0
      %5079 = vmatprep.mubr.bf16.mxu0 0
      %5080 = vmatmul.mubr.bf16.gmra.mrb[0].mxu0 %v5004
      %v5081 = vpop.f32.mrb[0].mxu0
      %v5082 = vadd.f32 0.0, %v5081
      %v5083 = vpop.f32.mrb[0].mxu0
      %v5084 = vpop.f32.mrb[0].mxu0
      %v5085 = vpop.f32.mrb[0].mxu0
      %5086 = vdwg.mxu0
      %v5087 = vpack.c.bf16 %v5041, %v5041
      %v5088 = vpack.c.bf16 %v5043, %v5043
      %v5089 = vpack.c.bf16 %v5082, %v5082
      %s5090 = scalar_lea.vmem %s5, 864
      %v5091 = vld [vmem:[%s5090] sm:$0xff]
      %v5092 = vld [vmem:[%s5090 + $0x8] sm:$0xff]
      %v5093 = vld [vmem:[%s5090 + $0x10] sm:$0xff]
      %v5094 = vld [vmem:[%s5090 + $0x18] sm:$0xff]
      %v5095 = vld [vmem:[%s5090 + $0x20] sm:$0xff]
      %v5096 = vld [vmem:[%s5090 + $0x28] sm:$0xff]
      %v5097 = vld [vmem:[%s5090 + $0x30] sm:$0xff]
      %v5098 = vld [vmem:[%s5090 + $0x38] sm:$0xff]
      %v5099 = vld [vmem:[%s5090 + $0x40] sm:$0xff]
      %v5100 = vld [vmem:[%s5090 + $0x48] sm:$0xff]
      %v5101 = vld [vmem:[%s5090 + $0x50] sm:$0xff]
      %v5102 = vld [vmem:[%s5090 + $0x58] sm:$0xff]
      %v5103 = vld [vmem:[%s5090 + $0x60] sm:$0xff]
      %v5104 = vld [vmem:[%s5090 + $0x68] sm:$0xff]
      %v5105 = vld [vmem:[%s5090 + $0x70] sm:$0xff]
      %v5106 = vld [vmem:[%s5090 + $0x78] sm:$0xff]
      %v5107 = vld [vmem:[%s5090 + $0x80] sm:$0xff]
      %v5108 = vld [vmem:[%s5090 + $0x88] sm:$0xff]
      %v5109 = vld [vmem:[%s5090 + $0x90] sm:$0xff]
      %v5110 = vld [vmem:[%s5090 + $0x98] sm:$0xff]
      %v5111 = vld [vmem:[%s5090 + $0xa0] sm:$0xff]
      %v5112 = vld [vmem:[%s5090 + $0xa8] sm:$0xff]
      %v5113 = vld [vmem:[%s5090 + $0xb0] sm:$0xff]
      %v5114 = vld [vmem:[%s5090 + $0xb8] sm:$0xff]
      %v5115 = vld [vmem:[%s5090 + $0xc0] sm:$0xff]
      %v5116 = vld [vmem:[%s5090 + $0xc8] sm:$0xff]
      %v5117 = vld [vmem:[%s5090 + $0xd0] sm:$0xff]
      %v5118 = vld [vmem:[%s5090 + $0xd8] sm:$0xff]
      %v5119 = vld [vmem:[%s5090 + $0xe0] sm:$0xff]
      %v5120 = vld [vmem:[%s5090 + $0xe8] sm:$0xff]
      %v5121 = vld [vmem:[%s5090 + $0xf0] sm:$0xff]
      %v5122 = vld [vmem:[%s5090 + $0xf8] sm:$0xff]
      %v5123 = vld [vmem:[%s5090 + $0x100] sm:$0xff]
      %v5124 = vld [vmem:[%s5090 + $0x108] sm:$0xff]
      %v5125 = vld [vmem:[%s5090 + $0x110] sm:$0xff]
      %v5126 = vld [vmem:[%s5090 + $0x118] sm:$0xff]
      %v5163 = vunpack.c.l.b16 %v5091
      %v5164 = vunpack.c.h.b16 %v5091
      %v5165 = vunpack.c.l.b16 %v5092
      %v5166 = vunpack.c.h.b16 %v5092
      %v5167 = vunpack.c.l.b16 %v5093
      %v5168 = vunpack.c.h.b16 %v5093
      %v5169 = vunpack.c.l.b16 %v5094
      %v5170 = vunpack.c.h.b16 %v5094
      %v5171 = vunpack.c.l.b16 %v5095
      %v5172 = vunpack.c.h.b16 %v5095
      %v5173 = vunpack.c.l.b16 %v5096
      %v5174 = vunpack.c.h.b16 %v5096
      %v5175 = vunpack.c.l.b16 %v5097
      %v5176 = vunpack.c.h.b16 %v5097
      %v5177 = vunpack.c.l.b16 %v5098
      %v5178 = vunpack.c.h.b16 %v5098
      %v5179 = vunpack.c.l.b16 %v5099
      %v5180 = vunpack.c.h.b16 %v5099
      %v5181 = vunpack.c.l.b16 %v5100
      %v5182 = vunpack.c.h.b16 %v5100
      %v5183 = vunpack.c.l.b16 %v5101
      %v5184 = vunpack.c.h.b16 %v5101
      %v5185 = vunpack.c.l.b16 %v5102
      %v5186 = vunpack.c.h.b16 %v5102
      %v5187 = vunpack.c.l.b16 %v5103
      %v5188 = vunpack.c.h.b16 %v5103
      %v5189 = vunpack.c.l.b16 %v5104
      %v5190 = vunpack.c.h.b16 %v5104
      %v5191 = vunpack.c.l.b16 %v5105
      %v5192 = vunpack.c.h.b16 %v5105
      %v5193 = vunpack.c.l.b16 %v5106
      %v5194 = vunpack.c.h.b16 %v5106
      %v5195 = vunpack.c.l.b16 %v5107
      %v5196 = vunpack.c.h.b16 %v5107
      %v5197 = vunpack.c.l.b16 %v5108
      %v5198 = vunpack.c.h.b16 %v5108
      %v5199 = vunpack.c.l.b16 %v5109
      %v5200 = vunpack.c.h.b16 %v5109
      %v5201 = vunpack.c.l.b16 %v5110
      %v5202 = vunpack.c.h.b16 %v5110
      %v5203 = vunpack.c.l.b16 %v5111
      %v5204 = vunpack.c.h.b16 %v5111
      %v5205 = vunpack.c.l.b16 %v5112
      %v5206 = vunpack.c.h.b16 %v5112
      %v5207 = vunpack.c.l.b16 %v5113
      %v5208 = vunpack.c.h.b16 %v5113
      %v5209 = vunpack.c.l.b16 %v5114
      %v5210 = vunpack.c.h.b16 %v5114
      %v5211 = vunpack.c.l.b16 %v5115
      %v5212 = vunpack.c.h.b16 %v5115
      %v5213 = vunpack.c.l.b16 %v5116
      %v5214 = vunpack.c.h.b16 %v5116
      %v5215 = vunpack.c.l.b16 %v5117
      %v5216 = vunpack.c.h.b16 %v5117
      %v5217 = vunpack.c.l.b16 %v5118
      %v5218 = vunpack.c.h.b16 %v5118
      %v5219 = vunpack.c.l.b16 %v5119
      %v5220 = vunpack.c.h.b16 %v5119
      %v5221 = vunpack.c.l.b16 %v5120
      %v5222 = vunpack.c.h.b16 %v5120
      %v5223 = vunpack.c.l.b16 %v5121
      %v5224 = vunpack.c.h.b16 %v5121
      %v5225 = vunpack.c.l.b16 %v5122
      %v5226 = vunpack.c.h.b16 %v5122
      %v5227 = vunpack.c.l.b16 %v5123
      %v5228 = vunpack.c.h.b16 %v5123
      %v5229 = vunpack.c.l.b16 %v5124
      %v5230 = vunpack.c.h.b16 %v5124
      %v5231 = vunpack.c.l.b16 %v5125
      %v5232 = vunpack.c.h.b16 %v5125
      %v5233 = vunpack.c.l.b16 %v5126
      %v5234 = vunpack.c.h.b16 %v5126
      %v5235 = vpack.c.b16 %v5165, %v5163
      %v5236 = vpack.c.b16 %v5166, %v5164
      %v5237 = vpack.c.b16 %v5169, %v5167
      %v5238 = vpack.c.b16 %v5170, %v5168
      %v5239 = vpack.c.b16 %v5173, %v5171
      %v5240 = vpack.c.b16 %v5174, %v5172
      %v5241 = vpack.c.b16 %v5177, %v5175
      %v5242 = vpack.c.b16 %v5178, %v5176
      %v5243 = vpack.c.b16 %v5181, %v5179
      %v5244 = vpack.c.b16 %v5182, %v5180
      %v5245 = vpack.c.b16 %v5185, %v5183
      %v5246 = vpack.c.b16 %v5186, %v5184
      %v5247 = vpack.c.b16 %v5189, %v5187
      %v5248 = vpack.c.b16 %v5190, %v5188
      %v5249 = vpack.c.b16 %v5193, %v5191
      %v5250 = vpack.c.b16 %v5194, %v5192
      %v5251 = vpack.c.b16 %v5197, %v5195
      %v5252 = vpack.c.b16 %v5198, %v5196
      %v5253 = vpack.c.b16 %v5201, %v5199
      %v5254 = vpack.c.b16 %v5202, %v5200
      %v5255 = vpack.c.b16 %v5205, %v5203
      %v5256 = vpack.c.b16 %v5206, %v5204
      %v5257 = vpack.c.b16 %v5209, %v5207
      %v5258 = vpack.c.b16 %v5210, %v5208
      %v5259 = vpack.c.b16 %v5213, %v5211
      %v5260 = vpack.c.b16 %v5214, %v5212
      %v5261 = vpack.c.b16 %v5217, %v5215
      %v5262 = vpack.c.b16 %v5218, %v5216
      %v5263 = vpack.c.b16 %v5221, %v5219
      %v5264 = vpack.c.b16 %v5222, %v5220
      %v5265 = vpack.c.b16 %v5225, %v5223
      %v5266 = vpack.c.b16 %v5226, %v5224
      %v5267 = vpack.c.b16 %v5229, %v5227
      %v5268 = vpack.c.b16 %v5230, %v5228
      %v5269 = vpack.c.b16 %v5233, %v5231
      %v5270 = vpack.c.b16 %v5234, %v5232
      %v5308 = vsel %vm3749, %v5089, 0
      %5310 = vmatprep.subr.bf16.mxu0 %v5236
      %5311 = vmatpush1.bf16.msra.mxu0 %v5235
      %5312 = vmatprep.subr.bf16.mxu0 %v5238
      %5313 = vmatpush1.bf16.msra.mxu0 %v5237
      %5314 = vmatprep.subr.bf16.mxu0 %v5240
      %5315 = vmatpush1.bf16.msra.mxu0 %v5239
      %5316 = vmatprep.subr.bf16.mxu0 %v5242
      %5317 = vmatpush1.bf16.msra.mxu0 %v5241
      %5318 = vmatprep.subr.bf16.mxu0 %v5244
      %5319 = vmatpush1.bf16.msra.mxu0 %v5243
      %5320 = vmatprep.subr.bf16.mxu0 %v5246
      %5321 = vmatpush1.bf16.msra.mxu0 %v5245
      %5322 = vmatprep.subr.bf16.mxu0 %v5248
      %5323 = vmatpush1.bf16.msra.mxu0 %v5247
      %5324 = vmatprep.subr.bf16.mxu0 %v5250
      %5325 = vmatpush1.bf16.msra.mxu0 %v5249
      %5326 = vmatprep.subr.bf16.mxu0 %v5252
      %5327 = vmatpush1.bf16.msra.mxu0 %v5251
      %5328 = vmatprep.subr.bf16.mxu0 %v5254
      %5329 = vmatpush1.bf16.msra.mxu0 %v5253
      %5330 = vmatprep.subr.bf16.mxu0 %v5256
      %5331 = vmatpush1.bf16.msra.mxu0 %v5255
      %5332 = vmatprep.subr.bf16.mxu0 %v5258
      %5333 = vmatpush1.bf16.msra.mxu0 %v5257
      %5334 = vmatprep.subr.bf16.mxu0 %v5260
      %5335 = vmatpush1.bf16.msra.mxu0 %v5259
      %5336 = vmatprep.subr.bf16.mxu0 %v5262
      %5337 = vmatpush1.bf16.msra.mxu0 %v5261
      %5338 = vmatprep.subr.bf16.mxu0 %v5264
      %5339 = vmatpush1.bf16.msra.mxu0 %v5263
      %5340 = vmatprep.subr.bf16.mxu0 %v5266
      %5341 = vmatpush1.bf16.msra.mxu0 %v5265
      %5342 = vmatprep.mubr.bf16.mxu0 %v5088
      %5343 = vmatmul.mubr.bf16.gmra.mrb[0].mxu0 %v5087
      %v5344 = vpop.f32.mrb[0].mxu0
      %v5345 = vadd.f32 0.0, %v5344
      %v5346 = vpop.f32.mrb[0].mxu0
      %v5347 = vadd.f32 0.0, %v5346
      %v5348 = vpop.f32.mrb[0].mxu0
      %v5349 = vpop.f32.mrb[0].mxu0
      %5350 = vdwg.mxu0
      %5351 = vmatprep.subr.bf16.mxu0 %v5268
      %5352 = vmatpush1.bf16.msra.mxu0 %v5267
      %5353 = vmatprep.subr.bf16.mxu0 %v5270
      %5354 = vmatpush1.bf16.msra.mxu0 %v5269
      %5355 = vmatprep.subr.bf16.mxu0 0
      %5356 = vmatpush1.bf16.msra.mxu0 0
      %5357 = vmatprep.subr.bf16.mxu0 0
      %5358 = vmatpush1.bf16.msra.mxu0 0
      %5359 = vmatprep.subr.bf16.mxu0 0
      %5360 = vmatpush1.bf16.msra.mxu0 0
      %5361 = vmatprep.subr.bf16.mxu0 0
      %5362 = vmatpush1.bf16.msra.mxu0 0
      %5363 = vmatprep.subr.bf16.mxu0 0
      %5364 = vmatpush1.bf16.msra.mxu0 0
      %5365 = vmatprep.subr.bf16.mxu0 0
      %5366 = vmatpush1.bf16.msra.mxu0 0
      %5367 = vmatprep.subr.bf16.mxu0 0
      %5368 = vmatpush1.bf16.msra.mxu0 0
      %5369 = vmatprep.subr.bf16.mxu0 0
      %5370 = vmatpush1.bf16.msra.mxu0 0
      %5371 = vmatprep.subr.bf16.mxu0 0
      %5372 = vmatpush1.bf16.msra.mxu0 0
      %5373 = vmatprep.subr.bf16.mxu0 0
      %5374 = vmatpush1.bf16.msra.mxu0 0
      %5375 = vmatprep.subr.bf16.mxu0 0
      %5376 = vmatpush1.bf16.msra.mxu0 0
      %5377 = vmatprep.subr.bf16.mxu0 0
      %5378 = vmatpush1.bf16.msra.mxu0 0
      %5379 = vmatprep.subr.bf16.mxu0 0
      %5380 = vmatpush1.bf16.msra.mxu0 0
      %5381 = vmatprep.subr.bf16.mxu0 0
      %5382 = vmatpush1.bf16.msra.mxu0 0
      %5383 = vmatprep.mubr.bf16.mxu0 0
      %5384 = vmatmul.mubr.bf16.gmra.mrb[0].mxu0 %v5308
      %v5385 = vpop.f32.mrb[0].mxu0
      %v5386 = vadd.f32 %v5345, %v5385
      %v5387 = vpop.f32.mrb[0].mxu0
      %v5388 = vadd.f32 %v5347, %v5387
      %v5389 = vpop.f32.mrb[0].mxu0
      %v5390 = vpop.f32.mrb[0].mxu0
      %5391 = vdwg.mxu0
      %v5392 = vadd.f32 %v5000, %v5386
      %v5393 = vadd.f32 %v5001, %v5388
      %v5394 = vld [vmem:[%s6] sm:$0x3]
      %v5396 = vlaneseq
      %v5397 = vshrl.u32 %v5396, 7
      %v5398 = vsub.s32 0, %v5397
      %v5399 = vrot.slane %v5394, %v5398
      %v5400 = vlaneseq
      %v5401 = vshrl.u32 %v5400, 7
      %v5402 = vsub.s32 1, %v5401
      %v5403 = vrot.slane %v5394, %v5402
      %v5406 = vadd.f32 %v5392, %v5399
      %v5407 = vadd.f32 %v5393, %v5403
      %vm5408 = vcmp.ge.f32.partialorder %v5406, 0.0
      %vm5409 = vcmp.ge.f32.partialorder %v5407, 0.0
      %v5410 = vmul.f32 %v5406, 0.1
      %v5411 = vmul.f32 %v5407, 0.1
      %v5412 = vsel %vm5408, %v5406, %v5410
      %v5413 = vsel %vm5409, %v5407, %v5411
      %v5415 = vcombine.high %v5412, %v5412
      %v5417 = vunpack.c.l.s4 1966171168
      %v5418 = vunpack.c.0.s8 %v5417
      %v5419 = vlaneseq
      %v5420 = vshrl.u32 %v5419, 7
      %v5421 = vsub.s32 %v5418, %v5420
      %v5422 = vrot.slane %v5412, %v5421
      %v5424 = vunpack.c.l.s4 1966171168
      %v5425 = vunpack.c.0.s8 %v5424
      %v5426 = vlaneseq
      %v5427 = vshrl.u32 %v5426, 7
      %v5428 = vsub.s32 %v5425, %v5427
      %v5429 = vrot.slane %v5415, %v5428
      %v5430 = vcombine.high %v5422, %v5422
      %v5431 = vcombine.high %v5429, %v5429
      %v5433 = vunpack.c.l.s4 1966171168
      %v5434 = vunpack.c.0.s8 %v5433
      %v5435 = vlaneseq
      %v5436 = vshrl.u32 %v5435, 7
      %v5437 = vsub.s32 %v5434, %v5436
      %v5438 = vrot.slane %v5422, %v5437
      %v5440 = vunpack.c.l.s4 1966171168
      %v5441 = vunpack.c.0.s8 %v5440
      %v5442 = vlaneseq
      %v5443 = vshrl.u32 %v5442, 7
      %v5444 = vsub.s32 %v5441, %v5443
      %v5445 = vrot.slane %v5429, %v5444
      %v5447 = vunpack.c.l.s4 1966171168
      %v5448 = vunpack.c.0.s8 %v5447
      %v5449 = vlaneseq
      %v5450 = vshrl.u32 %v5449, 7
      %v5451 = vsub.s32 %v5448, %v5450
      %v5452 = vrot.slane %v5430, %v5451
      %v5454 = vunpack.c.l.s4 1966171168
      %v5455 = vunpack.c.0.s8 %v5454
      %v5456 = vlaneseq
      %v5457 = vshrl.u32 %v5456, 7
      %v5458 = vsub.s32 %v5455, %v5457
      %v5459 = vrot.slane %v5431, %v5458
      %v5460 = vcombine.high %v5438, %v5438
      %v5461 = vcombine.high %v5445, %v5445
      %v5462 = vcombine.high %v5452, %v5452
      %v5463 = vcombine.high %v5459, %v5459
      %vm5472 = vcmask 253952
      %5473 = vst.msk [vmem:[#allocation5] sm:$0x1] %vm5472, %v5438
      %5474 = vst.msk [vmem:[#allocation5 + $0x8] sm:$0x1] %vm5472, %v5452
      %5475 = vst.msk [vmem:[#allocation5 + $0x10] sm:$0x1] %vm5472, %v5460
      %5476 = vst.msk [vmem:[#allocation5 + $0x18] sm:$0x1] %vm5472, %v5462
      %5477 = vst.msk [vmem:[#allocation5 + $0x20] sm:$0x1] %vm5472, %v5445
      %5478 = vst.msk [vmem:[#allocation5 + $0x28] sm:$0x1] %vm5472, %v5459
      %5479 = vst.msk [vmem:[#allocation5 + $0x30] sm:$0x1] %vm5472, %v5461
      %5480 = vst.msk [vmem:[#allocation5 + $0x38] sm:$0x1] %vm5472, %v5463
      %v5481 = vlaneseq
      %v5482 = vshrl.u32 %v5481, 7
      %v5483 = vsub.s32 0, %v5482
      %v5484 = vrot.slane %v5438, %v5483
      %v5485 = vlaneseq
      %v5486 = vshrl.u32 %v5485, 7
      %v5487 = vsub.s32 0, %v5486
      %v5488 = vrot.slane %v5452, %v5487
      %v5489 = vlaneseq
      %v5490 = vshrl.u32 %v5489, 7
      %v5491 = vsub.s32 0, %v5490
      %v5492 = vrot.slane %v5460, %v5491
      %v5493 = vlaneseq
      %v5494 = vshrl.u32 %v5493, 7
      %v5495 = vsub.s32 0, %v5494
      %v5496 = vrot.slane %v5462, %v5495
      %v5497 = vlaneseq
      %v5498 = vshrl.u32 %v5497, 7
      %v5499 = vsub.s32 0, %v5498
      %v5500 = vrot.slane %v5445, %v5499
      %v5501 = vlaneseq
      %v5502 = vshrl.u32 %v5501, 7
      %v5503 = vsub.s32 0, %v5502
      %v5504 = vrot.slane %v5459, %v5503
      %v5505 = vlaneseq
      %v5506 = vshrl.u32 %v5505, 7
      %v5507 = vsub.s32 0, %v5506
      %v5508 = vrot.slane %v5461, %v5507
      %v5509 = vlaneseq
      %v5510 = vshrl.u32 %v5509, 7
      %v5511 = vsub.s32 0, %v5510
      %v5512 = vrot.slane %v5463, %v5511
      %5513 = vrot.lane.b32.xlu0 %v5484, 96
      %v5514 = vpop.permute.xlu0 %5513
      %5515 = vrot.lane.b32.xlu0 %v5488, 96
      %v5516 = vpop.permute.xlu0 %5515
      %5517 = vrot.lane.b32.xlu0 %v5492, 96
      %v5518 = vpop.permute.xlu0 %5517
      %5519 = vrot.lane.b32.xlu0 %v5496, 96
      %v5520 = vpop.permute.xlu0 %5519
      %5521 = vrot.lane.b32.xlu0 %v5500, 96
      %v5522 = vpop.permute.xlu0 %5521
      %5523 = vrot.lane.b32.xlu0 %v5504, 96
      %v5524 = vpop.permute.xlu0 %5523
      %5525 = vrot.lane.b32.xlu0 %v5508, 96
      %v5526 = vpop.permute.xlu0 %5525
      %5527 = vrot.lane.b32.xlu0 %v5512, 96
      %v5528 = vpop.permute.xlu0 %5527
      %5537 = vst.msk [vmem:[#allocation5 + $0x1] sm:$0x1] %vm5472, %v5514
      %5538 = vst.msk [vmem:[#allocation5 + $0x9] sm:$0x1] %vm5472, %v5516
      %5539 = vst.msk [vmem:[#allocation5 + $0x11] sm:$0x1] %vm5472, %v5518
      %5540 = vst.msk [vmem:[#allocation5 + $0x19] sm:$0x1] %vm5472, %v5520
      %5541 = vst.msk [vmem:[#allocation5 + $0x21] sm:$0x1] %vm5472, %v5522
      %5542 = vst.msk [vmem:[#allocation5 + $0x29] sm:$0x1] %vm5472, %v5524
      %5543 = vst.msk [vmem:[#allocation5 + $0x31] sm:$0x1] %vm5472, %v5526
      %5544 = vst.msk [vmem:[#allocation5 + $0x39] sm:$0x1] %vm5472, %v5528
      %5545 = vrot.lane.b32.xlu0 %v5484, 64
      %v5546 = vpop.permute.xlu0 %5545
      %5547 = vrot.lane.b32.xlu0 %v5488, 64
      %v5548 = vpop.permute.xlu0 %5547
      %5549 = vrot.lane.b32.xlu0 %v5492, 64
      %v5550 = vpop.permute.xlu0 %5549
      %5551 = vrot.lane.b32.xlu0 %v5496, 64
      %v5552 = vpop.permute.xlu0 %5551
      %5553 = vrot.lane.b32.xlu0 %v5500, 64
      %v5554 = vpop.permute.xlu0 %5553
      %5555 = vrot.lane.b32.xlu0 %v5504, 64
      %v5556 = vpop.permute.xlu0 %5555
      %5557 = vrot.lane.b32.xlu0 %v5508, 64
      %v5558 = vpop.permute.xlu0 %5557
      %5559 = vrot.lane.b32.xlu0 %v5512, 64
      %v5560 = vpop.permute.xlu0 %5559
      %5569 = vst.msk [vmem:[#allocation5 + $0x2] sm:$0x1] %vm5472, %v5546
      %5570 = vst.msk [vmem:[#allocation5 + $0xa] sm:$0x1] %vm5472, %v5548
      %5571 = vst.msk [vmem:[#allocation5 + $0x12] sm:$0x1] %vm5472, %v5550
      %5572 = vst.msk [vmem:[#allocation5 + $0x1a] sm:$0x1] %vm5472, %v5552
      %5573 = vst.msk [vmem:[#allocation5 + $0x22] sm:$0x1] %vm5472, %v5554
      %5574 = vst.msk [vmem:[#allocation5 + $0x2a] sm:$0x1] %vm5472, %v5556
      %5575 = vst.msk [vmem:[#allocation5 + $0x32] sm:$0x1] %vm5472, %v5558
      %5576 = vst.msk [vmem:[#allocation5 + $0x3a] sm:$0x1] %vm5472, %v5560
      %5577 = vrot.lane.b32.xlu0 %v5484, 32
      %v5578 = vpop.permute.xlu0 %5577
      %5579 = vrot.lane.b32.xlu0 %v5488, 32
      %v5580 = vpop.permute.xlu0 %5579
      %5581 = vrot.lane.b32.xlu0 %v5492, 32
      %v5582 = vpop.permute.xlu0 %5581
      %5583 = vrot.lane.b32.xlu0 %v5496, 32
      %v5584 = vpop.permute.xlu0 %5583
      %5585 = vrot.lane.b32.xlu0 %v5500, 32
      %v5586 = vpop.permute.xlu0 %5585
      %5587 = vrot.lane.b32.xlu0 %v5504, 32
      %v5588 = vpop.permute.xlu0 %5587
      %5589 = vrot.lane.b32.xlu0 %v5508, 32
      %v5590 = vpop.permute.xlu0 %5589
      %5591 = vrot.lane.b32.xlu0 %v5512, 32
      %v5592 = vpop.permute.xlu0 %5591
      %5601 = vst.msk [vmem:[#allocation5 + $0x3] sm:$0x1] %vm5472, %v5578
      %5602 = vst.msk [vmem:[#allocation5 + $0xb] sm:$0x1] %vm5472, %v5580
      %5603 = vst.msk [vmem:[#allocation5 + $0x13] sm:$0x1] %vm5472, %v5582
      %5604 = vst.msk [vmem:[#allocation5 + $0x1b] sm:$0x1] %vm5472, %v5584
      %5605 = vst.msk [vmem:[#allocation5 + $0x23] sm:$0x1] %vm5472, %v5586
      %5606 = vst.msk [vmem:[#allocation5 + $0x2b] sm:$0x1] %vm5472, %v5588
      %5607 = vst.msk [vmem:[#allocation5 + $0x33] sm:$0x1] %vm5472, %v5590
      %5608 = vst.msk [vmem:[#allocation5 + $0x3b] sm:$0x1] %vm5472, %v5592
      %v5610 = vcombine.high %v5413, %v5413
      %v5612 = vunpack.c.l.s4 1966171168
      %v5613 = vunpack.c.0.s8 %v5612
      %v5614 = vlaneseq
      %v5615 = vshrl.u32 %v5614, 7
      %v5616 = vsub.s32 %v5613, %v5615
      %v5617 = vrot.slane %v5413, %v5616
      %v5619 = vunpack.c.l.s4 1966171168
      %v5620 = vunpack.c.0.s8 %v5619
      %v5621 = vlaneseq
      %v5622 = vshrl.u32 %v5621, 7
      %v5623 = vsub.s32 %v5620, %v5622
      %v5624 = vrot.slane %v5610, %v5623
      %v5625 = vcombine.high %v5617, %v5617
      %v5626 = vcombine.high %v5624, %v5624
      %v5628 = vunpack.c.l.s4 1966171168
      %v5629 = vunpack.c.0.s8 %v5628
      %v5630 = vlaneseq
      %v5631 = vshrl.u32 %v5630, 7
      %v5632 = vsub.s32 %v5629, %v5631
      %v5633 = vrot.slane %v5617, %v5632
      %v5635 = vunpack.c.l.s4 1966171168
      %v5636 = vunpack.c.0.s8 %v5635
      %v5637 = vlaneseq
      %v5638 = vshrl.u32 %v5637, 7
      %v5639 = vsub.s32 %v5636, %v5638
      %v5640 = vrot.slane %v5624, %v5639
      %v5642 = vunpack.c.l.s4 1966171168
      %v5643 = vunpack.c.0.s8 %v5642
      %v5644 = vlaneseq
      %v5645 = vshrl.u32 %v5644, 7
      %v5646 = vsub.s32 %v5643, %v5645
      %v5647 = vrot.slane %v5625, %v5646
      %v5649 = vunpack.c.l.s4 1966171168
      %v5650 = vunpack.c.0.s8 %v5649
      %v5651 = vlaneseq
      %v5652 = vshrl.u32 %v5651, 7
      %v5653 = vsub.s32 %v5650, %v5652
      %v5654 = vrot.slane %v5626, %v5653
      %v5655 = vcombine.high %v5633, %v5633
      %v5656 = vcombine.high %v5640, %v5640
      %v5657 = vcombine.high %v5647, %v5647
      %v5658 = vcombine.high %v5654, %v5654
      %5667 = vst.msk [vmem:[#allocation5 + $0x4] sm:$0x1] %vm5472, %v5633
      %5668 = vst.msk [vmem:[#allocation5 + $0xc] sm:$0x1] %vm5472, %v5647
      %5669 = vst.msk [vmem:[#allocation5 + $0x14] sm:$0x1] %vm5472, %v5655
      %5670 = vst.msk [vmem:[#allocation5 + $0x1c] sm:$0x1] %vm5472, %v5657
      %5671 = vst.msk [vmem:[#allocation5 + $0x24] sm:$0x1] %vm5472, %v5640
      %5672 = vst.msk [vmem:[#allocation5 + $0x2c] sm:$0x1] %vm5472, %v5654
      %5673 = vst.msk [vmem:[#allocation5 + $0x34] sm:$0x1] %vm5472, %v5656
      %5674 = vst.msk [vmem:[#allocation5 + $0x3c] sm:$0x1] %vm5472, %v5658
      %v5675 = vlaneseq
      %v5676 = vshrl.u32 %v5675, 7
      %v5677 = vsub.s32 0, %v5676
      %v5678 = vrot.slane %v5633, %v5677
      %v5679 = vlaneseq
      %v5680 = vshrl.u32 %v5679, 7
      %v5681 = vsub.s32 0, %v5680
      %v5682 = vrot.slane %v5647, %v5681
      %v5683 = vlaneseq
      %v5684 = vshrl.u32 %v5683, 7
      %v5685 = vsub.s32 0, %v5684
      %v5686 = vrot.slane %v5655, %v5685
      %v5687 = vlaneseq
      %v5688 = vshrl.u32 %v5687, 7
      %v5689 = vsub.s32 0, %v5688
      %v5690 = vrot.slane %v5657, %v5689
      %v5691 = vlaneseq
      %v5692 = vshrl.u32 %v5691, 7
      %v5693 = vsub.s32 0, %v5692
      %v5694 = vrot.slane %v5640, %v5693
      %v5695 = vlaneseq
      %v5696 = vshrl.u32 %v5695, 7
      %v5697 = vsub.s32 0, %v5696
      %v5698 = vrot.slane %v5654, %v5697
      %v5699 = vlaneseq
      %v5700 = vshrl.u32 %v5699, 7
      %v5701 = vsub.s32 0, %v5700
      %v5702 = vrot.slane %v5656, %v5701
      %v5703 = vlaneseq
      %v5704 = vshrl.u32 %v5703, 7
      %v5705 = vsub.s32 0, %v5704
      %v5706 = vrot.slane %v5658, %v5705
      %5707 = vrot.lane.b32.xlu0 %v5678, 96
      %v5708 = vpop.permute.xlu0 %5707
      %5709 = vrot.lane.b32.xlu0 %v5682, 96
      %v5710 = vpop.permute.xlu0 %5709
      %5711 = vrot.lane.b32.xlu0 %v5686, 96
      %v5712 = vpop.permute.xlu0 %5711
      %5713 = vrot.lane.b32.xlu0 %v5690, 96
      %v5714 = vpop.permute.xlu0 %5713
      %5715 = vrot.lane.b32.xlu0 %v5694, 96
      %v5716 = vpop.permute.xlu0 %5715
      %5717 = vrot.lane.b32.xlu0 %v5698, 96
      %v5718 = vpop.permute.xlu0 %5717
      %5719 = vrot.lane.b32.xlu0 %v5702, 96
      %v5720 = vpop.permute.xlu0 %5719
      %5721 = vrot.lane.b32.xlu0 %v5706, 96
      %v5722 = vpop.permute.xlu0 %5721
      %5731 = vst.msk [vmem:[#allocation5 + $0x5] sm:$0x1] %vm5472, %v5708
      %5732 = vst.msk [vmem:[#allocation5 + $0xd] sm:$0x1] %vm5472, %v5710
      %5733 = vst.msk [vmem:[#allocation5 + $0x15] sm:$0x1] %vm5472, %v5712
      %5734 = vst.msk [vmem:[#allocation5 + $0x1d] sm:$0x1] %vm5472, %v5714
      %5735 = vst.msk [vmem:[#allocation5 + $0x25] sm:$0x1] %vm5472, %v5716
      %5736 = vst.msk [vmem:[#allocation5 + $0x2d] sm:$0x1] %vm5472, %v5718
      %5737 = vst.msk [vmem:[#allocation5 + $0x35] sm:$0x1] %vm5472, %v5720
      %5738 = vst.msk [vmem:[#allocation5 + $0x3d] sm:$0x1] %vm5472, %v5722
      %5739 = vrot.lane.b32.xlu0 %v5678, 64
      %v5740 = vpop.permute.xlu0 %5739
      %5741 = vrot.lane.b32.xlu0 %v5682, 64
      %v5742 = vpop.permute.xlu0 %5741
      %5743 = vrot.lane.b32.xlu0 %v5686, 64
      %v5744 = vpop.permute.xlu0 %5743
      %5745 = vrot.lane.b32.xlu0 %v5690, 64
      %v5746 = vpop.permute.xlu0 %5745
      %5747 = vrot.lane.b32.xlu0 %v5694, 64
      %v5748 = vpop.permute.xlu0 %5747
      %5749 = vrot.lane.b32.xlu0 %v5698, 64
      %v5750 = vpop.permute.xlu0 %5749
      %5751 = vrot.lane.b32.xlu0 %v5702, 64
      %v5752 = vpop.permute.xlu0 %5751
      %5753 = vrot.lane.b32.xlu0 %v5706, 64
      %v5754 = vpop.permute.xlu0 %5753
      %5763 = vst.msk [vmem:[#allocation5 + $0x6] sm:$0x1] %vm5472, %v5740
      %5764 = vst.msk [vmem:[#allocation5 + $0xe] sm:$0x1] %vm5472, %v5742
      %5765 = vst.msk [vmem:[#allocation5 + $0x16] sm:$0x1] %vm5472, %v5744
      %5766 = vst.msk [vmem:[#allocation5 + $0x1e] sm:$0x1] %vm5472, %v5746
      %5767 = vst.msk [vmem:[#allocation5 + $0x26] sm:$0x1] %vm5472, %v5748
      %5768 = vst.msk [vmem:[#allocation5 + $0x2e] sm:$0x1] %vm5472, %v5750
      %5769 = vst.msk [vmem:[#allocation5 + $0x36] sm:$0x1] %vm5472, %v5752
      %5770 = vst.msk [vmem:[#allocation5 + $0x3e] sm:$0x1] %vm5472, %v5754
      %5771 = vrot.lane.b32.xlu0 %v5678, 32
      %v5772 = vpop.permute.xlu0 %5771
      %5773 = vrot.lane.b32.xlu0 %v5682, 32
      %v5774 = vpop.permute.xlu0 %5773
      %5775 = vrot.lane.b32.xlu0 %v5686, 32
      %v5776 = vpop.permute.xlu0 %5775
      %5777 = vrot.lane.b32.xlu0 %v5690, 32
      %v5778 = vpop.permute.xlu0 %5777
      %5779 = vrot.lane.b32.xlu0 %v5694, 32
      %v5780 = vpop.permute.xlu0 %5779
      %5781 = vrot.lane.b32.xlu0 %v5698, 32
      %v5782 = vpop.permute.xlu0 %5781
      %5783 = vrot.lane.b32.xlu0 %v5702, 32
      %v5784 = vpop.permute.xlu0 %5783
      %5785 = vrot.lane.b32.xlu0 %v5706, 32
      %v5786 = vpop.permute.xlu0 %5785
      %5795 = vst.msk [vmem:[#allocation5 + $0x7] sm:$0x1] %vm5472, %v5772
      %5796 = vst.msk [vmem:[#allocation5 + $0xf] sm:$0x1] %vm5472, %v5774
      %5797 = vst.msk [vmem:[#allocation5 + $0x17] sm:$0x1] %vm5472, %v5776
      %5798 = vst.msk [vmem:[#allocation5 + $0x1f] sm:$0x1] %vm5472, %v5778
      %5799 = vst.msk [vmem:[#allocation5 + $0x27] sm:$0x1] %vm5472, %v5780
      %5800 = vst.msk [vmem:[#allocation5 + $0x2f] sm:$0x1] %vm5472, %v5782
      %5801 = vst.msk [vmem:[#allocation5 + $0x37] sm:$0x1] %vm5472, %v5784
      %5802 = vst.msk [vmem:[#allocation5 + $0x3f] sm:$0x1] %vm5472, %v5786
      %v5803 = vld [vmem:[#allocation5] sm:$0xff]
      %v5804 = vld [vmem:[#allocation5 + $0x8] sm:$0xff]
      %v5805 = vld [vmem:[#allocation5 + $0x10] sm:$0xff]
      %v5806 = vld [vmem:[#allocation5 + $0x18] sm:$0xff]
      %v5807 = vld [vmem:[#allocation5 + $0x20] sm:$0xff]
      %v5808 = vld [vmem:[#allocation5 + $0x28] sm:$0xff]
      %v5809 = vld [vmem:[#allocation5 + $0x30] sm:$0xff]
      %v5810 = vld [vmem:[#allocation5 + $0x38] sm:$0xff]
      %v5811 = vpack.c.bf16 %v5804, %v5803
      %v5812 = vpack.c.bf16 %v5806, %v5805
      %v5813 = vpack.c.bf16 %v5808, %v5807
      %v5814 = vpack.c.bf16 %v5810, %v5809
      %v5815 = vld [vmem:[%s9] sm:$0xf]
      %v5816 = vld [vmem:[%s9 + $0x4] sm:$0xf]
      %v5817 = vld [vmem:[%s9 + $0x8] sm:$0xf]
      %v5818 = vld [vmem:[%s9 + $0xc] sm:$0xf]
      %v5819 = vld [vmem:[%s10] sm:$0x1]
      %v5821 = vlaneseq
      %v5822 = vshrl.u32 %v5821, 7
      %v5823 = vsub.s32 0, %v5822
      %v5824 = vrot.slane %v5819, %v5823
      %v5830 = vunpack.c.l.b16 %v5815
      %v5831 = vunpack.c.l.b16 %v5816
      %v5832 = vunpack.c.l.b16 %v5817
      %v5833 = vunpack.c.l.b16 %v5818
      %v5834 = vpack.c.b16 %v5831, %v5830
      %v5835 = vpack.c.b16 %v5833, %v5832
      %v5839 = vsel %vm3749, %v5811, 0
      %v5842 = vsel %vm3749, %v5812, 0
      %v5845 = vsel %vm3749, %v5813, 0
      %v5848 = vsel %vm3749, %v5814, 0
      %5850 = vmatprep.subr.bf16.mxu0 0
      %5851 = vmatpush1.bf16.msra.mxu0 %v5834
      %5852 = vmatprep.subr.bf16.mxu0 0
      %5853 = vmatpush1.bf16.msra.mxu0 %v5835
      %5854 = vmatprep.subr.bf16.mxu0 0
      %5855 = vmatpush1.bf16.msra.mxu0 0
      %5856 = vmatprep.subr.bf16.mxu0 0
      %5857 = vmatpush1.bf16.msra.mxu0 0
      %5858 = vmatprep.subr.bf16.mxu0 0
      %5859 = vmatpush1.bf16.msra.mxu0 0
      %5860 = vmatprep.subr.bf16.mxu0 0
      %5861 = vmatpush1.bf16.msra.mxu0 0
      %5862 = vmatprep.subr.bf16.mxu0 0
      %5863 = vmatpush1.bf16.msra.mxu0 0
      %5864 = vmatprep.subr.bf16.mxu0 0
      %5865 = vmatpush1.bf16.msra.mxu0 0
      %5866 = vmatprep.subr.bf16.mxu0 0
      %5867 = vmatpush1.bf16.msra.mxu0 0
      %5868 = vmatprep.subr.bf16.mxu0 0
      %5869 = vmatpush1.bf16.msra.mxu0 0
      %5870 = vmatprep.subr.bf16.mxu0 0
      %5871 = vmatpush1.bf16.msra.mxu0 0
      %5872 = vmatprep.subr.bf16.mxu0 0
      %5873 = vmatpush1.bf16.msra.mxu0 0
      %5874 = vmatprep.subr.bf16.mxu0 0
      %5875 = vmatpush1.bf16.msra.mxu0 0
      %5876 = vmatprep.subr.bf16.mxu0 0
      %5877 = vmatpush1.bf16.msra.mxu0 0
      %5878 = vmatprep.subr.bf16.mxu0 0
      %5879 = vmatpush1.bf16.msra.mxu0 0
      %5880 = vmatprep.subr.bf16.mxu0 0
      %5881 = vmatpush1.bf16.msra.mxu0 0
      %5882 = vmatprep.mubr.bf16.mxu0 0
      %5883 = vmatmul.mubr.bf16.gmra.mrb[0].mxu0 %v5839
      %v5884 = vpop.f32.mrb[0].mxu0
      %v5885 = vadd.f32 %v5824, %v5884
      %v5886 = vpop.f32.mrb[0].mxu0
      %v5887 = vpop.f32.mrb[0].mxu0
      %v5888 = vadd.f32 %v5824, %v5887
      %v5889 = vpop.f32.mrb[0].mxu0
      %5890 = vmatprep.mubr.bf16.mxu0 0
      %5891 = vmatmul.mubr.bf16.gmra.mrb[0].mxu0 %v5842
      %v5892 = vpop.f32.mrb[0].mxu0
      %v5893 = vadd.f32 %v5824, %v5892
      %v5894 = vpop.f32.mrb[0].mxu0
      %v5895 = vpop.f32.mrb[0].mxu0
      %v5896 = vadd.f32 %v5824, %v5895
      %v5897 = vpop.f32.mrb[0].mxu0
      %5898 = vmatprep.mubr.bf16.mxu0 0
      %5899 = vmatmul.mubr.bf16.gmra.mrb[0].mxu0 %v5845
      %v5900 = vpop.f32.mrb[0].mxu0
      %v5901 = vadd.f32 %v5824, %v5900
      %v5902 = vpop.f32.mrb[0].mxu0
      %v5903 = vpop.f32.mrb[0].mxu0
      %v5904 = vadd.f32 %v5824, %v5903
      %v5905 = vpop.f32.mrb[0].mxu0
      %5906 = vmatprep.mubr.bf16.mxu0 0
      %5907 = vmatmul.mubr.bf16.gmra.mrb[0].mxu0 %v5848
      %v5908 = vpop.f32.mrb[0].mxu0
      %v5909 = vadd.f32 %v5824, %v5908
      %v5910 = vpop.f32.mrb[0].mxu0
      %v5911 = vpop.f32.mrb[0].mxu0
      %v5912 = vadd.f32 %v5824, %v5911
      %v5913 = vpop.f32.mrb[0].mxu0
      %5914 = vdwg.mxu0
      %v5915 = vld [vmem:[%s11] sm:$0xf]
      %v5916 = vld [vmem:[%s11 + $0x4] sm:$0xf]
      %v5917 = vld [vmem:[%s11 + $0x8] sm:$0xf]
      %v5918 = vld [vmem:[%s11 + $0xc] sm:$0xf]
      %v5919 = vld [vmem:[%s12] sm:$0x1]
      %v5921 = vlaneseq
      %v5922 = vshrl.u32 %v5921, 7
      %v5923 = vsub.s32 0, %v5922
      %v5924 = vrot.slane %v5919, %v5923
      %v5930 = vunpack.c.l.b16 %v5915
      %v5931 = vunpack.c.l.b16 %v5916
      %v5932 = vunpack.c.l.b16 %v5917
      %v5933 = vunpack.c.l.b16 %v5918
      %v5934 = vpack.c.b16 %v5931, %v5930
      %v5935 = vpack.c.b16 %v5933, %v5932
      %5938 = vmatprep.subr.bf16.mxu0 0
      %5939 = vmatpush1.bf16.msra.mxu0 %v5934
      %5940 = vmatprep.subr.bf16.mxu0 0
      %5941 = vmatpush1.bf16.msra.mxu0 %v5935
      %5942 = vmatprep.subr.bf16.mxu0 0
      %5943 = vmatpush1.bf16.msra.mxu0 0
      %5944 = vmatprep.subr.bf16.mxu0 0
      %5945 = vmatpush1.bf16.msra.mxu0 0
      %5946 = vmatprep.subr.bf16.mxu0 0
      %5947 = vmatpush1.bf16.msra.mxu0 0
      %5948 = vmatprep.subr.bf16.mxu0 0
      %5949 = vmatpush1.bf16.msra.mxu0 0
      %5950 = vmatprep.subr.bf16.mxu0 0
      %5951 = vmatpush1.bf16.msra.mxu0 0
      %5952 = vmatprep.subr.bf16.mxu0 0
      %5953 = vmatpush1.bf16.msra.mxu0 0
      %5954 = vmatprep.subr.bf16.mxu0 0
      %5955 = vmatpush1.bf16.msra.mxu0 0
      %5956 = vmatprep.subr.bf16.mxu0 0
      %5957 = vmatpush1.bf16.msra.mxu0 0
      %5958 = vmatprep.subr.bf16.mxu0 0
      %5959 = vmatpush1.bf16.msra.mxu0 0
      %5960 = vmatprep.subr.bf16.mxu0 0
      %5961 = vmatpush1.bf16.msra.mxu0 0
      %5962 = vmatprep.subr.bf16.mxu0 0
      %5963 = vmatpush1.bf16.msra.mxu0 0
      %5964 = vmatprep.subr.bf16.mxu0 0
      %5965 = vmatpush1.bf16.msra.mxu0 0
      %5966 = vmatprep.subr.bf16.mxu0 0
      %5967 = vmatpush1.bf16.msra.mxu0 0
      %5968 = vmatprep.subr.bf16.mxu0 0
      %5969 = vmatpush1.bf16.msra.mxu0 0
      %5970 = vmatprep.mubr.bf16.mxu0 0
      %5971 = vmatmul.mubr.bf16.gmra.mrb[0].mxu0 %v5839
      %v5972 = vpop.f32.mrb[0].mxu0
      %v5973 = vadd.f32 %v5924, %v5972
      %v5974 = vpop.f32.mrb[0].mxu0
      %v5975 = vpop.f32.mrb[0].mxu0
      %v5976 = vadd.f32 %v5924, %v5975
      %v5977 = vpop.f32.mrb[0].mxu0
      %5978 = vmatprep.mubr.bf16.mxu0 0
      %5979 = vmatmul.mubr.bf16.gmra.mrb[0].mxu0 %v5842
      %v5980 = vpop.f32.mrb[0].mxu0
      %v5981 = vadd.f32 %v5924, %v5980
      %v5982 = vpop.f32.mrb[0].mxu0
      %v5983 = vpop.f32.mrb[0].mxu0
      %v5984 = vadd.f32 %v5924, %v5983
      %v5985 = vpop.f32.mrb[0].mxu0
      %5986 = vmatprep.mubr.bf16.mxu0 0
      %5987 = vmatmul.mubr.bf16.gmra.mrb[0].mxu0 %v5845
      %v5988 = vpop.f32.mrb[0].mxu0
      %v5989 = vadd.f32 %v5924, %v5988
      %v5990 = vpop.f32.mrb[0].mxu0
      %v5991 = vpop.f32.mrb[0].mxu0
      %v5992 = vadd.f32 %v5924, %v5991
      %v5993 = vpop.f32.mrb[0].mxu0
      %5994 = vmatprep.mubr.bf16.mxu0 0
      %5995 = vmatmul.mubr.bf16.gmra.mrb[0].mxu0 %v5848
      %v5996 = vpop.f32.mrb[0].mxu0
      %v5997 = vadd.f32 %v5924, %v5996
      %v5998 = vpop.f32.mrb[0].mxu0
      %v5999 = vpop.f32.mrb[0].mxu0
      %v6000 = vadd.f32 %v5924, %v5999
      %v6001 = vpop.f32.mrb[0].mxu0
      %6002 = vdwg.mxu0
      %v6003 = vld [vmem:[%s13] sm:$0xf]
      %v6004 = vld [vmem:[%s13 + $0x4] sm:$0xf]
      %v6005 = vld [vmem:[%s13 + $0x8] sm:$0xf]
      %v6006 = vld [vmem:[%s13 + $0xc] sm:$0xf]
      %v6007 = vld [vmem:[%s14] sm:$0x1]
      %v6009 = vlaneseq
      %v6010 = vshrl.u32 %v6009, 7
      %v6011 = vsub.s32 0, %v6010
      %v6012 = vrot.slane %v6007, %v6011
      %v6018 = vunpack.c.l.b16 %v6003
      %v6019 = vunpack.c.l.b16 %v6004
      %v6020 = vunpack.c.l.b16 %v6005
      %v6021 = vunpack.c.l.b16 %v6006
      %v6022 = vpack.c.b16 %v6019, %v6018
      %v6023 = vpack.c.b16 %v6021, %v6020
      %6026 = vmatprep.subr.bf16.mxu0 0
      %6027 = vmatpush1.bf16.msra.mxu0 %v6022
      %6028 = vmatprep.subr.bf16.mxu0 0
      %6029 = vmatpush1.bf16.msra.mxu0 %v6023
      %6030 = vmatprep.subr.bf16.mxu0 0
      %6031 = vmatpush1.bf16.msra.mxu0 0
      %6032 = vmatprep.subr.bf16.mxu0 0
      %6033 = vmatpush1.bf16.msra.mxu0 0
      %6034 = vmatprep.subr.bf16.mxu0 0
      %6035 = vmatpush1.bf16.msra.mxu0 0
      %6036 = vmatprep.subr.bf16.mxu0 0
      %6037 = vmatpush1.bf16.msra.mxu0 0
      %6038 = vmatprep.subr.bf16.mxu0 0
      %6039 = vmatpush1.bf16.msra.mxu0 0
      %6040 = vmatprep.subr.bf16.mxu0 0
      %6041 = vmatpush1.bf16.msra.mxu0 0
      %6042 = vmatprep.subr.bf16.mxu0 0
      %6043 = vmatpush1.bf16.msra.mxu0 0
      %6044 = vmatprep.subr.bf16.mxu0 0
      %6045 = vmatpush1.bf16.msra.mxu0 0
      %6046 = vmatprep.subr.bf16.mxu0 0
      %6047 = vmatpush1.bf16.msra.mxu0 0
      %6048 = vmatprep.subr.bf16.mxu0 0
      %6049 = vmatpush1.bf16.msra.mxu0 0
      %6050 = vmatprep.subr.bf16.mxu0 0
      %6051 = vmatpush1.bf16.msra.mxu0 0
      %6052 = vmatprep.subr.bf16.mxu0 0
      %6053 = vmatpush1.bf16.msra.mxu0 0
      %6054 = vmatprep.subr.bf16.mxu0 0
      %6055 = vmatpush1.bf16.msra.mxu0 0
      %6056 = vmatprep.subr.bf16.mxu0 0
      %6057 = vmatpush1.bf16.msra.mxu0 0
      %6058 = vmatprep.mubr.bf16.mxu0 0
      %6059 = vmatmul.mubr.bf16.gmra.mrb[0].mxu0 %v5839
      %v6060 = vpop.f32.mrb[0].mxu0
      %v6061 = vadd.f32 %v6012, %v6060
      %v6062 = vpop.f32.mrb[0].mxu0
      %v6063 = vpop.f32.mrb[0].mxu0
      %v6064 = vadd.f32 %v6012, %v6063
      %v6065 = vpop.f32.mrb[0].mxu0
      %6066 = vmatprep.mubr.bf16.mxu0 0
      %6067 = vmatmul.mubr.bf16.gmra.mrb[0].mxu0 %v5842
      %v6068 = vpop.f32.mrb[0].mxu0
      %v6069 = vadd.f32 %v6012, %v6068
      %v6070 = vpop.f32.mrb[0].mxu0
      %v6071 = vpop.f32.mrb[0].mxu0
      %v6072 = vadd.f32 %v6012, %v6071
      %v6073 = vpop.f32.mrb[0].mxu0
      %6074 = vmatprep.mubr.bf16.mxu0 0
      %6075 = vmatmul.mubr.bf16.gmra.mrb[0].mxu0 %v5845
      %v6076 = vpop.f32.mrb[0].mxu0
      %v6077 = vadd.f32 %v6012, %v6076
      %v6078 = vpop.f32.mrb[0].mxu0
      %v6079 = vpop.f32.mrb[0].mxu0
      %v6080 = vadd.f32 %v6012, %v6079
      %v6081 = vpop.f32.mrb[0].mxu0
      %6082 = vmatprep.mubr.bf16.mxu0 0
      %6083 = vmatmul.mubr.bf16.gmra.mrb[0].mxu0 %v5848
      %v6084 = vpop.f32.mrb[0].mxu0
      %v6085 = vadd.f32 %v6012, %v6084
      %v6086 = vpop.f32.mrb[0].mxu0
      %v6087 = vpop.f32.mrb[0].mxu0
      %v6088 = vadd.f32 %v6012, %v6087
      %v6089 = vpop.f32.mrb[0].mxu0
      %6090 = vdwg.mxu0
      %v6091 = vpack.c.bf16 %v5888, %v5885
      %v6092 = vpack.c.bf16 %v5896, %v5893
      %v6093 = vpack.c.bf16 %v5904, %v5901
      %v6094 = vpack.c.bf16 %v5912, %v5909
      %v6095 = vpack.c.bf16 %v5976, %v5973
      %v6096 = vpack.c.bf16 %v5984, %v5981
      %v6097 = vpack.c.bf16 %v5992, %v5989
      %v6098 = vpack.c.bf16 %v6000, %v5997
      %vm6099 = vcmask 31744
      %v6101 = vsel %vm6099, %v6091, 0
      %v6104 = vsel %vm6099, %v6092, 0
      %v6107 = vsel %vm6099, %v6093, 0
      %v6110 = vsel %vm6099, %v6094, 0
      %v6113 = vsel %vm6099, %v6095, 0
      %v6116 = vsel %vm6099, %v6096, 0
      %v6119 = vsel %vm6099, %v6097, 0
      %v6122 = vsel %vm6099, %v6098, 0
      %6124 = vmatprep.subr.bf16.mxu0 0
      %6125 = vmatpush1.bf16.xpose.msra.mxu0 %v6113
      %6126 = vmatprep.subr.bf16.mxu0 0
      %6127 = vmatpush1.bf16.xpose.msra.mxu0 %v6116
      %6128 = vmatprep.subr.bf16.mxu0 0
      %6129 = vmatpush1.bf16.xpose.msra.mxu0 %v6119
      %6130 = vmatprep.subr.bf16.mxu0 0
      %6131 = vmatpush1.bf16.xpose.msra.mxu0 %v6122
      %6132 = vmatprep.subr.bf16.mxu0 0
      %6133 = vmatpush1.bf16.xpose.msra.mxu0 0
      %6134 = vmatprep.subr.bf16.mxu0 0
      %6135 = vmatpush1.bf16.xpose.msra.mxu0 0
      %6136 = vmatprep.subr.bf16.mxu0 0
      %6137 = vmatpush1.bf16.xpose.msra.mxu0 0
      %6138 = vmatprep.subr.bf16.mxu0 0
      %6139 = vmatpush1.bf16.xpose.msra.mxu0 0
      %6140 = vmatprep.subr.bf16.mxu0 0
      %6141 = vmatpush1.bf16.xpose.msra.mxu0 0
      %6142 = vmatprep.subr.bf16.mxu0 0
      %6143 = vmatpush1.bf16.xpose.msra.mxu0 0
      %6144 = vmatprep.subr.bf16.mxu0 0
      %6145 = vmatpush1.bf16.xpose.msra.mxu0 0
      %6146 = vmatprep.subr.bf16.mxu0 0
      %6147 = vmatpush1.bf16.xpose.msra.mxu0 0
      %6148 = vmatprep.subr.bf16.mxu0 0
      %6149 = vmatpush1.bf16.xpose.msra.mxu0 0
      %6150 = vmatprep.subr.bf16.mxu0 0
      %6151 = vmatpush1.bf16.xpose.msra.mxu0 0
      %6152 = vmatprep.subr.bf16.mxu0 0
      %6153 = vmatpush1.bf16.xpose.msra.mxu0 0
      %6154 = vmatprep.subr.bf16.mxu0 0
      %6155 = vmatpush1.bf16.xpose.msra.mxu0 0
      %6156 = vmatprep.mubr.bf16.mxu0 0
      %6157 = vmatmul.mubr.bf16.gmra.mrb[0].mxu0 %v6101
      %v6158 = vpop.f32.mrb[0].mxu0
      %v6159 = vadd.f32 0.0, %v6158
      %v6160 = vpop.f32.mrb[0].mxu0
      %v6161 = vpop.f32.mrb[0].mxu0
      %v6162 = vadd.f32 0.0, %v6161
      %v6163 = vpop.f32.mrb[0].mxu0
      %6164 = vmatprep.mubr.bf16.mxu0 0
      %6165 = vmatmul.mubr.bf16.gmra.mrb[0].mxu0 %v6104
      %v6166 = vpop.f32.mrb[0].mxu0
      %v6167 = vadd.f32 0.0, %v6166
      %v6168 = vpop.f32.mrb[0].mxu0
      %v6169 = vpop.f32.mrb[0].mxu0
      %v6170 = vadd.f32 0.0, %v6169
      %v6171 = vpop.f32.mrb[0].mxu0
      %6172 = vmatprep.mubr.bf16.mxu0 0
      %6173 = vmatmul.mubr.bf16.gmra.mrb[0].mxu0 %v6107
      %v6174 = vpop.f32.mrb[0].mxu0
      %v6175 = vadd.f32 0.0, %v6174
      %v6176 = vpop.f32.mrb[0].mxu0
      %v6177 = vpop.f32.mrb[0].mxu0
      %v6178 = vadd.f32 0.0, %v6177
      %v6179 = vpop.f32.mrb[0].mxu0
      %6180 = vmatprep.mubr.bf16.mxu0 0
      %6181 = vmatmul.mubr.bf16.gmra.mrb[0].mxu0 %v6110
      %v6182 = vpop.f32.mrb[0].mxu0
      %v6183 = vadd.f32 0.0, %v6182
      %v6184 = vpop.f32.mrb[0].mxu0
      %v6185 = vpop.f32.mrb[0].mxu0
      %v6186 = vadd.f32 0.0, %v6185
      %v6187 = vpop.f32.mrb[0].mxu0
      %6188 = vdwg.mxu0
      %vm6189 = vcmask 523264
      %v6190 = vsel %vm6189, %v6159, -inf
      %6191 = vmax.xlane.f32.xlu0 %v6190
      %v6192 = vpop.xlane.xlu0 %6191
      %v6193 = vsel %vm6189, %v6162, -inf
      %6194 = vmax.xlane.f32.xlu0 %v6193
      %v6195 = vpop.xlane.xlu0 %6194
      %v6196 = vsel %vm6189, %v6167, -inf
      %6197 = vmax.xlane.f32.xlu0 %v6196
      %v6198 = vpop.xlane.xlu0 %6197
      %v6199 = vsel %vm6189, %v6170, -inf
      %6200 = vmax.xlane.f32.xlu0 %v6199
      %v6201 = vpop.xlane.xlu0 %6200
      %v6202 = vsel %vm6189, %v6175, -inf
      %6203 = vmax.xlane.f32.xlu0 %v6202
      %v6204 = vpop.xlane.xlu0 %6203
      %v6205 = vsel %vm6189, %v6178, -inf
      %6206 = vmax.xlane.f32.xlu0 %v6205
      %v6207 = vpop.xlane.xlu0 %6206
      %v6208 = vsel %vm6189, %v6183, -inf
      %6209 = vmax.xlane.f32.xlu0 %v6208
      %v6210 = vpop.xlane.xlu0 %6209
      %v6211 = vsel %vm6189, %v6186, -inf
      %6212 = vmax.xlane.f32.xlu0 %v6211
      %v6213 = vpop.xlane.xlu0 %6212
      %v6214 = vsub.f32 %v6159, %v6192
      %v6215 = vsub.f32 %v6162, %v6195
      %v6216 = vsub.f32 %v6167, %v6198
      %v6217 = vsub.f32 %v6170, %v6201
      %v6218 = vsub.f32 %v6175, %v6204
      %v6219 = vsub.f32 %v6178, %v6207
      %v6220 = vsub.f32 %v6183, %v6210
      %v6221 = vsub.f32 %v6186, %v6213
      %v6222 = vmul.f32 %v6214, 1.442695
      %v6223 = vpow.pop %v6222
      %v6224 = vmul.f32 %v6215, 1.442695
      %v6225 = vpow.pop %v6224
      %v6226 = vmul.f32 %v6216, 1.442695
      %v6227 = vpow.pop %v6226
      %v6228 = vmul.f32 %v6217, 1.442695
      %v6229 = vpow.pop %v6228
      %v6230 = vmul.f32 %v6218, 1.442695
      %v6231 = vpow.pop %v6230
      %v6232 = vmul.f32 %v6219, 1.442695
      %v6233 = vpow.pop %v6232
      %v6234 = vmul.f32 %v6220, 1.442695
      %v6235 = vpow.pop %v6234
      %v6236 = vmul.f32 %v6221, 1.442695
      %v6237 = vpow.pop %v6236
      %v6238 = vsel %vm6189, %v6223, 0.0
      %6239 = vadd.xlane.f32.xlu0 %v6238
      %v6240 = vpop.xlane.xlu0 %6239
      %v6241 = vsel %vm6189, %v6225, 0.0
      %6242 = vadd.xlane.f32.xlu0 %v6241
      %v6243 = vpop.xlane.xlu0 %6242
      %v6244 = vsel %vm6189, %v6227, 0.0
      %6245 = vadd.xlane.f32.xlu0 %v6244
      %v6246 = vpop.xlane.xlu0 %6245
      %v6247 = vsel %vm6189, %v6229, 0.0
      %6248 = vadd.xlane.f32.xlu0 %v6247
      %v6249 = vpop.xlane.xlu0 %6248
      %v6250 = vsel %vm6189, %v6231, 0.0
      %6251 = vadd.xlane.f32.xlu0 %v6250
      %v6252 = vpop.xlane.xlu0 %6251
      %v6253 = vsel %vm6189, %v6233, 0.0
      %6254 = vadd.xlane.f32.xlu0 %v6253
      %v6255 = vpop.xlane.xlu0 %6254
      %v6256 = vsel %vm6189, %v6235, 0.0
      %6257 = vadd.xlane.f32.xlu0 %v6256
      %v6258 = vpop.xlane.xlu0 %6257
      %v6259 = vsel %vm6189, %v6237, 0.0
      %6260 = vadd.xlane.f32.xlu0 %v6259
      %v6261 = vpop.xlane.xlu0 %6260
      %v6262 = vrcp.pop %v6240
      %v6263 = vrcp.pop %v6243
      %v6264 = vrcp.pop %v6246
      %v6265 = vrcp.pop %v6249
      %v6266 = vrcp.pop %v6252
      %v6267 = vrcp.pop %v6255
      %v6268 = vrcp.pop %v6258
      %v6269 = vrcp.pop %v6261
      %v6270 = vmul.f32 %v6223, %v6262
      %v6271 = vmul.f32 %v6225, %v6263
      %v6272 = vmul.f32 %v6227, %v6264
      %v6273 = vmul.f32 %v6229, %v6265
      %v6274 = vmul.f32 %v6231, %v6266
      %v6275 = vmul.f32 %v6233, %v6267
      %v6276 = vmul.f32 %v6235, %v6268
      %v6277 = vmul.f32 %v6237, %v6269
      %v6278 = vpack.c.bf16 %v6271, %v6270
      %v6279 = vpack.c.bf16 %v6273, %v6272
      %v6280 = vpack.c.bf16 %v6275, %v6274
      %v6281 = vpack.c.bf16 %v6277, %v6276
      %v6282 = vpack.c.bf16 %v6064, %v6061
      %v6283 = vpack.c.bf16 %v6072, %v6069
      %v6284 = vpack.c.bf16 %v6080, %v6077
      %v6285 = vpack.c.bf16 %v6088, %v6085
      %v6287 = vsel %vm6189, %v6278, 0
      %v6290 = vsel %vm6189, %v6279, 0
      %v6293 = vsel %vm6189, %v6280, 0
      %v6296 = vsel %vm6189, %v6281, 0
      %6298 = vmatprep.subr.bf16.mxu0 0
      %6299 = vmatpush1.bf16.msra.mxu0 %v6282
      %6300 = vmatprep.subr.bf16.mxu0 0
      %6301 = vmatpush1.bf16.msra.mxu0 %v6283
      %6302 = vmatprep.subr.bf16.mxu0 0
      %6303 = vmatpush1.bf16.msra.mxu0 %v6284
      %6304 = vmatprep.subr.bf16.mxu0 0
      %6305 = vmatpush1.bf16.msra.mxu0 %v6285
      %6306 = vmatprep.subr.bf16.mxu0 0
      %6307 = vmatpush1.bf16.msra.mxu0 0
      %6308 = vmatprep.subr.bf16.mxu0 0
      %6309 = vmatpush1.bf16.msra.mxu0 0
      %6310 = vmatprep.subr.bf16.mxu0 0
      %6311 = vmatpush1.bf16.msra.mxu0 0
      %6312 = vmatprep.subr.bf16.mxu0 0
      %6313 = vmatpush1.bf16.msra.mxu0 0
      %6314 = vmatprep.subr.bf16.mxu0 0
      %6315 = vmatpush1.bf16.msra.mxu0 0
      %6316 = vmatprep.subr.bf16.mxu0 0
      %6317 = vmatpush1.bf16.msra.mxu0 0
      %6318 = vmatprep.subr.bf16.mxu0 0
      %6319 = vmatpush1.bf16.msra.mxu0 0
      %6320 = vmatprep.subr.bf16.mxu0 0
      %6321 = vmatpush1.bf16.msra.mxu0 0
      %6322 = vmatprep.subr.bf16.mxu0 0
      %6323 = vmatpush1.bf16.msra.mxu0 0
      %6324 = vmatprep.subr.bf16.mxu0 0
      %6325 = vmatpush1.bf16.msra.mxu0 0
      %6326 = vmatprep.subr.bf16.mxu0 0
      %6327 = vmatpush1.bf16.msra.mxu0 0
      %6328 = vmatprep.subr.bf16.mxu0 0
      %6329 = vmatpush1.bf16.msra.mxu0 0
      %6330 = vmatprep.mubr.bf16.mxu0 0
      %6331 = vmatmul.mubr.bf16.gmra.mrb[0].mxu0 %v6287
      %v6332 = vpop.f32.mrb[0].mxu0
      %v6333 = vadd.f32 0.0, %v6332
      %v6334 = vpop.f32.mrb[0].mxu0
      %v6335 = vpop.f32.mrb[0].mxu0
      %v6336 = vadd.f32 0.0, %v6335
      %v6337 = vpop.f32.mrb[0].mxu0
      %6338 = vmatprep.mubr.bf16.mxu0 0
      %6339 = vmatmul.mubr.bf16.gmra.mrb[0].mxu0 %v6290
      %v6340 = vpop.f32.mrb[0].mxu0
      %v6341 = vadd.f32 0.0, %v6340
      %v6342 = vpop.f32.mrb[0].mxu0
      %v6343 = vpop.f32.mrb[0].mxu0
      %v6344 = vadd.f32 0.0, %v6343
      %v6345 = vpop.f32.mrb[0].mxu0
      %6346 = vmatprep.mubr.bf16.mxu0 0
      %6347 = vmatmul.mubr.bf16.gmra.mrb[0].mxu0 %v6293
      %v6348 = vpop.f32.mrb[0].mxu0
      %v6349 = vadd.f32 0.0, %v6348
      %v6350 = vpop.f32.mrb[0].mxu0
      %v6351 = vpop.f32.mrb[0].mxu0
      %v6352 = vadd.f32 0.0, %v6351
      %v6353 = vpop.f32.mrb[0].mxu0
      %6354 = vmatprep.mubr.bf16.mxu0 0
      %6355 = vmatmul.mubr.bf16.gmra.mrb[0].mxu0 %v6296
      %v6356 = vpop.f32.mrb[0].mxu0
      %v6357 = vadd.f32 0.0, %v6356
      %v6358 = vpop.f32.mrb[0].mxu0
      %v6359 = vpop.f32.mrb[0].mxu0
      %v6360 = vadd.f32 0.0, %v6359
      %v6361 = vpop.f32.mrb[0].mxu0
      %6362 = vdwg.mxu0
      %v6363 = vld [vmem:[#allocation7] sm:$0x1]
      %s6364 = vtos %v6363
      %v6365 = vstv %s6364
      %v6366 = vmul.f32 %v6365, %v6333
      %v6367 = vmul.f32 %v6365, %v6336
      %v6368 = vmul.f32 %v6365, %v6341
      %v6369 = vmul.f32 %v6365, %v6344
      %v6370 = vmul.f32 %v6365, %v6349
      %v6371 = vmul.f32 %v6365, %v6352
      %v6372 = vmul.f32 %v6365, %v6357
      %v6373 = vmul.f32 %v6365, %v6360
      %v6374 = vadd.f32 %v6366, %v5803
      %v6375 = vadd.f32 %v6367, %v5804
      %v6376 = vadd.f32 %v6368, %v5805
      %v6377 = vadd.f32 %v6369, %v5806
      %v6378 = vadd.f32 %v6370, %v5807
      %v6379 = vadd.f32 %v6371, %v5808
      %v6380 = vadd.f32 %v6372, %v5809
      %v6381 = vadd.f32 %v6373, %v5810
      %6382 = vst [vmem:[#allocation4] sm:$0xff] 0.0
      %6383 = vst [vmem:[#allocation4 + $0x8] sm:$0xff] 0.0
      %6384 = vst.msk [vmem:[#allocation4 + $0x10] sm:$0xff] %vm6189, 0.0
      %6385 = vst [vmem:[#allocation4 + $0x18] sm:$0x3] 0.0
      %6386 = vst [vmem:[#allocation4 + $0x20] sm:$0x3] 0.0
      %vm6387 = vcmask 517120
      %6388 = vst.msk [vmem:[#allocation4 + $0x28] sm:$0x3] %vm6387, 0.0
      %v6397 = vrot.slane %v6374, 7
      %v6398 = vrot.slane %v6375, 6
      %vm6399 = vcmask 1042434
      %v6400 = vsel %vm6399, %v6398, %v6397
      %v6401 = vrot.slane %v6376, 5
      %vm6402 = vcmask 1043459
      %v6403 = vsel %vm6402, %v6401, %v6400
      %v6404 = vrot.slane %v6377, 4
      %vm6405 = vcmask 1044484
      %v6406 = vsel %vm6405, %v6404, %v6403
      %v6407 = vrot.slane %v6378, 3
      %vm6408 = vcmask 1045509
      %v6409 = vsel %vm6408, %v6407, %v6406
      %v6410 = vrot.slane %v6379, 2
      %vm6411 = vcmask 1046534
      %v6412 = vsel %vm6411, %v6410, %v6409
      %v6413 = vrot.slane %v6380, 1
      %vm6414 = vcmask 1047559
      %v6415 = vsel %vm6414, %v6413, %v6412
      %6416 = vrot.lane.b32.xlu0 %v6415, 32
      %v6417 = vpop.permute.xlu0 %6416
      %6418 = vrot.lane.b32.xlu0 %v6381, 32
      %v6419 = vpop.permute.xlu0 %6418
      %vm6422 = vcmask 523521
      %6423 = vst.msk [vmem:[#allocation4] sm:$0xfe] %vm6422, %v6417
      %vm6424 = vcmask 516352
      %6425 = vst.msk [vmem:[#allocation4 + $0x18] sm:$0x1] %vm6424, %v6419
      %v6426 = vrot.slane %v6375, 7
      %v6427 = vsel %vm6399, %v6426, %v6374
      %v6428 = vrot.slane %v6376, 6
      %v6429 = vsel %vm6402, %v6428, %v6427
      %v6430 = vrot.slane %v6377, 5
      %v6431 = vsel %vm6405, %v6430, %v6429
      %v6432 = vrot.slane %v6378, 4
      %v6433 = vsel %vm6408, %v6432, %v6431
      %v6434 = vrot.slane %v6379, 3
      %v6435 = vsel %vm6411, %v6434, %v6433
      %v6436 = vrot.slane %v6380, 2
      %v6437 = vsel %vm6414, %v6436, %v6435
      %v6438 = vrot.slane %v6381, 1
      %6439 = vrot.lane.b32.xlu0 %v6437, 64
      %v6440 = vpop.permute.xlu0 %6439
      %6441 = vrot.lane.b32.xlu0 %v6438, 64
      %v6442 = vpop.permute.xlu0 %6441
      %vm6445 = vcmask 785921
      %6446 = vst.msk [vmem:[#allocation4] sm:$0xfe] %vm6445, %v6440
      %vm6447 = vcmask 778752
      %6448 = vst.msk [vmem:[#allocation4 + $0x18] sm:$0x1] %vm6447, %v6442
      %v6449 = vrot.slane %v6374, 1
      %v6450 = vsel %vm6399, %v6375, %v6449
      %v6451 = vrot.slane %v6376, 7
      %v6452 = vsel %vm6402, %v6451, %v6450
      %v6453 = vrot.slane %v6377, 6
      %v6454 = vsel %vm6405, %v6453, %v6452
      %v6455 = vrot.slane %v6378, 5
      %v6456 = vsel %vm6408, %v6455, %v6454
      %v6457 = vrot.slane %v6379, 4
      %v6458 = vsel %vm6411, %v6457, %v6456
      %v6459 = vrot.slane %v6380, 3
      %v6460 = vsel %vm6414, %v6459, %v6458
      %v6461 = vrot.slane %v6381, 2
      %6462 = vrot.lane.b32.xlu0 %v6460, 96
      %v6463 = vpop.permute.xlu0 %6462
      %6464 = vrot.lane.b32.xlu0 %v6461, 96
      %v6465 = vpop.permute.xlu0 %6464
      %vm6468 = vcmask 1048321
      %6469 = vst.msk [vmem:[#allocation4] sm:$0xfe] %vm6468, %v6463
      %vm6470 = vcmask 1041152
      %6471 = vst.msk [vmem:[#allocation4 + $0x18] sm:$0x1] %vm6470, %v6465
      %v6472 = vrot.slane %v6374, 2
      %v6473 = vrot.slane %v6375, 1
      %v6474 = vsel %vm6399, %v6473, %v6472
      %v6475 = vsel %vm6402, %v6376, %v6474
      %v6476 = vrot.slane %v6377, 7
      %v6477 = vsel %vm6405, %v6476, %v6475
      %v6478 = vrot.slane %v6378, 6
      %v6479 = vsel %vm6408, %v6478, %v6477
      %v6480 = vrot.slane %v6379, 5
      %v6481 = vsel %vm6411, %v6480, %v6479
      %v6482 = vrot.slane %v6380, 4
      %v6483 = vsel %vm6414, %v6482, %v6481
      %v6484 = vrot.slane %v6381, 3
      %vm6487 = vcmask 261121
      %6488 = vst.msk [vmem:[#allocation4 + $0x8] sm:$0xfe] %vm6487, %v6483
      %6489 = vst.msk [vmem:[#allocation4 + $0x20] sm:$0x1] %vm5472, %v6484
      %v6490 = vrot.slane %v6374, 3
      %v6491 = vrot.slane %v6375, 2
      %v6492 = vsel %vm6399, %v6491, %v6490
      %v6493 = vrot.slane %v6376, 1
      %v6494 = vsel %vm6402, %v6493, %v6492
      %v6495 = vsel %vm6405, %v6377, %v6494
      %v6496 = vrot.slane %v6378, 7
      %v6497 = vsel %vm6408, %v6496, %v6495
      %v6498 = vrot.slane %v6379, 6
      %v6499 = vsel %vm6411, %v6498, %v6497
      %v6500 = vrot.slane %v6380, 5
      %v6501 = vsel %vm6414, %v6500, %v6499
      %v6502 = vrot.slane %v6381, 4
      %6503 = vrot.lane.b32.xlu0 %v6501, 32
      %v6504 = vpop.permute.xlu0 %6503
      %6505 = vrot.lane.b32.xlu0 %v6502, 32
      %v6506 = vpop.permute.xlu0 %6505
      %6509 = vst.msk [vmem:[#allocation4 + $0x8] sm:$0xfe] %vm6422, %v6504
      %6510 = vst.msk [vmem:[#allocation4 + $0x20] sm:$0x1] %vm6424, %v6506
      %v6511 = vrot.slane %v6374, 4
      %v6512 = vrot.slane %v6375, 3
      %v6513 = vsel %vm6399, %v6512, %v6511
      %v6514 = vrot.slane %v6376, 2
      %v6515 = vsel %vm6402, %v6514, %v6513
      %v6516 = vrot.slane %v6377, 1
      %v6517 = vsel %vm6405, %v6516, %v6515
      %v6518 = vsel %vm6408, %v6378, %v6517
      %v6519 = vrot.slane %v6379, 7
      %v6520 = vsel %vm6411, %v6519, %v6518
      %v6521 = vrot.slane %v6380, 6
      %v6522 = vsel %vm6414, %v6521, %v6520
      %v6523 = vrot.slane %v6381, 5
      %6524 = vrot.lane.b32.xlu0 %v6522, 64
      %v6525 = vpop.permute.xlu0 %6524
      %6526 = vrot.lane.b32.xlu0 %v6523, 64
      %v6527 = vpop.permute.xlu0 %6526
      %6530 = vst.msk [vmem:[#allocation4 + $0x8] sm:$0xfe] %vm6445, %v6525
      %6531 = vst.msk [vmem:[#allocation4 + $0x20] sm:$0x1] %vm6447, %v6527
      %v6532 = vrot.slane %v6374, 5
      %v6533 = vrot.slane %v6375, 4
      %v6534 = vsel %vm6399, %v6533, %v6532
      %v6535 = vrot.slane %v6376, 3
      %v6536 = vsel %vm6402, %v6535, %v6534
      %v6537 = vrot.slane %v6377, 2
      %v6538 = vsel %vm6405, %v6537, %v6536
      %v6539 = vrot.slane %v6378, 1
      %v6540 = vsel %vm6408, %v6539, %v6538
      %v6541 = vsel %vm6411, %v6379, %v6540
      %v6542 = vrot.slane %v6380, 7
      %v6543 = vsel %vm6414, %v6542, %v6541
      %v6544 = vrot.slane %v6381, 6
      %6545 = vrot.lane.b32.xlu0 %v6543, 96
      %v6546 = vpop.permute.xlu0 %6545
      %6547 = vrot.lane.b32.xlu0 %v6544, 96
      %v6548 = vpop.permute.xlu0 %6547
      %6551 = vst.msk [vmem:[#allocation4 + $0x8] sm:$0xfe] %vm6468, %v6546
      %6552 = vst.msk [vmem:[#allocation4 + $0x20] sm:$0x1] %vm6470, %v6548
      %v6553 = vrot.slane %v6374, 6
      %v6554 = vrot.slane %v6375, 5
      %v6555 = vsel %vm6399, %v6554, %v6553
      %v6556 = vrot.slane %v6376, 4
      %v6557 = vsel %vm6402, %v6556, %v6555
      %v6558 = vrot.slane %v6377, 3
      %v6559 = vsel %vm6405, %v6558, %v6557
      %v6560 = vrot.slane %v6378, 2
      %v6561 = vsel %vm6408, %v6560, %v6559
      %v6562 = vrot.slane %v6379, 1
      %v6563 = vsel %vm6411, %v6562, %v6561
      %v6564 = vsel %vm6414, %v6380, %v6563
      %v6565 = vrot.slane %v6381, 7
      %6568 = vst.msk [vmem:[#allocation4 + $0x10] sm:$0xfe] %vm6487, %v6564
      %6569 = vst.msk [vmem:[#allocation4 + $0x28] sm:$0x1] %vm5472, %v6565
      %v6570 = vld [vmem:[#allocation4] sm:$0xff]
      %v6571 = vld [vmem:[#allocation4 + $0x8] sm:$0xff]
      %v6572 = vld [vmem:[#allocation4 + $0x10] sm:$0xff]
      %v6573 = vld [vmem:[#allocation4 + $0x18] sm:$0x3]
      %v6574 = vld [vmem:[#allocation4 + $0x20] sm:$0x3]
      %v6575 = vld [vmem:[#allocation4 + $0x28] sm:$0x3]
      %v6576 = vpack.c.bf16 %v6573, %v6570
      %v6577 = vpack.c.bf16 %v6574, %v6571
      %v6578 = vpack.c.bf16 %v6575, %v6572
      %vm6579 = vcmask 80896
      %v6580 = vsel %vm6579, %v3821, 0
      %vm6582 = vcmask 1044480
      %v6584 = vsel %vm6582, %v6576, 0
      %v6587 = vsel %vm6582, %v6577, 0
      %v6590 = vsel %vm6582, %v6578, 0
      %6592 = vmatprep.subr.bf16.mxu0 %v6587
      %6593 = vmatpush1.bf16.msra.mxu0 %v6584
      %6594 = vmatprep.subr.bf16.mxu0 0
      %6595 = vmatpush1.bf16.msra.mxu0 0
      %6596 = vmatprep.subr.bf16.mxu0 0
      %6597 = vmatpush1.bf16.msra.mxu0 0
      %6598 = vmatprep.subr.bf16.mxu0 0
      %6599 = vmatpush1.bf16.msra.mxu0 0
      %6600 = vmatprep.subr.bf16.mxu0 0
      %6601 = vmatpush1.bf16.msra.mxu0 0
      %6602 = vmatprep.subr.bf16.mxu0 0
      %6603 = vmatpush1.bf16.msra.mxu0 0
      %6604 = vmatprep.subr.bf16.mxu0 0
      %6605 = vmatpush1.bf16.msra.mxu0 0
      %6606 = vmatprep.subr.bf16.mxu0 0
      %6607 = vmatpush1.bf16.msra.mxu0 0
      %6608 = vmatprep.subr.bf16.mxu0 0
      %6609 = vmatpush1.bf16.msra.mxu0 0
      %6610 = vmatprep.subr.bf16.mxu0 0
      %6611 = vmatpush1.bf16.msra.mxu0 0
      %6612 = vmatprep.subr.bf16.mxu0 0
      %6613 = vmatpush1.bf16.msra.mxu0 0
      %6614 = vmatprep.subr.bf16.mxu0 0
      %6615 = vmatpush1.bf16.msra.mxu0 0
      %6616 = vmatprep.subr.bf16.mxu0 0
      %6617 = vmatpush1.bf16.msra.mxu0 0
      %6618 = vmatprep.subr.bf16.mxu0 0
      %6619 = vmatpush1.bf16.msra.mxu0 0
      %6620 = vmatprep.subr.bf16.mxu0 0
      %6621 = vmatpush1.bf16.msra.mxu0 0
      %6622 = vmatprep.subr.bf16.mxu0 0
      %6623 = vmatpush1.bf16.msra.mxu0 0
      %6624 = vmatprep.mubr.bf16.mxu0 0
      %6625 = vmatmul.mubr.bf16.gmra.mrb[0].mxu0 %v6580
      %v6626 = vpop.f32.mrb[0].mxu0
      %v6627 = vadd.f32 0.0, %v6626
      %v6628 = vpop.f32.mrb[0].mxu0
      %v6629 = vadd.f32 0.0, %v6628
      %v6630 = vpop.f32.mrb[0].mxu0
      %v6631 = vpop.f32.mrb[0].mxu0
      %6632 = vdwg.mxu0
      %6633 = vmatprep.subr.bf16.mxu0 0
      %6634 = vmatpush1.bf16.msra.mxu0 %v6590
      %6635 = vmatprep.subr.bf16.mxu0 0
      %6636 = vmatpush1.bf16.msra.mxu0 0
      %6637 = vmatprep.subr.bf16.mxu0 0
      %6638 = vmatpush1.bf16.msra.mxu0 0
      %6639 = vmatprep.subr.bf16.mxu0 0
      %6640 = vmatpush1.bf16.msra.mxu0 0
      %6641 = vmatprep.subr.bf16.mxu0 0
      %6642 = vmatpush1.bf16.msra.mxu0 0
      %6643 = vmatprep.subr.bf16.mxu0 0
      %6644 = vmatpush1.bf16.msra.mxu0 0
      %6645 = vmatprep.subr.bf16.mxu0 0
      %6646 = vmatpush1.bf16.msra.mxu0 0
      %6647 = vmatprep.subr.bf16.mxu0 0
      %6648 = vmatpush1.bf16.msra.mxu0 0
      %6649 = vmatprep.subr.bf16.mxu0 0
      %6650 = vmatpush1.bf16.msra.mxu0 0
      %6651 = vmatprep.subr.bf16.mxu0 0
      %6652 = vmatpush1.bf16.msra.mxu0 0
      %6653 = vmatprep.subr.bf16.mxu0 0
      %6654 = vmatpush1.bf16.msra.mxu0 0
      %6655 = vmatprep.subr.bf16.mxu0 0
      %6656 = vmatpush1.bf16.msra.mxu0 0
      %6657 = vmatprep.subr.bf16.mxu0 0
      %6658 = vmatpush1.bf16.msra.mxu0 0
      %6659 = vmatprep.subr.bf16.mxu0 0
      %6660 = vmatpush1.bf16.msra.mxu0 0
      %6661 = vmatprep.subr.bf16.mxu0 0
      %6662 = vmatpush1.bf16.msra.mxu0 0
      %6663 = vmatprep.subr.bf16.mxu0 0
      %6664 = vmatpush1.bf16.msra.mxu0 0
      %6665 = vmatprep.mubr.bf16.mxu0 0
      %6666 = vmatmul.mubr.bf16.gmra.mrb[0].mxu0 %v6580
      %v6667 = vpop.f32.mrb[0].mxu0
      %v6668 = vadd.f32 0.0, %v6667
      %v6669 = vpop.f32.mrb[0].mxu0
      %v6670 = vpop.f32.mrb[0].mxu0
      %v6671 = vpop.f32.mrb[0].mxu0
      %6672 = vdwg.mxu0
      %v6673 = vpack.c.bf16 %v6627, %v6627
      %v6674 = vpack.c.bf16 %v6629, %v6629
      %v6675 = vpack.c.bf16 %v6668, %v6668
      %v6676 = vld [vmem:[%s7] sm:$0xff]
      %v6677 = vld [vmem:[%s7 + $0x8] sm:$0xff]
      %v6678 = vld [vmem:[%s7 + $0x10] sm:$0xff]
      %v6679 = vld [vmem:[%s7 + $0x18] sm:$0xff]
      %v6680 = vld [vmem:[%s7 + $0x20] sm:$0xff]
      %v6681 = vld [vmem:[%s7 + $0x28] sm:$0xff]
      %v6682 = vld [vmem:[%s7 + $0x30] sm:$0xff]
      %v6683 = vld [vmem:[%s7 + $0x38] sm:$0xff]
      %v6684 = vld [vmem:[%s7 + $0x40] sm:$0xff]
      %v6685 = vld [vmem:[%s7 + $0x48] sm:$0xff]
      %v6686 = vld [vmem:[%s7 + $0x50] sm:$0xff]
      %v6687 = vld [vmem:[%s7 + $0x58] sm:$0xff]
      %v6688 = vld [vmem:[%s7 + $0x60] sm:$0xff]
      %v6689 = vld [vmem:[%s7 + $0x68] sm:$0xff]
      %v6690 = vld [vmem:[%s7 + $0x70] sm:$0xff]
      %v6691 = vld [vmem:[%s7 + $0x78] sm:$0xff]
      %v6692 = vld [vmem:[%s7 + $0x80] sm:$0xff]
      %v6693 = vld [vmem:[%s7 + $0x88] sm:$0xff]
      %v6694 = vld [vmem:[%s7 + $0x90] sm:$0xff]
      %v6695 = vld [vmem:[%s7 + $0x98] sm:$0xff]
      %v6696 = vld [vmem:[%s7 + $0xa0] sm:$0xff]
      %v6697 = vld [vmem:[%s7 + $0xa8] sm:$0xff]
      %v6698 = vld [vmem:[%s7 + $0xb0] sm:$0xff]
      %v6699 = vld [vmem:[%s7 + $0xb8] sm:$0xff]
      %v6700 = vld [vmem:[%s7 + $0xc0] sm:$0xff]
      %v6701 = vld [vmem:[%s7 + $0xc8] sm:$0xff]
      %v6702 = vld [vmem:[%s7 + $0xd0] sm:$0xff]
      %v6703 = vld [vmem:[%s7 + $0xd8] sm:$0xff]
      %v6704 = vld [vmem:[%s7 + $0xe0] sm:$0xff]
      %v6705 = vld [vmem:[%s7 + $0xe8] sm:$0xff]
      %v6706 = vld [vmem:[%s7 + $0xf0] sm:$0xff]
      %v6707 = vld [vmem:[%s7 + $0xf8] sm:$0xff]
      %v6708 = vld [vmem:[%s7 + $0x100] sm:$0xff]
      %v6709 = vld [vmem:[%s7 + $0x108] sm:$0xff]
      %v6710 = vld [vmem:[%s7 + $0x110] sm:$0xff]
      %v6711 = vld [vmem:[%s7 + $0x118] sm:$0xff]
      %v6712 = vld [vmem:[%s7 + $0x120] sm:$0xff]
      %v6713 = vld [vmem:[%s7 + $0x128] sm:$0xff]
      %v6714 = vld [vmem:[%s7 + $0x130] sm:$0xff]
      %v6715 = vld [vmem:[%s7 + $0x138] sm:$0xff]
      %v6716 = vsel %vm6579, %v3955, 0
      %6718 = vmatprep.subr.bf16.mxu0 %v6587
      %6719 = vmatpush1.bf16.msra.mxu0 %v6584
      %6720 = vmatprep.subr.bf16.mxu0 0
      %6721 = vmatpush1.bf16.msra.mxu0 0
      %6722 = vmatprep.subr.bf16.mxu0 0
      %6723 = vmatpush1.bf16.msra.mxu0 0
      %6724 = vmatprep.subr.bf16.mxu0 0
      %6725 = vmatpush1.bf16.msra.mxu0 0
      %6726 = vmatprep.subr.bf16.mxu0 0
      %6727 = vmatpush1.bf16.msra.mxu0 0
      %6728 = vmatprep.subr.bf16.mxu0 0
      %6729 = vmatpush1.bf16.msra.mxu0 0
      %6730 = vmatprep.subr.bf16.mxu0 0
      %6731 = vmatpush1.bf16.msra.mxu0 0
      %6732 = vmatprep.subr.bf16.mxu0 0
      %6733 = vmatpush1.bf16.msra.mxu0 0
      %6734 = vmatprep.subr.bf16.mxu0 0
      %6735 = vmatpush1.bf16.msra.mxu0 0
      %6736 = vmatprep.subr.bf16.mxu0 0
      %6737 = vmatpush1.bf16.msra.mxu0 0
      %6738 = vmatprep.subr.bf16.mxu0 0
      %6739 = vmatpush1.bf16.msra.mxu0 0
      %6740 = vmatprep.subr.bf16.mxu0 0
      %6741 = vmatpush1.bf16.msra.mxu0 0
      %6742 = vmatprep.subr.bf16.mxu0 0
      %6743 = vmatpush1.bf16.msra.mxu0 0
      %6744 = vmatprep.subr.bf16.mxu0 0
      %6745 = vmatpush1.bf16.msra.mxu0 0
      %6746 = vmatprep.subr.bf16.mxu0 0
      %6747 = vmatpush1.bf16.msra.mxu0 0
      %6748 = vmatprep.subr.bf16.mxu0 0
      %6749 = vmatpush1.bf16.msra.mxu0 0
      %6750 = vmatprep.mubr.bf16.mxu0 0
      %6751 = vmatmul.mubr.bf16.gmra.mrb[0].mxu0 %v6716
      %v6752 = vpop.f32.mrb[0].mxu0
      %v6753 = vadd.f32 0.0, %v6752
      %v6754 = vpop.f32.mrb[0].mxu0
      %v6755 = vadd.f32 0.0, %v6754
      %v6756 = vpop.f32.mrb[0].mxu0
      %v6757 = vpop.f32.mrb[0].mxu0
      %6758 = vdwg.mxu0
      %6759 = vmatprep.subr.bf16.mxu0 0
      %6760 = vmatpush1.bf16.msra.mxu0 %v6590
      %6761 = vmatprep.subr.bf16.mxu0 0
      %6762 = vmatpush1.bf16.msra.mxu0 0
      %6763 = vmatprep.subr.bf16.mxu0 0
      %6764 = vmatpush1.bf16.msra.mxu0 0
      %6765 = vmatprep.subr.bf16.mxu0 0
      %6766 = vmatpush1.bf16.msra.mxu0 0
      %6767 = vmatprep.subr.bf16.mxu0 0
      %6768 = vmatpush1.bf16.msra.mxu0 0
      %6769 = vmatprep.subr.bf16.mxu0 0
      %6770 = vmatpush1.bf16.msra.mxu0 0
      %6771 = vmatprep.subr.bf16.mxu0 0
      %6772 = vmatpush1.bf16.msra.mxu0 0
      %6773 = vmatprep.subr.bf16.mxu0 0
      %6774 = vmatpush1.bf16.msra.mxu0 0
      %6775 = vmatprep.subr.bf16.mxu0 0
      %6776 = vmatpush1.bf16.msra.mxu0 0
      %6777 = vmatprep.subr.bf16.mxu0 0
      %6778 = vmatpush1.bf16.msra.mxu0 0
      %6779 = vmatprep.subr.bf16.mxu0 0
      %6780 = vmatpush1.bf16.msra.mxu0 0
      %6781 = vmatprep.subr.bf16.mxu0 0
      %6782 = vmatpush1.bf16.msra.mxu0 0
      %6783 = vmatprep.subr.bf16.mxu0 0
      %6784 = vmatpush1.bf16.msra.mxu0 0
      %6785 = vmatprep.subr.bf16.mxu0 0
      %6786 = vmatpush1.bf16.msra.mxu0 0
      %6787 = vmatprep.subr.bf16.mxu0 0
      %6788 = vmatpush1.bf16.msra.mxu0 0
      %6789 = vmatprep.subr.bf16.mxu0 0
      %6790 = vmatpush1.bf16.msra.mxu0 0
      %6791 = vmatprep.mubr.bf16.mxu0 0
      %6792 = vmatmul.mubr.bf16.gmra.mrb[0].mxu0 %v6716
      %v6793 = vpop.f32.mrb[0].mxu0
      %v6794 = vadd.f32 0.0, %v6793
      %v6795 = vpop.f32.mrb[0].mxu0
      %v6796 = vpop.f32.mrb[0].mxu0
      %v6797 = vpop.f32.mrb[0].mxu0
      %6798 = vdwg.mxu0
      %v6799 = vpack.c.bf16 %v6753, %v6753
      %v6800 = vpack.c.bf16 %v6755, %v6755
      %v6801 = vpack.c.bf16 %v6794, %v6794
      %s6802 = scalar_lea.vmem %s7, 320
      %v6803 = vld [vmem:[%s6802] sm:$0xff]
      %v6804 = vld [vmem:[%s6802 + $0x8] sm:$0xff]
      %v6805 = vld [vmem:[%s6802 + $0x10] sm:$0xff]
      %v6806 = vld [vmem:[%s6802 + $0x18] sm:$0xff]
      %v6807 = vld [vmem:[%s6802 + $0x20] sm:$0xff]
      %v6808 = vld [vmem:[%s6802 + $0x28] sm:$0xff]
      %v6809 = vld [vmem:[%s6802 + $0x30] sm:$0xff]
      %v6810 = vld [vmem:[%s6802 + $0x38] sm:$0xff]
      %v6811 = vld [vmem:[%s6802 + $0x40] sm:$0xff]
      %v6812 = vld [vmem:[%s6802 + $0x48] sm:$0xff]
      %v6813 = vld [vmem:[%s6802 + $0x50] sm:$0xff]
      %v6814 = vld [vmem:[%s6802 + $0x58] sm:$0xff]
      %v6815 = vld [vmem:[%s6802 + $0x60] sm:$0xff]
      %v6816 = vld [vmem:[%s6802 + $0x68] sm:$0xff]
      %v6817 = vld [vmem:[%s6802 + $0x70] sm:$0xff]
      %v6818 = vld [vmem:[%s6802 + $0x78] sm:$0xff]
      %v6819 = vld [vmem:[%s6802 + $0x80] sm:$0xff]
      %v6820 = vld [vmem:[%s6802 + $0x88] sm:$0xff]
      %v6821 = vld [vmem:[%s6802 + $0x90] sm:$0xff]
      %v6822 = vld [vmem:[%s6802 + $0x98] sm:$0xff]
      %v6823 = vld [vmem:[%s6802 + $0xa0] sm:$0xff]
      %v6824 = vld [vmem:[%s6802 + $0xa8] sm:$0xff]
      %v6825 = vld [vmem:[%s6802 + $0xb0] sm:$0xff]
      %v6826 = vld [vmem:[%s6802 + $0xb8] sm:$0xff]
      %v6827 = vld [vmem:[%s6802 + $0xc0] sm:$0xff]
      %v6828 = vld [vmem:[%s6802 + $0xc8] sm:$0xff]
      %v6829 = vld [vmem:[%s6802 + $0xd0] sm:$0xff]
      %v6830 = vld [vmem:[%s6802 + $0xd8] sm:$0xff]
      %v6831 = vld [vmem:[%s6802 + $0xe0] sm:$0xff]
      %v6832 = vld [vmem:[%s6802 + $0xe8] sm:$0xff]
      %v6833 = vld [vmem:[%s6802 + $0xf0] sm:$0xff]
      %v6834 = vld [vmem:[%s6802 + $0xf8] sm:$0xff]
      %v6835 = vld [vmem:[%s6802 + $0x100] sm:$0xff]
      %v6836 = vld [vmem:[%s6802 + $0x108] sm:$0xff]
      %v6837 = vld [vmem:[%s6802 + $0x110] sm:$0xff]
      %v6838 = vld [vmem:[%s6802 + $0x118] sm:$0xff]
      %v6839 = vld [vmem:[%s6802 + $0x120] sm:$0xff]
      %v6840 = vld [vmem:[%s6802 + $0x128] sm:$0xff]
      %v6841 = vld [vmem:[%s6802 + $0x130] sm:$0xff]
      %v6842 = vld [vmem:[%s6802 + $0x138] sm:$0xff]
      %v6883 = vunpack.c.l.b16 %v6803
      %v6884 = vunpack.c.h.b16 %v6803
      %v6885 = vunpack.c.l.b16 %v6804
      %v6886 = vunpack.c.h.b16 %v6804
      %v6887 = vunpack.c.l.b16 %v6805
      %v6888 = vunpack.c.h.b16 %v6805
      %v6889 = vunpack.c.l.b16 %v6806
      %v6890 = vunpack.c.h.b16 %v6806
      %v6891 = vunpack.c.l.b16 %v6807
      %v6892 = vunpack.c.h.b16 %v6807
      %v6893 = vunpack.c.l.b16 %v6808
      %v6894 = vunpack.c.h.b16 %v6808
      %v6895 = vunpack.c.l.b16 %v6809
      %v6896 = vunpack.c.h.b16 %v6809
      %v6897 = vunpack.c.l.b16 %v6810
      %v6898 = vunpack.c.h.b16 %v6810
      %v6899 = vunpack.c.l.b16 %v6811
      %v6900 = vunpack.c.h.b16 %v6811
      %v6901 = vunpack.c.l.b16 %v6812
      %v6902 = vunpack.c.h.b16 %v6812
      %v6903 = vunpack.c.l.b16 %v6813
      %v6904 = vunpack.c.h.b16 %v6813
      %v6905 = vunpack.c.l.b16 %v6814
      %v6906 = vunpack.c.h.b16 %v6814
      %v6907 = vunpack.c.l.b16 %v6815
      %v6908 = vunpack.c.h.b16 %v6815
      %v6909 = vunpack.c.l.b16 %v6816
      %v6910 = vunpack.c.h.b16 %v6816
      %v6911 = vunpack.c.l.b16 %v6817
      %v6912 = vunpack.c.h.b16 %v6817
      %v6913 = vunpack.c.l.b16 %v6818
      %v6914 = vunpack.c.h.b16 %v6818
      %v6915 = vunpack.c.l.b16 %v6819
      %v6916 = vunpack.c.h.b16 %v6819
      %v6917 = vunpack.c.l.b16 %v6820
      %v6918 = vunpack.c.h.b16 %v6820
      %v6919 = vunpack.c.l.b16 %v6821
      %v6920 = vunpack.c.h.b16 %v6821
      %v6921 = vunpack.c.l.b16 %v6822
      %v6922 = vunpack.c.h.b16 %v6822
      %v6923 = vunpack.c.l.b16 %v6823
      %v6924 = vunpack.c.h.b16 %v6823
      %v6925 = vunpack.c.l.b16 %v6824
      %v6926 = vunpack.c.h.b16 %v6824
      %v6927 = vunpack.c.l.b16 %v6825
      %v6928 = vunpack.c.h.b16 %v6825
      %v6929 = vunpack.c.l.b16 %v6826
      %v6930 = vunpack.c.h.b16 %v6826
      %v6931 = vunpack.c.l.b16 %v6827
      %v6932 = vunpack.c.h.b16 %v6827
      %v6933 = vunpack.c.l.b16 %v6828
      %v6934 = vunpack.c.h.b16 %v6828
      %v6935 = vunpack.c.l.b16 %v6829
      %v6936 = vunpack.c.h.b16 %v6829
      %v6937 = vunpack.c.l.b16 %v6830
      %v6938 = vunpack.c.h.b16 %v6830
      %v6939 = vunpack.c.l.b16 %v6831
      %v6940 = vunpack.c.h.b16 %v6831
      %v6941 = vunpack.c.l.b16 %v6832
      %v6942 = vunpack.c.h.b16 %v6832
      %v6943 = vunpack.c.l.b16 %v6833
      %v6944 = vunpack.c.h.b16 %v6833
      %v6945 = vunpack.c.l.b16 %v6834
      %v6946 = vunpack.c.h.b16 %v6834
      %v6947 = vunpack.c.l.b16 %v6835
      %v6948 = vunpack.c.h.b16 %v6835
      %v6949 = vunpack.c.l.b16 %v6836
      %v6950 = vunpack.c.h.b16 %v6836
      %v6951 = vunpack.c.l.b16 %v6837
      %v6952 = vunpack.c.h.b16 %v6837
      %v6953 = vunpack.c.l.b16 %v6838
      %v6954 = vunpack.c.h.b16 %v6838
      %v6955 = vunpack.c.l.b16 %v6839
      %v6956 = vunpack.c.h.b16 %v6839
      %v6957 = vunpack.c.l.b16 %v6840
      %v6958 = vunpack.c.h.b16 %v6840
      %v6959 = vunpack.c.l.b16 %v6841
      %v6960 = vunpack.c.h.b16 %v6841
      %v6961 = vunpack.c.l.b16 %v6842
      %v6962 = vunpack.c.h.b16 %v6842
      %v6963 = vpack.c.b16 %v6885, %v6883
      %v6964 = vpack.c.b16 %v6886, %v6884
      %v6965 = vpack.c.b16 %v6889, %v6887
      %v6966 = vpack.c.b16 %v6890, %v6888
      %v6967 = vpack.c.b16 %v6893, %v6891
      %v6968 = vpack.c.b16 %v6894, %v6892
      %v6969 = vpack.c.b16 %v6897, %v6895
      %v6970 = vpack.c.b16 %v6898, %v6896
      %v6971 = vpack.c.b16 %v6901, %v6899
      %v6972 = vpack.c.b16 %v6902, %v6900
      %v6973 = vpack.c.b16 %v6905, %v6903
      %v6974 = vpack.c.b16 %v6906, %v6904
      %v6975 = vpack.c.b16 %v6909, %v6907
      %v6976 = vpack.c.b16 %v6910, %v6908
      %v6977 = vpack.c.b16 %v6913, %v6911
      %v6978 = vpack.c.b16 %v6914, %v6912
      %v6979 = vpack.c.b16 %v6917, %v6915
      %v6980 = vpack.c.b16 %v6918, %v6916
      %v6981 = vpack.c.b16 %v6921, %v6919
      %v6982 = vpack.c.b16 %v6922, %v6920
      %v6983 = vpack.c.b16 %v6925, %v6923
      %v6984 = vpack.c.b16 %v6926, %v6924
      %v6985 = vpack.c.b16 %v6929, %v6927
      %v6986 = vpack.c.b16 %v6930, %v6928
      %v6987 = vpack.c.b16 %v6933, %v6931
      %v6988 = vpack.c.b16 %v6934, %v6932
      %v6989 = vpack.c.b16 %v6937, %v6935
      %v6990 = vpack.c.b16 %v6938, %v6936
      %v6991 = vpack.c.b16 %v6941, %v6939
      %v6992 = vpack.c.b16 %v6942, %v6940
      %v6993 = vpack.c.b16 %v6945, %v6943
      %v6994 = vpack.c.b16 %v6946, %v6944
      %v6995 = vpack.c.b16 %v6949, %v6947
      %v6996 = vpack.c.b16 %v6950, %v6948
      %v6997 = vpack.c.b16 %v6953, %v6951
      %v6998 = vpack.c.b16 %v6954, %v6952
      %v6999 = vpack.c.b16 %v6957, %v6955
      %v7000 = vpack.c.b16 %v6958, %v6956
      %v7001 = vpack.c.b16 %v6961, %v6959
      %v7002 = vpack.c.b16 %v6962, %v6960
      %v7044 = vsel %vm6189, %v6801, 0
      %7046 = vmatprep.subr.bf16.mxu0 %v6964
      %7047 = vmatpush1.bf16.msra.mxu0 %v6963
      %7048 = vmatprep.subr.bf16.mxu0 %v6966
      %7049 = vmatpush1.bf16.msra.mxu0 %v6965
      %7050 = vmatprep.subr.bf16.mxu0 %v6968
      %7051 = vmatpush1.bf16.msra.mxu0 %v6967
      %7052 = vmatprep.subr.bf16.mxu0 %v6970
      %7053 = vmatpush1.bf16.msra.mxu0 %v6969
      %7054 = vmatprep.subr.bf16.mxu0 %v6972
      %7055 = vmatpush1.bf16.msra.mxu0 %v6971
      %7056 = vmatprep.subr.bf16.mxu0 %v6974
      %7057 = vmatpush1.bf16.msra.mxu0 %v6973
      %7058 = vmatprep.subr.bf16.mxu0 %v6976
      %7059 = vmatpush1.bf16.msra.mxu0 %v6975
      %7060 = vmatprep.subr.bf16.mxu0 %v6978
      %7061 = vmatpush1.bf16.msra.mxu0 %v6977
      %7062 = vmatprep.subr.bf16.mxu0 %v6980
      %7063 = vmatpush1.bf16.msra.mxu0 %v6979
      %7064 = vmatprep.subr.bf16.mxu0 %v6982
      %7065 = vmatpush1.bf16.msra.mxu0 %v6981
      %7066 = vmatprep.subr.bf16.mxu0 %v6984
      %7067 = vmatpush1.bf16.msra.mxu0 %v6983
      %7068 = vmatprep.subr.bf16.mxu0 %v6986
      %7069 = vmatpush1.bf16.msra.mxu0 %v6985
      %7070 = vmatprep.subr.bf16.mxu0 %v6988
      %7071 = vmatpush1.bf16.msra.mxu0 %v6987
      %7072 = vmatprep.subr.bf16.mxu0 %v6990
      %7073 = vmatpush1.bf16.msra.mxu0 %v6989
      %7074 = vmatprep.subr.bf16.mxu0 %v6992
      %7075 = vmatpush1.bf16.msra.mxu0 %v6991
      %7076 = vmatprep.subr.bf16.mxu0 %v6994
      %7077 = vmatpush1.bf16.msra.mxu0 %v6993
      %7078 = vmatprep.mubr.bf16.mxu0 %v6800
      %7079 = vmatmul.mubr.bf16.gmra.mrb[0].mxu0 %v6799
      %v7080 = vpop.f32.mrb[0].mxu0
      %v7081 = vadd.f32 0.0, %v7080
      %v7082 = vpop.f32.mrb[0].mxu0
      %v7083 = vadd.f32 0.0, %v7082
      %v7084 = vpop.f32.mrb[0].mxu0
      %v7085 = vpop.f32.mrb[0].mxu0
      %7086 = vdwg.mxu0
      %7087 = vmatprep.subr.bf16.mxu0 %v6996
      %7088 = vmatpush1.bf16.msra.mxu0 %v6995
      %7089 = vmatprep.subr.bf16.mxu0 %v6998
      %7090 = vmatpush1.bf16.msra.mxu0 %v6997
      %7091 = vmatprep.subr.bf16.mxu0 %v7000
      %7092 = vmatpush1.bf16.msra.mxu0 %v6999
      %7093 = vmatprep.subr.bf16.mxu0 %v7002
      %7094 = vmatpush1.bf16.msra.mxu0 %v7001
      %7095 = vmatprep.subr.bf16.mxu0 0
      %7096 = vmatpush1.bf16.msra.mxu0 0
      %7097 = vmatprep.subr.bf16.mxu0 0
      %7098 = vmatpush1.bf16.msra.mxu0 0
      %7099 = vmatprep.subr.bf16.mxu0 0
      %7100 = vmatpush1.bf16.msra.mxu0 0
      %7101 = vmatprep.subr.bf16.mxu0 0
      %7102 = vmatpush1.bf16.msra.mxu0 0
      %7103 = vmatprep.subr.bf16.mxu0 0
      %7104 = vmatpush1.bf16.msra.mxu0 0
      %7105 = vmatprep.subr.bf16.mxu0 0
      %7106 = vmatpush1.bf16.msra.mxu0 0
      %7107 = vmatprep.subr.bf16.mxu0 0
      %7108 = vmatpush1.bf16.msra.mxu0 0
      %7109 = vmatprep.subr.bf16.mxu0 0
      %7110 = vmatpush1.bf16.msra.mxu0 0
      %7111 = vmatprep.subr.bf16.mxu0 0
      %7112 = vmatpush1.bf16.msra.mxu0 0
      %7113 = vmatprep.subr.bf16.mxu0 0
      %7114 = vmatpush1.bf16.msra.mxu0 0
      %7115 = vmatprep.subr.bf16.mxu0 0
      %7116 = vmatpush1.bf16.msra.mxu0 0
      %7117 = vmatprep.subr.bf16.mxu0 0
      %7118 = vmatpush1.bf16.msra.mxu0 0
      %7119 = vmatprep.mubr.bf16.mxu0 0
      %7120 = vmatmul.mubr.bf16.gmra.mrb[0].mxu0 %v7044
      %v7121 = vpop.f32.mrb[0].mxu0
      %v7122 = vadd.f32 %v7081, %v7121
      %v7123 = vpop.f32.mrb[0].mxu0
      %v7124 = vadd.f32 %v7083, %v7123
      %v7125 = vpop.f32.mrb[0].mxu0
      %v7126 = vpop.f32.mrb[0].mxu0
      %7127 = vdwg.mxu0
      %v7168 = vunpack.c.l.b16 %v6676
      %v7169 = vunpack.c.h.b16 %v6676
      %v7170 = vunpack.c.l.b16 %v6677
      %v7171 = vunpack.c.h.b16 %v6677
      %v7172 = vunpack.c.l.b16 %v6678
      %v7173 = vunpack.c.h.b16 %v6678
      %v7174 = vunpack.c.l.b16 %v6679
      %v7175 = vunpack.c.h.b16 %v6679
      %v7176 = vunpack.c.l.b16 %v6680
      %v7177 = vunpack.c.h.b16 %v6680
      %v7178 = vunpack.c.l.b16 %v6681
      %v7179 = vunpack.c.h.b16 %v6681
      %v7180 = vunpack.c.l.b16 %v6682
      %v7181 = vunpack.c.h.b16 %v6682
      %v7182 = vunpack.c.l.b16 %v6683
      %v7183 = vunpack.c.h.b16 %v6683
      %v7184 = vunpack.c.l.b16 %v6684
      %v7185 = vunpack.c.h.b16 %v6684
      %v7186 = vunpack.c.l.b16 %v6685
      %v7187 = vunpack.c.h.b16 %v6685
      %v7188 = vunpack.c.l.b16 %v6686
      %v7189 = vunpack.c.h.b16 %v6686
      %v7190 = vunpack.c.l.b16 %v6687
      %v7191 = vunpack.c.h.b16 %v6687
      %v7192 = vunpack.c.l.b16 %v6688
      %v7193 = vunpack.c.h.b16 %v6688
      %v7194 = vunpack.c.l.b16 %v6689
      %v7195 = vunpack.c.h.b16 %v6689
      %v7196 = vunpack.c.l.b16 %v6690
      %v7197 = vunpack.c.h.b16 %v6690
      %v7198 = vunpack.c.l.b16 %v6691
      %v7199 = vunpack.c.h.b16 %v6691
      %v7200 = vunpack.c.l.b16 %v6692
      %v7201 = vunpack.c.h.b16 %v6692
      %v7202 = vunpack.c.l.b16 %v6693
      %v7203 = vunpack.c.h.b16 %v6693
      %v7204 = vunpack.c.l.b16 %v6694
      %v7205 = vunpack.c.h.b16 %v6694
      %v7206 = vunpack.c.l.b16 %v6695
      %v7207 = vunpack.c.h.b16 %v6695
      %v7208 = vunpack.c.l.b16 %v6696
      %v7209 = vunpack.c.h.b16 %v6696
      %v7210 = vunpack.c.l.b16 %v6697
      %v7211 = vunpack.c.h.b16 %v6697
      %v7212 = vunpack.c.l.b16 %v6698
      %v7213 = vunpack.c.h.b16 %v6698
      %v7214 = vunpack.c.l.b16 %v6699
      %v7215 = vunpack.c.h.b16 %v6699
      %v7216 = vunpack.c.l.b16 %v6700
      %v7217 = vunpack.c.h.b16 %v6700
      %v7218 = vunpack.c.l.b16 %v6701
      %v7219 = vunpack.c.h.b16 %v6701
      %v7220 = vunpack.c.l.b16 %v6702
      %v7221 = vunpack.c.h.b16 %v6702
      %v7222 = vunpack.c.l.b16 %v6703
      %v7223 = vunpack.c.h.b16 %v6703
      %v7224 = vunpack.c.l.b16 %v6704
      %v7225 = vunpack.c.h.b16 %v6704
      %v7226 = vunpack.c.l.b16 %v6705
      %v7227 = vunpack.c.h.b16 %v6705
      %v7228 = vunpack.c.l.b16 %v6706
      %v7229 = vunpack.c.h.b16 %v6706
      %v7230 = vunpack.c.l.b16 %v6707
      %v7231 = vunpack.c.h.b16 %v6707
      %v7232 = vunpack.c.l.b16 %v6708
      %v7233 = vunpack.c.h.b16 %v6708
      %v7234 = vunpack.c.l.b16 %v6709
      %v7235 = vunpack.c.h.b16 %v6709
      %v7236 = vunpack.c.l.b16 %v6710
      %v7237 = vunpack.c.h.b16 %v6710
      %v7238 = vunpack.c.l.b16 %v6711
      %v7239 = vunpack.c.h.b16 %v6711
      %v7240 = vunpack.c.l.b16 %v6712
      %v7241 = vunpack.c.h.b16 %v6712
      %v7242 = vunpack.c.l.b16 %v6713
      %v7243 = vunpack.c.h.b16 %v6713
      %v7244 = vunpack.c.l.b16 %v6714
      %v7245 = vunpack.c.h.b16 %v6714
      %v7246 = vunpack.c.l.b16 %v6715
      %v7247 = vunpack.c.h.b16 %v6715
      %v7248 = vpack.c.b16 %v7170, %v7168
      %v7249 = vpack.c.b16 %v7171, %v7169
      %v7250 = vpack.c.b16 %v7174, %v7172
      %v7251 = vpack.c.b16 %v7175, %v7173
      %v7252 = vpack.c.b16 %v7178, %v7176
      %v7253 = vpack.c.b16 %v7179, %v7177
      %v7254 = vpack.c.b16 %v7182, %v7180
      %v7255 = vpack.c.b16 %v7183, %v7181
      %v7256 = vpack.c.b16 %v7186, %v7184
      %v7257 = vpack.c.b16 %v7187, %v7185
      %v7258 = vpack.c.b16 %v7190, %v7188
      %v7259 = vpack.c.b16 %v7191, %v7189
      %v7260 = vpack.c.b16 %v7194, %v7192
      %v7261 = vpack.c.b16 %v7195, %v7193
      %v7262 = vpack.c.b16 %v7198, %v7196
      %v7263 = vpack.c.b16 %v7199, %v7197
      %v7264 = vpack.c.b16 %v7202, %v7200
      %v7265 = vpack.c.b16 %v7203, %v7201
      %v7266 = vpack.c.b16 %v7206, %v7204
      %v7267 = vpack.c.b16 %v7207, %v7205
      %v7268 = vpack.c.b16 %v7210, %v7208
      %v7269 = vpack.c.b16 %v7211, %v7209
      %v7270 = vpack.c.b16 %v7214, %v7212
      %v7271 = vpack.c.b16 %v7215, %v7213
      %v7272 = vpack.c.b16 %v7218, %v7216
      %v7273 = vpack.c.b16 %v7219, %v7217
      %v7274 = vpack.c.b16 %v7222, %v7220
      %v7275 = vpack.c.b16 %v7223, %v7221
      %v7276 = vpack.c.b16 %v7226, %v7224
      %v7277 = vpack.c.b16 %v7227, %v7225
      %v7278 = vpack.c.b16 %v7230, %v7228
      %v7279 = vpack.c.b16 %v7231, %v7229
      %v7280 = vpack.c.b16 %v7234, %v7232
      %v7281 = vpack.c.b16 %v7235, %v7233
      %v7282 = vpack.c.b16 %v7238, %v7236
      %v7283 = vpack.c.b16 %v7239, %v7237
      %v7284 = vpack.c.b16 %v7242, %v7240
      %v7285 = vpack.c.b16 %v7243, %v7241
      %v7286 = vpack.c.b16 %v7246, %v7244
      %v7287 = vpack.c.b16 %v7247, %v7245
      %v7329 = vsel %vm6189, %v6675, 0
      %7331 = vmatprep.subr.bf16.mxu0 %v7249
      %7332 = vmatpush1.bf16.msra.mxu0 %v7248
      %7333 = vmatprep.subr.bf16.mxu0 %v7251
      %7334 = vmatpush1.bf16.msra.mxu0 %v7250
      %7335 = vmatprep.subr.bf16.mxu0 %v7253
      %7336 = vmatpush1.bf16.msra.mxu0 %v7252
      %7337 = vmatprep.subr.bf16.mxu0 %v7255
      %7338 = vmatpush1.bf16.msra.mxu0 %v7254
      %7339 = vmatprep.subr.bf16.mxu0 %v7257
      %7340 = vmatpush1.bf16.msra.mxu0 %v7256
      %7341 = vmatprep.subr.bf16.mxu0 %v7259
      %7342 = vmatpush1.bf16.msra.mxu0 %v7258
      %7343 = vmatprep.subr.bf16.mxu0 %v7261
      %7344 = vmatpush1.bf16.msra.mxu0 %v7260
      %7345 = vmatprep.subr.bf16.mxu0 %v7263
      %7346 = vmatpush1.bf16.msra.mxu0 %v7262
      %7347 = vmatprep.subr.bf16.mxu0 %v7265
      %7348 = vmatpush1.bf16.msra.mxu0 %v7264
      %7349 = vmatprep.subr.bf16.mxu0 %v7267
      %7350 = vmatpush1.bf16.msra.mxu0 %v7266
      %7351 = vmatprep.subr.bf16.mxu0 %v7269
      %7352 = vmatpush1.bf16.msra.mxu0 %v7268
      %7353 = vmatprep.subr.bf16.mxu0 %v7271
      %7354 = vmatpush1.bf16.msra.mxu0 %v7270
      %7355 = vmatprep.subr.bf16.mxu0 %v7273
      %7356 = vmatpush1.bf16.msra.mxu0 %v7272
      %7357 = vmatprep.subr.bf16.mxu0 %v7275
      %7358 = vmatpush1.bf16.msra.mxu0 %v7274
      %7359 = vmatprep.subr.bf16.mxu0 %v7277
      %7360 = vmatpush1.bf16.msra.mxu0 %v7276
      %7361 = vmatprep.subr.bf16.mxu0 %v7279
      %7362 = vmatpush1.bf16.msra.mxu0 %v7278
      %7363 = vmatprep.mubr.bf16.mxu0 %v6674
      %7364 = vmatmul.mubr.bf16.gmra.mrb[0].mxu0 %v6673
      %v7365 = vpop.f32.mrb[0].mxu0
      %v7366 = vadd.f32 %v7122, %v7365
      %v7367 = vpop.f32.mrb[0].mxu0
      %v7368 = vadd.f32 %v7124, %v7367
      %v7369 = vpop.f32.mrb[0].mxu0
      %v7370 = vpop.f32.mrb[0].mxu0
      %7371 = vdwg.mxu0
      %7372 = vmatprep.subr.bf16.mxu0 %v7281
      %7373 = vmatpush1.bf16.msra.mxu0 %v7280
      %7374 = vmatprep.subr.bf16.mxu0 %v7283
      %7375 = vmatpush1.bf16.msra.mxu0 %v7282
      %7376 = vmatprep.subr.bf16.mxu0 %v7285
      %7377 = vmatpush1.bf16.msra.mxu0 %v7284
      %7378 = vmatprep.subr.bf16.mxu0 %v7287
      %7379 = vmatpush1.bf16.msra.mxu0 %v7286
      %7380 = vmatprep.subr.bf16.mxu0 0
      %7381 = vmatpush1.bf16.msra.mxu0 0
      %7382 = vmatprep.subr.bf16.mxu0 0
      %7383 = vmatpush1.bf16.msra.mxu0 0
      %7384 = vmatprep.subr.bf16.mxu0 0
      %7385 = vmatpush1.bf16.msra.mxu0 0
      %7386 = vmatprep.subr.bf16.mxu0 0
      %7387 = vmatpush1.bf16.msra.mxu0 0
      %7388 = vmatprep.subr.bf16.mxu0 0
      %7389 = vmatpush1.bf16.msra.mxu0 0
      %7390 = vmatprep.subr.bf16.mxu0 0
      %7391 = vmatpush1.bf16.msra.mxu0 0
      %7392 = vmatprep.subr.bf16.mxu0 0
      %7393 = vmatpush1.bf16.msra.mxu0 0
      %7394 = vmatprep.subr.bf16.mxu0 0
      %7395 = vmatpush1.bf16.msra.mxu0 0
      %7396 = vmatprep.subr.bf16.mxu0 0
      %7397 = vmatpush1.bf16.msra.mxu0 0
      %7398 = vmatprep.subr.bf16.mxu0 0
      %7399 = vmatpush1.bf16.msra.mxu0 0
      %7400 = vmatprep.subr.bf16.mxu0 0
      %7401 = vmatpush1.bf16.msra.mxu0 0
      %7402 = vmatprep.subr.bf16.mxu0 0
      %7403 = vmatpush1.bf16.msra.mxu0 0
      %7404 = vmatprep.mubr.bf16.mxu0 0
      %7405 = vmatmul.mubr.bf16.gmra.mrb[0].mxu0 %v7329
      %v7406 = vpop.f32.mrb[0].mxu0
      %v7407 = vadd.f32 %v7366, %v7406
      %v7408 = vpop.f32.mrb[0].mxu0
      %v7409 = vadd.f32 %v7368, %v7408
      %v7410 = vpop.f32.mrb[0].mxu0
      %v7411 = vpop.f32.mrb[0].mxu0
      %7412 = vdwg.mxu0
      %v7413 = vsel %vm6579, %v4610, 0
      %7415 = vmatprep.subr.bf16.mxu0 %v6587
      %7416 = vmatpush1.bf16.msra.mxu0 %v6584
      %7417 = vmatprep.subr.bf16.mxu0 0
      %7418 = vmatpush1.bf16.msra.mxu0 0
      %7419 = vmatprep.subr.bf16.mxu0 0
      %7420 = vmatpush1.bf16.msra.mxu0 0
      %7421 = vmatprep.subr.bf16.mxu0 0
      %7422 = vmatpush1.bf16.msra.mxu0 0
      %7423 = vmatprep.subr.bf16.mxu0 0
      %7424 = vmatpush1.bf16.msra.mxu0 0
      %7425 = vmatprep.subr.bf16.mxu0 0
      %7426 = vmatpush1.bf16.msra.mxu0 0
      %7427 = vmatprep.subr.bf16.mxu0 0
      %7428 = vmatpush1.bf16.msra.mxu0 0
      %7429 = vmatprep.subr.bf16.mxu0 0
      %7430 = vmatpush1.bf16.msra.mxu0 0
      %7431 = vmatprep.subr.bf16.mxu0 0
      %7432 = vmatpush1.bf16.msra.mxu0 0
      %7433 = vmatprep.subr.bf16.mxu0 0
      %7434 = vmatpush1.bf16.msra.mxu0 0
      %7435 = vmatprep.subr.bf16.mxu0 0
      %7436 = vmatpush1.bf16.msra.mxu0 0
      %7437 = vmatprep.subr.bf16.mxu0 0
      %7438 = vmatpush1.bf16.msra.mxu0 0
      %7439 = vmatprep.subr.bf16.mxu0 0
      %7440 = vmatpush1.bf16.msra.mxu0 0
      %7441 = vmatprep.subr.bf16.mxu0 0
      %7442 = vmatpush1.bf16.msra.mxu0 0
      %7443 = vmatprep.subr.bf16.mxu0 0
      %7444 = vmatpush1.bf16.msra.mxu0 0
      %7445 = vmatprep.subr.bf16.mxu0 0
      %7446 = vmatpush1.bf16.msra.mxu0 0
      %7447 = vmatprep.mubr.bf16.mxu0 0
      %7448 = vmatmul.mubr.bf16.gmra.mrb[0].mxu0 %v7413
      %v7449 = vpop.f32.mrb[0].mxu0
      %v7450 = vadd.f32 0.0, %v7449
      %v7451 = vpop.f32.mrb[0].mxu0
      %v7452 = vadd.f32 0.0, %v7451
      %v7453 = vpop.f32.mrb[0].mxu0
      %v7454 = vpop.f32.mrb[0].mxu0
      %7455 = vdwg.mxu0
      %7456 = vmatprep.subr.bf16.mxu0 0
      %7457 = vmatpush1.bf16.msra.mxu0 %v6590
      %7458 = vmatprep.subr.bf16.mxu0 0
      %7459 = vmatpush1.bf16.msra.mxu0 0
      %7460 = vmatprep.subr.bf16.mxu0 0
      %7461 = vmatpush1.bf16.msra.mxu0 0
      %7462 = vmatprep.subr.bf16.mxu0 0
      %7463 = vmatpush1.bf16.msra.mxu0 0
      %7464 = vmatprep.subr.bf16.mxu0 0
      %7465 = vmatpush1.bf16.msra.mxu0 0
      %7466 = vmatprep.subr.bf16.mxu0 0
      %7467 = vmatpush1.bf16.msra.mxu0 0
      %7468 = vmatprep.subr.bf16.mxu0 0
      %7469 = vmatpush1.bf16.msra.mxu0 0
      %7470 = vmatprep.subr.bf16.mxu0 0
      %7471 = vmatpush1.bf16.msra.mxu0 0
      %7472 = vmatprep.subr.bf16.mxu0 0
      %7473 = vmatpush1.bf16.msra.mxu0 0
      %7474 = vmatprep.subr.bf16.mxu0 0
      %7475 = vmatpush1.bf16.msra.mxu0 0
      %7476 = vmatprep.subr.bf16.mxu0 0
      %7477 = vmatpush1.bf16.msra.mxu0 0
      %7478 = vmatprep.subr.bf16.mxu0 0
      %7479 = vmatpush1.bf16.msra.mxu0 0
      %7480 = vmatprep.subr.bf16.mxu0 0
      %7481 = vmatpush1.bf16.msra.mxu0 0
      %7482 = vmatprep.subr.bf16.mxu0 0
      %7483 = vmatpush1.bf16.msra.mxu0 0
      %7484 = vmatprep.subr.bf16.mxu0 0
      %7485 = vmatpush1.bf16.msra.mxu0 0
      %7486 = vmatprep.subr.bf16.mxu0 0
      %7487 = vmatpush1.bf16.msra.mxu0 0
      %7488 = vmatprep.mubr.bf16.mxu0 0
      %7489 = vmatmul.mubr.bf16.gmra.mrb[0].mxu0 %v7413
      %v7490 = vpop.f32.mrb[0].mxu0
      %v7491 = vadd.f32 0.0, %v7490
      %v7492 = vpop.f32.mrb[0].mxu0
      %v7493 = vpop.f32.mrb[0].mxu0
      %v7494 = vpop.f32.mrb[0].mxu0
      %7495 = vdwg.mxu0
      %v7496 = vpack.c.bf16 %v7450, %v7450
      %v7497 = vpack.c.bf16 %v7452, %v7452
      %v7498 = vpack.c.bf16 %v7491, %v7491
      %s7499 = scalar_lea.vmem %s7, 640
      %v7500 = vld [vmem:[%s7499] sm:$0xff]
      %v7501 = vld [vmem:[%s7499 + $0x8] sm:$0xff]
      %v7502 = vld [vmem:[%s7499 + $0x10] sm:$0xff]
      %v7503 = vld [vmem:[%s7499 + $0x18] sm:$0xff]
      %v7504 = vld [vmem:[%s7499 + $0x20] sm:$0xff]
      %v7505 = vld [vmem:[%s7499 + $0x28] sm:$0xff]
      %v7506 = vld [vmem:[%s7499 + $0x30] sm:$0xff]
      %v7507 = vld [vmem:[%s7499 + $0x38] sm:$0xff]
      %v7508 = vld [vmem:[%s7499 + $0x40] sm:$0xff]
      %v7509 = vld [vmem:[%s7499 + $0x48] sm:$0xff]
      %v7510 = vld [vmem:[%s7499 + $0x50] sm:$0xff]
      %v7511 = vld [vmem:[%s7499 + $0x58] sm:$0xff]
      %v7512 = vld [vmem:[%s7499 + $0x60] sm:$0xff]
      %v7513 = vld [vmem:[%s7499 + $0x68] sm:$0xff]
      %v7514 = vld [vmem:[%s7499 + $0x70] sm:$0xff]
      %v7515 = vld [vmem:[%s7499 + $0x78] sm:$0xff]
      %v7516 = vld [vmem:[%s7499 + $0x80] sm:$0xff]
      %v7517 = vld [vmem:[%s7499 + $0x88] sm:$0xff]
      %v7518 = vld [vmem:[%s7499 + $0x90] sm:$0xff]
      %v7519 = vld [vmem:[%s7499 + $0x98] sm:$0xff]
      %v7520 = vld [vmem:[%s7499 + $0xa0] sm:$0xff]
      %v7521 = vld [vmem:[%s7499 + $0xa8] sm:$0xff]
      %v7522 = vld [vmem:[%s7499 + $0xb0] sm:$0xff]
      %v7523 = vld [vmem:[%s7499 + $0xb8] sm:$0xff]
      %v7524 = vld [vmem:[%s7499 + $0xc0] sm:$0xff]
      %v7525 = vld [vmem:[%s7499 + $0xc8] sm:$0xff]
      %v7526 = vld [vmem:[%s7499 + $0xd0] sm:$0xff]
      %v7527 = vld [vmem:[%s7499 + $0xd8] sm:$0xff]
      %v7528 = vld [vmem:[%s7499 + $0xe0] sm:$0xff]
      %v7529 = vld [vmem:[%s7499 + $0xe8] sm:$0xff]
      %v7530 = vld [vmem:[%s7499 + $0xf0] sm:$0xff]
      %v7531 = vld [vmem:[%s7499 + $0xf8] sm:$0xff]
      %v7532 = vld [vmem:[%s7499 + $0x100] sm:$0xff]
      %v7533 = vld [vmem:[%s7499 + $0x108] sm:$0xff]
      %v7534 = vld [vmem:[%s7499 + $0x110] sm:$0xff]
      %v7535 = vld [vmem:[%s7499 + $0x118] sm:$0xff]
      %v7536 = vld [vmem:[%s7499 + $0x120] sm:$0xff]
      %v7537 = vld [vmem:[%s7499 + $0x128] sm:$0xff]
      %v7538 = vld [vmem:[%s7499 + $0x130] sm:$0xff]
      %v7539 = vld [vmem:[%s7499 + $0x138] sm:$0xff]
      %v7580 = vunpack.c.l.b16 %v7500
      %v7581 = vunpack.c.h.b16 %v7500
      %v7582 = vunpack.c.l.b16 %v7501
      %v7583 = vunpack.c.h.b16 %v7501
      %v7584 = vunpack.c.l.b16 %v7502
      %v7585 = vunpack.c.h.b16 %v7502
      %v7586 = vunpack.c.l.b16 %v7503
      %v7587 = vunpack.c.h.b16 %v7503
      %v7588 = vunpack.c.l.b16 %v7504
      %v7589 = vunpack.c.h.b16 %v7504
      %v7590 = vunpack.c.l.b16 %v7505
      %v7591 = vunpack.c.h.b16 %v7505
      %v7592 = vunpack.c.l.b16 %v7506
      %v7593 = vunpack.c.h.b16 %v7506
      %v7594 = vunpack.c.l.b16 %v7507
      %v7595 = vunpack.c.h.b16 %v7507
      %v7596 = vunpack.c.l.b16 %v7508
      %v7597 = vunpack.c.h.b16 %v7508
      %v7598 = vunpack.c.l.b16 %v7509
      %v7599 = vunpack.c.h.b16 %v7509
      %v7600 = vunpack.c.l.b16 %v7510
      %v7601 = vunpack.c.h.b16 %v7510
      %v7602 = vunpack.c.l.b16 %v7511
      %v7603 = vunpack.c.h.b16 %v7511
      %v7604 = vunpack.c.l.b16 %v7512
      %v7605 = vunpack.c.h.b16 %v7512
      %v7606 = vunpack.c.l.b16 %v7513
      %v7607 = vunpack.c.h.b16 %v7513
      %v7608 = vunpack.c.l.b16 %v7514
      %v7609 = vunpack.c.h.b16 %v7514
      %v7610 = vunpack.c.l.b16 %v7515
      %v7611 = vunpack.c.h.b16 %v7515
      %v7612 = vunpack.c.l.b16 %v7516
      %v7613 = vunpack.c.h.b16 %v7516
      %v7614 = vunpack.c.l.b16 %v7517
      %v7615 = vunpack.c.h.b16 %v7517
      %v7616 = vunpack.c.l.b16 %v7518
      %v7617 = vunpack.c.h.b16 %v7518
      %v7618 = vunpack.c.l.b16 %v7519
      %v7619 = vunpack.c.h.b16 %v7519
      %v7620 = vunpack.c.l.b16 %v7520
      %v7621 = vunpack.c.h.b16 %v7520
      %v7622 = vunpack.c.l.b16 %v7521
      %v7623 = vunpack.c.h.b16 %v7521
      %v7624 = vunpack.c.l.b16 %v7522
      %v7625 = vunpack.c.h.b16 %v7522
      %v7626 = vunpack.c.l.b16 %v7523
      %v7627 = vunpack.c.h.b16 %v7523
      %v7628 = vunpack.c.l.b16 %v7524
      %v7629 = vunpack.c.h.b16 %v7524
      %v7630 = vunpack.c.l.b16 %v7525
      %v7631 = vunpack.c.h.b16 %v7525
      %v7632 = vunpack.c.l.b16 %v7526
      %v7633 = vunpack.c.h.b16 %v7526
      %v7634 = vunpack.c.l.b16 %v7527
      %v7635 = vunpack.c.h.b16 %v7527
      %v7636 = vunpack.c.l.b16 %v7528
      %v7637 = vunpack.c.h.b16 %v7528
      %v7638 = vunpack.c.l.b16 %v7529
      %v7639 = vunpack.c.h.b16 %v7529
      %v7640 = vunpack.c.l.b16 %v7530
      %v7641 = vunpack.c.h.b16 %v7530
      %v7642 = vunpack.c.l.b16 %v7531
      %v7643 = vunpack.c.h.b16 %v7531
      %v7644 = vunpack.c.l.b16 %v7532
      %v7645 = vunpack.c.h.b16 %v7532
      %v7646 = vunpack.c.l.b16 %v7533
      %v7647 = vunpack.c.h.b16 %v7533
      %v7648 = vunpack.c.l.b16 %v7534
      %v7649 = vunpack.c.h.b16 %v7534
      %v7650 = vunpack.c.l.b16 %v7535
      %v7651 = vunpack.c.h.b16 %v7535
      %v7652 = vunpack.c.l.b16 %v7536
      %v7653 = vunpack.c.h.b16 %v7536
      %v7654 = vunpack.c.l.b16 %v7537
      %v7655 = vunpack.c.h.b16 %v7537
      %v7656 = vunpack.c.l.b16 %v7538
      %v7657 = vunpack.c.h.b16 %v7538
      %v7658 = vunpack.c.l.b16 %v7539
      %v7659 = vunpack.c.h.b16 %v7539
      %v7660 = vpack.c.b16 %v7582, %v7580
      %v7661 = vpack.c.b16 %v7583, %v7581
      %v7662 = vpack.c.b16 %v7586, %v7584
      %v7663 = vpack.c.b16 %v7587, %v7585
      %v7664 = vpack.c.b16 %v7590, %v7588
      %v7665 = vpack.c.b16 %v7591, %v7589
      %v7666 = vpack.c.b16 %v7594, %v7592
      %v7667 = vpack.c.b16 %v7595, %v7593
      %v7668 = vpack.c.b16 %v7598, %v7596
      %v7669 = vpack.c.b16 %v7599, %v7597
      %v7670 = vpack.c.b16 %v7602, %v7600
      %v7671 = vpack.c.b16 %v7603, %v7601
      %v7672 = vpack.c.b16 %v7606, %v7604
      %v7673 = vpack.c.b16 %v7607, %v7605
      %v7674 = vpack.c.b16 %v7610, %v7608
      %v7675 = vpack.c.b16 %v7611, %v7609
      %v7676 = vpack.c.b16 %v7614, %v7612
      %v7677 = vpack.c.b16 %v7615, %v7613
      %v7678 = vpack.c.b16 %v7618, %v7616
      %v7679 = vpack.c.b16 %v7619, %v7617
      %v7680 = vpack.c.b16 %v7622, %v7620
      %v7681 = vpack.c.b16 %v7623, %v7621
      %v7682 = vpack.c.b16 %v7626, %v7624
      %v7683 = vpack.c.b16 %v7627, %v7625
      %v7684 = vpack.c.b16 %v7630, %v7628
      %v7685 = vpack.c.b16 %v7631, %v7629
      %v7686 = vpack.c.b16 %v7634, %v7632
      %v7687 = vpack.c.b16 %v7635, %v7633
      %v7688 = vpack.c.b16 %v7638, %v7636
      %v7689 = vpack.c.b16 %v7639, %v7637
      %v7690 = vpack.c.b16 %v7642, %v7640
      %v7691 = vpack.c.b16 %v7643, %v7641
      %v7692 = vpack.c.b16 %v7646, %v7644
      %v7693 = vpack.c.b16 %v7647, %v7645
      %v7694 = vpack.c.b16 %v7650, %v7648
      %v7695 = vpack.c.b16 %v7651, %v7649
      %v7696 = vpack.c.b16 %v7654, %v7652
      %v7697 = vpack.c.b16 %v7655, %v7653
      %v7698 = vpack.c.b16 %v7658, %v7656
      %v7699 = vpack.c.b16 %v7659, %v7657
      %v7741 = vsel %vm6189, %v7498, 0
      %7743 = vmatprep.subr.bf16.mxu0 %v7661
      %7744 = vmatpush1.bf16.msra.mxu0 %v7660
      %7745 = vmatprep.subr.bf16.mxu0 %v7663
      %7746 = vmatpush1.bf16.msra.mxu0 %v7662
      %7747 = vmatprep.subr.bf16.mxu0 %v7665
      %7748 = vmatpush1.bf16.msra.mxu0 %v7664
      %7749 = vmatprep.subr.bf16.mxu0 %v7667
      %7750 = vmatpush1.bf16.msra.mxu0 %v7666
      %7751 = vmatprep.subr.bf16.mxu0 %v7669
      %7752 = vmatpush1.bf16.msra.mxu0 %v7668
      %7753 = vmatprep.subr.bf16.mxu0 %v7671
      %7754 = vmatpush1.bf16.msra.mxu0 %v7670
      %7755 = vmatprep.subr.bf16.mxu0 %v7673
      %7756 = vmatpush1.bf16.msra.mxu0 %v7672
      %7757 = vmatprep.subr.bf16.mxu0 %v7675
      %7758 = vmatpush1.bf16.msra.mxu0 %v7674
      %7759 = vmatprep.subr.bf16.mxu0 %v7677
      %7760 = vmatpush1.bf16.msra.mxu0 %v7676
      %7761 = vmatprep.subr.bf16.mxu0 %v7679
      %7762 = vmatpush1.bf16.msra.mxu0 %v7678
      %7763 = vmatprep.subr.bf16.mxu0 %v7681
      %7764 = vmatpush1.bf16.msra.mxu0 %v7680
      %7765 = vmatprep.subr.bf16.mxu0 %v7683
      %7766 = vmatpush1.bf16.msra.mxu0 %v7682
      %7767 = vmatprep.subr.bf16.mxu0 %v7685
      %7768 = vmatpush1.bf16.msra.mxu0 %v7684
      %7769 = vmatprep.subr.bf16.mxu0 %v7687
      %7770 = vmatpush1.bf16.msra.mxu0 %v7686
      %7771 = vmatprep.subr.bf16.mxu0 %v7689
      %7772 = vmatpush1.bf16.msra.mxu0 %v7688
      %7773 = vmatprep.subr.bf16.mxu0 %v7691
      %7774 = vmatpush1.bf16.msra.mxu0 %v7690
      %7775 = vmatprep.mubr.bf16.mxu0 %v7497
      %7776 = vmatmul.mubr.bf16.gmra.mrb[0].mxu0 %v7496
      %v7777 = vpop.f32.mrb[0].mxu0
      %v7778 = vadd.f32 0.0, %v7777
      %v7779 = vpop.f32.mrb[0].mxu0
      %v7780 = vadd.f32 0.0, %v7779
      %v7781 = vpop.f32.mrb[0].mxu0
      %v7782 = vpop.f32.mrb[0].mxu0
      %7783 = vdwg.mxu0
      %7784 = vmatprep.subr.bf16.mxu0 %v7693
      %7785 = vmatpush1.bf16.msra.mxu0 %v7692
      %7786 = vmatprep.subr.bf16.mxu0 %v7695
      %7787 = vmatpush1.bf16.msra.mxu0 %v7694
      %7788 = vmatprep.subr.bf16.mxu0 %v7697
      %7789 = vmatpush1.bf16.msra.mxu0 %v7696
      %7790 = vmatprep.subr.bf16.mxu0 %v7699
      %7791 = vmatpush1.bf16.msra.mxu0 %v7698
      %7792 = vmatprep.subr.bf16.mxu0 0
      %7793 = vmatpush1.bf16.msra.mxu0 0
      %7794 = vmatprep.subr.bf16.mxu0 0
      %7795 = vmatpush1.bf16.msra.mxu0 0
      %7796 = vmatprep.subr.bf16.mxu0 0
      %7797 = vmatpush1.bf16.msra.mxu0 0
      %7798 = vmatprep.subr.bf16.mxu0 0
      %7799 = vmatpush1.bf16.msra.mxu0 0
      %7800 = vmatprep.subr.bf16.mxu0 0
      %7801 = vmatpush1.bf16.msra.mxu0 0
      %7802 = vmatprep.subr.bf16.mxu0 0
      %7803 = vmatpush1.bf16.msra.mxu0 0
      %7804 = vmatprep.subr.bf16.mxu0 0
      %7805 = vmatpush1.bf16.msra.mxu0 0
      %7806 = vmatprep.subr.bf16.mxu0 0
      %7807 = vmatpush1.bf16.msra.mxu0 0
      %7808 = vmatprep.subr.bf16.mxu0 0
      %7809 = vmatpush1.bf16.msra.mxu0 0
      %7810 = vmatprep.subr.bf16.mxu0 0
      %7811 = vmatpush1.bf16.msra.mxu0 0
      %7812 = vmatprep.subr.bf16.mxu0 0
      %7813 = vmatpush1.bf16.msra.mxu0 0
      %7814 = vmatprep.subr.bf16.mxu0 0
      %7815 = vmatpush1.bf16.msra.mxu0 0
      %7816 = vmatprep.mubr.bf16.mxu0 0
      %7817 = vmatmul.mubr.bf16.gmra.mrb[0].mxu0 %v7741
      %v7818 = vpop.f32.mrb[0].mxu0
      %v7819 = vadd.f32 %v7778, %v7818
      %v7820 = vpop.f32.mrb[0].mxu0
      %v7821 = vadd.f32 %v7780, %v7820
      %v7822 = vpop.f32.mrb[0].mxu0
      %v7823 = vpop.f32.mrb[0].mxu0
      %7824 = vdwg.mxu0
      %v7825 = vadd.f32 %v7407, %v7819
      %v7826 = vadd.f32 %v7409, %v7821
      %v7827 = vsel %vm6579, %v5002, 0
      %7829 = vmatprep.subr.bf16.mxu0 %v6587
      %7830 = vmatpush1.bf16.msra.mxu0 %v6584
      %7831 = vmatprep.subr.bf16.mxu0 0
      %7832 = vmatpush1.bf16.msra.mxu0 0
      %7833 = vmatprep.subr.bf16.mxu0 0
      %7834 = vmatpush1.bf16.msra.mxu0 0
      %7835 = vmatprep.subr.bf16.mxu0 0
      %7836 = vmatpush1.bf16.msra.mxu0 0
      %7837 = vmatprep.subr.bf16.mxu0 0
      %7838 = vmatpush1.bf16.msra.mxu0 0
      %7839 = vmatprep.subr.bf16.mxu0 0
      %7840 = vmatpush1.bf16.msra.mxu0 0
      %7841 = vmatprep.subr.bf16.mxu0 0
      %7842 = vmatpush1.bf16.msra.mxu0 0
      %7843 = vmatprep.subr.bf16.mxu0 0
      %7844 = vmatpush1.bf16.msra.mxu0 0
      %7845 = vmatprep.subr.bf16.mxu0 0
      %7846 = vmatpush1.bf16.msra.mxu0 0
      %7847 = vmatprep.subr.bf16.mxu0 0
      %7848 = vmatpush1.bf16.msra.mxu0 0
      %7849 = vmatprep.subr.bf16.mxu0 0
      %7850 = vmatpush1.bf16.msra.mxu0 0
      %7851 = vmatprep.subr.bf16.mxu0 0
      %7852 = vmatpush1.bf16.msra.mxu0 0
      %7853 = vmatprep.subr.bf16.mxu0 0
      %7854 = vmatpush1.bf16.msra.mxu0 0
      %7855 = vmatprep.subr.bf16.mxu0 0
      %7856 = vmatpush1.bf16.msra.mxu0 0
      %7857 = vmatprep.subr.bf16.mxu0 0
      %7858 = vmatpush1.bf16.msra.mxu0 0
      %7859 = vmatprep.subr.bf16.mxu0 0
      %7860 = vmatpush1.bf16.msra.mxu0 0
      %7861 = vmatprep.mubr.bf16.mxu0 0
      %7862 = vmatmul.mubr.bf16.gmra.mrb[0].mxu0 %v7827
      %v7863 = vpop.f32.mrb[0].mxu0
      %v7864 = vadd.f32 0.0, %v7863
      %v7865 = vpop.f32.mrb[0].mxu0
      %v7866 = vadd.f32 0.0, %v7865
      %v7867 = vpop.f32.mrb[0].mxu0
      %v7868 = vpop.f32.mrb[0].mxu0
      %7869 = vdwg.mxu0
      %7870 = vmatprep.subr.bf16.mxu0 0
      %7871 = vmatpush1.bf16.msra.mxu0 %v6590
      %7872 = vmatprep.subr.bf16.mxu0 0
      %7873 = vmatpush1.bf16.msra.mxu0 0
      %7874 = vmatprep.subr.bf16.mxu0 0
      %7875 = vmatpush1.bf16.msra.mxu0 0
      %7876 = vmatprep.subr.bf16.mxu0 0
      %7877 = vmatpush1.bf16.msra.mxu0 0
      %7878 = vmatprep.subr.bf16.mxu0 0
      %7879 = vmatpush1.bf16.msra.mxu0 0
      %7880 = vmatprep.subr.bf16.mxu0 0
      %7881 = vmatpush1.bf16.msra.mxu0 0
      %7882 = vmatprep.subr.bf16.mxu0 0
      %7883 = vmatpush1.bf16.msra.mxu0 0
      %7884 = vmatprep.subr.bf16.mxu0 0
      %7885 = vmatpush1.bf16.msra.mxu0 0
      %7886 = vmatprep.subr.bf16.mxu0 0
      %7887 = vmatpush1.bf16.msra.mxu0 0
      %7888 = vmatprep.subr.bf16.mxu0 0
      %7889 = vmatpush1.bf16.msra.mxu0 0
      %7890 = vmatprep.subr.bf16.mxu0 0
      %7891 = vmatpush1.bf16.msra.mxu0 0
      %7892 = vmatprep.subr.bf16.mxu0 0
      %7893 = vmatpush1.bf16.msra.mxu0 0
      %7894 = vmatprep.subr.bf16.mxu0 0
      %7895 = vmatpush1.bf16.msra.mxu0 0
      %7896 = vmatprep.subr.bf16.mxu0 0
      %7897 = vmatpush1.bf16.msra.mxu0 0
      %7898 = vmatprep.subr.bf16.mxu0 0
      %7899 = vmatpush1.bf16.msra.mxu0 0
      %7900 = vmatprep.subr.bf16.mxu0 0
      %7901 = vmatpush1.bf16.msra.mxu0 0
      %7902 = vmatprep.mubr.bf16.mxu0 0
      %7903 = vmatmul.mubr.bf16.gmra.mrb[0].mxu0 %v7827
      %v7904 = vpop.f32.mrb[0].mxu0
      %v7905 = vadd.f32 0.0, %v7904
      %v7906 = vpop.f32.mrb[0].mxu0
      %v7907 = vpop.f32.mrb[0].mxu0
      %v7908 = vpop.f32.mrb[0].mxu0
      %7909 = vdwg.mxu0
      %v7910 = vpack.c.bf16 %v7864, %v7864
      %v7911 = vpack.c.bf16 %v7866, %v7866
      %v7912 = vpack.c.bf16 %v7905, %v7905
      %s7913 = scalar_lea.vmem %s7, 960
      %v7914 = vld [vmem:[%s7913] sm:$0xff]
      %v7915 = vld [vmem:[%s7913 + $0x8] sm:$0xff]
      %v7916 = vld [vmem:[%s7913 + $0x10] sm:$0xff]
      %v7917 = vld [vmem:[%s7913 + $0x18] sm:$0xff]
      %v7918 = vld [vmem:[%s7913 + $0x20] sm:$0xff]
      %v7919 = vld [vmem:[%s7913 + $0x28] sm:$0xff]
      %v7920 = vld [vmem:[%s7913 + $0x30] sm:$0xff]
      %v7921 = vld [vmem:[%s7913 + $0x38] sm:$0xff]
      %v7922 = vld [vmem:[%s7913 + $0x40] sm:$0xff]
      %v7923 = vld [vmem:[%s7913 + $0x48] sm:$0xff]
      %v7924 = vld [vmem:[%s7913 + $0x50] sm:$0xff]
      %v7925 = vld [vmem:[%s7913 + $0x58] sm:$0xff]
      %v7926 = vld [vmem:[%s7913 + $0x60] sm:$0xff]
      %v7927 = vld [vmem:[%s7913 + $0x68] sm:$0xff]
      %v7928 = vld [vmem:[%s7913 + $0x70] sm:$0xff]
      %v7929 = vld [vmem:[%s7913 + $0x78] sm:$0xff]
      %v7930 = vld [vmem:[%s7913 + $0x80] sm:$0xff]
      %v7931 = vld [vmem:[%s7913 + $0x88] sm:$0xff]
      %v7932 = vld [vmem:[%s7913 + $0x90] sm:$0xff]
      %v7933 = vld [vmem:[%s7913 + $0x98] sm:$0xff]
      %v7934 = vld [vmem:[%s7913 + $0xa0] sm:$0xff]
      %v7935 = vld [vmem:[%s7913 + $0xa8] sm:$0xff]
      %v7936 = vld [vmem:[%s7913 + $0xb0] sm:$0xff]
      %v7937 = vld [vmem:[%s7913 + $0xb8] sm:$0xff]
      %v7938 = vld [vmem:[%s7913 + $0xc0] sm:$0xff]
      %v7939 = vld [vmem:[%s7913 + $0xc8] sm:$0xff]
      %v7940 = vld [vmem:[%s7913 + $0xd0] sm:$0xff]
      %v7941 = vld [vmem:[%s7913 + $0xd8] sm:$0xff]
      %v7942 = vld [vmem:[%s7913 + $0xe0] sm:$0xff]
      %v7943 = vld [vmem:[%s7913 + $0xe8] sm:$0xff]
      %v7944 = vld [vmem:[%s7913 + $0xf0] sm:$0xff]
      %v7945 = vld [vmem:[%s7913 + $0xf8] sm:$0xff]
      %v7946 = vld [vmem:[%s7913 + $0x100] sm:$0xff]
      %v7947 = vld [vmem:[%s7913 + $0x108] sm:$0xff]
      %v7948 = vld [vmem:[%s7913 + $0x110] sm:$0xff]
      %v7949 = vld [vmem:[%s7913 + $0x118] sm:$0xff]
      %v7950 = vld [vmem:[%s7913 + $0x120] sm:$0xff]
      %v7951 = vld [vmem:[%s7913 + $0x128] sm:$0xff]
      %v7952 = vld [vmem:[%s7913 + $0x130] sm:$0xff]
      %v7953 = vld [vmem:[%s7913 + $0x138] sm:$0xff]
      %v7994 = vunpack.c.l.b16 %v7914
      %v7995 = vunpack.c.h.b16 %v7914
      %v7996 = vunpack.c.l.b16 %v7915
      %v7997 = vunpack.c.h.b16 %v7915
      %v7998 = vunpack.c.l.b16 %v7916
      %v7999 = vunpack.c.h.b16 %v7916
      %v8000 = vunpack.c.l.b16 %v7917
      %v8001 = vunpack.c.h.b16 %v7917
      %v8002 = vunpack.c.l.b16 %v7918
      %v8003 = vunpack.c.h.b16 %v7918
      %v8004 = vunpack.c.l.b16 %v7919
      %v8005 = vunpack.c.h.b16 %v7919
      %v8006 = vunpack.c.l.b16 %v7920
      %v8007 = vunpack.c.h.b16 %v7920
      %v8008 = vunpack.c.l.b16 %v7921
      %v8009 = vunpack.c.h.b16 %v7921
      %v8010 = vunpack.c.l.b16 %v7922
      %v8011 = vunpack.c.h.b16 %v7922
      %v8012 = vunpack.c.l.b16 %v7923
      %v8013 = vunpack.c.h.b16 %v7923
      %v8014 = vunpack.c.l.b16 %v7924
      %v8015 = vunpack.c.h.b16 %v7924
      %v8016 = vunpack.c.l.b16 %v7925
      %v8017 = vunpack.c.h.b16 %v7925
      %v8018 = vunpack.c.l.b16 %v7926
      %v8019 = vunpack.c.h.b16 %v7926
      %v8020 = vunpack.c.l.b16 %v7927
      %v8021 = vunpack.c.h.b16 %v7927
      %v8022 = vunpack.c.l.b16 %v7928
      %v8023 = vunpack.c.h.b16 %v7928
      %v8024 = vunpack.c.l.b16 %v7929
      %v8025 = vunpack.c.h.b16 %v7929
      %v8026 = vunpack.c.l.b16 %v7930
      %v8027 = vunpack.c.h.b16 %v7930
      %v8028 = vunpack.c.l.b16 %v7931
      %v8029 = vunpack.c.h.b16 %v7931
      %v8030 = vunpack.c.l.b16 %v7932
      %v8031 = vunpack.c.h.b16 %v7932
      %v8032 = vunpack.c.l.b16 %v7933
      %v8033 = vunpack.c.h.b16 %v7933
      %v8034 = vunpack.c.l.b16 %v7934
      %v8035 = vunpack.c.h.b16 %v7934
      %v8036 = vunpack.c.l.b16 %v7935
      %v8037 = vunpack.c.h.b16 %v7935
      %v8038 = vunpack.c.l.b16 %v7936
      %v8039 = vunpack.c.h.b16 %v7936
      %v8040 = vunpack.c.l.b16 %v7937
      %v8041 = vunpack.c.h.b16 %v7937
      %v8042 = vunpack.c.l.b16 %v7938
      %v8043 = vunpack.c.h.b16 %v7938
      %v8044 = vunpack.c.l.b16 %v7939
      %v8045 = vunpack.c.h.b16 %v7939
      %v8046 = vunpack.c.l.b16 %v7940
      %v8047 = vunpack.c.h.b16 %v7940
      %v8048 = vunpack.c.l.b16 %v7941
      %v8049 = vunpack.c.h.b16 %v7941
      %v8050 = vunpack.c.l.b16 %v7942
      %v8051 = vunpack.c.h.b16 %v7942
      %v8052 = vunpack.c.l.b16 %v7943
      %v8053 = vunpack.c.h.b16 %v7943
      %v8054 = vunpack.c.l.b16 %v7944
      %v8055 = vunpack.c.h.b16 %v7944
      %v8056 = vunpack.c.l.b16 %v7945
      %v8057 = vunpack.c.h.b16 %v7945
      %v8058 = vunpack.c.l.b16 %v7946
      %v8059 = vunpack.c.h.b16 %v7946
      %v8060 = vunpack.c.l.b16 %v7947
      %v8061 = vunpack.c.h.b16 %v7947
      %v8062 = vunpack.c.l.b16 %v7948
      %v8063 = vunpack.c.h.b16 %v7948
      %v8064 = vunpack.c.l.b16 %v7949
      %v8065 = vunpack.c.h.b16 %v7949
      %v8066 = vunpack.c.l.b16 %v7950
      %v8067 = vunpack.c.h.b16 %v7950
      %v8068 = vunpack.c.l.b16 %v7951
      %v8069 = vunpack.c.h.b16 %v7951
      %v8070 = vunpack.c.l.b16 %v7952
      %v8071 = vunpack.c.h.b16 %v7952
      %v8072 = vunpack.c.l.b16 %v7953
      %v8073 = vunpack.c.h.b16 %v7953
      %v8074 = vpack.c.b16 %v7996, %v7994
      %v8075 = vpack.c.b16 %v7997, %v7995
      %v8076 = vpack.c.b16 %v8000, %v7998
      %v8077 = vpack.c.b16 %v8001, %v7999
      %v8078 = vpack.c.b16 %v8004, %v8002
      %v8079 = vpack.c.b16 %v8005, %v8003
      %v8080 = vpack.c.b16 %v8008, %v8006
      %v8081 = vpack.c.b16 %v8009, %v8007
      %v8082 = vpack.c.b16 %v8012, %v8010
      %v8083 = vpack.c.b16 %v8013, %v8011
      %v8084 = vpack.c.b16 %v8016, %v8014
      %v8085 = vpack.c.b16 %v8017, %v8015
      %v8086 = vpack.c.b16 %v8020, %v8018
      %v8087 = vpack.c.b16 %v8021, %v8019
      %v8088 = vpack.c.b16 %v8024, %v8022
      %v8089 = vpack.c.b16 %v8025, %v8023
      %v8090 = vpack.c.b16 %v8028, %v8026
      %v8091 = vpack.c.b16 %v8029, %v8027
      %v8092 = vpack.c.b16 %v8032, %v8030
      %v8093 = vpack.c.b16 %v8033, %v8031
      %v8094 = vpack.c.b16 %v8036, %v8034
      %v8095 = vpack.c.b16 %v8037, %v8035
      %v8096 = vpack.c.b16 %v8040, %v8038
      %v8097 = vpack.c.b16 %v8041, %v8039
      %v8098 = vpack.c.b16 %v8044, %v8042
      %v8099 = vpack.c.b16 %v8045, %v8043
      %v8100 = vpack.c.b16 %v8048, %v8046
      %v8101 = vpack.c.b16 %v8049, %v8047
      %v8102 = vpack.c.b16 %v8052, %v8050
      %v8103 = vpack.c.b16 %v8053, %v8051
      %v8104 = vpack.c.b16 %v8056, %v8054
      %v8105 = vpack.c.b16 %v8057, %v8055
      %v8106 = vpack.c.b16 %v8060, %v8058
      %v8107 = vpack.c.b16 %v8061, %v8059
      %v8108 = vpack.c.b16 %v8064, %v8062
      %v8109 = vpack.c.b16 %v8065, %v8063
      %v8110 = vpack.c.b16 %v8068, %v8066
      %v8111 = vpack.c.b16 %v8069, %v8067
      %v8112 = vpack.c.b16 %v8072, %v8070
      %v8113 = vpack.c.b16 %v8073, %v8071
      %v8155 = vsel %vm6189, %v7912, 0
      %8157 = vmatprep.subr.bf16.mxu0 %v8075
      %8158 = vmatpush1.bf16.msra.mxu0 %v8074
      %8159 = vmatprep.subr.bf16.mxu0 %v8077
      %8160 = vmatpush1.bf16.msra.mxu0 %v8076
      %8161 = vmatprep.subr.bf16.mxu0 %v8079
      %8162 = vmatpush1.bf16.msra.mxu0 %v8078
      %8163 = vmatprep.subr.bf16.mxu0 %v8081
      %8164 = vmatpush1.bf16.msra.mxu0 %v8080
      %8165 = vmatprep.subr.bf16.mxu0 %v8083
      %8166 = vmatpush1.bf16.msra.mxu0 %v8082
      %8167 = vmatprep.subr.bf16.mxu0 %v8085
      %8168 = vmatpush1.bf16.msra.mxu0 %v8084
      %8169 = vmatprep.subr.bf16.mxu0 %v8087
      %8170 = vmatpush1.bf16.msra.mxu0 %v8086
      %8171 = vmatprep.subr.bf16.mxu0 %v8089
      %8172 = vmatpush1.bf16.msra.mxu0 %v8088
      %8173 = vmatprep.subr.bf16.mxu0 %v8091
      %8174 = vmatpush1.bf16.msra.mxu0 %v8090
      %8175 = vmatprep.subr.bf16.mxu0 %v8093
      %8176 = vmatpush1.bf16.msra.mxu0 %v8092
      %8177 = vmatprep.subr.bf16.mxu0 %v8095
      %8178 = vmatpush1.bf16.msra.mxu0 %v8094
      %8179 = vmatprep.subr.bf16.mxu0 %v8097
      %8180 = vmatpush1.bf16.msra.mxu0 %v8096
      %8181 = vmatprep.subr.bf16.mxu0 %v8099
      %8182 = vmatpush1.bf16.msra.mxu0 %v8098
      %8183 = vmatprep.subr.bf16.mxu0 %v8101
      %8184 = vmatpush1.bf16.msra.mxu0 %v8100
      %8185 = vmatprep.subr.bf16.mxu0 %v8103
      %8186 = vmatpush1.bf16.msra.mxu0 %v8102
      %8187 = vmatprep.subr.bf16.mxu0 %v8105
      %8188 = vmatpush1.bf16.msra.mxu0 %v8104
      %8189 = vmatprep.mubr.bf16.mxu0 %v7911
      %8190 = vmatmul.mubr.bf16.gmra.mrb[0].mxu0 %v7910
      %v8191 = vpop.f32.mrb[0].mxu0
      %v8192 = vadd.f32 0.0, %v8191
      %v8193 = vpop.f32.mrb[0].mxu0
      %v8194 = vadd.f32 0.0, %v8193
      %v8195 = vpop.f32.mrb[0].mxu0
      %v8196 = vpop.f32.mrb[0].mxu0
      %8197 = vdwg.mxu0
      %8198 = vmatprep.subr.bf16.mxu0 %v8107
      %8199 = vmatpush1.bf16.msra.mxu0 %v8106
      %8200 = vmatprep.subr.bf16.mxu0 %v8109
      %8201 = vmatpush1.bf16.msra.mxu0 %v8108
      %8202 = vmatprep.subr.bf16.mxu0 %v8111
      %8203 = vmatpush1.bf16.msra.mxu0 %v8110
      %8204 = vmatprep.subr.bf16.mxu0 %v8113
      %8205 = vmatpush1.bf16.msra.mxu0 %v8112
      %8206 = vmatprep.subr.bf16.mxu0 0
      %8207 = vmatpush1.bf16.msra.mxu0 0
      %8208 = vmatprep.subr.bf16.mxu0 0
      %8209 = vmatpush1.bf16.msra.mxu0 0
      %8210 = vmatprep.subr.bf16.mxu0 0
      %8211 = vmatpush1.bf16.msra.mxu0 0
      %8212 = vmatprep.subr.bf16.mxu0 0
      %8213 = vmatpush1.bf16.msra.mxu0 0
      %8214 = vmatprep.subr.bf16.mxu0 0
      %8215 = vmatpush1.bf16.msra.mxu0 0
      %8216 = vmatprep.subr.bf16.mxu0 0
      %8217 = vmatpush1.bf16.msra.mxu0 0
      %8218 = vmatprep.subr.bf16.mxu0 0
      %8219 = vmatpush1.bf16.msra.mxu0 0
      %8220 = vmatprep.subr.bf16.mxu0 0
      %8221 = vmatpush1.bf16.msra.mxu0 0
      %8222 = vmatprep.subr.bf16.mxu0 0
      %8223 = vmatpush1.bf16.msra.mxu0 0
      %8224 = vmatprep.subr.bf16.mxu0 0
      %8225 = vmatpush1.bf16.msra.mxu0 0
      %8226 = vmatprep.subr.bf16.mxu0 0
      %8227 = vmatpush1.bf16.msra.mxu0 0
      %8228 = vmatprep.subr.bf16.mxu0 0
      %8229 = vmatpush1.bf16.msra.mxu0 0
      %8230 = vmatprep.mubr.bf16.mxu0 0
      %8231 = vmatmul.mubr.bf16.gmra.mrb[0].mxu0 %v8155
      %v8232 = vpop.f32.mrb[0].mxu0
      %v8233 = vadd.f32 %v8192, %v8232
      %v8234 = vpop.f32.mrb[0].mxu0
      %v8235 = vadd.f32 %v8194, %v8234
      %v8236 = vpop.f32.mrb[0].mxu0
      %v8237 = vpop.f32.mrb[0].mxu0
      %8238 = vdwg.mxu0
      %v8239 = vadd.f32 %v7825, %v8233
      %v8240 = vadd.f32 %v7826, %v8235
      %v8241 = vld [vmem:[%s8] sm:$0x3]
      %v8243 = vlaneseq
      %v8244 = vshrl.u32 %v8243, 7
      %v8245 = vsub.s32 0, %v8244
      %v8246 = vrot.slane %v8241, %v8245
      %v8247 = vlaneseq
      %v8248 = vshrl.u32 %v8247, 7
      %v8249 = vsub.s32 1, %v8248
      %v8250 = vrot.slane %v8241, %v8249
      %v8253 = vadd.f32 %v8239, %v8246
      %v8254 = vadd.f32 %v8240, %v8250
      %vm8255 = vcmp.ge.f32.partialorder %v8253, 0.0
      %vm8256 = vcmp.ge.f32.partialorder %v8254, 0.0
      %v8257 = vmul.f32 %v8253, 0.1
      %v8258 = vmul.f32 %v8254, 0.1
      %v8259 = vsel %vm8255, %v8253, %v8257
      %v8260 = vsel %vm8256, %v8254, %v8258
      %v8263 = vunpack.c.l.s4 1966171168
      %v8264 = vunpack.c.0.s8 %v8263
      %v8265 = vlaneseq
      %v8266 = vshrl.u32 %v8265, 7
      %v8267 = vsub.s32 %v8264, %v8266
      %v8268 = vrot.slane %v8259, %v8267
      %v8269 = vcombine.high %v8268, %v8268
      %v8271 = vunpack.c.l.s4 1966171168
      %v8272 = vunpack.c.0.s8 %v8271
      %v8273 = vlaneseq
      %v8274 = vshrl.u32 %v8273, 7
      %v8275 = vsub.s32 %v8272, %v8274
      %v8276 = vrot.slane %v8268, %v8275
      %v8278 = vunpack.c.l.s4 1966171168
      %v8279 = vunpack.c.0.s8 %v8278
      %v8280 = vlaneseq
      %v8281 = vshrl.u32 %v8280, 7
      %v8282 = vsub.s32 %v8279, %v8281
      %v8283 = vrot.slane %v8269, %v8282
      %v8284 = vcombine.high %v8276, %v8276
      %v8285 = vcombine.high %v8283, %v8283
      %vm8290 = vcmask 516096
      %8291 = vst.msk [vmem:[#allocation6] sm:$0x1] %vm8290, %v8276
      %8292 = vst.msk [vmem:[#allocation6 + $0x4] sm:$0x1] %vm8290, %v8283
      %8293 = vst.msk [vmem:[#allocation6 + $0x8] sm:$0x1] %vm8290, %v8284
      %8294 = vst.msk [vmem:[#allocation6 + $0xc] sm:$0x1] %vm8290, %v8285
      %v8295 = vlaneseq
      %v8296 = vshrl.u32 %v8295, 7
      %v8297 = vsub.s32 0, %v8296
      %v8298 = vrot.slane %v8276, %v8297
      %v8299 = vlaneseq
      %v8300 = vshrl.u32 %v8299, 7
      %v8301 = vsub.s32 0, %v8300
      %v8302 = vrot.slane %v8283, %v8301
      %v8303 = vlaneseq
      %v8304 = vshrl.u32 %v8303, 7
      %v8305 = vsub.s32 0, %v8304
      %v8306 = vrot.slane %v8284, %v8305
      %v8307 = vlaneseq
      %v8308 = vshrl.u32 %v8307, 7
      %v8309 = vsub.s32 0, %v8308
      %v8310 = vrot.slane %v8285, %v8309
      %8311 = vrot.lane.b32.xlu0 %v8298, 64
      %v8312 = vpop.permute.xlu0 %8311
      %8313 = vrot.lane.b32.xlu0 %v8302, 64
      %v8314 = vpop.permute.xlu0 %8313
      %8315 = vrot.lane.b32.xlu0 %v8306, 64
      %v8316 = vpop.permute.xlu0 %8315
      %8317 = vrot.lane.b32.xlu0 %v8310, 64
      %v8318 = vpop.permute.xlu0 %8317
      %8323 = vst.msk [vmem:[#allocation6 + $0x1] sm:$0x1] %vm8290, %v8312
      %8324 = vst.msk [vmem:[#allocation6 + $0x5] sm:$0x1] %vm8290, %v8314
      %8325 = vst.msk [vmem:[#allocation6 + $0x9] sm:$0x1] %vm8290, %v8316
      %8326 = vst.msk [vmem:[#allocation6 + $0xd] sm:$0x1] %vm8290, %v8318
      %v8329 = vunpack.c.l.s4 1966171168
      %v8330 = vunpack.c.0.s8 %v8329
      %v8331 = vlaneseq
      %v8332 = vshrl.u32 %v8331, 7
      %v8333 = vsub.s32 %v8330, %v8332
      %v8334 = vrot.slane %v8260, %v8333
      %v8335 = vcombine.high %v8334, %v8334
      %v8337 = vunpack.c.l.s4 1966171168
      %v8338 = vunpack.c.0.s8 %v8337
      %v8339 = vlaneseq
      %v8340 = vshrl.u32 %v8339, 7
      %v8341 = vsub.s32 %v8338, %v8340
      %v8342 = vrot.slane %v8334, %v8341
      %v8344 = vunpack.c.l.s4 1966171168
      %v8345 = vunpack.c.0.s8 %v8344
      %v8346 = vlaneseq
      %v8347 = vshrl.u32 %v8346, 7
      %v8348 = vsub.s32 %v8345, %v8347
      %v8349 = vrot.slane %v8335, %v8348
      %v8350 = vcombine.high %v8342, %v8342
      %v8351 = vcombine.high %v8349, %v8349
      %8356 = vst.msk [vmem:[#allocation6 + $0x2] sm:$0x1] %vm8290, %v8342
      %8357 = vst.msk [vmem:[#allocation6 + $0x6] sm:$0x1] %vm8290, %v8349
      %8358 = vst.msk [vmem:[#allocation6 + $0xa] sm:$0x1] %vm8290, %v8350
      %8359 = vst.msk [vmem:[#allocation6 + $0xe] sm:$0x1] %vm8290, %v8351
      %v8360 = vlaneseq
      %v8361 = vshrl.u32 %v8360, 7
      %v8362 = vsub.s32 0, %v8361
      %v8363 = vrot.slane %v8342, %v8362
      %v8364 = vlaneseq
      %v8365 = vshrl.u32 %v8364, 7
      %v8366 = vsub.s32 0, %v8365
      %v8367 = vrot.slane %v8349, %v8366
      %v8368 = vlaneseq
      %v8369 = vshrl.u32 %v8368, 7
      %v8370 = vsub.s32 0, %v8369
      %v8371 = vrot.slane %v8350, %v8370
      %v8372 = vlaneseq
      %v8373 = vshrl.u32 %v8372, 7
      %v8374 = vsub.s32 0, %v8373
      %v8375 = vrot.slane %v8351, %v8374
      %8376 = vrot.lane.b32.xlu0 %v8363, 64
      %v8377 = vpop.permute.xlu0 %8376
      %8378 = vrot.lane.b32.xlu0 %v8367, 64
      %v8379 = vpop.permute.xlu0 %8378
      %8380 = vrot.lane.b32.xlu0 %v8371, 64
      %v8381 = vpop.permute.xlu0 %8380
      %8382 = vrot.lane.b32.xlu0 %v8375, 64
      %v8383 = vpop.permute.xlu0 %8382
      %8388 = vst.msk [vmem:[#allocation6 + $0x3] sm:$0x1] %vm8290, %v8377
      %8389 = vst.msk [vmem:[#allocation6 + $0x7] sm:$0x1] %vm8290, %v8379
      %8390 = vst.msk [vmem:[#allocation6 + $0xb] sm:$0x1] %vm8290, %v8381
      %8391 = vst.msk [vmem:[#allocation6 + $0xf] sm:$0x1] %vm8290, %v8383
      %v8392 = vld [vmem:[#allocation6] sm:$0xf]
      %v8393 = vld [vmem:[#allocation6 + $0x4] sm:$0xf]
      %v8394 = vld [vmem:[#allocation6 + $0x8] sm:$0xf]
      %v8395 = vld [vmem:[#allocation6 + $0xc] sm:$0xf]
      %v8400 = vcombine.low %v8392, %v8393
      %v8401 = vcombine.low %v8394, %v8395
      %v8404 = vpack.c.bf16 %v8401, %v8400
      %v8405 = vld [vmem:[%s16] sm:$0xf]
      %v8406 = vld [vmem:[%s16 + $0x4] sm:$0xf]
      %v8407 = vld [vmem:[%s16 + $0x8] sm:$0xf]
      %v8408 = vld [vmem:[%s16 + $0xc] sm:$0xf]
      %v8409 = vld [vmem:[%s16 + $0x10] sm:$0xf]
      %v8410 = vld [vmem:[%s16 + $0x14] sm:$0xf]
      %v8411 = vld [vmem:[%s16 + $0x18] sm:$0xf]
      %v8412 = vld [vmem:[%s16 + $0x1c] sm:$0xf]
      %v8413 = vld [vmem:[%s17] sm:$0x1]
      %v8415 = vlaneseq
      %v8416 = vshrl.u32 %v8415, 7
      %v8417 = vsub.s32 0, %v8416
      %v8418 = vrot.slane %v8413, %v8417
      %v8428 = vunpack.c.l.b16 %v8405
      %v8429 = vunpack.c.l.b16 %v8406
      %v8430 = vunpack.c.l.b16 %v8407
      %v8431 = vunpack.c.l.b16 %v8408
      %v8432 = vunpack.c.l.b16 %v8409
      %v8433 = vunpack.c.l.b16 %v8410
      %v8434 = vunpack.c.l.b16 %v8411
      %v8435 = vunpack.c.l.b16 %v8412
      %v8436 = vpack.c.b16 %v8429, %v8428
      %v8437 = vpack.c.b16 %v8431, %v8430
      %v8438 = vpack.c.b16 %v8433, %v8432
      %v8439 = vpack.c.b16 %v8435, %v8434
      %v8445 = vsel %vm6189, %v8404, 0
      %8447 = vmatprep.subr.bf16.mxu0 0
      %8448 = vmatpush1.bf16.msra.mxu0 %v8436
      %8449 = vmatprep.subr.bf16.mxu0 0
      %8450 = vmatpush1.bf16.msra.mxu0 %v8437
      %8451 = vmatprep.subr.bf16.mxu0 0
      %8452 = vmatpush1.bf16.msra.mxu0 %v8438
      %8453 = vmatprep.subr.bf16.mxu0 0
      %8454 = vmatpush1.bf16.msra.mxu0 %v8439
      %8455 = vmatprep.subr.bf16.mxu0 0
      %8456 = vmatpush1.bf16.msra.mxu0 0
      %8457 = vmatprep.subr.bf16.mxu0 0
      %8458 = vmatpush1.bf16.msra.mxu0 0
      %8459 = vmatprep.subr.bf16.mxu0 0
      %8460 = vmatpush1.bf16.msra.mxu0 0
      %8461 = vmatprep.subr.bf16.mxu0 0
      %8462 = vmatpush1.bf16.msra.mxu0 0
      %8463 = vmatprep.subr.bf16.mxu0 0
      %8464 = vmatpush1.bf16.msra.mxu0 0
      %8465 = vmatprep.subr.bf16.mxu0 0
      %8466 = vmatpush1.bf16.msra.mxu0 0
      %8467 = vmatprep.subr.bf16.mxu0 0
      %8468 = vmatpush1.bf16.msra.mxu0 0
      %8469 = vmatprep.subr.bf16.mxu0 0
      %8470 = vmatpush1.bf16.msra.mxu0 0
      %8471 = vmatprep.subr.bf16.mxu0 0
      %8472 = vmatpush1.bf16.msra.mxu0 0
      %8473 = vmatprep.subr.bf16.mxu0 0
      %8474 = vmatpush1.bf16.msra.mxu0 0
      %8475 = vmatprep.subr.bf16.mxu0 0
      %8476 = vmatpush1.bf16.msra.mxu0 0
      %8477 = vmatprep.subr.bf16.mxu0 0
      %8478 = vmatpush1.bf16.msra.mxu0 0
      %8479 = vmatprep.mubr.bf16.mxu0 0
      %8480 = vmatmul.mubr.bf16.gmra.mrb[0].mxu0 %v8445
      %v8481 = vpop.f32.mrb[0].mxu0
      %v8482 = vadd.f32 %v8418, %v8481
      %v8483 = vpop.f32.mrb[0].mxu0
      %v8484 = vpop.f32.mrb[0].mxu0
      %v8485 = vadd.f32 %v8418, %v8484
      %v8486 = vpop.f32.mrb[0].mxu0
      %8487 = vdwg.mxu0
      %v8488 = vld [vmem:[%s18] sm:$0xf]
      %v8489 = vld [vmem:[%s18 + $0x4] sm:$0xf]
      %v8490 = vld [vmem:[%s18 + $0x8] sm:$0xf]
      %v8491 = vld [vmem:[%s18 + $0xc] sm:$0xf]
      %v8492 = vld [vmem:[%s18 + $0x10] sm:$0xf]
      %v8493 = vld [vmem:[%s18 + $0x14] sm:$0xf]
      %v8494 = vld [vmem:[%s18 + $0x18] sm:$0xf]
      %v8495 = vld [vmem:[%s18 + $0x1c] sm:$0xf]
      %v8496 = vld [vmem:[%s19] sm:$0x1]
      %v8498 = vlaneseq
      %v8499 = vshrl.u32 %v8498, 7
      %v8500 = vsub.s32 0, %v8499
      %v8501 = vrot.slane %v8496, %v8500
      %v8511 = vunpack.c.l.b16 %v8488
      %v8512 = vunpack.c.l.b16 %v8489
      %v8513 = vunpack.c.l.b16 %v8490
      %v8514 = vunpack.c.l.b16 %v8491
      %v8515 = vunpack.c.l.b16 %v8492
      %v8516 = vunpack.c.l.b16 %v8493
      %v8517 = vunpack.c.l.b16 %v8494
      %v8518 = vunpack.c.l.b16 %v8495
      %v8519 = vpack.c.b16 %v8512, %v8511
      %v8520 = vpack.c.b16 %v8514, %v8513
      %v8521 = vpack.c.b16 %v8516, %v8515
      %v8522 = vpack.c.b16 %v8518, %v8517
      %8527 = vmatprep.subr.bf16.mxu0 0
      %8528 = vmatpush1.bf16.msra.mxu0 %v8519
      %8529 = vmatprep.subr.bf16.mxu0 0
      %8530 = vmatpush1.bf16.msra.mxu0 %v8520
      %8531 = vmatprep.subr.bf16.mxu0 0
      %8532 = vmatpush1.bf16.msra.mxu0 %v8521
      %8533 = vmatprep.subr.bf16.mxu0 0
      %8534 = vmatpush1.bf16.msra.mxu0 %v8522
      %8535 = vmatprep.subr.bf16.mxu0 0
      %8536 = vmatpush1.bf16.msra.mxu0 0
      %8537 = vmatprep.subr.bf16.mxu0 0
      %8538 = vmatpush1.bf16.msra.mxu0 0
      %8539 = vmatprep.subr.bf16.mxu0 0
      %8540 = vmatpush1.bf16.msra.mxu0 0
      %8541 = vmatprep.subr.bf16.mxu0 0
      %8542 = vmatpush1.bf16.msra.mxu0 0
      %8543 = vmatprep.subr.bf16.mxu0 0
      %8544 = vmatpush1.bf16.msra.mxu0 0
      %8545 = vmatprep.subr.bf16.mxu0 0
      %8546 = vmatpush1.bf16.msra.mxu0 0
      %8547 = vmatprep.subr.bf16.mxu0 0
      %8548 = vmatpush1.bf16.msra.mxu0 0
      %8549 = vmatprep.subr.bf16.mxu0 0
      %8550 = vmatpush1.bf16.msra.mxu0 0
      %8551 = vmatprep.subr.bf16.mxu0 0
      %8552 = vmatpush1.bf16.msra.mxu0 0
      %8553 = vmatprep.subr.bf16.mxu0 0
      %8554 = vmatpush1.bf16.msra.mxu0 0
      %8555 = vmatprep.subr.bf16.mxu0 0
      %8556 = vmatpush1.bf16.msra.mxu0 0
      %8557 = vmatprep.subr.bf16.mxu0 0
      %8558 = vmatpush1.bf16.msra.mxu0 0
      %8559 = vmatprep.mubr.bf16.mxu0 0
      %8560 = vmatmul.mubr.bf16.gmra.mrb[0].mxu0 %v8445
      %v8561 = vpop.f32.mrb[0].mxu0
      %v8562 = vadd.f32 %v8501, %v8561
      %v8563 = vpop.f32.mrb[0].mxu0
      %v8564 = vpop.f32.mrb[0].mxu0
      %v8565 = vadd.f32 %v8501, %v8564
      %v8566 = vpop.f32.mrb[0].mxu0
      %8567 = vdwg.mxu0
      %v8568 = vld [vmem:[%s20] sm:$0xf]
      %v8569 = vld [vmem:[%s20 + $0x4] sm:$0xf]
      %v8570 = vld [vmem:[%s20 + $0x8] sm:$0xf]
      %v8571 = vld [vmem:[%s20 + $0xc] sm:$0xf]
      %v8572 = vld [vmem:[%s20 + $0x10] sm:$0xf]
      %v8573 = vld [vmem:[%s20 + $0x14] sm:$0xf]
      %v8574 = vld [vmem:[%s20 + $0x18] sm:$0xf]
      %v8575 = vld [vmem:[%s20 + $0x1c] sm:$0xf]
      %v8576 = vld [vmem:[%s21] sm:$0x1]
      %v8578 = vlaneseq
      %v8579 = vshrl.u32 %v8578, 7
      %v8580 = vsub.s32 0, %v8579
      %v8581 = vrot.slane %v8576, %v8580
      %v8591 = vunpack.c.l.b16 %v8568
      %v8592 = vunpack.c.l.b16 %v8569
      %v8593 = vunpack.c.l.b16 %v8570
      %v8594 = vunpack.c.l.b16 %v8571
      %v8595 = vunpack.c.l.b16 %v8572
      %v8596 = vunpack.c.l.b16 %v8573
      %v8597 = vunpack.c.l.b16 %v8574
      %v8598 = vunpack.c.l.b16 %v8575
      %v8599 = vpack.c.b16 %v8592, %v8591
      %v8600 = vpack.c.b16 %v8594, %v8593
      %v8601 = vpack.c.b16 %v8596, %v8595
      %v8602 = vpack.c.b16 %v8598, %v8597
      %8607 = vmatprep.subr.bf16.mxu0 0
      %8608 = vmatpush1.bf16.msra.mxu0 %v8599
      %8609 = vmatprep.subr.bf16.mxu0 0
      %8610 = vmatpush1.bf16.msra.mxu0 %v8600
      %8611 = vmatprep.subr.bf16.mxu0 0
      %8612 = vmatpush1.bf16.msra.mxu0 %v8601
      %8613 = vmatprep.subr.bf16.mxu0 0
      %8614 = vmatpush1.bf16.msra.mxu0 %v8602
      %8615 = vmatprep.subr.bf16.mxu0 0
      %8616 = vmatpush1.bf16.msra.mxu0 0
      %8617 = vmatprep.subr.bf16.mxu0 0
      %8618 = vmatpush1.bf16.msra.mxu0 0
      %8619 = vmatprep.subr.bf16.mxu0 0
      %8620 = vmatpush1.bf16.msra.mxu0 0
      %8621 = vmatprep.subr.bf16.mxu0 0
      %8622 = vmatpush1.bf16.msra.mxu0 0
      %8623 = vmatprep.subr.bf16.mxu0 0
      %8624 = vmatpush1.bf16.msra.mxu0 0
      %8625 = vmatprep.subr.bf16.mxu0 0
      %8626 = vmatpush1.bf16.msra.mxu0 0
      %8627 = vmatprep.subr.bf16.mxu0 0
      %8628 = vmatpush1.bf16.msra.mxu0 0
      %8629 = vmatprep.subr.bf16.mxu0 0
      %8630 = vmatpush1.bf16.msra.mxu0 0
      %8631 = vmatprep.subr.bf16.mxu0 0
      %8632 = vmatpush1.bf16.msra.mxu0 0
      %8633 = vmatprep.subr.bf16.mxu0 0
      %8634 = vmatpush1.bf16.msra.mxu0 0
      %8635 = vmatprep.subr.bf16.mxu0 0
      %8636 = vmatpush1.bf16.msra.mxu0 0
      %8637 = vmatprep.subr.bf16.mxu0 0
      %8638 = vmatpush1.bf16.msra.mxu0 0
      %8639 = vmatprep.mubr.bf16.mxu0 0
      %8640 = vmatmul.mubr.bf16.gmra.mrb[0].mxu0 %v8445
      %v8641 = vpop.f32.mrb[0].mxu0
      %v8642 = vadd.f32 %v8581, %v8641
      %v8643 = vpop.f32.mrb[0].mxu0
      %v8644 = vpop.f32.mrb[0].mxu0
      %v8645 = vadd.f32 %v8581, %v8644
      %v8646 = vpop.f32.mrb[0].mxu0
      %8647 = vdwg.mxu0
      %v8648 = vpack.c.bf16 %v8485, %v8482
      %v8649 = vpack.c.bf16 %v8565, %v8562
      %v8651 = vsel %vm2105, %v8648, 0
      %v8654 = vsel %vm2105, %v8649, 0
      %8656 = vmatprep.subr.bf16.mxu0 0
      %8657 = vmatpush1.bf16.xpose.msra.mxu0 %v8654
      %8658 = vmatprep.subr.bf16.mxu0 0
      %8659 = vmatpush1.bf16.xpose.msra.mxu0 0
      %8660 = vmatprep.subr.bf16.mxu0 0
      %8661 = vmatpush1.bf16.xpose.msra.mxu0 0
      %8662 = vmatprep.subr.bf16.mxu0 0
      %8663 = vmatpush1.bf16.xpose.msra.mxu0 0
      %8664 = vmatprep.subr.bf16.mxu0 0
      %8665 = vmatpush1.bf16.xpose.msra.mxu0 0
      %8666 = vmatprep.subr.bf16.mxu0 0
      %8667 = vmatpush1.bf16.xpose.msra.mxu0 0
      %8668 = vmatprep.subr.bf16.mxu0 0
      %8669 = vmatpush1.bf16.xpose.msra.mxu0 0
      %8670 = vmatprep.subr.bf16.mxu0 0
      %8671 = vmatpush1.bf16.xpose.msra.mxu0 0
      %8672 = vmatprep.subr.bf16.mxu0 0
      %8673 = vmatpush1.bf16.xpose.msra.mxu0 0
      %8674 = vmatprep.subr.bf16.mxu0 0
      %8675 = vmatpush1.bf16.xpose.msra.mxu0 0
      %8676 = vmatprep.subr.bf16.mxu0 0
      %8677 = vmatpush1.bf16.xpose.msra.mxu0 0
      %8678 = vmatprep.subr.bf16.mxu0 0
      %8679 = vmatpush1.bf16.xpose.msra.mxu0 0
      %8680 = vmatprep.subr.bf16.mxu0 0
      %8681 = vmatpush1.bf16.xpose.msra.mxu0 0
      %8682 = vmatprep.subr.bf16.mxu0 0
      %8683 = vmatpush1.bf16.xpose.msra.mxu0 0
      %8684 = vmatprep.subr.bf16.mxu0 0
      %8685 = vmatpush1.bf16.xpose.msra.mxu0 0
      %8686 = vmatprep.subr.bf16.mxu0 0
      %8687 = vmatpush1.bf16.xpose.msra.mxu0 0
      %8688 = vmatprep.mubr.bf16.mxu0 0
      %8689 = vmatmul.mubr.bf16.gmra.mrb[0].mxu0 %v8651
      %v8690 = vpop.f32.mrb[0].mxu0
      %v8691 = vadd.f32 0.0, %v8690
      %v8692 = vpop.f32.mrb[0].mxu0
      %v8693 = vpop.f32.mrb[0].mxu0
      %v8694 = vadd.f32 0.0, %v8693
      %v8695 = vpop.f32.mrb[0].mxu0
      %8696 = vdwg.mxu0
      %v8697 = vsel %vm2048, %v8691, -inf
      %8698 = vmax.xlane.f32.xlu0 %v8697
      %v8699 = vpop.xlane.xlu0 %8698
      %v8700 = vsel %vm2048, %v8694, -inf
      %8701 = vmax.xlane.f32.xlu0 %v8700
      %v8702 = vpop.xlane.xlu0 %8701
      %v8703 = vsub.f32 %v8691, %v8699
      %v8704 = vsub.f32 %v8694, %v8702
      %v8705 = vmul.f32 %v8703, 1.442695
      %v8706 = vpow.pop %v8705
      %v8707 = vmul.f32 %v8704, 1.442695
      %v8708 = vpow.pop %v8707
      %v8709 = vsel %vm2048, %v8706, 0.0
      %8710 = vadd.xlane.f32.xlu0 %v8709
      %v8711 = vpop.xlane.xlu0 %8710
      %v8712 = vsel %vm2048, %v8708, 0.0
      %8713 = vadd.xlane.f32.xlu0 %v8712
      %v8714 = vpop.xlane.xlu0 %8713
      %v8715 = vrcp.pop %v8711
      %v8716 = vrcp.pop %v8714
      %v8717 = vmul.f32 %v8706, %v8715
      %v8718 = vmul.f32 %v8708, %v8716
      %v8719 = vpack.c.bf16 %v8718, %v8717
      %v8720 = vpack.c.bf16 %v8645, %v8642
      %v8722 = vsel %vm2048, %v8719, 0
      %8724 = vmatprep.subr.bf16.mxu0 0
      %8725 = vmatpush1.bf16.msra.mxu0 %v8720
      %8726 = vmatprep.subr.bf16.mxu0 0
      %8727 = vmatpush1.bf16.msra.mxu0 0
      %8728 = vmatprep.subr.bf16.mxu0 0
      %8729 = vmatpush1.bf16.msra.mxu0 0
      %8730 = vmatprep.subr.bf16.mxu0 0
      %8731 = vmatpush1.bf16.msra.mxu0 0
      %8732 = vmatprep.subr.bf16.mxu0 0
      %8733 = vmatpush1.bf16.msra.mxu0 0
      %8734 = vmatprep.subr.bf16.mxu0 0
      %8735 = vmatpush1.bf16.msra.mxu0 0
      %8736 = vmatprep.subr.bf16.mxu0 0
      %8737 = vmatpush1.bf16.msra.mxu0 0
      %8738 = vmatprep.subr.bf16.mxu0 0
      %8739 = vmatpush1.bf16.msra.mxu0 0
      %8740 = vmatprep.subr.bf16.mxu0 0
      %8741 = vmatpush1.bf16.msra.mxu0 0
      %8742 = vmatprep.subr.bf16.mxu0 0
      %8743 = vmatpush1.bf16.msra.mxu0 0
      %8744 = vmatprep.subr.bf16.mxu0 0
      %8745 = vmatpush1.bf16.msra.mxu0 0
      %8746 = vmatprep.subr.bf16.mxu0 0
      %8747 = vmatpush1.bf16.msra.mxu0 0
      %8748 = vmatprep.subr.bf16.mxu0 0
      %8749 = vmatpush1.bf16.msra.mxu0 0
      %8750 = vmatprep.subr.bf16.mxu0 0
      %8751 = vmatpush1.bf16.msra.mxu0 0
      %8752 = vmatprep.subr.bf16.mxu0 0
      %8753 = vmatpush1.bf16.msra.mxu0 0
      %8754 = vmatprep.subr.bf16.mxu0 0
      %8755 = vmatpush1.bf16.msra.mxu0 0
      %8756 = vmatprep.mubr.bf16.mxu0 0
      %8757 = vmatmul.mubr.bf16.gmra.mrb[0].mxu0 %v8722
      %v8758 = vpop.f32.mrb[0].mxu0
      %v8759 = vadd.f32 0.0, %v8758
      %v8760 = vpop.f32.mrb[0].mxu0
      %v8761 = vpop.f32.mrb[0].mxu0
      %v8762 = vadd.f32 0.0, %v8761
      %v8763 = vpop.f32.mrb[0].mxu0
      %8764 = vdwg.mxu0
      %v8765 = vld [vmem:[#allocation8] sm:$0x1]
      %s8766 = vtos %v8765
      %v8767 = vstv %s8766
      %v8768 = vmul.f32 %v8767, %v8759
      %v8769 = vmul.f32 %v8767, %v8762
      %v8770 = vadd.f32 %v8768, %v8400
      %v8771 = vadd.f32 %v8769, %v8401
      %v8772 = vld [vmem:[%s23] sm:$0xff]
      %v8773 = vld [vmem:[%s23 + $0x8] sm:$0xff]
      %v8774 = vmul.f32 %v8770, %v8772
      %v8775 = vmul.f32 %v8771, %v8773
      %v8776 = vsel %vm6189, %v8774, 0.0
      %8777 = vadd.xlane.f32.xlu0 %v8776
      %v8778 = vpop.xlane.xlu0 %8777
      %v8779 = vsel %vm6189, %v8775, 0.0
      %8780 = vadd.xlane.f32.xlu0 %v8779
      %v8781 = vpop.xlane.xlu0 %8780
      %v8782 = vadd.f32 %v8778, %v8781
      %v8783 = vrot.slane %v8782, 4
      %v8784 = vadd.f32 %v8782, %v8783
      %v8785 = vrot.slane %v8784, 2
      %v8786 = vadd.f32 %v8784, %v8785
      %v8787 = vrot.slane %v8786, 1
      %v8788 = vadd.f32 %v8786, %v8787
      %v8789 = vld [vmem:[#allocation9] sm:$0x1]
      %v8790 = vadd.f32 %v8788, %v8789
      %v8792 = vlaneseq
      %v8793 = vshrl.u32 %v8792, 7
      %v8794 = vsub.s32 0, %v8793
      %v8795 = vrot.slane %v8790, %v8794
      %8796 = vset.pattern.permute.xlu0 0
      %8797 = vperm.xlu0 %8796, %v8795
      %v8798 = vpop.permute.xlu0 %8797
      %v8800 = vadd.f32 %v8798, 0.0
      %8801 = vst [vmem:[%s768] sm:$0xff] %v8800
      %p8802 = scmp.lt.s32.totalorder %s42, 1
      %s8803 = scalar_select %p8802, %s42, 1
      %s8804 = smul.addr %s8803, 8
      %s8805 = scalar_lea.vmem %s25, %s8804
      // Predicated region
      $region121: #{forward.1} parent=119 // pred_check
        %p8806 = pneg %p590
      $region122: #{forward.1} parent=119 // pred_check_branch
        %8808 = sbr.rel (%p8806) target = $region124
      $region123: #{forward.1} parent=119 // pred_region
        _
      $region124: #{forward.1} parent=119 // pred_fallthru
        _
    $region120: #{forward.1} parent=5 // pred_fallthru
      _
    %p8809 = scmp.le.s32.totalorder 2, %s37
    // Predicated region
    $region125: #{forward.1} parent=5 // pred_check
      %p8810 = pneg %p8809
    $region126: #{forward.1} parent=5 // pred_check_branch
      %8812 = sbr.rel (%p8810) target = $region128
    $region127: #{forward.1} parent=5 // pred_region
      %s8813 = ssub.s32 %s37, 2
      // Predicated region
      $region129: #{forward.1} parent=127 // pred_check
        %p8814 = pneg %p596
      $region130: #{forward.1} parent=127 // pred_check_branch
        %8816 = sbr.rel (%p8814) target = $region132
      $region131: #{forward.1} parent=127 // pred_region
        %p8817 = scmp.lt.s32.totalorder %s43, 1
        %s8818 = scalar_select %p8817, %s43, 1
        %s8819 = smul.addr %s8818, 8
        %s8820 = scalar_lea.vmem %s25, %s8819
      $region132: #{forward.1} parent=127 // pred_fallthru
        _
    $region128: #{forward.1} parent=5 // pred_fallthru
      _
  $region6: #{forward.1} parent=0 // loop_footer
    %s41 = sadd.s32 1, %s37
  $region7: #{forward.1} parent=0 // loop_footer_branch
    %36 = sbr.rel target = $region3
  $region8: #{forward.1} parent=0 // loop_exit
    _

</llo_original>
